<compile_context>
chip_gen: v7x
topology: tpu7x:2x2x1
jax: 0.10.0
libtpu: 0.0.40
codegen_flags: <defaults>
</compile_context>

<pallas_src>
import functools

import jax
import jax.numpy as jnp
from jax.experimental import pallas as pl
from jax.experimental.pallas import tpu as pltpu


ENC_CHANNELS = (32, 64, 128, 256)
_VMEM_LIMIT_BYTES = 64 * 1024 * 1024   # well above the 16/32 MiB scoped defaults


# ---------------------------------------------------------------------------
# helpers
# ---------------------------------------------------------------------------
def _round_up(x, m):
    return ((x + m - 1) // m) * m


def _tile(dim, preferred, unit):
    """Largest multiple of `unit` that is <= preferred and divides `dim`.
    `dim` must already be a multiple of `unit` (callers pad)."""
    assert dim % unit == 0, (dim, unit)
    t = max(unit, (min(preferred, dim) // unit) * unit)
    while dim % t != 0:
        t -= unit
    return t


# ---------------------------------------------------------------------------
# Pallas kernel 1: 3x3 / stride-2 / pad-1 conv with in-kernel 9-tap accumulation
#
# The wrapper splits the zero-padded NHWC input into its 4 stride-2 phases
# (same total bytes as the input).  Inside the kernel every tap (ki, kj) is a
# unit-stride static slice of one phase, matmul'd against the (Cin, Cout)
# weight slice and accumulated in f32.  Grid is over the batch only (whole
# image per step — plenty for the sizes this module sees).
# TODO(synk): add an output-row tile axis for very large H*W so the per-step
# phase blocks stay bounded on v7x's 64 MiB VMEM.
# ---------------------------------------------------------------------------
def _conv3x3_s2_kernel(p00_ref, p01_ref, p10_ref, p11_ref, w_ref, b_ref, o_ref,
                       *, ho, wo, apply_relu):
    phases = ((p00_ref, p01_ref), (p10_ref, p11_ref))
    cin = w_ref.shape[1]
    cout = w_ref.shape[2]

    loaded = {}
    acc = jnp.zeros((ho * wo, cout), jnp.float32)
    for ki in range(3):
        for kj in range(3):
            pi, pj = ki % 2, kj % 2
            di, dj = ki // 2, kj // 2
            if (pi, pj) not in loaded:
                loaded[(pi, pj)] = phases[pi][pj][0]        # (ho+1, wo+1, cin)
            tap = loaded[(pi, pj)][di:di + ho, dj:dj + wo, :]   # (ho, wo, cin)
            acc = acc + jnp.dot(tap.reshape(ho * wo, cin),
                                w_ref[ki * 3 + kj],
                                preferred_element_type=jnp.float32)
    res = acc + b_ref[...]          # f32 epilogue
    if apply_relu:
        res = jnp.maximum(res, 0.0)
    o_ref[0] = res.astype(o_ref.dtype)


def conv3x3_s2_p1(x_nhwc, w9, b, *, apply_relu=True):
    """x_nhwc: (N,H,W,Cin) bf16; w9: (9,Cin,Cout) bf16 (rows in (kh,kw) order,
    pre-transposed at init); b: (1,Cout) f32.  Returns (N,Ho,Wo,Cout) bf16."""
    n, h, w, cin = x_nhwc.shape
    assert w9.shape[0] == 9 and w9.shape[1] == cin, (x_nhwc.shape, w9.shape)
    cout = w9.shape[2]
    ho = (h - 1) // 2 + 1
    wo = (w - 1) // 2 + 1

    # Pad to an even (2*ho+2, 2*wo+2) canvas (pad-1 low; extra high rows/cols
    # are zeros that valid output positions never read).
    hp, wp = 2 * ho + 2, 2 * wo + 2
    xp = jnp.pad(x_nhwc, ((0, 0), (1, hp - h - 1), (1, wp - w - 1), (0, 0)))
    # 4 stride-2 phases — total bytes == padded input bytes (no im2col blow-up).
    phases = tuple(xp[:, pi::2, pj::2, :] for pi in range(2) for pj in range(2))
    ph_block = (1, ho + 1, wo + 1, cin)

    flops = 2 * n * ho * wo * 9 * cin * cout
    bytes_accessed = (4 * n * (ho + 1) * (wo + 1) * cin * 2      # phase reads (bf16)
                      + 9 * cin * cout * 2 + cout * 4            # weights + bias
                      + n * ho * wo * cout * 2)                  # output (bf16)

    kern = functools.partial(_conv3x3_s2_kernel, ho=ho, wo=wo,
                             apply_relu=apply_relu)
    y = pl.pallas_call(
        kern,
        out_shape=jax.ShapeDtypeStruct((n, ho * wo, cout), jnp.bfloat16),
        grid=(n,),
        in_specs=[pl.BlockSpec(ph_block, lambda i: (i, 0, 0, 0))] * 4 + [
            pl.BlockSpec((9, cin, cout), lambda i: (0, 0, 0)),
            pl.BlockSpec((1, cout), lambda i: (0, 0)),
        ],
        out_specs=pl.BlockSpec((1, ho * wo, cout), lambda i: (i, 0, 0)),
        compiler_params=pltpu.CompilerParams(
            dimension_semantics=("parallel",),
            vmem_limit_bytes=_VMEM_LIMIT_BYTES),
        cost_estimate=pl.CostEstimate(flops=flops, transcendentals=0,
                                      bytes_accessed=bytes_accessed),
    )(*phases, w9, b)
    return y.reshape(n, ho, wo, cout)


# ---------------------------------------------------------------------------
# Pallas kernel 2: fused  out = relu(x @ w1 + b1) @ w2 + b2
#   grid = (M tiles [parallel], K1 tiles [arbitrary]); fc1_w streams over the
#   K axis while the (tm, 1024) hidden stays resident in VMEM scratch; fc2 +
#   biases run in the epilogue on the last K step (hidden never touches HBM).
# ---------------------------------------------------------------------------
def _fused_mlp_kernel(x_ref, w1_ref, b1_ref, w2_ref, b2_ref, o_ref, h_ref):
    k = pl.program_id(1)

    @pl.when(k == 0)
    def _():
        h_ref[...] = jnp.zeros_like(h_ref)

    h_ref[...] += jnp.dot(x_ref[...], w1_ref[...],
                          preferred_element_type=jnp.float32)

    @pl.when(k == pl.num_programs(1) - 1)
    def _():
        h = jnp.maximum(h_ref[...] + b1_ref[...], 0.0).astype(w2_ref.dtype)
        o_ref[...] = (jnp.dot(h, w2_ref[...],
                              preferred_element_type=jnp.float32)
                      + b2_ref[...]).astype(o_ref.dtype)


def pallas_fused_mlp(x, w1, b1, w2, b2):
    """x:(M,K1) bf16, w1:(K1,H) bf16, b1:(1,H) f32, w2:(H,N2) bf16, b2:(1,N2) f32."""
    M, K1 = x.shape
    K1b, H = w1.shape
    H2, N2 = w2.shape
    assert K1 == K1b and H == H2, (x.shape, w1.shape, w2.shape)
    assert K1 % 128 == 0 and H % 128 == 0

    # Pad M up to a sublane multiple so tiles never fall back to the full dim.
    m_pad = _round_up(M, 8)
    if m_pad != M:
        x = jnp.pad(x, ((0, m_pad - M), (0, 0)))
    tm = _tile(m_pad, 512, 8)
    tk = _tile(K1, 512, 128)
    grid = (m_pad // tm, K1 // tk)

    w1_spec = pl.BlockSpec((tk, H), lambda i, k: (k, 0))
    if grid[1] >= 3:   # 3-deep buffering on the streamed fc1 weight
        w1_spec = pl.BlockSpec((tk, H), lambda i, k: (k, 0),
                               pipeline_mode=pl.Buffered(3))

    flops = 2 * m_pad * (K1 * H + H * N2)
    bytes_accessed = (m_pad * K1 * 2 + K1 * H * 2 + H * 4
                      + H * N2 * 2 + N2 * 4 + m_pad * N2 * 4)

    out = pl.pallas_call(
        _fused_mlp_kernel,
        out_shape=jax.ShapeDtypeStruct((m_pad, N2), jnp.float32),
        grid=grid,
        in_specs=[
            pl.BlockSpec((tm, tk), lambda i, k: (i, k)),
            w1_spec,
            pl.BlockSpec((1, H), lambda i, k: (0, 0)),
            pl.BlockSpec((H, N2), lambda i, k: (0, 0)),
            pl.BlockSpec((1, N2), lambda i, k: (0, 0)),
        ],
        out_specs=pl.BlockSpec((tm, N2), lambda i, k: (i, 0)),
        scratch_shapes=[pltpu.VMEM((tm, H), jnp.float32)],
        compiler_params=pltpu.CompilerParams(
            dimension_semantics=("parallel", "arbitrary"),
            vmem_limit_bytes=_VMEM_LIMIT_BYTES),
        cost_estimate=pl.CostEstimate(flops=flops, transcendentals=0,
                                      bytes_accessed=bytes_accessed),
    )(x, w1, b1, w2, b2)
    return out[:M]


# ---------------------------------------------------------------------------
# Parameter construction (deterministic, PyTorch-style uniform init).
# All layout work (HWIO transpose, flatten permutation, bias reshape, bf16
# cast) is done once here, not per forward.
# ---------------------------------------------------------------------------
def _uniform(key, shape, fan_in):
    bound = 1.0 / jnp.sqrt(jnp.float32(fan_in))
    return jax.random.uniform(key, shape, jnp.float32, -bound, bound)


def init_encoder_params(key, latent_dim, input_channels, img_size):
    h, w = img_size
    h4, w4 = h // 16, w // 16
    flatten = 256 * h4 * w4
    cins = (input_channels,) + ENC_CHANNELS[:-1]
    keys = jax.random.split(key, 12)
    params = {}
    k = 0
    for li in range(4):
        cin, cout = cins[li], ENC_CHANNELS[li]
        fan_in = cin * 9
        w_oihw = _uniform(keys[k], (cout, cin, 3, 3), fan_in); k += 1
        b_vec = _uniform(keys[k], (cout,), fan_in); k += 1
        # (kh, kw, cin, cout) -> (9, cin, cout) rows in (kh, kw) order.
        w9 = jnp.transpose(w_oihw, (2, 3, 1, 0)).reshape(9, cin, cout)
        if cin < 8:   # pad the contracting dim of the first conv to a sublane
            w9 = jnp.pad(w9, ((0, 0), (0, 8 - cin), (0, 0)))
        params[f"conv{li+1}_w"] = w9.astype(jnp.bfloat16)
        params[f"conv{li+1}_b"] = b_vec.reshape(1, cout).astype(jnp.float32)

    # fc1: PyTorch flattens NCHW ((C,H,W) order); our activation is flattened
    # NHWC, so permute fc1_w's rows once here instead of transposing conv4's
    # output every forward.
    w_fc1 = _uniform(keys[k], (flatten, 1024), flatten); k += 1
    w_fc1 = (w_fc1.reshape(256, h4, w4, 1024)
                  .transpose(1, 2, 0, 3)
                  .reshape(flatten, 1024))
    params["fc1_w"] = w_fc1.astype(jnp.bfloat16)
    params["fc1_b"] = _uniform(keys[k], (1024,), flatten).reshape(1, 1024); k += 1

    w_fc2 = _uniform(keys[k], (1024, latent_dim), 1024); k += 1
    params["fc2_w"] = w_fc2.astype(jnp.bfloat16)
    params["fc2_b"] = _uniform(keys[k], (latent_dim,), 1024).reshape(1, latent_dim); k += 1
    return params


# ---------------------------------------------------------------------------
# Encoder forward
# ---------------------------------------------------------------------------
def encoder_forward(params, diff_mask_nchw):
    # Input arrives NCHW (PyTorch); convs run in NHWC with bf16 activations
    # between layers (all epilogues in f32 inside the kernels).
    x = jnp.transpose(diff_mask_nchw, (0, 2, 3, 1)).astype(jnp.bfloat16)
    cin_pad = params["conv1_w"].shape[1]
    if cin_pad != x.shape[-1]:
        x = jnp.pad(x, ((0, 0),) * 3 + ((0, cin_pad - x.shape[-1]),))
    for li in range(4):
        x = conv3x3_s2_p1(x, params[f"conv{li+1}_w"], params[f"conv{li+1}_b"],
                          apply_relu=True)
    n = x.shape[0]
    x_flat = x.reshape(n, -1)        # NHWC flatten; fc1_w rows permuted at init
    return pallas_fused_mlp(x_flat, params["fc1_w"], params["fc1_b"],
                            params["fc2_w"], params["fc2_b"])


# ---------------------------------------------------------------------------
# Pure-JAX (XLA) reference for correctness checking — same bf16 weights cast
# to f32, f32 activations throughout.
# ---------------------------------------------------------------------------
def reference_forward(params, diff_mask_nchw):
    x = jnp.transpose(diff_mask_nchw, (0, 2, 3, 1)).astype(jnp.float32)
    cin_pad = params["conv1_w"].shape[1]
    if cin_pad != x.shape[-1]:
        x = jnp.pad(x, ((0, 0),) * 3 + ((0, cin_pad - x.shape[-1]),))
    for li in range(4):
        w9 = params[f"conv{li+1}_w"].astype(jnp.float32)
        b = params[f"conv{li+1}_b"].astype(jnp.float32)
        cin, cout = w9.shape[1], w9.shape[2]
        w_hwio = w9.reshape(3, 3, cin, cout)
        y = jax.lax.conv_general_dilated(
            x, w_hwio, window_strides=(2, 2), padding=((1, 1), (1, 1)),
            dimension_numbers=("NHWC", "HWIO", "NHWC"))
        x = jax.nn.relu(y + b.reshape(1, 1, 1, cout))
    xf = x.reshape(x.shape[0], -1)
    h = jax.nn.relu(xf @ params["fc1_w"].astype(jnp.float32) + params["fc1_b"])
    return h @ params["fc2_w"].astype(jnp.float32) + params["fc2_b"]


if __name__ == "__main__":
    latent_dim = 32
    input_channels = 4
    img_size = (16, 16)
    batch = 2

    key = jax.random.PRNGKey(0)
    pkey, xkey = jax.random.split(key)
    params = init_encoder_params(pkey, latent_dim, input_channels, img_size)

    x = jax.random.normal(xkey, (batch, input_channels, *img_size), jnp.float32)

    fwd = jax.jit(encoder_forward)
    out = jax.block_until_ready(fwd(params, x))
    assert out.shape == (batch, latent_dim), out.shape
    assert out.dtype == jnp.float32

    # Correctness vs. an XLA reference (bf16 matmul operands in the kernels
    # -> relaxed tolerance).
    ref = reference_forward(params, x)
    assert jnp.allclose(out, ref, rtol=5e-2, atol=2e-2), \
        float(jnp.max(jnp.abs(out - ref)))
    print("KERNEL_OK")
</pallas_src>

<mosaic_0001>
module attributes {stable_mosaic.version = 11 : i64} {
  func.func @_conv3x3_s2_kernel(%arg0: i32, %arg1: memref<1x9x9x8xbf16, #tpu.memory_space<vmem>>, %arg2: memref<1x9x9x8xbf16, #tpu.memory_space<vmem>>, %arg3: memref<1x9x9x8xbf16, #tpu.memory_space<vmem>>, %arg4: memref<1x9x9x8xbf16, #tpu.memory_space<vmem>>, %arg5: memref<9x8x32xbf16, #tpu.memory_space<vmem>>, %arg6: memref<1x32xf32, #tpu.memory_space<vmem>>, %arg7: memref<1x64x32xbf16, #tpu.memory_space<vmem>>) attributes {dimension_semantics = [#tpu.dimension_semantics<parallel>], iteration_bounds = array<i64: 2>, scalar_prefetch = 0 : i64, scratch_operands = 0 : i64, tpu.core_type = #tpu.core_type<tc>, window_params = [{transform_indices = @transform_0, window_bounds = array<i64: 1, 9, 9, 8>}, {transform_indices = @transform_1, window_bounds = array<i64: 1, 9, 9, 8>}, {transform_indices = @transform_2, window_bounds = array<i64: 1, 9, 9, 8>}, {transform_indices = @transform_3, window_bounds = array<i64: 1, 9, 9, 8>}, {pipeline_mode = #tpu.pipeline_mode<synchronous>, transform_indices = @transform_4, window_bounds = array<i64: 9, 8, 32>}, {pipeline_mode = #tpu.pipeline_mode<synchronous>, transform_indices = @transform_5, window_bounds = array<i64: 1, 32>}, {transform_indices = @transform_6, window_bounds = array<i64: 1, 64, 32>}]} {
    %cst = arith.constant 0.000000e+00 : f32
    %0 = vector.broadcast %cst : f32 to vector<64x32xf32>
    %c0 = arith.constant 0 : index
    %c0_0 = arith.constant 0 : index
    %c0_1 = arith.constant 0 : index
    %c0_2 = arith.constant 0 : index
    %1 = vector.load %arg1[%c0, %c0_0, %c0_1, %c0_2] : memref<1x9x9x8xbf16, #tpu.memory_space<vmem>>, vector<1x9x9x8xbf16>
    %2 = vector.shape_cast %1 : vector<1x9x9x8xbf16> to vector<9x9x8xbf16>
    %3 = vector.extract_strided_slice %2 {offsets = [0, 0, 0], sizes = [8, 8, 8], strides = [1, 1, 1]} : vector<9x9x8xbf16> to vector<8x8x8xbf16>
    %4 = vector.shape_cast %3 : vector<8x8x8xbf16> to vector<64x8xbf16>
    %c0_3 = arith.constant 0 : index
    %c0_4 = arith.constant 0 : index
    %c0_5 = arith.constant 0 : index
    %5 = vector.load %arg5[%c0_3, %c0_4, %c0_5] : memref<9x8x32xbf16, #tpu.memory_space<vmem>>, vector<1x8x32xbf16>
    %6 = vector.shape_cast %5 : vector<1x8x32xbf16> to vector<8x32xbf16>
    %cst_6 = arith.constant dense<0.000000e+00> : vector<64x32xf32>
    %7 = tpu.matmul %4, %6, %cst_6 {dimension_numbers = #tpu.dot_dimension_numbers<[1], [0], [0], [1], [0, 0, 1, 1], [], []>} : vector<64x8xbf16>, vector<8x32xbf16>, vector<64x32xf32> -> vector<64x32xf32>
    %8 = arith.addf %0, %7 : vector<64x32xf32>
    %c0_7 = arith.constant 0 : index
    %c0_8 = arith.constant 0 : index
    %c0_9 = arith.constant 0 : index
    %c0_10 = arith.constant 0 : index
    %9 = vector.load %arg2[%c0_7, %c0_8, %c0_9, %c0_10] : memref<1x9x9x8xbf16, #tpu.memory_space<vmem>>, vector<1x9x9x8xbf16>
    %10 = vector.shape_cast %9 : vector<1x9x9x8xbf16> to vector<9x9x8xbf16>
    %11 = vector.extract_strided_slice %10 {offsets = [0, 0, 0], sizes = [8, 8, 8], strides = [1, 1, 1]} : vector<9x9x8xbf16> to vector<8x8x8xbf16>
    %12 = vector.shape_cast %11 : vector<8x8x8xbf16> to vector<64x8xbf16>
    %c1 = arith.constant 1 : index
    %c0_11 = arith.constant 0 : index
    %c0_12 = arith.constant 0 : index
    %13 = vector.load %arg5[%c1, %c0_11, %c0_12] : memref<9x8x32xbf16, #tpu.memory_space<vmem>>, vector<1x8x32xbf16>
    %14 = vector.shape_cast %13 : vector<1x8x32xbf16> to vector<8x32xbf16>
    %cst_13 = arith.constant dense<0.000000e+00> : vector<64x32xf32>
    %15 = tpu.matmul %12, %14, %cst_13 {dimension_numbers = #tpu.dot_dimension_numbers<[1], [0], [0], [1], [0, 0, 1, 1], [], []>} : vector<64x8xbf16>, vector<8x32xbf16>, vector<64x32xf32> -> vector<64x32xf32>
    %16 = arith.addf %8, %15 : vector<64x32xf32>
    %17 = vector.extract_strided_slice %2 {offsets = [0, 1, 0], sizes = [8, 8, 8], strides = [1, 1, 1]} : vector<9x9x8xbf16> to vector<8x8x8xbf16>
    %18 = vector.shape_cast %17 : vector<8x8x8xbf16> to vector<64x8xbf16>
    %c2 = arith.constant 2 : index
    %c0_14 = arith.constant 0 : index
    %c0_15 = arith.constant 0 : index
    %19 = vector.load %arg5[%c2, %c0_14, %c0_15] : memref<9x8x32xbf16, #tpu.memory_space<vmem>>, vector<1x8x32xbf16>
    %20 = vector.shape_cast %19 : vector<1x8x32xbf16> to vector<8x32xbf16>
    %cst_16 = arith.constant dense<0.000000e+00> : vector<64x32xf32>
    %21 = tpu.matmul %18, %20, %cst_16 {dimension_numbers = #tpu.dot_dimension_numbers<[1], [0], [0], [1], [0, 0, 1, 1], [], []>} : vector<64x8xbf16>, vector<8x32xbf16>, vector<64x32xf32> -> vector<64x32xf32>
    %22 = arith.addf %16, %21 : vector<64x32xf32>
    %c0_17 = arith.constant 0 : index
    %c0_18 = arith.constant 0 : index
    %c0_19 = arith.constant 0 : index
    %c0_20 = arith.constant 0 : index
    %23 = vector.load %arg3[%c0_17, %c0_18, %c0_19, %c0_20] : memref<1x9x9x8xbf16, #tpu.memory_space<vmem>>, vector<1x9x9x8xbf16>
    %24 = vector.shape_cast %23 : vector<1x9x9x8xbf16> to vector<9x9x8xbf16>
    %25 = vector.extract_strided_slice %24 {offsets = [0, 0, 0], sizes = [8, 8, 8], strides = [1, 1, 1]} : vector<9x9x8xbf16> to vector<8x8x8xbf16>
    %26 = vector.shape_cast %25 : vector<8x8x8xbf16> to vector<64x8xbf16>
    %c3 = arith.constant 3 : index
    %c0_21 = arith.constant 0 : index
    %c0_22 = arith.constant 0 : index
    %27 = vector.load %arg5[%c3, %c0_21, %c0_22] : memref<9x8x32xbf16, #tpu.memory_space<vmem>>, vector<1x8x32xbf16>
    %28 = vector.shape_cast %27 : vector<1x8x32xbf16> to vector<8x32xbf16>
    %cst_23 = arith.constant dense<0.000000e+00> : vector<64x32xf32>
    %29 = tpu.matmul %26, %28, %cst_23 {dimension_numbers = #tpu.dot_dimension_numbers<[1], [0], [0], [1], [0, 0, 1, 1], [], []>} : vector<64x8xbf16>, vector<8x32xbf16>, vector<64x32xf32> -> vector<64x32xf32>
    %30 = arith.addf %22, %29 : vector<64x32xf32>
    %c0_24 = arith.constant 0 : index
    %c0_25 = arith.constant 0 : index
    %c0_26 = arith.constant 0 : index
    %c0_27 = arith.constant 0 : index
    %31 = vector.load %arg4[%c0_24, %c0_25, %c0_26, %c0_27] : memref<1x9x9x8xbf16, #tpu.memory_space<vmem>>, vector<1x9x9x8xbf16>
    %32 = vector.shape_cast %31 : vector<1x9x9x8xbf16> to vector<9x9x8xbf16>
    %33 = vector.extract_strided_slice %32 {offsets = [0, 0, 0], sizes = [8, 8, 8], strides = [1, 1, 1]} : vector<9x9x8xbf16> to vector<8x8x8xbf16>
    %34 = vector.shape_cast %33 : vector<8x8x8xbf16> to vector<64x8xbf16>
    %c4 = arith.constant 4 : index
    %c0_28 = arith.constant 0 : index
    %c0_29 = arith.constant 0 : index
    %35 = vector.load %arg5[%c4, %c0_28, %c0_29] : memref<9x8x32xbf16, #tpu.memory_space<vmem>>, vector<1x8x32xbf16>
    %36 = vector.shape_cast %35 : vector<1x8x32xbf16> to vector<8x32xbf16>
    %cst_30 = arith.constant dense<0.000000e+00> : vector<64x32xf32>
    %37 = tpu.matmul %34, %36, %cst_30 {dimension_numbers = #tpu.dot_dimension_numbers<[1], [0], [0], [1], [0, 0, 1, 1], [], []>} : vector<64x8xbf16>, vector<8x32xbf16>, vector<64x32xf32> -> vector<64x32xf32>
    %38 = arith.addf %30, %37 : vector<64x32xf32>
    %39 = vector.extract_strided_slice %24 {offsets = [0, 1, 0], sizes = [8, 8, 8], strides = [1, 1, 1]} : vector<9x9x8xbf16> to vector<8x8x8xbf16>
    %40 = vector.shape_cast %39 : vector<8x8x8xbf16> to vector<64x8xbf16>
    %c5 = arith.constant 5 : index
    %c0_31 = arith.constant 0 : index
    %c0_32 = arith.constant 0 : index
    %41 = vector.load %arg5[%c5, %c0_31, %c0_32] : memref<9x8x32xbf16, #tpu.memory_space<vmem>>, vector<1x8x32xbf16>
    %42 = vector.shape_cast %41 : vector<1x8x32xbf16> to vector<8x32xbf16>
    %cst_33 = arith.constant dense<0.000000e+00> : vector<64x32xf32>
    %43 = tpu.matmul %40, %42, %cst_33 {dimension_numbers = #tpu.dot_dimension_numbers<[1], [0], [0], [1], [0, 0, 1, 1], [], []>} : vector<64x8xbf16>, vector<8x32xbf16>, vector<64x32xf32> -> vector<64x32xf32>
    %44 = arith.addf %38, %43 : vector<64x32xf32>
    %45 = vector.extract_strided_slice %2 {offsets = [1, 0, 0], sizes = [8, 8, 8], strides = [1, 1, 1]} : vector<9x9x8xbf16> to vector<8x8x8xbf16>
    %46 = vector.shape_cast %45 : vector<8x8x8xbf16> to vector<64x8xbf16>
    %c6 = arith.constant 6 : index
    %c0_34 = arith.constant 0 : index
    %c0_35 = arith.constant 0 : index
    %47 = vector.load %arg5[%c6, %c0_34, %c0_35] : memref<9x8x32xbf16, #tpu.memory_space<vmem>>, vector<1x8x32xbf16>
    %48 = vector.shape_cast %47 : vector<1x8x32xbf16> to vector<8x32xbf16>
    %cst_36 = arith.constant dense<0.000000e+00> : vector<64x32xf32>
    %49 = tpu.matmul %46, %48, %cst_36 {dimension_numbers = #tpu.dot_dimension_numbers<[1], [0], [0], [1], [0, 0, 1, 1], [], []>} : vector<64x8xbf16>, vector<8x32xbf16>, vector<64x32xf32> -> vector<64x32xf32>
    %50 = arith.addf %44, %49 : vector<64x32xf32>
    %51 = vector.extract_strided_slice %10 {offsets = [1, 0, 0], sizes = [8, 8, 8], strides = [1, 1, 1]} : vector<9x9x8xbf16> to vector<8x8x8xbf16>
    %52 = vector.shape_cast %51 : vector<8x8x8xbf16> to vector<64x8xbf16>
    %c7 = arith.constant 7 : index
    %c0_37 = arith.constant 0 : index
    %c0_38 = arith.constant 0 : index
    %53 = vector.load %arg5[%c7, %c0_37, %c0_38] : memref<9x8x32xbf16, #tpu.memory_space<vmem>>, vector<1x8x32xbf16>
    %54 = vector.shape_cast %53 : vector<1x8x32xbf16> to vector<8x32xbf16>
    %cst_39 = arith.constant dense<0.000000e+00> : vector<64x32xf32>
    %55 = tpu.matmul %52, %54, %cst_39 {dimension_numbers = #tpu.dot_dimension_numbers<[1], [0], [0], [1], [0, 0, 1, 1], [], []>} : vector<64x8xbf16>, vector<8x32xbf16>, vector<64x32xf32> -> vector<64x32xf32>
    %56 = arith.addf %50, %55 : vector<64x32xf32>
    %57 = vector.extract_strided_slice %2 {offsets = [1, 1, 0], sizes = [8, 8, 8], strides = [1, 1, 1]} : vector<9x9x8xbf16> to vector<8x8x8xbf16>
    %58 = vector.shape_cast %57 : vector<8x8x8xbf16> to vector<64x8xbf16>
    %c8 = arith.constant 8 : index
    %c0_40 = arith.constant 0 : index
    %c0_41 = arith.constant 0 : index
    %59 = vector.load %arg5[%c8, %c0_40, %c0_41] : memref<9x8x32xbf16, #tpu.memory_space<vmem>>, vector<1x8x32xbf16>
    %60 = vector.shape_cast %59 : vector<1x8x32xbf16> to vector<8x32xbf16>
    %cst_42 = arith.constant dense<0.000000e+00> : vector<64x32xf32>
    %61 = tpu.matmul %58, %60, %cst_42 {dimension_numbers = #tpu.dot_dimension_numbers<[1], [0], [0], [1], [0, 0, 1, 1], [], []>} : vector<64x8xbf16>, vector<8x32xbf16>, vector<64x32xf32> -> vector<64x32xf32>
    %62 = arith.addf %56, %61 : vector<64x32xf32>
    %c0_43 = arith.constant 0 : index
    %c0_44 = arith.constant 0 : index
    %63 = vector.load %arg6[%c0_43, %c0_44] : memref<1x32xf32, #tpu.memory_space<vmem>>, vector<1x32xf32>
    %64 = vector.broadcast %63 : vector<1x32xf32> to vector<64x32xf32>
    %65 = arith.addf %62, %64 : vector<64x32xf32>
    %cst_45 = arith.constant 0.000000e+00 : f32
    %66 = vector.broadcast %cst_45 : f32 to vector<64x32xf32>
    %67 = arith.maximumf %65, %66 : vector<64x32xf32>
    %68 = arith.truncf %67 : vector<64x32xf32> to vector<64x32xbf16>
    %c0_46 = arith.constant 0 : index
    %c0_47 = arith.constant 0 : index
    %c0_48 = arith.constant 0 : index
    %69 = vector.load %arg7[%c0_46, %c0_47, %c0_48] : memref<1x64x32xbf16, #tpu.memory_space<vmem>>, vector<1x64x32xbf16>
    %70 = vector.shape_cast %69 : vector<1x64x32xbf16> to vector<64x32xbf16>
    %71 = vector.shape_cast %68 : vector<64x32xbf16> to vector<1x64x32xbf16>
    tpu.vector_store %arg7[%c0_46, %c0_47, %c0_48], %71 {strides = array<i32>} : memref<1x64x32xbf16, #tpu.memory_space<vmem>>, vector<1x64x32xbf16>,
    return
  }
  func.func @transform_0(%arg0: i32) -> (i32, i32, i32, i32) {
    %c0_i32 = arith.constant 0 : i32
    %c0_i32_0 = arith.constant 0 : i32
    %c0_i32_1 = arith.constant 0 : i32
    %c0_i32_2 = arith.constant 0 : i32
    return %arg0, %c0_i32, %c0_i32_0, %c0_i32_1 : i32, i32, i32, i32
  }
  func.func @transform_1(%arg0: i32) -> (i32, i32, i32, i32) {
    %c0_i32 = arith.constant 0 : i32
    %c0_i32_0 = arith.constant 0 : i32
    %c0_i32_1 = arith.constant 0 : i32
    %c0_i32_2 = arith.constant 0 : i32
    return %arg0, %c0_i32, %c0_i32_0, %c0_i32_1 : i32, i32, i32, i32
  }
  func.func @transform_2(%arg0: i32) -> (i32, i32, i32, i32) {
    %c0_i32 = arith.constant 0 : i32
    %c0_i32_0 = arith.constant 0 : i32
    %c0_i32_1 = arith.constant 0 : i32
    %c0_i32_2 = arith.constant 0 : i32
    return %arg0, %c0_i32, %c0_i32_0, %c0_i32_1 : i32, i32, i32, i32
  }
  func.func @transform_3(%arg0: i32) -> (i32, i32, i32, i32) {
    %c0_i32 = arith.constant 0 : i32
    %c0_i32_0 = arith.constant 0 : i32
    %c0_i32_1 = arith.constant 0 : i32
    %c0_i32_2 = arith.constant 0 : i32
    return %arg0, %c0_i32, %c0_i32_0, %c0_i32_1 : i32, i32, i32, i32
  }
  func.func @transform_4(%arg0: i32) -> (i32, i32, i32) {
    %c0_i32 = arith.constant 0 : i32
    %c0_i32_0 = arith.constant 0 : i32
    %c0_i32_1 = arith.constant 0 : i32
    %c0_i32_2 = arith.constant 0 : i32
    return %c0_i32, %c0_i32_0, %c0_i32_1 : i32, i32, i32
  }
  func.func @transform_5(%arg0: i32) -> (i32, i32) {
    %c0_i32 = arith.constant 0 : i32
    %c0_i32_0 = arith.constant 0 : i32
    %c0_i32_1 = arith.constant 0 : i32
    return %c0_i32, %c0_i32_0 : i32, i32
  }
  func.func @transform_6(%arg0: i32) -> (i32, i32, i32) {
    %c0_i32 = arith.constant 0 : i32
    %c0_i32_0 = arith.constant 0 : i32
    %c0_i32_1 = arith.constant 0 : i32
    return %arg0, %c0_i32, %c0_i32_0 : i32, i32, i32
  }
}

module attributes {stable_mosaic.version = 11 : i64} {
  func.func @_conv3x3_s2_kernel(%arg0: i32, %arg1: memref<1x5x5x32xbf16, #tpu.memory_space<vmem>>, %arg2: memref<1x5x5x32xbf16, #tpu.memory_space<vmem>>, %arg3: memref<1x5x5x32xbf16, #tpu.memory_space<vmem>>, %arg4: memref<1x5x5x32xbf16, #tpu.memory_space<vmem>>, %arg5: memref<9x32x64xbf16, #tpu.memory_space<vmem>>, %arg6: memref<1x64xf32, #tpu.memory_space<vmem>>, %arg7: memref<1x16x64xbf16, #tpu.memory_space<vmem>>) attributes {dimension_semantics = [#tpu.dimension_semantics<parallel>], iteration_bounds = array<i64: 2>, scalar_prefetch = 0 : i64, scratch_operands = 0 : i64, tpu.core_type = #tpu.core_type<tc>, window_params = [{transform_indices = @transform_0, window_bounds = array<i64: 1, 5, 5, 32>}, {transform_indices = @transform_1, window_bounds = array<i64: 1, 5, 5, 32>}, {transform_indices = @transform_2, window_bounds = array<i64: 1, 5, 5, 32>}, {transform_indices = @transform_3, window_bounds = array<i64: 1, 5, 5, 32>}, {pipeline_mode = #tpu.pipeline_mode<synchronous>, transform_indices = @transform_4, window_bounds = array<i64: 9, 32, 64>}, {pipeline_mode = #tpu.pipeline_mode<synchronous>, transform_indices = @transform_5, window_bounds = array<i64: 1, 64>}, {transform_indices = @transform_6, window_bounds = array<i64: 1, 16, 64>}]} {
    %cst = arith.constant 0.000000e+00 : f32
    %0 = vector.broadcast %cst : f32 to vector<16x64xf32>
    %c0 = arith.constant 0 : index
    %c0_0 = arith.constant 0 : index
    %c0_1 = arith.constant 0 : index
    %c0_2 = arith.constant 0 : index
    %1 = vector.load %arg1[%c0, %c0_0, %c0_1, %c0_2] : memref<1x5x5x32xbf16, #tpu.memory_space<vmem>>, vector<1x5x5x32xbf16>
    %2 = vector.shape_cast %1 : vector<1x5x5x32xbf16> to vector<5x5x32xbf16>
    %3 = vector.extract_strided_slice %2 {offsets = [0, 0, 0], sizes = [4, 4, 32], strides = [1, 1, 1]} : vector<5x5x32xbf16> to vector<4x4x32xbf16>
    %4 = vector.shape_cast %3 : vector<4x4x32xbf16> to vector<16x32xbf16>
    %c0_3 = arith.constant 0 : index
    %c0_4 = arith.constant 0 : index
    %c0_5 = arith.constant 0 : index
    %5 = vector.load %arg5[%c0_3, %c0_4, %c0_5] : memref<9x32x64xbf16, #tpu.memory_space<vmem>>, vector<1x32x64xbf16>
    %6 = vector.shape_cast %5 : vector<1x32x64xbf16> to vector<32x64xbf16>
    %cst_6 = arith.constant dense<0.000000e+00> : vector<16x64xf32>
    %7 = tpu.matmul %4, %6, %cst_6 {dimension_numbers = #tpu.dot_dimension_numbers<[1], [0], [0], [1], [0, 0, 1, 1], [], []>} : vector<16x32xbf16>, vector<32x64xbf16>, vector<16x64xf32> -> vector<16x64xf32>
    %8 = arith.addf %0, %7 : vector<16x64xf32>
    %c0_7 = arith.constant 0 : index
    %c0_8 = arith.constant 0 : index
    %c0_9 = arith.constant 0 : index
    %c0_10 = arith.constant 0 : index
    %9 = vector.load %arg2[%c0_7, %c0_8, %c0_9, %c0_10] : memref<1x5x5x32xbf16, #tpu.memory_space<vmem>>, vector<1x5x5x32xbf16>
    %10 = vector.shape_cast %9 : vector<1x5x5x32xbf16> to vector<5x5x32xbf16>
    %11 = vector.extract_strided_slice %10 {offsets = [0, 0, 0], sizes = [4, 4, 32], strides = [1, 1, 1]} : vector<5x5x32xbf16> to vector<4x4x32xbf16>
    %12 = vector.shape_cast %11 : vector<4x4x32xbf16> to vector<16x32xbf16>
    %c1 = arith.constant 1 : index
    %c0_11 = arith.constant 0 : index
    %c0_12 = arith.constant 0 : index
    %13 = vector.load %arg5[%c1, %c0_11, %c0_12] : memref<9x32x64xbf16, #tpu.memory_space<vmem>>, vector<1x32x64xbf16>
    %14 = vector.shape_cast %13 : vector<1x32x64xbf16> to vector<32x64xbf16>
    %cst_13 = arith.constant dense<0.000000e+00> : vector<16x64xf32>
    %15 = tpu.matmul %12, %14, %cst_13 {dimension_numbers = #tpu.dot_dimension_numbers<[1], [0], [0], [1], [0, 0, 1, 1], [], []>} : vector<16x32xbf16>, vector<32x64xbf16>, vector<16x64xf32> -> vector<16x64xf32>
    %16 = arith.addf %8, %15 : vector<16x64xf32>
    %17 = vector.extract_strided_slice %2 {offsets = [0, 1, 0], sizes = [4, 4, 32], strides = [1, 1, 1]} : vector<5x5x32xbf16> to vector<4x4x32xbf16>
    %18 = vector.shape_cast %17 : vector<4x4x32xbf16> to vector<16x32xbf16>
    %c2 = arith.constant 2 : index
    %c0_14 = arith.constant 0 : index
    %c0_15 = arith.constant 0 : index
    %19 = vector.load %arg5[%c2, %c0_14, %c0_15] : memref<9x32x64xbf16, #tpu.memory_space<vmem>>, vector<1x32x64xbf16>
    %20 = vector.shape_cast %19 : vector<1x32x64xbf16> to vector<32x64xbf16>
    %cst_16 = arith.constant dense<0.000000e+00> : vector<16x64xf32>
    %21 = tpu.matmul %18, %20, %cst_16 {dimension_numbers = #tpu.dot_dimension_numbers<[1], [0], [0], [1], [0, 0, 1, 1], [], []>} : vector<16x32xbf16>, vector<32x64xbf16>, vector<16x64xf32> -> vector<16x64xf32>
    %22 = arith.addf %16, %21 : vector<16x64xf32>
    %c0_17 = arith.constant 0 : index
    %c0_18 = arith.constant 0 : index
    %c0_19 = arith.constant 0 : index
    %c0_20 = arith.constant 0 : index
    %23 = vector.load %arg3[%c0_17, %c0_18, %c0_19, %c0_20] : memref<1x5x5x32xbf16, #tpu.memory_space<vmem>>, vector<1x5x5x32xbf16>
    %24 = vector.shape_cast %23 : vector<1x5x5x32xbf16> to vector<5x5x32xbf16>
    %25 = vector.extract_strided_slice %24 {offsets = [0, 0, 0], sizes = [4, 4, 32], strides = [1, 1, 1]} : vector<5x5x32xbf16> to vector<4x4x32xbf16>
    %26 = vector.shape_cast %25 : vector<4x4x32xbf16> to vector<16x32xbf16>
    %c3 = arith.constant 3 : index
    %c0_21 = arith.constant 0 : index
    %c0_22 = arith.constant 0 : index
    %27 = vector.load %arg5[%c3, %c0_21, %c0_22] : memref<9x32x64xbf16, #tpu.memory_space<vmem>>, vector<1x32x64xbf16>
    %28 = vector.shape_cast %27 : vector<1x32x64xbf16> to vector<32x64xbf16>
    %cst_23 = arith.constant dense<0.000000e+00> : vector<16x64xf32>
    %29 = tpu.matmul %26, %28, %cst_23 {dimension_numbers = #tpu.dot_dimension_numbers<[1], [0], [0], [1], [0, 0, 1, 1], [], []>} : vector<16x32xbf16>, vector<32x64xbf16>, vector<16x64xf32> -> vector<16x64xf32>
    %30 = arith.addf %22, %29 : vector<16x64xf32>
    %c0_24 = arith.constant 0 : index
    %c0_25 = arith.constant 0 : index
    %c0_26 = arith.constant 0 : index
    %c0_27 = arith.constant 0 : index
    %31 = vector.load %arg4[%c0_24, %c0_25, %c0_26, %c0_27] : memref<1x5x5x32xbf16, #tpu.memory_space<vmem>>, vector<1x5x5x32xbf16>
    %32 = vector.shape_cast %31 : vector<1x5x5x32xbf16> to vector<5x5x32xbf16>
    %33 = vector.extract_strided_slice %32 {offsets = [0, 0, 0], sizes = [4, 4, 32], strides = [1, 1, 1]} : vector<5x5x32xbf16> to vector<4x4x32xbf16>
    %34 = vector.shape_cast %33 : vector<4x4x32xbf16> to vector<16x32xbf16>
    %c4 = arith.constant 4 : index
    %c0_28 = arith.constant 0 : index
    %c0_29 = arith.constant 0 : index
    %35 = vector.load %arg5[%c4, %c0_28, %c0_29] : memref<9x32x64xbf16, #tpu.memory_space<vmem>>, vector<1x32x64xbf16>
    %36 = vector.shape_cast %35 : vector<1x32x64xbf16> to vector<32x64xbf16>
    %cst_30 = arith.constant dense<0.000000e+00> : vector<16x64xf32>
    %37 = tpu.matmul %34, %36, %cst_30 {dimension_numbers = #tpu.dot_dimension_numbers<[1], [0], [0], [1], [0, 0, 1, 1], [], []>} : vector<16x32xbf16>, vector<32x64xbf16>, vector<16x64xf32> -> vector<16x64xf32>
    %38 = arith.addf %30, %37 : vector<16x64xf32>
    %39 = vector.extract_strided_slice %24 {offsets = [0, 1, 0], sizes = [4, 4, 32], strides = [1, 1, 1]} : vector<5x5x32xbf16> to vector<4x4x32xbf16>
    %40 = vector.shape_cast %39 : vector<4x4x32xbf16> to vector<16x32xbf16>
    %c5 = arith.constant 5 : index
    %c0_31 = arith.constant 0 : index
    %c0_32 = arith.constant 0 : index
    %41 = vector.load %arg5[%c5, %c0_31, %c0_32] : memref<9x32x64xbf16, #tpu.memory_space<vmem>>, vector<1x32x64xbf16>
    %42 = vector.shape_cast %41 : vector<1x32x64xbf16> to vector<32x64xbf16>
    %cst_33 = arith.constant dense<0.000000e+00> : vector<16x64xf32>
    %43 = tpu.matmul %40, %42, %cst_33 {dimension_numbers = #tpu.dot_dimension_numbers<[1], [0], [0], [1], [0, 0, 1, 1], [], []>} : vector<16x32xbf16>, vector<32x64xbf16>, vector<16x64xf32> -> vector<16x64xf32>
    %44 = arith.addf %38, %43 : vector<16x64xf32>
    %45 = vector.extract_strided_slice %2 {offsets = [1, 0, 0], sizes = [4, 4, 32], strides = [1, 1, 1]} : vector<5x5x32xbf16> to vector<4x4x32xbf16>
    %46 = vector.shape_cast %45 : vector<4x4x32xbf16> to vector<16x32xbf16>
    %c6 = arith.constant 6 : index
    %c0_34 = arith.constant 0 : index
    %c0_35 = arith.constant 0 : index
    %47 = vector.load %arg5[%c6, %c0_34, %c0_35] : memref<9x32x64xbf16, #tpu.memory_space<vmem>>, vector<1x32x64xbf16>
    %48 = vector.shape_cast %47 : vector<1x32x64xbf16> to vector<32x64xbf16>
    %cst_36 = arith.constant dense<0.000000e+00> : vector<16x64xf32>
    %49 = tpu.matmul %46, %48, %cst_36 {dimension_numbers = #tpu.dot_dimension_numbers<[1], [0], [0], [1], [0, 0, 1, 1], [], []>} : vector<16x32xbf16>, vector<32x64xbf16>, vector<16x64xf32> -> vector<16x64xf32>
    %50 = arith.addf %44, %49 : vector<16x64xf32>
    %51 = vector.extract_strided_slice %10 {offsets = [1, 0, 0], sizes = [4, 4, 32], strides = [1, 1, 1]} : vector<5x5x32xbf16> to vector<4x4x32xbf16>
    %52 = vector.shape_cast %51 : vector<4x4x32xbf16> to vector<16x32xbf16>
    %c7 = arith.constant 7 : index
    %c0_37 = arith.constant 0 : index
    %c0_38 = arith.constant 0 : index
    %53 = vector.load %arg5[%c7, %c0_37, %c0_38] : memref<9x32x64xbf16, #tpu.memory_space<vmem>>, vector<1x32x64xbf16>
    %54 = vector.shape_cast %53 : vector<1x32x64xbf16> to vector<32x64xbf16>
    %cst_39 = arith.constant dense<0.000000e+00> : vector<16x64xf32>
    %55 = tpu.matmul %52, %54, %cst_39 {dimension_numbers = #tpu.dot_dimension_numbers<[1], [0], [0], [1], [0, 0, 1, 1], [], []>} : vector<16x32xbf16>, vector<32x64xbf16>, vector<16x64xf32> -> vector<16x64xf32>
    %56 = arith.addf %50, %55 : vector<16x64xf32>
    %57 = vector.extract_strided_slice %2 {offsets = [1, 1, 0], sizes = [4, 4, 32], strides = [1, 1, 1]} : vector<5x5x32xbf16> to vector<4x4x32xbf16>
    %58 = vector.shape_cast %57 : vector<4x4x32xbf16> to vector<16x32xbf16>
    %c8 = arith.constant 8 : index
    %c0_40 = arith.constant 0 : index
    %c0_41 = arith.constant 0 : index
    %59 = vector.load %arg5[%c8, %c0_40, %c0_41] : memref<9x32x64xbf16, #tpu.memory_space<vmem>>, vector<1x32x64xbf16>
    %60 = vector.shape_cast %59 : vector<1x32x64xbf16> to vector<32x64xbf16>
    %cst_42 = arith.constant dense<0.000000e+00> : vector<16x64xf32>
    %61 = tpu.matmul %58, %60, %cst_42 {dimension_numbers = #tpu.dot_dimension_numbers<[1], [0], [0], [1], [0, 0, 1, 1], [], []>} : vector<16x32xbf16>, vector<32x64xbf16>, vector<16x64xf32> -> vector<16x64xf32>
    %62 = arith.addf %56, %61 : vector<16x64xf32>
    %c0_43 = arith.constant 0 : index
    %c0_44 = arith.constant 0 : index
    %63 = vector.load %arg6[%c0_43, %c0_44] : memref<1x64xf32, #tpu.memory_space<vmem>>, vector<1x64xf32>
    %64 = vector.broadcast %63 : vector<1x64xf32> to vector<16x64xf32>
    %65 = arith.addf %62, %64 : vector<16x64xf32>
    %cst_45 = arith.constant 0.000000e+00 : f32
    %66 = vector.broadcast %cst_45 : f32 to vector<16x64xf32>
    %67 = arith.maximumf %65, %66 : vector<16x64xf32>
    %68 = arith.truncf %67 : vector<16x64xf32> to vector<16x64xbf16>
    %c0_46 = arith.constant 0 : index
    %c0_47 = arith.constant 0 : index
    %c0_48 = arith.constant 0 : index
    %69 = vector.load %arg7[%c0_46, %c0_47, %c0_48] : memref<1x16x64xbf16, #tpu.memory_space<vmem>>, vector<1x16x64xbf16>
    %70 = vector.shape_cast %69 : vector<1x16x64xbf16> to vector<16x64xbf16>
    %71 = vector.shape_cast %68 : vector<16x64xbf16> to vector<1x16x64xbf16>
    tpu.vector_store %arg7[%c0_46, %c0_47, %c0_48], %71 {strides = array<i32>} : memref<1x16x64xbf16, #tpu.memory_space<vmem>>, vector<1x16x64xbf16>,
    return
  }
  func.func @transform_0(%arg0: i32) -> (i32, i32, i32, i32) {
    %c0_i32 = arith.constant 0 : i32
    %c0_i32_0 = arith.constant 0 : i32
    %c0_i32_1 = arith.constant 0 : i32
    %c0_i32_2 = arith.constant 0 : i32
    return %arg0, %c0_i32, %c0_i32_0, %c0_i32_1 : i32, i32, i32, i32
  }
  func.func @transform_1(%arg0: i32) -> (i32, i32, i32, i32) {
    %c0_i32 = arith.constant 0 : i32
    %c0_i32_0 = arith.constant 0 : i32
    %c0_i32_1 = arith.constant 0 : i32
    %c0_i32_2 = arith.constant 0 : i32
    return %arg0, %c0_i32, %c0_i32_0, %c0_i32_1 : i32, i32, i32, i32
  }
  func.func @transform_2(%arg0: i32) -> (i32, i32, i32, i32) {
    %c0_i32 = arith.constant 0 : i32
    %c0_i32_0 = arith.constant 0 : i32
    %c0_i32_1 = arith.constant 0 : i32
    %c0_i32_2 = arith.constant 0 : i32
    return %arg0, %c0_i32, %c0_i32_0, %c0_i32_1 : i32, i32, i32, i32
  }
  func.func @transform_3(%arg0: i32) -> (i32, i32, i32, i32) {
    %c0_i32 = arith.constant 0 : i32
    %c0_i32_0 = arith.constant 0 : i32
    %c0_i32_1 = arith.constant 0 : i32
    %c0_i32_2 = arith.constant 0 : i32
    return %arg0, %c0_i32, %c0_i32_0, %c0_i32_1 : i32, i32, i32, i32
  }
  func.func @transform_4(%arg0: i32) -> (i32, i32, i32) {
    %c0_i32 = arith.constant 0 : i32
    %c0_i32_0 = arith.constant 0 : i32
    %c0_i32_1 = arith.constant 0 : i32
    %c0_i32_2 = arith.constant 0 : i32
    return %c0_i32, %c0_i32_0, %c0_i32_1 : i32, i32, i32
  }
  func.func @transform_5(%arg0: i32) -> (i32, i32) {
    %c0_i32 = arith.constant 0 : i32
    %c0_i32_0 = arith.constant 0 : i32
    %c0_i32_1 = arith.constant 0 : i32
    return %c0_i32, %c0_i32_0 : i32, i32
  }
  func.func @transform_6(%arg0: i32) -> (i32, i32, i32) {
    %c0_i32 = arith.constant 0 : i32
    %c0_i32_0 = arith.constant 0 : i32
    %c0_i32_1 = arith.constant 0 : i32
    return %arg0, %c0_i32, %c0_i32_0 : i32, i32, i32
  }
}

module attributes {stable_mosaic.version = 11 : i64} {
  func.func @_conv3x3_s2_kernel(%arg0: i32, %arg1: memref<1x3x3x64xbf16, #tpu.memory_space<vmem>>, %arg2: memref<1x3x3x64xbf16, #tpu.memory_space<vmem>>, %arg3: memref<1x3x3x64xbf16, #tpu.memory_space<vmem>>, %arg4: memref<1x3x3x64xbf16, #tpu.memory_space<vmem>>, %arg5: memref<9x64x128xbf16, #tpu.memory_space<vmem>>, %arg6: memref<1x128xf32, #tpu.memory_space<vmem>>, %arg7: memref<1x4x128xbf16, #tpu.memory_space<vmem>>) attributes {dimension_semantics = [#tpu.dimension_semantics<parallel>], iteration_bounds = array<i64: 2>, scalar_prefetch = 0 : i64, scratch_operands = 0 : i64, tpu.core_type = #tpu.core_type<tc>, window_params = [{transform_indices = @transform_0, window_bounds = array<i64: 1, 3, 3, 64>}, {transform_indices = @transform_1, window_bounds = array<i64: 1, 3, 3, 64>}, {transform_indices = @transform_2, window_bounds = array<i64: 1, 3, 3, 64>}, {transform_indices = @transform_3, window_bounds = array<i64: 1, 3, 3, 64>}, {pipeline_mode = #tpu.pipeline_mode<synchronous>, transform_indices = @transform_4, window_bounds = array<i64: 9, 64, 128>}, {pipeline_mode = #tpu.pipeline_mode<synchronous>, transform_indices = @transform_5, window_bounds = array<i64: 1, 128>}, {transform_indices = @transform_6, window_bounds = array<i64: 1, 4, 128>}]} {
    %cst = arith.constant 0.000000e+00 : f32
    %0 = vector.broadcast %cst : f32 to vector<4x128xf32>
    %c0 = arith.constant 0 : index
    %c0_0 = arith.constant 0 : index
    %c0_1 = arith.constant 0 : index
    %c0_2 = arith.constant 0 : index
    %1 = vector.load %arg1[%c0, %c0_0, %c0_1, %c0_2] : memref<1x3x3x64xbf16, #tpu.memory_space<vmem>>, vector<1x3x3x64xbf16>
    %2 = vector.shape_cast %1 : vector<1x3x3x64xbf16> to vector<3x3x64xbf16>
    %3 = vector.extract_strided_slice %2 {offsets = [0, 0, 0], sizes = [2, 2, 64], strides = [1, 1, 1]} : vector<3x3x64xbf16> to vector<2x2x64xbf16>
    %4 = vector.shape_cast %3 : vector<2x2x64xbf16> to vector<4x64xbf16>
    %c0_3 = arith.constant 0 : index
    %c0_4 = arith.constant 0 : index
    %c0_5 = arith.constant 0 : index
    %5 = vector.load %arg5[%c0_3, %c0_4, %c0_5] : memref<9x64x128xbf16, #tpu.memory_space<vmem>>, vector<1x64x128xbf16>
    %6 = vector.shape_cast %5 : vector<1x64x128xbf16> to vector<64x128xbf16>
    %cst_6 = arith.constant dense<0.000000e+00> : vector<4x128xf32>
    %7 = tpu.matmul %4, %6, %cst_6 {dimension_numbers = #tpu.dot_dimension_numbers<[1], [0], [0], [1], [0, 0, 1, 1], [], []>} : vector<4x64xbf16>, vector<64x128xbf16>, vector<4x128xf32> -> vector<4x128xf32>
    %8 = arith.addf %0, %7 : vector<4x128xf32>
    %c0_7 = arith.constant 0 : index
    %c0_8 = arith.constant 0 : index
    %c0_9 = arith.constant 0 : index
    %c0_10 = arith.constant 0 : index
    %9 = vector.load %arg2[%c0_7, %c0_8, %c0_9, %c0_10] : memref<1x3x3x64xbf16, #tpu.memory_space<vmem>>, vector<1x3x3x64xbf16>
    %10 = vector.shape_cast %9 : vector<1x3x3x64xbf16> to vector<3x3x64xbf16>
    %11 = vector.extract_strided_slice %10 {offsets = [0, 0, 0], sizes = [2, 2, 64], strides = [1, 1, 1]} : vector<3x3x64xbf16> to vector<2x2x64xbf16>
    %12 = vector.shape_cast %11 : vector<2x2x64xbf16> to vector<4x64xbf16>
    %c1 = arith.constant 1 : index
    %c0_11 = arith.constant 0 : index
    %c0_12 = arith.constant 0 : index
    %13 = vector.load %arg5[%c1, %c0_11, %c0_12] : memref<9x64x128xbf16, #tpu.memory_space<vmem>>, vector<1x64x128xbf16>
    %14 = vector.shape_cast %13 : vector<1x64x128xbf16> to vector<64x128xbf16>
    %cst_13 = arith.constant dense<0.000000e+00> : vector<4x128xf32>
    %15 = tpu.matmul %12, %14, %cst_13 {dimension_numbers = #tpu.dot_dimension_numbers<[1], [0], [0], [1], [0, 0, 1, 1], [], []>} : vector<4x64xbf16>, vector<64x128xbf16>, vector<4x128xf32> -> vector<4x128xf32>
    %16 = arith.addf %8, %15 : vector<4x128xf32>
    %17 = vector.extract_strided_slice %2 {offsets = [0, 1, 0], sizes = [2, 2, 64], strides = [1, 1, 1]} : vector<3x3x64xbf16> to vector<2x2x64xbf16>
    %18 = vector.shape_cast %17 : vector<2x2x64xbf16> to vector<4x64xbf16>
    %c2 = arith.constant 2 : index
    %c0_14 = arith.constant 0 : index
    %c0_15 = arith.constant 0 : index
    %19 = vector.load %arg5[%c2, %c0_14, %c0_15] : memref<9x64x128xbf16, #tpu.memory_space<vmem>>, vector<1x64x128xbf16>
    %20 = vector.shape_cast %19 : vector<1x64x128xbf16> to vector<64x128xbf16>
    %cst_16 = arith.constant dense<0.000000e+00> : vector<4x128xf32>
    %21 = tpu.matmul %18, %20, %cst_16 {dimension_numbers = #tpu.dot_dimension_numbers<[1], [0], [0], [1], [0, 0, 1, 1], [], []>} : vector<4x64xbf16>, vector<64x128xbf16>, vector<4x128xf32> -> vector<4x128xf32>
    %22 = arith.addf %16, %21 : vector<4x128xf32>
    %c0_17 = arith.constant 0 : index
    %c0_18 = arith.constant 0 : index
    %c0_19 = arith.constant 0 : index
    %c0_20 = arith.constant 0 : index
    %23 = vector.load %arg3[%c0_17, %c0_18, %c0_19, %c0_20] : memref<1x3x3x64xbf16, #tpu.memory_space<vmem>>, vector<1x3x3x64xbf16>
    %24 = vector.shape_cast %23 : vector<1x3x3x64xbf16> to vector<3x3x64xbf16>
    %25 = vector.extract_strided_slice %24 {offsets = [0, 0, 0], sizes = [2, 2, 64], strides = [1, 1, 1]} : vector<3x3x64xbf16> to vector<2x2x64xbf16>
    %26 = vector.shape_cast %25 : vector<2x2x64xbf16> to vector<4x64xbf16>
    %c3 = arith.constant 3 : index
    %c0_21 = arith.constant 0 : index
    %c0_22 = arith.constant 0 : index
    %27 = vector.load %arg5[%c3, %c0_21, %c0_22] : memref<9x64x128xbf16, #tpu.memory_space<vmem>>, vector<1x64x128xbf16>
    %28 = vector.shape_cast %27 : vector<1x64x128xbf16> to vector<64x128xbf16>
    %cst_23 = arith.constant dense<0.000000e+00> : vector<4x128xf32>
    %29 = tpu.matmul %26, %28, %cst_23 {dimension_numbers = #tpu.dot_dimension_numbers<[1], [0], [0], [1], [0, 0, 1, 1], [], []>} : vector<4x64xbf16>, vector<64x128xbf16>, vector<4x128xf32> -> vector<4x128xf32>
    %30 = arith.addf %22, %29 : vector<4x128xf32>
    %c0_24 = arith.constant 0 : index
    %c0_25 = arith.constant 0 : index
    %c0_26 = arith.constant 0 : index
    %c0_27 = arith.constant 0 : index
    %31 = vector.load %arg4[%c0_24, %c0_25, %c0_26, %c0_27] : memref<1x3x3x64xbf16, #tpu.memory_space<vmem>>, vector<1x3x3x64xbf16>
    %32 = vector.shape_cast %31 : vector<1x3x3x64xbf16> to vector<3x3x64xbf16>
    %33 = vector.extract_strided_slice %32 {offsets = [0, 0, 0], sizes = [2, 2, 64], strides = [1, 1, 1]} : vector<3x3x64xbf16> to vector<2x2x64xbf16>
    %34 = vector.shape_cast %33 : vector<2x2x64xbf16> to vector<4x64xbf16>
    %c4 = arith.constant 4 : index
    %c0_28 = arith.constant 0 : index
    %c0_29 = arith.constant 0 : index
    %35 = vector.load %arg5[%c4, %c0_28, %c0_29] : memref<9x64x128xbf16, #tpu.memory_space<vmem>>, vector<1x64x128xbf16>
    %36 = vector.shape_cast %35 : vector<1x64x128xbf16> to vector<64x128xbf16>
    %cst_30 = arith.constant dense<0.000000e+00> : vector<4x128xf32>
    %37 = tpu.matmul %34, %36, %cst_30 {dimension_numbers = #tpu.dot_dimension_numbers<[1], [0], [0], [1], [0, 0, 1, 1], [], []>} : vector<4x64xbf16>, vector<64x128xbf16>, vector<4x128xf32> -> vector<4x128xf32>
    %38 = arith.addf %30, %37 : vector<4x128xf32>
    %39 = vector.extract_strided_slice %24 {offsets = [0, 1, 0], sizes = [2, 2, 64], strides = [1, 1, 1]} : vector<3x3x64xbf16> to vector<2x2x64xbf16>
    %40 = vector.shape_cast %39 : vector<2x2x64xbf16> to vector<4x64xbf16>
    %c5 = arith.constant 5 : index
    %c0_31 = arith.constant 0 : index
    %c0_32 = arith.constant 0 : index
    %41 = vector.load %arg5[%c5, %c0_31, %c0_32] : memref<9x64x128xbf16, #tpu.memory_space<vmem>>, vector<1x64x128xbf16>
    %42 = vector.shape_cast %41 : vector<1x64x128xbf16> to vector<64x128xbf16>
    %cst_33 = arith.constant dense<0.000000e+00> : vector<4x128xf32>
    %43 = tpu.matmul %40, %42, %cst_33 {dimension_numbers = #tpu.dot_dimension_numbers<[1], [0], [0], [1], [0, 0, 1, 1], [], []>} : vector<4x64xbf16>, vector<64x128xbf16>, vector<4x128xf32> -> vector<4x128xf32>
    %44 = arith.addf %38, %43 : vector<4x128xf32>
    %45 = vector.extract_strided_slice %2 {offsets = [1, 0, 0], sizes = [2, 2, 64], strides = [1, 1, 1]} : vector<3x3x64xbf16> to vector<2x2x64xbf16>
    %46 = vector.shape_cast %45 : vector<2x2x64xbf16> to vector<4x64xbf16>
    %c6 = arith.constant 6 : index
    %c0_34 = arith.constant 0 : index
    %c0_35 = arith.constant 0 : index
    %47 = vector.load %arg5[%c6, %c0_34, %c0_35] : memref<9x64x128xbf16, #tpu.memory_space<vmem>>, vector<1x64x128xbf16>
    %48 = vector.shape_cast %47 : vector<1x64x128xbf16> to vector<64x128xbf16>
    %cst_36 = arith.constant dense<0.000000e+00> : vector<4x128xf32>
    %49 = tpu.matmul %46, %48, %cst_36 {dimension_numbers = #tpu.dot_dimension_numbers<[1], [0], [0], [1], [0, 0, 1, 1], [], []>} : vector<4x64xbf16>, vector<64x128xbf16>, vector<4x128xf32> -> vector<4x128xf32>
    %50 = arith.addf %44, %49 : vector<4x128xf32>
    %51 = vector.extract_strided_slice %10 {offsets = [1, 0, 0], sizes = [2, 2, 64], strides = [1, 1, 1]} : vector<3x3x64xbf16> to vector<2x2x64xbf16>
    %52 = vector.shape_cast %51 : vector<2x2x64xbf16> to vector<4x64xbf16>
    %c7 = arith.constant 7 : index
    %c0_37 = arith.constant 0 : index
    %c0_38 = arith.constant 0 : index
    %53 = vector.load %arg5[%c7, %c0_37, %c0_38] : memref<9x64x128xbf16, #tpu.memory_space<vmem>>, vector<1x64x128xbf16>
    %54 = vector.shape_cast %53 : vector<1x64x128xbf16> to vector<64x128xbf16>
    %cst_39 = arith.constant dense<0.000000e+00> : vector<4x128xf32>
    %55 = tpu.matmul %52, %54, %cst_39 {dimension_numbers = #tpu.dot_dimension_numbers<[1], [0], [0], [1], [0, 0, 1, 1], [], []>} : vector<4x64xbf16>, vector<64x128xbf16>, vector<4x128xf32> -> vector<4x128xf32>
    %56 = arith.addf %50, %55 : vector<4x128xf32>
    %57 = vector.extract_strided_slice %2 {offsets = [1, 1, 0], sizes = [2, 2, 64], strides = [1, 1, 1]} : vector<3x3x64xbf16> to vector<2x2x64xbf16>
    %58 = vector.shape_cast %57 : vector<2x2x64xbf16> to vector<4x64xbf16>
    %c8 = arith.constant 8 : index
    %c0_40 = arith.constant 0 : index
    %c0_41 = arith.constant 0 : index
    %59 = vector.load %arg5[%c8, %c0_40, %c0_41] : memref<9x64x128xbf16, #tpu.memory_space<vmem>>, vector<1x64x128xbf16>
    %60 = vector.shape_cast %59 : vector<1x64x128xbf16> to vector<64x128xbf16>
    %cst_42 = arith.constant dense<0.000000e+00> : vector<4x128xf32>
    %61 = tpu.matmul %58, %60, %cst_42 {dimension_numbers = #tpu.dot_dimension_numbers<[1], [0], [0], [1], [0, 0, 1, 1], [], []>} : vector<4x64xbf16>, vector<64x128xbf16>, vector<4x128xf32> -> vector<4x128xf32>
    %62 = arith.addf %56, %61 : vector<4x128xf32>
    %c0_43 = arith.constant 0 : index
    %c0_44 = arith.constant 0 : index
    %63 = vector.load %arg6[%c0_43, %c0_44] : memref<1x128xf32, #tpu.memory_space<vmem>>, vector<1x128xf32>
    %64 = vector.broadcast %63 : vector<1x128xf32> to vector<4x128xf32>
    %65 = arith.addf %62, %64 : vector<4x128xf32>
    %cst_45 = arith.constant 0.000000e+00 : f32
    %66 = vector.broadcast %cst_45 : f32 to vector<4x128xf32>
    %67 = arith.maximumf %65, %66 : vector<4x128xf32>
    %68 = arith.truncf %67 : vector<4x128xf32> to vector<4x128xbf16>
    %c0_46 = arith.constant 0 : index
    %c0_47 = arith.constant 0 : index
    %c0_48 = arith.constant 0 : index
    %69 = vector.load %arg7[%c0_46, %c0_47, %c0_48] : memref<1x4x128xbf16, #tpu.memory_space<vmem>>, vector<1x4x128xbf16>
    %70 = vector.shape_cast %69 : vector<1x4x128xbf16> to vector<4x128xbf16>
    %71 = vector.shape_cast %68 : vector<4x128xbf16> to vector<1x4x128xbf16>
    tpu.vector_store %arg7[%c0_46, %c0_47, %c0_48], %71 {strides = array<i32>} : memref<1x4x128xbf16, #tpu.memory_space<vmem>>, vector<1x4x128xbf16>,
    return
  }
  func.func @transform_0(%arg0: i32) -> (i32, i32, i32, i32) {
    %c0_i32 = arith.constant 0 : i32
    %c0_i32_0 = arith.constant 0 : i32
    %c0_i32_1 = arith.constant 0 : i32
    %c0_i32_2 = arith.constant 0 : i32
    return %arg0, %c0_i32, %c0_i32_0, %c0_i32_1 : i32, i32, i32, i32
  }
  func.func @transform_1(%arg0: i32) -> (i32, i32, i32, i32) {
    %c0_i32 = arith.constant 0 : i32
    %c0_i32_0 = arith.constant 0 : i32
    %c0_i32_1 = arith.constant 0 : i32
    %c0_i32_2 = arith.constant 0 : i32
    return %arg0, %c0_i32, %c0_i32_0, %c0_i32_1 : i32, i32, i32, i32
  }
  func.func @transform_2(%arg0: i32) -> (i32, i32, i32, i32) {
    %c0_i32 = arith.constant 0 : i32
    %c0_i32_0 = arith.constant 0 : i32
    %c0_i32_1 = arith.constant 0 : i32
    %c0_i32_2 = arith.constant 0 : i32
    return %arg0, %c0_i32, %c0_i32_0, %c0_i32_1 : i32, i32, i32, i32
  }
  func.func @transform_3(%arg0: i32) -> (i32, i32, i32, i32) {
    %c0_i32 = arith.constant 0 : i32
    %c0_i32_0 = arith.constant 0 : i32
    %c0_i32_1 = arith.constant 0 : i32
    %c0_i32_2 = arith.constant 0 : i32
    return %arg0, %c0_i32, %c0_i32_0, %c0_i32_1 : i32, i32, i32, i32
  }
  func.func @transform_4(%arg0: i32) -> (i32, i32, i32) {
    %c0_i32 = arith.constant 0 : i32
    %c0_i32_0 = arith.constant 0 : i32
    %c0_i32_1 = arith.constant 0 : i32
    %c0_i32_2 = arith.constant 0 : i32
    return %c0_i32, %c0_i32_0, %c0_i32_1 : i32, i32, i32
  }
  func.func @transform_5(%arg0: i32) -> (i32, i32) {
    %c0_i32 = arith.constant 0 : i32
    %c0_i32_0 = arith.constant 0 : i32
    %c0_i32_1 = arith.constant 0 : i32
    return %c0_i32, %c0_i32_0 : i32, i32
  }
  func.func @transform_6(%arg0: i32) -> (i32, i32, i32) {
    %c0_i32 = arith.constant 0 : i32
    %c0_i32_0 = arith.constant 0 : i32
    %c0_i32_1 = arith.constant 0 : i32
    return %arg0, %c0_i32, %c0_i32_0 : i32, i32, i32
  }
}

module attributes {stable_mosaic.version = 11 : i64} {
  func.func @_conv3x3_s2_kernel(%arg0: i32, %arg1: memref<1x2x2x128xbf16, #tpu.memory_space<vmem>>, %arg2: memref<1x2x2x128xbf16, #tpu.memory_space<vmem>>, %arg3: memref<1x2x2x128xbf16, #tpu.memory_space<vmem>>, %arg4: memref<1x2x2x128xbf16, #tpu.memory_space<vmem>>, %arg5: memref<9x128x256xbf16, #tpu.memory_space<vmem>>, %arg6: memref<1x256xf32, #tpu.memory_space<vmem>>, %arg7: memref<1x1x256xbf16, #tpu.memory_space<vmem>>) attributes {dimension_semantics = [#tpu.dimension_semantics<parallel>], iteration_bounds = array<i64: 2>, scalar_prefetch = 0 : i64, scratch_operands = 0 : i64, tpu.core_type = #tpu.core_type<tc>, window_params = [{transform_indices = @transform_0, window_bounds = array<i64: 1, 2, 2, 128>}, {transform_indices = @transform_1, window_bounds = array<i64: 1, 2, 2, 128>}, {transform_indices = @transform_2, window_bounds = array<i64: 1, 2, 2, 128>}, {transform_indices = @transform_3, window_bounds = array<i64: 1, 2, 2, 128>}, {pipeline_mode = #tpu.pipeline_mode<synchronous>, transform_indices = @transform_4, window_bounds = array<i64: 9, 128, 256>}, {pipeline_mode = #tpu.pipeline_mode<synchronous>, transform_indices = @transform_5, window_bounds = array<i64: 1, 256>}, {transform_indices = @transform_6, window_bounds = array<i64: 1, 1, 256>}]} {
    %cst = arith.constant 0.000000e+00 : f32
    %0 = vector.broadcast %cst : f32 to vector<1x256xf32>
    %c0 = arith.constant 0 : index
    %c0_0 = arith.constant 0 : index
    %c0_1 = arith.constant 0 : index
    %c0_2 = arith.constant 0 : index
    %1 = vector.load %arg1[%c0, %c0_0, %c0_1, %c0_2] : memref<1x2x2x128xbf16, #tpu.memory_space<vmem>>, vector<1x2x2x128xbf16>
    %2 = vector.shape_cast %1 : vector<1x2x2x128xbf16> to vector<2x2x128xbf16>
    %3 = vector.extract_strided_slice %2 {offsets = [0, 0, 0], sizes = [1, 1, 128], strides = [1, 1, 1]} : vector<2x2x128xbf16> to vector<1x1x128xbf16>
    %4 = vector.shape_cast %3 : vector<1x1x128xbf16> to vector<1x128xbf16>
    %c0_3 = arith.constant 0 : index
    %c0_4 = arith.constant 0 : index
    %c0_5 = arith.constant 0 : index
    %5 = vector.load %arg5[%c0_3, %c0_4, %c0_5] : memref<9x128x256xbf16, #tpu.memory_space<vmem>>, vector<1x128x256xbf16>
    %6 = vector.shape_cast %5 : vector<1x128x256xbf16> to vector<128x256xbf16>
    %cst_6 = arith.constant dense<0.000000e+00> : vector<1x256xf32>
    %7 = tpu.matmul %4, %6, %cst_6 {dimension_numbers = #tpu.dot_dimension_numbers<[1], [0], [0], [1], [0, 0, 1, 1], [], []>} : vector<1x128xbf16>, vector<128x256xbf16>, vector<1x256xf32> -> vector<1x256xf32>
    %8 = arith.addf %0, %7 : vector<1x256xf32>
    %c0_7 = arith.constant 0 : index
    %c0_8 = arith.constant 0 : index
    %c0_9 = arith.constant 0 : index
    %c0_10 = arith.constant 0 : index
    %9 = vector.load %arg2[%c0_7, %c0_8, %c0_9, %c0_10] : memref<1x2x2x128xbf16, #tpu.memory_space<vmem>>, vector<1x2x2x128xbf16>
    %10 = vector.shape_cast %9 : vector<1x2x2x128xbf16> to vector<2x2x128xbf16>
    %11 = vector.extract_strided_slice %10 {offsets = [0, 0, 0], sizes = [1, 1, 128], strides = [1, 1, 1]} : vector<2x2x128xbf16> to vector<1x1x128xbf16>
    %12 = vector.shape_cast %11 : vector<1x1x128xbf16> to vector<1x128xbf16>
    %c1 = arith.constant 1 : index
    %c0_11 = arith.constant 0 : index
    %c0_12 = arith.constant 0 : index
    %13 = vector.load %arg5[%c1, %c0_11, %c0_12] : memref<9x128x256xbf16, #tpu.memory_space<vmem>>, vector<1x128x256xbf16>
    %14 = vector.shape_cast %13 : vector<1x128x256xbf16> to vector<128x256xbf16>
    %cst_13 = arith.constant dense<0.000000e+00> : vector<1x256xf32>
    %15 = tpu.matmul %12, %14, %cst_13 {dimension_numbers = #tpu.dot_dimension_numbers<[1], [0], [0], [1], [0, 0, 1, 1], [], []>} : vector<1x128xbf16>, vector<128x256xbf16>, vector<1x256xf32> -> vector<1x256xf32>
    %16 = arith.addf %8, %15 : vector<1x256xf32>
    %17 = vector.extract_strided_slice %2 {offsets = [0, 1, 0], sizes = [1, 1, 128], strides = [1, 1, 1]} : vector<2x2x128xbf16> to vector<1x1x128xbf16>
    %18 = vector.shape_cast %17 : vector<1x1x128xbf16> to vector<1x128xbf16>
    %c2 = arith.constant 2 : index
    %c0_14 = arith.constant 0 : index
    %c0_15 = arith.constant 0 : index
    %19 = vector.load %arg5[%c2, %c0_14, %c0_15] : memref<9x128x256xbf16, #tpu.memory_space<vmem>>, vector<1x128x256xbf16>
    %20 = vector.shape_cast %19 : vector<1x128x256xbf16> to vector<128x256xbf16>
    %cst_16 = arith.constant dense<0.000000e+00> : vector<1x256xf32>
    %21 = tpu.matmul %18, %20, %cst_16 {dimension_numbers = #tpu.dot_dimension_numbers<[1], [0], [0], [1], [0, 0, 1, 1], [], []>} : vector<1x128xbf16>, vector<128x256xbf16>, vector<1x256xf32> -> vector<1x256xf32>
    %22 = arith.addf %16, %21 : vector<1x256xf32>
    %c0_17 = arith.constant 0 : index
    %c0_18 = arith.constant 0 : index
    %c0_19 = arith.constant 0 : index
    %c0_20 = arith.constant 0 : index
    %23 = vector.load %arg3[%c0_17, %c0_18, %c0_19, %c0_20] : memref<1x2x2x128xbf16, #tpu.memory_space<vmem>>, vector<1x2x2x128xbf16>
    %24 = vector.shape_cast %23 : vector<1x2x2x128xbf16> to vector<2x2x128xbf16>
    %25 = vector.extract_strided_slice %24 {offsets = [0, 0, 0], sizes = [1, 1, 128], strides = [1, 1, 1]} : vector<2x2x128xbf16> to vector<1x1x128xbf16>
    %26 = vector.shape_cast %25 : vector<1x1x128xbf16> to vector<1x128xbf16>
    %c3 = arith.constant 3 : index
    %c0_21 = arith.constant 0 : index
    %c0_22 = arith.constant 0 : index
    %27 = vector.load %arg5[%c3, %c0_21, %c0_22] : memref<9x128x256xbf16, #tpu.memory_space<vmem>>, vector<1x128x256xbf16>
    %28 = vector.shape_cast %27 : vector<1x128x256xbf16> to vector<128x256xbf16>
    %cst_23 = arith.constant dense<0.000000e+00> : vector<1x256xf32>
    %29 = tpu.matmul %26, %28, %cst_23 {dimension_numbers = #tpu.dot_dimension_numbers<[1], [0], [0], [1], [0, 0, 1, 1], [], []>} : vector<1x128xbf16>, vector<128x256xbf16>, vector<1x256xf32> -> vector<1x256xf32>
    %30 = arith.addf %22, %29 : vector<1x256xf32>
    %c0_24 = arith.constant 0 : index
    %c0_25 = arith.constant 0 : index
    %c0_26 = arith.constant 0 : index
    %c0_27 = arith.constant 0 : index
    %31 = vector.load %arg4[%c0_24, %c0_25, %c0_26, %c0_27] : memref<1x2x2x128xbf16, #tpu.memory_space<vmem>>, vector<1x2x2x128xbf16>
    %32 = vector.shape_cast %31 : vector<1x2x2x128xbf16> to vector<2x2x128xbf16>
    %33 = vector.extract_strided_slice %32 {offsets = [0, 0, 0], sizes = [1, 1, 128], strides = [1, 1, 1]} : vector<2x2x128xbf16> to vector<1x1x128xbf16>
    %34 = vector.shape_cast %33 : vector<1x1x128xbf16> to vector<1x128xbf16>
    %c4 = arith.constant 4 : index
    %c0_28 = arith.constant 0 : index
    %c0_29 = arith.constant 0 : index
    %35 = vector.load %arg5[%c4, %c0_28, %c0_29] : memref<9x128x256xbf16, #tpu.memory_space<vmem>>, vector<1x128x256xbf16>
    %36 = vector.shape_cast %35 : vector<1x128x256xbf16> to vector<128x256xbf16>
    %cst_30 = arith.constant dense<0.000000e+00> : vector<1x256xf32>
    %37 = tpu.matmul %34, %36, %cst_30 {dimension_numbers = #tpu.dot_dimension_numbers<[1], [0], [0], [1], [0, 0, 1, 1], [], []>} : vector<1x128xbf16>, vector<128x256xbf16>, vector<1x256xf32> -> vector<1x256xf32>
    %38 = arith.addf %30, %37 : vector<1x256xf32>
    %39 = vector.extract_strided_slice %24 {offsets = [0, 1, 0], sizes = [1, 1, 128], strides = [1, 1, 1]} : vector<2x2x128xbf16> to vector<1x1x128xbf16>
    %40 = vector.shape_cast %39 : vector<1x1x128xbf16> to vector<1x128xbf16>
    %c5 = arith.constant 5 : index
    %c0_31 = arith.constant 0 : index
    %c0_32 = arith.constant 0 : index
    %41 = vector.load %arg5[%c5, %c0_31, %c0_32] : memref<9x128x256xbf16, #tpu.memory_space<vmem>>, vector<1x128x256xbf16>
    %42 = vector.shape_cast %41 : vector<1x128x256xbf16> to vector<128x256xbf16>
    %cst_33 = arith.constant dense<0.000000e+00> : vector<1x256xf32>
    %43 = tpu.matmul %40, %42, %cst_33 {dimension_numbers = #tpu.dot_dimension_numbers<[1], [0], [0], [1], [0, 0, 1, 1], [], []>} : vector<1x128xbf16>, vector<128x256xbf16>, vector<1x256xf32> -> vector<1x256xf32>
    %44 = arith.addf %38, %43 : vector<1x256xf32>
    %45 = vector.extract_strided_slice %2 {offsets = [1, 0, 0], sizes = [1, 1, 128], strides = [1, 1, 1]} : vector<2x2x128xbf16> to vector<1x1x128xbf16>
    %46 = vector.shape_cast %45 : vector<1x1x128xbf16> to vector<1x128xbf16>
    %c6 = arith.constant 6 : index
    %c0_34 = arith.constant 0 : index
    %c0_35 = arith.constant 0 : index
    %47 = vector.load %arg5[%c6, %c0_34, %c0_35] : memref<9x128x256xbf16, #tpu.memory_space<vmem>>, vector<1x128x256xbf16>
    %48 = vector.shape_cast %47 : vector<1x128x256xbf16> to vector<128x256xbf16>
    %cst_36 = arith.constant dense<0.000000e+00> : vector<1x256xf32>
    %49 = tpu.matmul %46, %48, %cst_36 {dimension_numbers = #tpu.dot_dimension_numbers<[1], [0], [0], [1], [0, 0, 1, 1], [], []>} : vector<1x128xbf16>, vector<128x256xbf16>, vector<1x256xf32> -> vector<1x256xf32>
    %50 = arith.addf %44, %49 : vector<1x256xf32>
    %51 = vector.extract_strided_slice %10 {offsets = [1, 0, 0], sizes = [1, 1, 128], strides = [1, 1, 1]} : vector<2x2x128xbf16> to vector<1x1x128xbf16>
    %52 = vector.shape_cast %51 : vector<1x1x128xbf16> to vector<1x128xbf16>
    %c7 = arith.constant 7 : index
    %c0_37 = arith.constant 0 : index
    %c0_38 = arith.constant 0 : index
    %53 = vector.load %arg5[%c7, %c0_37, %c0_38] : memref<9x128x256xbf16, #tpu.memory_space<vmem>>, vector<1x128x256xbf16>
    %54 = vector.shape_cast %53 : vector<1x128x256xbf16> to vector<128x256xbf16>
    %cst_39 = arith.constant dense<0.000000e+00> : vector<1x256xf32>
    %55 = tpu.matmul %52, %54, %cst_39 {dimension_numbers = #tpu.dot_dimension_numbers<[1], [0], [0], [1], [0, 0, 1, 1], [], []>} : vector<1x128xbf16>, vector<128x256xbf16>, vector<1x256xf32> -> vector<1x256xf32>
    %56 = arith.addf %50, %55 : vector<1x256xf32>
    %57 = vector.extract_strided_slice %2 {offsets = [1, 1, 0], sizes = [1, 1, 128], strides = [1, 1, 1]} : vector<2x2x128xbf16> to vector<1x1x128xbf16>
    %58 = vector.shape_cast %57 : vector<1x1x128xbf16> to vector<1x128xbf16>
    %c8 = arith.constant 8 : index
    %c0_40 = arith.constant 0 : index
    %c0_41 = arith.constant 0 : index
    %59 = vector.load %arg5[%c8, %c0_40, %c0_41] : memref<9x128x256xbf16, #tpu.memory_space<vmem>>, vector<1x128x256xbf16>
    %60 = vector.shape_cast %59 : vector<1x128x256xbf16> to vector<128x256xbf16>
    %cst_42 = arith.constant dense<0.000000e+00> : vector<1x256xf32>
    %61 = tpu.matmul %58, %60, %cst_42 {dimension_numbers = #tpu.dot_dimension_numbers<[1], [0], [0], [1], [0, 0, 1, 1], [], []>} : vector<1x128xbf16>, vector<128x256xbf16>, vector<1x256xf32> -> vector<1x256xf32>
    %62 = arith.addf %56, %61 : vector<1x256xf32>
    %c0_43 = arith.constant 0 : index
    %c0_44 = arith.constant 0 : index
    %63 = vector.load %arg6[%c0_43, %c0_44] : memref<1x256xf32, #tpu.memory_space<vmem>>, vector<1x256xf32>
    %64 = arith.addf %62, %63 : vector<1x256xf32>
    %cst_45 = arith.constant 0.000000e+00 : f32
    %65 = vector.broadcast %cst_45 : f32 to vector<1x256xf32>
    %66 = arith.maximumf %64, %65 : vector<1x256xf32>
    %67 = arith.truncf %66 : vector<1x256xf32> to vector<1x256xbf16>
    %c0_46 = arith.constant 0 : index
    %c0_47 = arith.constant 0 : index
    %c0_48 = arith.constant 0 : index
    %68 = vector.load %arg7[%c0_46, %c0_47, %c0_48] : memref<1x1x256xbf16, #tpu.memory_space<vmem>>, vector<1x1x256xbf16>
    %69 = vector.shape_cast %68 : vector<1x1x256xbf16> to vector<1x256xbf16>
    %70 = vector.shape_cast %67 : vector<1x256xbf16> to vector<1x1x256xbf16>
    tpu.vector_store %arg7[%c0_46, %c0_47, %c0_48], %70 {strides = array<i32>} : memref<1x1x256xbf16, #tpu.memory_space<vmem>>, vector<1x1x256xbf16>,
    return
  }
  func.func @transform_0(%arg0: i32) -> (i32, i32, i32, i32) {
    %c0_i32 = arith.constant 0 : i32
    %c0_i32_0 = arith.constant 0 : i32
    %c0_i32_1 = arith.constant 0 : i32
    %c0_i32_2 = arith.constant 0 : i32
    return %arg0, %c0_i32, %c0_i32_0, %c0_i32_1 : i32, i32, i32, i32
  }
  func.func @transform_1(%arg0: i32) -> (i32, i32, i32, i32) {
    %c0_i32 = arith.constant 0 : i32
    %c0_i32_0 = arith.constant 0 : i32
    %c0_i32_1 = arith.constant 0 : i32
    %c0_i32_2 = arith.constant 0 : i32
    return %arg0, %c0_i32, %c0_i32_0, %c0_i32_1 : i32, i32, i32, i32
  }
  func.func @transform_2(%arg0: i32) -> (i32, i32, i32, i32) {
    %c0_i32 = arith.constant 0 : i32
    %c0_i32_0 = arith.constant 0 : i32
    %c0_i32_1 = arith.constant 0 : i32
    %c0_i32_2 = arith.constant 0 : i32
    return %arg0, %c0_i32, %c0_i32_0, %c0_i32_1 : i32, i32, i32, i32
  }
  func.func @transform_3(%arg0: i32) -> (i32, i32, i32, i32) {
    %c0_i32 = arith.constant 0 : i32
    %c0_i32_0 = arith.constant 0 : i32
    %c0_i32_1 = arith.constant 0 : i32
    %c0_i32_2 = arith.constant 0 : i32
    return %arg0, %c0_i32, %c0_i32_0, %c0_i32_1 : i32, i32, i32, i32
  }
  func.func @transform_4(%arg0: i32) -> (i32, i32, i32) {
    %c0_i32 = arith.constant 0 : i32
    %c0_i32_0 = arith.constant 0 : i32
    %c0_i32_1 = arith.constant 0 : i32
    %c0_i32_2 = arith.constant 0 : i32
    return %c0_i32, %c0_i32_0, %c0_i32_1 : i32, i32, i32
  }
  func.func @transform_5(%arg0: i32) -> (i32, i32) {
    %c0_i32 = arith.constant 0 : i32
    %c0_i32_0 = arith.constant 0 : i32
    %c0_i32_1 = arith.constant 0 : i32
    return %c0_i32, %c0_i32_0 : i32, i32
  }
  func.func @transform_6(%arg0: i32) -> (i32, i32, i32) {
    %c0_i32 = arith.constant 0 : i32
    %c0_i32_0 = arith.constant 0 : i32
    %c0_i32_1 = arith.constant 0 : i32
    return %arg0, %c0_i32, %c0_i32_0 : i32, i32, i32
  }
}

module attributes {stable_mosaic.version = 11 : i64} {
  func.func @_fused_mlp_kernel(%arg0: i32, %arg1: i32, %arg2: memref<8x256xbf16, #tpu.memory_space<vmem>>, %arg3: memref<256x1024xbf16, #tpu.memory_space<vmem>>, %arg4: memref<1x1024xf32, #tpu.memory_space<vmem>>, %arg5: memref<1024x32xbf16, #tpu.memory_space<vmem>>, %arg6: memref<1x32xf32, #tpu.memory_space<vmem>>, %arg7: memref<8x32xf32, #tpu.memory_space<vmem>>, %arg8: memref<8x1024xf32, #tpu.memory_space<vmem>>) attributes {dimension_semantics = [#tpu.dimension_semantics<parallel>, #tpu.dimension_semantics<arbitrary>], iteration_bounds = array<i64: 1, 1>, scalar_prefetch = 0 : i64, scratch_operands = 1 : i64, tpu.core_type = #tpu.core_type<tc>, window_params = [{transform_indices = @transform_0, window_bounds = array<i64: 8, 256>}, {transform_indices = @transform_1, window_bounds = array<i64: 256, 1024>}, {pipeline_mode = #tpu.pipeline_mode<synchronous>, transform_indices = @transform_2, window_bounds = array<i64: 1, 1024>}, {pipeline_mode = #tpu.pipeline_mode<synchronous>, transform_indices = @transform_3, window_bounds = array<i64: 1024, 32>}, {pipeline_mode = #tpu.pipeline_mode<synchronous>, transform_indices = @transform_4, window_bounds = array<i64: 1, 32>}, {transform_indices = @transform_5, window_bounds = array<i64: 8, 32>}]} {
    %c0_i32 = arith.constant 0 : i32
    %0 = arith.cmpi eq, %arg1, %c0_i32 : i32
    %1 = arith.extui %0 : i1 to i32
    %c0_i32_0 = arith.constant 0 : i32
    %2 = arith.cmpi ne, %1, %c0_i32_0 : i32
    scf.if %2 {
      %cst_10 = arith.constant 0.000000e+00 : f32
      %12 = vector.broadcast %cst_10 : f32 to vector<8x1024xf32>
      %c0_11 = arith.constant 0 : index
      %c0_12 = arith.constant 0 : index
      %13 = vector.load %arg8[%c0_11, %c0_12] : memref<8x1024xf32, #tpu.memory_space<vmem>>, vector<8x1024xf32>
      tpu.vector_store %arg8[%c0_11, %c0_12], %12 {strides = array<i32>} : memref<8x1024xf32, #tpu.memory_space<vmem>>, vector<8x1024xf32>,
    } else {
    }
    %c0 = arith.constant 0 : index
    %c0_1 = arith.constant 0 : index
    %3 = vector.load %arg8[%c0, %c0_1] : memref<8x1024xf32, #tpu.memory_space<vmem>>, vector<8x1024xf32>
    %c0_2 = arith.constant 0 : index
    %c0_3 = arith.constant 0 : index
    %4 = vector.load %arg2[%c0_2, %c0_3] : memref<8x256xbf16, #tpu.memory_space<vmem>>, vector<8x256xbf16>
    %c0_4 = arith.constant 0 : index
    %c0_5 = arith.constant 0 : index
    %5 = vector.load %arg3[%c0_4, %c0_5] : memref<256x1024xbf16, #tpu.memory_space<vmem>>, vector<256x1024xbf16>
    %cst = arith.constant dense<0.000000e+00> : vector<8x1024xf32>
    %6 = tpu.matmul %4, %5, %cst {dimension_numbers = #tpu.dot_dimension_numbers<[1], [0], [0], [1], [0, 0, 1, 1], [], []>} : vector<8x256xbf16>, vector<256x1024xbf16>, vector<8x1024xf32> -> vector<8x1024xf32>
    %7 = arith.addf %3, %6 : vector<8x1024xf32>
    %c0_6 = arith.constant 0 : index
    %c0_7 = arith.constant 0 : index
    %8 = vector.load %arg8[%c0_6, %c0_7] : memref<8x1024xf32, #tpu.memory_space<vmem>>, vector<8x1024xf32>
    tpu.vector_store %arg8[%c0_6, %c0_7], %7 {strides = array<i32>} : memref<8x1024xf32, #tpu.memory_space<vmem>>, vector<8x1024xf32>,
    %c0_i32_8 = arith.constant 0 : i32
    %9 = arith.cmpi eq, %arg1, %c0_i32_8 : i32
    %10 = arith.extui %9 : i1 to i32
    %c0_i32_9 = arith.constant 0 : i32
    %11 = arith.cmpi ne, %10, %c0_i32_9 : i32
    scf.if %11 {
      %c0_10 = arith.constant 0 : index
      %c0_11 = arith.constant 0 : index
      %12 = vector.load %arg8[%c0_10, %c0_11] : memref<8x1024xf32, #tpu.memory_space<vmem>>, vector<8x1024xf32>
      %c0_12 = arith.constant 0 : index
      %c0_13 = arith.constant 0 : index
      %13 = vector.load %arg4[%c0_12, %c0_13] : memref<1x1024xf32, #tpu.memory_space<vmem>>, vector<1x1024xf32>
      %14 = vector.broadcast %13 : vector<1x1024xf32> to vector<8x1024xf32>
      %15 = arith.addf %12, %14 : vector<8x1024xf32>
      %cst_14 = arith.constant 0.000000e+00 : f32
      %16 = vector.broadcast %cst_14 : f32 to vector<8x1024xf32>
      %17 = arith.maximumf %15, %16 : vector<8x1024xf32>
      %18 = arith.truncf %17 : vector<8x1024xf32> to vector<8x1024xbf16>
      %c0_15 = arith.constant 0 : index
      %c0_16 = arith.constant 0 : index
      %19 = vector.load %arg5[%c0_15, %c0_16] : memref<1024x32xbf16, #tpu.memory_space<vmem>>, vector<1024x32xbf16>
      %cst_17 = arith.constant dense<0.000000e+00> : vector<8x32xf32>
      %20 = tpu.matmul %18, %19, %cst_17 {dimension_numbers = #tpu.dot_dimension_numbers<[1], [0], [0], [1], [0, 0, 1, 1], [], []>} : vector<8x1024xbf16>, vector<1024x32xbf16>, vector<8x32xf32> -> vector<8x32xf32>
      %c0_18 = arith.constant 0 : index
      %c0_19 = arith.constant 0 : index
      %21 = vector.load %arg6[%c0_18, %c0_19] : memref<1x32xf32, #tpu.memory_space<vmem>>, vector<1x32xf32>
      %22 = vector.broadcast %21 : vector<1x32xf32> to vector<8x32xf32>
      %23 = arith.addf %20, %22 : vector<8x32xf32>
      %c0_20 = arith.constant 0 : index
      %c0_21 = arith.constant 0 : index
      %24 = vector.load %arg7[%c0_20, %c0_21] : memref<8x32xf32, #tpu.memory_space<vmem>>, vector<8x32xf32>
      tpu.vector_store %arg7[%c0_20, %c0_21], %23 {strides = array<i32>} : memref<8x32xf32, #tpu.memory_space<vmem>>, vector<8x32xf32>,
    } else {
    }
    return
  }
  func.func @transform_0(%arg0: i32, %arg1: i32) -> (i32, i32) {
    %c0_i32 = arith.constant 0 : i32
    return %arg0, %arg1 : i32, i32
  }
  func.func @transform_1(%arg0: i32, %arg1: i32) -> (i32, i32) {
    %c0_i32 = arith.constant 0 : i32
    %c0_i32_0 = arith.constant 0 : i32
    return %arg1, %c0_i32 : i32, i32
  }
  func.func @transform_2(%arg0: i32, %arg1: i32) -> (i32, i32) {
    %c0_i32 = arith.constant 0 : i32
    %c0_i32_0 = arith.constant 0 : i32
    %c0_i32_1 = arith.constant 0 : i32
    return %c0_i32, %c0_i32_0 : i32, i32
  }
  func.func @transform_3(%arg0: i32, %arg1: i32) -> (i32, i32) {
    %c0_i32 = arith.constant 0 : i32
    %c0_i32_0 = arith.constant 0 : i32
    %c0_i32_1 = arith.constant 0 : i32
    return %c0_i32, %c0_i32_0 : i32, i32
  }
  func.func @transform_4(%arg0: i32, %arg1: i32) -> (i32, i32) {
    %c0_i32 = arith.constant 0 : i32
    %c0_i32_0 = arith.constant 0 : i32
    %c0_i32_1 = arith.constant 0 : i32
    return %c0_i32, %c0_i32_0 : i32, i32
  }
  func.func @transform_5(%arg0: i32, %arg1: i32) -> (i32, i32) {
    %c0_i32 = arith.constant 0 : i32
    %c0_i32_0 = arith.constant 0 : i32
    return %arg0, %c0_i32 : i32, i32
  }
}

</mosaic_0001>

<llo_original>
// kernel: encoder_forward.6
$region0: #{encoder_forward.6}
  #allocation0 [shape = 'u32[]', space=smem, size = 0x4, offset = 0x4, fixed_abs, tag = 'smem constant byte address 0x4 - core index']
  #allocation1 [shape = 'u32[144,128]{1,0:T(1,128)}', space=vmem, size = 0x12000, scoped, tag = 'internal scratch']
  %s0 = inlined_call_operand.hbm [shape: bf16[2,5,5,32], index: 0, kind: input, shape index: {}]
  %s1 = inlined_call_operand.hbm [shape: bf16[2,5,5,32], index: 1, kind: input, shape index: {}]
  %s2 = inlined_call_operand.hbm [shape: bf16[2,5,5,32], index: 2, kind: input, shape index: {}]
  %s3 = inlined_call_operand.hbm [shape: bf16[2,5,5,32], index: 3, kind: input, shape index: {}]
  %s4 = inlined_call_operand.hbm [shape: bf16[9,32,64], index: 4, kind: input, shape index: {}]
  %s5 = inlined_call_operand.hbm [shape: f32[1,64], index: 5, kind: input, shape index: {}]
  %s6 = inlined_call_operand.hbm [shape: bf16[2,16,64], index: 6, kind: output, shape index: {}]
  %s7 = sld [smem:[#allocation0]]
  $region81: #{encoder_forward.6} parent=0
    _
  %s9 = ssub.s32 1, %s7
  %s10 = scalar_select 0, %s9, %s7
  $region1: #{encoder_forward.6} parent=0
    #allocation2 [shape = 'u8[20480]{0}', space=vmem, size = 0x5000, scoped, tag = 'input window, operand 0']
    #allocation3 [shape = 's32[2]{0}', space=sflag, size = 0x8, scoped, tag = 'scoped memory for encoder_forward.6']
    #allocation4 [shape = 's32[2]{0}', space=sflag, size = 0x8, scoped, tag = 'scoped memory for encoder_forward.6']
    #allocation5 [shape = 'u8[20480]{0}', space=vmem, size = 0x5000, scoped, tag = 'input window, operand 1']
    #allocation6 [shape = 's32[2]{0}', space=sflag, size = 0x8, scoped, tag = 'scoped memory for encoder_forward.6']
    #allocation7 [shape = 'u8[20480]{0}', space=vmem, size = 0x5000, scoped, tag = 'input window, operand 2']
    #allocation8 [shape = 'u8[20480]{0}', space=vmem, size = 0x5000, scoped, tag = 'input window, operand 3']
    #allocation9 [shape = 's32[2]{0}', space=sflag, size = 0x8, scoped, tag = 'scoped memory for encoder_forward.6']
    #allocation10 [shape = 'u8[73728]{0}', space=vmem, size = 0x12000, scoped, tag = 'input window, operand 4, single buffered']
    #allocation11 [shape = 'u8[512]{0}', space=vmem, size = 0x400, scoped, tag = 'input window, operand 5, single buffered']
    #allocation12 [shape = 's32[1]{0}', space=sflag, size = 0x4, scoped, tag = 'scoped memory for encoder_forward.6']
    #allocation13 [shape = 'u8[8192]{0}', space=vmem, size = 0x2000, scoped, tag = 'output window, operand 0']
    %11 = vsyncpa [#allocation3], 0
    %s12 = scalar_lea.sflag [#allocation3], 1
    %13 = vsyncpa %s12, 0
    %14 = vsyncpa [#allocation6], 0
    %s15 = scalar_lea.sflag [#allocation6], 1
    %16 = vsyncpa %s15, 0
    %17 = vsyncpa [#allocation9], 0
    %s18 = scalar_lea.sflag [#allocation9], 1
    %19 = vsyncpa %s18, 0
    %20 = vsyncpa [#allocation12], 0
    %21 = vsyncpa [#allocation4], 0
    %s22 = scalar_lea.sflag [#allocation4], 1
    %23 = vsyncpa %s22, 0
    loop: start=0, step=1, limit=4
    $region2: #{encoder_forward.6} parent=1 // loop_pre_header
      _
    $region3: #{encoder_forward.6} parent=1 // loop_header
      %s25 = sphi 0, %s29
      %p26 = scmp.ge.s32.totalorder %s25, 4
      %s35 = sphi 0, %s37
      %s38 = sphi 0, %s35
      %s39 = sphi 0, %s38
      %s55 = sphi 0, %s39
      %s61 = sphi 0, %s63
      %s64 = sphi 0, %s61
      %s65 = sphi 0, %s64
      %s81 = sphi 0, %s65
      %s87 = sphi 0, %s89
      %s90 = sphi 0, %s87
      %s91 = sphi 0, %s90
      %s107 = sphi 0, %s91
      %s113 = sphi 0, %s115
      %s116 = sphi 0, %s113
      %s117 = sphi 0, %s116
      %s133 = sphi 0, %s117
      %s137 = sphi 0, %s137
      %s139 = sphi 0, %s137
      %s140 = sphi 0, %s139
      %s154 = sphi 0, %s140
      %s158 = sphi 0, %s158
      %s160 = sphi 0, %s158
      %s161 = sphi 0, %s160
      %s175 = sphi 0, %s161
      %s181 = sphi 0, %s183
      %s184 = sphi 0, %s181
      %s185 = sphi 0, %s184
      %s201 = sphi 0, %s185
    $region4: #{encoder_forward.6} parent=1 // loop_header_branch
      %28 = sbr.rel (%p26) target = $region8
    $region5: #{encoder_forward.6} parent=1 // loop_body
      %s30 = ssub.s32 %s25, 1
      %s31 = ssub.s32 %s25, 2
      %s32 = sadd.s32 %s25, 1
      %s33 = ssub.s32 %s25, %s32
      %p34 = scmp.eq.s32.totalorder %s33, 0
      %s36 = sadd.s32 %s35, 1
      %s37 = scalar_select %p34, %s35, %s36
      %p40 = pneg %p34
      %p41 = scmp.eq.s32.totalorder %s25, 1
      %p42 = por %p40, %p41
      %p43 = scmp.ne.s32.totalorder %s35, %s38
      %p44 = scmp.eq.s32.totalorder %s25, 0
      %p45 = por %p43, %p44
      %p46 = scmp.ne.s32.totalorder %s35, %s38
      %p47 = scmp.eq.s32.totalorder %s30, 1
      %p48 = por %p46, %p47
      %p49 = scmp.ne.s32.totalorder %s38, %s39
      %p50 = scmp.eq.s32.totalorder %s30, 0
      %p51 = por %p49, %p50
      %p52 = scmp.ne.s32.totalorder %s38, %s39
      %p53 = scmp.eq.s32.totalorder %s31, 1
      %p54 = por %p52, %p53
      %p56 = scmp.ne.s32.totalorder %s39, %s55
      %p57 = scmp.eq.s32.totalorder %s31, 0
      %p58 = por %p56, %p57
      %s59 = ssub.s32 %s25, %s32
      %p60 = scmp.eq.s32.totalorder %s59, 0
      %s62 = sadd.s32 %s61, 1
      %s63 = scalar_select %p60, %s61, %s62
      %p66 = pneg %p60
      %p67 = scmp.eq.s32.totalorder %s25, 1
      %p68 = por %p66, %p67
      %p69 = scmp.ne.s32.totalorder %s61, %s64
      %p70 = scmp.eq.s32.totalorder %s25, 0
      %p71 = por %p69, %p70
      %p72 = scmp.ne.s32.totalorder %s61, %s64
      %p73 = scmp.eq.s32.totalorder %s30, 1
      %p74 = por %p72, %p73
      %p75 = scmp.ne.s32.totalorder %s64, %s65
      %p76 = scmp.eq.s32.totalorder %s30, 0
      %p77 = por %p75, %p76
      %p78 = scmp.ne.s32.totalorder %s64, %s65
      %p79 = scmp.eq.s32.totalorder %s31, 1
      %p80 = por %p78, %p79
      %p82 = scmp.ne.s32.totalorder %s65, %s81
      %p83 = scmp.eq.s32.totalorder %s31, 0
      %p84 = por %p82, %p83
      %s85 = ssub.s32 %s25, %s32
      %p86 = scmp.eq.s32.totalorder %s85, 0
      %s88 = sadd.s32 %s87, 1
      %s89 = scalar_select %p86, %s87, %s88
      %p92 = pneg %p86
      %p93 = scmp.eq.s32.totalorder %s25, 1
      %p94 = por %p92, %p93
      %p95 = scmp.ne.s32.totalorder %s87, %s90
      %p96 = scmp.eq.s32.totalorder %s25, 0
      %p97 = por %p95, %p96
      %p98 = scmp.ne.s32.totalorder %s87, %s90
      %p99 = scmp.eq.s32.totalorder %s30, 1
      %p100 = por %p98, %p99
      %p101 = scmp.ne.s32.totalorder %s90, %s91
      %p102 = scmp.eq.s32.totalorder %s30, 0
      %p103 = por %p101, %p102
      %p104 = scmp.ne.s32.totalorder %s90, %s91
      %p105 = scmp.eq.s32.totalorder %s31, 1
      %p106 = por %p104, %p105
      %p108 = scmp.ne.s32.totalorder %s91, %s107
      %p109 = scmp.eq.s32.totalorder %s31, 0
      %p110 = por %p108, %p109
      %s111 = ssub.s32 %s25, %s32
      %p112 = scmp.eq.s32.totalorder %s111, 0
      %s114 = sadd.s32 %s113, 1
      %s115 = scalar_select %p112, %s113, %s114
      %p118 = pneg %p112
      %p119 = scmp.eq.s32.totalorder %s25, 1
      %p120 = por %p118, %p119
      %p121 = scmp.ne.s32.totalorder %s113, %s116
      %p122 = scmp.eq.s32.totalorder %s25, 0
      %p123 = por %p121, %p122
      %p124 = scmp.ne.s32.totalorder %s113, %s116
      %p125 = scmp.eq.s32.totalorder %s30, 1
      %p126 = por %p124, %p125
      %p127 = scmp.ne.s32.totalorder %s116, %s117
      %p128 = scmp.eq.s32.totalorder %s30, 0
      %p129 = por %p127, %p128
      %p130 = scmp.ne.s32.totalorder %s116, %s117
      %p131 = scmp.eq.s32.totalorder %s31, 1
      %p132 = por %p130, %p131
      %p134 = scmp.ne.s32.totalorder %s117, %s133
      %p135 = scmp.eq.s32.totalorder %s31, 0
      %p136 = por %p134, %p135
      %s138 = sadd.s32 %s137, 1
      %p141 = scmp.eq.s32.totalorder %s25, 1
      %p142 = scmp.ne.s32.totalorder %s137, %s139
      %p143 = scmp.eq.s32.totalorder %s25, 0
      %p144 = por %p142, %p143
      %p145 = scmp.ne.s32.totalorder %s137, %s139
      %p146 = scmp.eq.s32.totalorder %s30, 1
      %p147 = por %p145, %p146
      %p148 = scmp.ne.s32.totalorder %s139, %s140
      %p149 = scmp.eq.s32.totalorder %s30, 0
      %p150 = por %p148, %p149
      %p151 = scmp.ne.s32.totalorder %s139, %s140
      %p152 = scmp.eq.s32.totalorder %s31, 1
      %p153 = por %p151, %p152
      %p155 = scmp.ne.s32.totalorder %s140, %s154
      %p156 = scmp.eq.s32.totalorder %s31, 0
      %p157 = por %p155, %p156
      %s159 = sadd.s32 %s158, 1
      %p162 = scmp.eq.s32.totalorder %s25, 1
      %p163 = scmp.ne.s32.totalorder %s158, %s160
      %p164 = scmp.eq.s32.totalorder %s25, 0
      %p165 = por %p163, %p164
      %p166 = scmp.ne.s32.totalorder %s158, %s160
      %p167 = scmp.eq.s32.totalorder %s30, 1
      %p168 = por %p166, %p167
      %p169 = scmp.ne.s32.totalorder %s160, %s161
      %p170 = scmp.eq.s32.totalorder %s30, 0
      %p171 = por %p169, %p170
      %p172 = scmp.ne.s32.totalorder %s160, %s161
      %p173 = scmp.eq.s32.totalorder %s31, 1
      %p174 = por %p172, %p173
      %p176 = scmp.ne.s32.totalorder %s161, %s175
      %p177 = scmp.eq.s32.totalorder %s31, 0
      %p178 = por %p176, %p177
      %s179 = ssub.s32 %s25, %s32
      %p180 = scmp.eq.s32.totalorder %s179, 0
      %s182 = sadd.s32 %s181, 1
      %s183 = scalar_select %p180, %s181, %s182
      %p186 = pneg %p180
      %p187 = scmp.eq.s32.totalorder %s25, 1
      %p188 = por %p186, %p187
      %p189 = scmp.ne.s32.totalorder %s181, %s184
      %p190 = scmp.eq.s32.totalorder %s25, 0
      %p191 = por %p189, %p190
      %p192 = scmp.ne.s32.totalorder %s181, %s184
      %p193 = scmp.eq.s32.totalorder %s30, 1
      %p194 = por %p192, %p193
      %p195 = scmp.ne.s32.totalorder %s184, %s185
      %p196 = scmp.eq.s32.totalorder %s30, 0
      %p197 = por %p195, %p196
      %p198 = scmp.ne.s32.totalorder %s184, %s185
      %p199 = scmp.eq.s32.totalorder %s31, 1
      %p200 = por %p198, %p199
      %p202 = scmp.ne.s32.totalorder %s185, %s201
      %p203 = scmp.eq.s32.totalorder %s31, 0
      %p204 = por %p202, %p203
      %p205 = scmp.le.s32.totalorder 1, %s25
      %p206 = scmp.lt.s32.totalorder %s25, 3
      %p207 = pnand %p205, %p206
      %p208 = pneg %p207
      // Predicated region
      $region9: #{encoder_forward.6} parent=5 // pred_check
        _
      $region10: #{encoder_forward.6} parent=5 // pred_check_branch
        %210 = sbr.rel (%p207) target = $region12
      $region11: #{encoder_forward.6} parent=5 // pred_region
        %s211 = ssub.s32 %s25, 1
        // Predicated region
        $region13: #{encoder_forward.6} parent=11 // pred_check
          %p212 = pneg %p150
        $region14: #{encoder_forward.6} parent=11 // pred_check_branch
          %214 = sbr.rel (%p212) target = $region16
        $region15: #{encoder_forward.6} parent=11 // pred_region
          %s216 = ssub.s32 2304, 2304
          %217 = vsyncadd [#allocation9], %s216
          %s218 = sshll.u32 [#allocation10], 4
          %s219 = int_to_ptr.vmem [resolvable:$true] %s218
          %224 = dma.hbm_to_vmem [thread:$0]  %s4, 2304, %s219, [#allocation9], 64, 64, 4
        $region16: #{encoder_forward.6} parent=11 // pred_fallthru
          _
        // Predicated region
        $region17: #{encoder_forward.6} parent=11 // pred_check
          %p225 = pneg %p171
        $region18: #{encoder_forward.6} parent=11 // pred_check_branch
          %227 = sbr.rel (%p225) target = $region20
        $region19: #{encoder_forward.6} parent=11 // pred_region
          %s229 = ssub.s32 16, 16
          %230 = vsyncadd [#allocation12], %s229
          %s232 = sshll.u32 [#allocation11], 4
          %s233 = int_to_ptr.vmem [resolvable:$true] %s232
          %235 = dma.hbm_to_vmem [thread:$0]  %s5, 16, %s233, [#allocation12]
        $region20: #{encoder_forward.6} parent=11 // pred_fallthru
          _
      $region12: #{encoder_forward.6} parent=5 // pred_fallthru
        _
      %p236 = scmp.lt.s32.totalorder %s25, 2
      // Predicated region
      $region21: #{encoder_forward.6} parent=5 // pred_check
        %p237 = pneg %p236
      $region22: #{encoder_forward.6} parent=5 // pred_check_branch
        %239 = sbr.rel (%p237) target = $region24
      $region23: #{encoder_forward.6} parent=5 // pred_region
        // Predicated region
        $region25: #{encoder_forward.6} parent=23 // pred_check
          %p240 = pneg %p45
        $region26: #{encoder_forward.6} parent=23 // pred_check_branch
          %242 = sbr.rel (%p240) target = $region28
        $region27: #{encoder_forward.6} parent=23 // pred_region
          %s243 = sand.u32 %s35, 1
          %s244 = scalar_lea.sflag [#allocation3], %s243
          %s245 = sand.u32 %s35, 1
          %s246 = smul.addr %s245, 20
          %s247 = scalar_lea.vmem [#allocation2], %s246
          %s249 = ssub.s32 320, 320
          %250 = vsyncadd %s244, %s249
          %s251 = smul.addr %s25, 5
          %s252 = smul.addr %s251, 64
          %s253 = scalar_lea.hbm %s0, %s252
          %s254 = sshll.u32 %s247, 4
          %s255 = int_to_ptr.vmem [resolvable:$true] %s254
          %260 = dma.hbm_to_vmem [thread:$0]  %s253, 320, %s255, %s244, 64, 64, 4
        $region28: #{encoder_forward.6} parent=23 // pred_fallthru
          _
        // Predicated region
        $region29: #{encoder_forward.6} parent=23 // pred_check
          %p261 = pneg %p71
        $region30: #{encoder_forward.6} parent=23 // pred_check_branch
          %263 = sbr.rel (%p261) target = $region32
        $region31: #{encoder_forward.6} parent=23 // pred_region
          %s264 = sand.u32 %s25, 1
          %s265 = scalar_lea.sflag [#allocation6], %s264
          %s266 = sand.u32 %s61, 1
          %s267 = smul.addr %s266, 20
          %s268 = scalar_lea.vmem [#allocation5], %s267
          %s270 = ssub.s32 320, 320
          %271 = vsyncadd %s265, %s270
          %s272 = smul.addr %s25, 5
          %s273 = smul.addr %s272, 64
          %s274 = scalar_lea.hbm %s1, %s273
          %s275 = sshll.u32 %s268, 4
          %s276 = int_to_ptr.vmem [resolvable:$true] %s275
          %281 = dma.hbm_to_vmem [thread:$0]  %s274, 320, %s276, %s265, 64, 64, 4
        $region32: #{encoder_forward.6} parent=23 // pred_fallthru
          _
        // Predicated region
        $region33: #{encoder_forward.6} parent=23 // pred_check
          %p282 = pneg %p97
        $region34: #{encoder_forward.6} parent=23 // pred_check_branch
          %284 = sbr.rel (%p282) target = $region36
        $region35: #{encoder_forward.6} parent=23 // pred_region
          %s285 = sand.u32 %s25, 1
          %s286 = scalar_lea.sflag [#allocation6], %s285
          %s287 = sand.u32 %s87, 1
          %s288 = smul.addr %s287, 20
          %s289 = scalar_lea.vmem [#allocation7], %s288
          %s291 = ssub.s32 320, 320
          %292 = vsyncadd %s286, %s291
          %s293 = smul.addr %s25, 5
          %s294 = smul.addr %s293, 64
          %s295 = scalar_lea.hbm %s2, %s294
          %s296 = sshll.u32 %s289, 4
          %s297 = int_to_ptr.vmem [resolvable:$true] %s296
          %302 = dma.hbm_to_vmem [thread:$0]  %s295, 320, %s297, %s286, 64, 64, 4
        $region36: #{encoder_forward.6} parent=23 // pred_fallthru
          _
        // Predicated region
        $region37: #{encoder_forward.6} parent=23 // pred_check
          %p303 = pneg %p123
        $region38: #{encoder_forward.6} parent=23 // pred_check_branch
          %305 = sbr.rel (%p303) target = $region40
        $region39: #{encoder_forward.6} parent=23 // pred_region
          %s306 = sand.u32 %s25, 1
          %s307 = scalar_lea.sflag [#allocation9], %s306
          %s308 = sand.u32 %s113, 1
          %s309 = smul.addr %s308, 20
          %s310 = scalar_lea.vmem [#allocation8], %s309
          %s312 = ssub.s32 320, 320
          %313 = vsyncadd %s307, %s312
          %s314 = smul.addr %s25, 5
          %s315 = smul.addr %s314, 64
          %s316 = scalar_lea.hbm %s3, %s315
          %s317 = sshll.u32 %s310, 4
          %s318 = int_to_ptr.vmem [resolvable:$true] %s317
          %323 = dma.hbm_to_vmem [thread:$0]  %s316, 320, %s318, %s307, 64, 64, 4
        $region40: #{encoder_forward.6} parent=23 // pred_fallthru
          _
      $region24: #{encoder_forward.6} parent=5 // pred_fallthru
        _
      %p324 = scmp.le.s32.totalorder 1, %s25
      %p325 = scmp.lt.s32.totalorder %s25, 3
      %p326 = pnand %p324, %p325
      %p327 = pneg %p326
      // Predicated region
      $region41: #{encoder_forward.6} parent=5 // pred_check
        _
      $region42: #{encoder_forward.6} parent=5 // pred_check_branch
        %329 = sbr.rel (%p326) target = $region44
      $region43: #{encoder_forward.6} parent=5 // pred_region
        %s330 = ssub.s32 %s25, 1
        %s331 = sand.u32 %s38, 1
        %s332 = scalar_lea.sflag [#allocation3], %s331
        %s333 = sand.u32 %s38, 1
        %s334 = smul.addr %s333, 20
        %s335 = scalar_lea.vmem [#allocation2], %s334
        // Predicated region
        $region45: #{encoder_forward.6} parent=43 // pred_check
          %p336 = pneg %p51
        $region46: #{encoder_forward.6} parent=43 // pred_check_branch
          %338 = sbr.rel (%p336) target = $region48
        $region47: #{encoder_forward.6} parent=43 // pred_region
          %339 = dma.done %s332, 320
        $region48: #{encoder_forward.6} parent=43 // pred_fallthru
          _
        %s340 = sand.u32 %s30, 1
        %s341 = scalar_lea.sflag [#allocation6], %s340
        %s342 = sand.u32 %s64, 1
        %s343 = smul.addr %s342, 20
        %s344 = scalar_lea.vmem [#allocation5], %s343
        // Predicated region
        $region49: #{encoder_forward.6} parent=43 // pred_check
          %p345 = pneg %p77
        $region50: #{encoder_forward.6} parent=43 // pred_check_branch
          %347 = sbr.rel (%p345) target = $region52
        $region51: #{encoder_forward.6} parent=43 // pred_region
          %348 = dma.done %s341, 320
        $region52: #{encoder_forward.6} parent=43 // pred_fallthru
          _
        %s349 = sand.u32 %s30, 1
        %s350 = scalar_lea.sflag [#allocation6], %s349
        %s351 = sand.u32 %s90, 1
        %s352 = smul.addr %s351, 20
        %s353 = scalar_lea.vmem [#allocation7], %s352
        // Predicated region
        $region53: #{encoder_forward.6} parent=43 // pred_check
          %p354 = pneg %p103
        $region54: #{encoder_forward.6} parent=43 // pred_check_branch
          %356 = sbr.rel (%p354) target = $region56
        $region55: #{encoder_forward.6} parent=43 // pred_region
          %357 = dma.done %s350, 320
        $region56: #{encoder_forward.6} parent=43 // pred_fallthru
          _
        %s358 = sand.u32 %s30, 1
        %s359 = scalar_lea.sflag [#allocation9], %s358
        %s360 = sand.u32 %s116, 1
        %s361 = smul.addr %s360, 20
        %s362 = scalar_lea.vmem [#allocation8], %s361
        // Predicated region
        $region57: #{encoder_forward.6} parent=43 // pred_check
          %p363 = pneg %p129
        $region58: #{encoder_forward.6} parent=43 // pred_check_branch
          %365 = sbr.rel (%p363) target = $region60
        $region59: #{encoder_forward.6} parent=43 // pred_region
          %366 = dma.done %s359, 320
        $region60: #{encoder_forward.6} parent=43 // pred_fallthru
          _
        // Predicated region
        $region61: #{encoder_forward.6} parent=43 // pred_check
          %p367 = pneg %p150
        $region62: #{encoder_forward.6} parent=43 // pred_check_branch
          %369 = sbr.rel (%p367) target = $region64
        $region63: #{encoder_forward.6} parent=43 // pred_region
          %370 = dma.done [#allocation9], 2304
        $region64: #{encoder_forward.6} parent=43 // pred_fallthru
          _
        // Predicated region
        $region65: #{encoder_forward.6} parent=43 // pred_check
          %p371 = pneg %p171
        $region66: #{encoder_forward.6} parent=43 // pred_check_branch
          %373 = sbr.rel (%p371) target = $region68
        $region67: #{encoder_forward.6} parent=43 // pred_region
          %374 = dma.done [#allocation12], 16
        $region68: #{encoder_forward.6} parent=43 // pred_fallthru
          _
        %s375 = sand.u32 %s38, 1
        %s376 = scalar_lea.sflag [#allocation3], %s375
        %s377 = sand.u32 %s38, 1
        %s378 = smul.addr %s377, 20
        %s379 = scalar_lea.vmem [#allocation2], %s378
        %p380 = pneg %p51
        %p381 = pneg %p48
        %s382 = sand.u32 %s30, 1
        %s383 = scalar_lea.sflag [#allocation6], %s382
        %s384 = sand.u32 %s64, 1
        %s385 = smul.addr %s384, 20
        %s386 = scalar_lea.vmem [#allocation5], %s385
        %p387 = pneg %p77
        %p388 = pneg %p74
        %s389 = sand.u32 %s30, 1
        %s390 = scalar_lea.sflag [#allocation6], %s389
        %s391 = sand.u32 %s90, 1
        %s392 = smul.addr %s391, 20
        %s393 = scalar_lea.vmem [#allocation7], %s392
        %p394 = pneg %p103
        %p395 = pneg %p100
        %s396 = sand.u32 %s30, 1
        %s397 = scalar_lea.sflag [#allocation9], %s396
        %s398 = sand.u32 %s116, 1
        %s399 = smul.addr %s398, 20
        %s400 = scalar_lea.vmem [#allocation8], %s399
        %p401 = pneg %p129
        %p402 = pneg %p126
        %p403 = pneg %p150
        %p404 = pneg %p147
        %p405 = pneg %p171
        %p406 = pneg %p168
        %p407 = pneg %p197
        %p408 = pneg %p194
        %s409 = sand.u32 %s184, 1
        %s410 = scalar_lea.sflag [#allocation4], %s409
        %s411 = sand.u32 %s184, 1
        %s412 = smul.addr %s411, 8
        %s413 = scalar_lea.vmem [#allocation13], %s412
        %v415 = vld [vmem:[%s335] sm:$0x7]
        %v416 = vld [vmem:[%s335 + $0x4] sm:$0x7]
        %v417 = vld [vmem:[%s335 + $0x8] sm:$0x7]
        %v418 = vld [vmem:[%s335 + $0xc] sm:$0x7]
        %v419 = vld [vmem:[%s335 + $0x10] sm:$0x7]
        %v420 = vld [vmem:[#allocation10] sm:$0xf]
        %v421 = vld [vmem:[#allocation10 + $0x4] sm:$0xf]
        %v422 = vld [vmem:[#allocation10 + $0x8] sm:$0xf]
        %v423 = vld [vmem:[#allocation10 + $0xc] sm:$0xf]
        %v424 = vld [vmem:[%s344] sm:$0x7]
        %v425 = vld [vmem:[%s344 + $0x4] sm:$0x7]
        %v426 = vld [vmem:[%s344 + $0x8] sm:$0x7]
        %v427 = vld [vmem:[%s344 + $0xc] sm:$0x7]
        %v428 = vld [vmem:[%s344 + $0x10] sm:$0x7]
        %s429 = scalar_lea.vmem [#allocation10], 16
        %v430 = vld [vmem:[%s429] sm:$0xf]
        %v431 = vld [vmem:[%s429 + $0x4] sm:$0xf]
        %v432 = vld [vmem:[%s429 + $0x8] sm:$0xf]
        %v433 = vld [vmem:[%s429 + $0xc] sm:$0xf]
        %v438 = vcombine.low %v424, %v425
        %v439 = vcombine.low %v426, %v427
        %v441 = vunpack.c.l.s4 1983009808
        %v442 = vunpack.c.0.s8 %v441
        %v443 = vlaneseq
        %v444 = vshrl.u32 %v443, 7
        %v445 = vsub.s32 %v442, %v444
        %v446 = vrot.slane %v438, %v445
        %v448 = vunpack.c.l.s4 1983009808
        %v449 = vunpack.c.0.s8 %v448
        %v450 = vlaneseq
        %v451 = vshrl.u32 %v450, 7
        %v452 = vsub.s32 %v449, %v451
        %v453 = vrot.slane %v439, %v452
        %v454 = vcombine.low %v446, %v453
        %v459 = vunpack.c.l.b16 %v430
        %v460 = vunpack.c.l.b16 %v431
        %v461 = vunpack.c.l.b16 %v432
        %v462 = vunpack.c.l.b16 %v433
        %v463 = vpack.c.b16 %v460, %v459
        %v464 = vpack.c.b16 %v462, %v461
        %vm467 = vcmask 261120
        %v469 = vsel %vm467, %v454, 0
        %471 = vmatprep.subr.bf16.mxu0 0
        %472 = vmatpush1.bf16.msra.mxu0 %v463
        %473 = vmatprep.subr.bf16.mxu0 0
        %474 = vmatpush1.bf16.msra.mxu0 %v464
        %475 = vmatprep.subr.bf16.mxu0 0
        %476 = vmatpush1.bf16.msra.mxu0 0
        %477 = vmatprep.subr.bf16.mxu0 0
        %478 = vmatpush1.bf16.msra.mxu0 0
        %479 = vmatprep.subr.bf16.mxu0 0
        %480 = vmatpush1.bf16.msra.mxu0 0
        %481 = vmatprep.subr.bf16.mxu0 0
        %482 = vmatpush1.bf16.msra.mxu0 0
        %483 = vmatprep.subr.bf16.mxu0 0
        %484 = vmatpush1.bf16.msra.mxu0 0
        %485 = vmatprep.subr.bf16.mxu0 0
        %486 = vmatpush1.bf16.msra.mxu0 0
        %487 = vmatprep.subr.bf16.mxu0 0
        %488 = vmatpush1.bf16.msra.mxu0 0
        %489 = vmatprep.subr.bf16.mxu0 0
        %490 = vmatpush1.bf16.msra.mxu0 0
        %491 = vmatprep.subr.bf16.mxu0 0
        %492 = vmatpush1.bf16.msra.mxu0 0
        %493 = vmatprep.subr.bf16.mxu0 0
        %494 = vmatpush1.bf16.msra.mxu0 0
        %495 = vmatprep.subr.bf16.mxu0 0
        %496 = vmatpush1.bf16.msra.mxu0 0
        %497 = vmatprep.subr.bf16.mxu0 0
        %498 = vmatpush1.bf16.msra.mxu0 0
        %499 = vmatprep.subr.bf16.mxu0 0
        %500 = vmatpush1.bf16.msra.mxu0 0
        %501 = vmatprep.subr.bf16.mxu0 0
        %502 = vmatpush1.bf16.msra.mxu0 0
        %503 = vmatprep.mubr.bf16.mxu0 0
        %504 = vmatmul.mubr.bf16.gmra.mrb[0].mxu0 %v469
        %v505 = vpop.f32.mrb[0].mxu0
        %v506 = vadd.f32 0.0, %v505
        %v507 = vpop.f32.mrb[0].mxu0
        %v508 = vpop.f32.mrb[0].mxu0
        %v509 = vadd.f32 0.0, %v508
        %v510 = vpop.f32.mrb[0].mxu0
        %511 = vdwg.mxu0
        %v516 = vcombine.low %v415, %v416
        %v517 = vcombine.low %v417, %v418
        %v519 = vunpack.c.l.s4 1983009808
        %v520 = vunpack.c.0.s8 %v519
        %v521 = vlaneseq
        %v522 = vshrl.u32 %v521, 7
        %v523 = vsub.s32 %v520, %v522
        %v524 = vrot.slane %v516, %v523
        %v526 = vunpack.c.l.s4 1983009808
        %v527 = vunpack.c.0.s8 %v526
        %v528 = vlaneseq
        %v529 = vshrl.u32 %v528, 7
        %v530 = vsub.s32 %v527, %v529
        %v531 = vrot.slane %v517, %v530
        %v532 = vcombine.low %v524, %v531
        %v537 = vunpack.c.l.b16 %v420
        %v538 = vunpack.c.l.b16 %v421
        %v539 = vunpack.c.l.b16 %v422
        %v540 = vunpack.c.l.b16 %v423
        %v541 = vpack.c.b16 %v538, %v537
        %v542 = vpack.c.b16 %v540, %v539
        %v546 = vsel %vm467, %v532, 0
        %548 = vmatprep.subr.bf16.mxu0 0
        %549 = vmatpush1.bf16.msra.mxu0 %v541
        %550 = vmatprep.subr.bf16.mxu0 0
        %551 = vmatpush1.bf16.msra.mxu0 %v542
        %552 = vmatprep.subr.bf16.mxu0 0
        %553 = vmatpush1.bf16.msra.mxu0 0
        %554 = vmatprep.subr.bf16.mxu0 0
        %555 = vmatpush1.bf16.msra.mxu0 0
        %556 = vmatprep.subr.bf16.mxu0 0
        %557 = vmatpush1.bf16.msra.mxu0 0
        %558 = vmatprep.subr.bf16.mxu0 0
        %559 = vmatpush1.bf16.msra.mxu0 0
        %560 = vmatprep.subr.bf16.mxu0 0
        %561 = vmatpush1.bf16.msra.mxu0 0
        %562 = vmatprep.subr.bf16.mxu0 0
        %563 = vmatpush1.bf16.msra.mxu0 0
        %564 = vmatprep.subr.bf16.mxu0 0
        %565 = vmatpush1.bf16.msra.mxu0 0
        %566 = vmatprep.subr.bf16.mxu0 0
        %567 = vmatpush1.bf16.msra.mxu0 0
        %568 = vmatprep.subr.bf16.mxu0 0
        %569 = vmatpush1.bf16.msra.mxu0 0
        %570 = vmatprep.subr.bf16.mxu0 0
        %571 = vmatpush1.bf16.msra.mxu0 0
        %572 = vmatprep.subr.bf16.mxu0 0
        %573 = vmatpush1.bf16.msra.mxu0 0
        %574 = vmatprep.subr.bf16.mxu0 0
        %575 = vmatpush1.bf16.msra.mxu0 0
        %576 = vmatprep.subr.bf16.mxu0 0
        %577 = vmatpush1.bf16.msra.mxu0 0
        %578 = vmatprep.subr.bf16.mxu0 0
        %579 = vmatpush1.bf16.msra.mxu0 0
        %580 = vmatprep.mubr.bf16.mxu0 0
        %581 = vmatmul.mubr.bf16.gmra.mrb[0].mxu0 %v546
        %v582 = vpop.f32.mrb[0].mxu0
        %v583 = vadd.f32 %v506, %v582
        %v584 = vpop.f32.mrb[0].mxu0
        %v585 = vpop.f32.mrb[0].mxu0
        %v586 = vadd.f32 %v509, %v585
        %v587 = vpop.f32.mrb[0].mxu0
        %588 = vdwg.mxu0
        %v590 = vunpack.c.l.s4 1983009808
        %v591 = vunpack.c.0.s8 %v590
        %v592 = vlaneseq
        %v593 = vshrl.u32 %v592, 7
        %v594 = vsub.s32 %v591, %v593
        %v595 = vrot.slane %v415, %v594
        %v596 = vcombine.high %v595, %v595
        %v598 = vunpack.c.l.s4 1983009808
        %v599 = vunpack.c.0.s8 %v598
        %v600 = vlaneseq
        %v601 = vshrl.u32 %v600, 7
        %v602 = vsub.s32 %v599, %v601
        %v603 = vrot.slane %v416, %v602
        %v604 = vcombine.high %v603, %v603
        %v606 = vunpack.c.l.s4 1983009808
        %v607 = vunpack.c.0.s8 %v606
        %v608 = vlaneseq
        %v609 = vshrl.u32 %v608, 7
        %v610 = vsub.s32 %v607, %v609
        %v611 = vrot.slane %v417, %v610
        %v612 = vcombine.high %v611, %v611
        %v614 = vunpack.c.l.s4 1983009808
        %v615 = vunpack.c.0.s8 %v614
        %v616 = vlaneseq
        %v617 = vshrl.u32 %v616, 7
        %v618 = vsub.s32 %v615, %v617
        %v619 = vrot.slane %v418, %v618
        %v620 = vcombine.high %v619, %v619
        %vm621 = vsmask.f32 1280
        %vm622 = vsmask.f32 3336
        %vm623 = vmor %vm621, %vm622
        %vm624 = vsmask.f32 5392
        %vm625 = vmor %vm623, %vm624
        %vm626 = vsmask.f32 7448
        %vm627 = vmor %vm625, %vm626
        %v629 = vshrl.u32 %v595, 16
        %v631 = vrot.slane %v629, 6
        %v632 = vshll.u32 %v595, 16
        %v634 = vrot.slane %v632, 7
        %v635 = vor.u32 %v631, %v634
        %v636 = vrot.slane %v635, 2
        %v638 = vshll.u32 %v596, 16
        %v640 = vrot.slane %v638, 7
        %v641 = vsel %vm627, %v636, %v640
        %v643 = vshrl.u32 %v603, 16
        %v645 = vrot.slane %v643, 6
        %v646 = vshll.u32 %v603, 16
        %v648 = vrot.slane %v646, 7
        %v649 = vor.u32 %v645, %v648
        %v650 = vrot.slane %v649, 2
        %v652 = vshll.u32 %v604, 16
        %v654 = vrot.slane %v652, 7
        %v655 = vsel %vm627, %v650, %v654
        %v657 = vshrl.u32 %v611, 16
        %v659 = vrot.slane %v657, 6
        %v660 = vshll.u32 %v611, 16
        %v662 = vrot.slane %v660, 7
        %v663 = vor.u32 %v659, %v662
        %v664 = vrot.slane %v663, 2
        %v666 = vshll.u32 %v612, 16
        %v668 = vrot.slane %v666, 7
        %v669 = vsel %vm627, %v664, %v668
        %v671 = vshrl.u32 %v619, 16
        %v673 = vrot.slane %v671, 6
        %v674 = vshll.u32 %v619, 16
        %v676 = vrot.slane %v674, 7
        %v677 = vor.u32 %v673, %v676
        %v678 = vrot.slane %v677, 2
        %v680 = vshll.u32 %v620, 16
        %v682 = vrot.slane %v680, 7
        %v683 = vsel %vm627, %v678, %v682
        %s684 = scalar_lea.vmem [#allocation10], 32
        %v685 = vld [vmem:[%s684] sm:$0xf]
        %v686 = vld [vmem:[%s684 + $0x4] sm:$0xf]
        %v687 = vld [vmem:[%s684 + $0x8] sm:$0xf]
        %v688 = vld [vmem:[%s684 + $0xc] sm:$0xf]
        %v689 = vcombine.low %v641, %v655
        %v690 = vcombine.low %v669, %v683
        %v692 = vunpack.c.l.s4 1983009808
        %v693 = vunpack.c.0.s8 %v692
        %v694 = vlaneseq
        %v695 = vshrl.u32 %v694, 7
        %v696 = vsub.s32 %v693, %v695
        %v697 = vrot.slane %v689, %v696
        %v699 = vunpack.c.l.s4 1983009808
        %v700 = vunpack.c.0.s8 %v699
        %v701 = vlaneseq
        %v702 = vshrl.u32 %v701, 7
        %v703 = vsub.s32 %v700, %v702
        %v704 = vrot.slane %v690, %v703
        %v705 = vcombine.low %v697, %v704
        %v710 = vunpack.c.l.b16 %v685
        %v711 = vunpack.c.l.b16 %v686
        %v712 = vunpack.c.l.b16 %v687
        %v713 = vunpack.c.l.b16 %v688
        %v714 = vpack.c.b16 %v711, %v710
        %v715 = vpack.c.b16 %v713, %v712
        %v719 = vsel %vm467, %v705, 0
        %721 = vmatprep.subr.bf16.mxu0 0
        %722 = vmatpush1.bf16.msra.mxu0 %v714
        %723 = vmatprep.subr.bf16.mxu0 0
        %724 = vmatpush1.bf16.msra.mxu0 %v715
        %725 = vmatprep.subr.bf16.mxu0 0
        %726 = vmatpush1.bf16.msra.mxu0 0
        %727 = vmatprep.subr.bf16.mxu0 0
        %728 = vmatpush1.bf16.msra.mxu0 0
        %729 = vmatprep.subr.bf16.mxu0 0
        %730 = vmatpush1.bf16.msra.mxu0 0
        %731 = vmatprep.subr.bf16.mxu0 0
        %732 = vmatpush1.bf16.msra.mxu0 0
        %733 = vmatprep.subr.bf16.mxu0 0
        %734 = vmatpush1.bf16.msra.mxu0 0
        %735 = vmatprep.subr.bf16.mxu0 0
        %736 = vmatpush1.bf16.msra.mxu0 0
        %737 = vmatprep.subr.bf16.mxu0 0
        %738 = vmatpush1.bf16.msra.mxu0 0
        %739 = vmatprep.subr.bf16.mxu0 0
        %740 = vmatpush1.bf16.msra.mxu0 0
        %741 = vmatprep.subr.bf16.mxu0 0
        %742 = vmatpush1.bf16.msra.mxu0 0
        %743 = vmatprep.subr.bf16.mxu0 0
        %744 = vmatpush1.bf16.msra.mxu0 0
        %745 = vmatprep.subr.bf16.mxu0 0
        %746 = vmatpush1.bf16.msra.mxu0 0
        %747 = vmatprep.subr.bf16.mxu0 0
        %748 = vmatpush1.bf16.msra.mxu0 0
        %749 = vmatprep.subr.bf16.mxu0 0
        %750 = vmatpush1.bf16.msra.mxu0 0
        %751 = vmatprep.subr.bf16.mxu0 0
        %752 = vmatpush1.bf16.msra.mxu0 0
        %753 = vmatprep.mubr.bf16.mxu0 0
        %754 = vmatmul.mubr.bf16.gmra.mrb[0].mxu0 %v719
        %v755 = vpop.f32.mrb[0].mxu0
        %v756 = vadd.f32 0.0, %v755
        %v757 = vpop.f32.mrb[0].mxu0
        %v758 = vpop.f32.mrb[0].mxu0
        %v759 = vadd.f32 0.0, %v758
        %v760 = vpop.f32.mrb[0].mxu0
        %761 = vdwg.mxu0
        %v762 = vadd.f32 %v583, %v756
        %v763 = vadd.f32 %v586, %v759
        %v764 = vld [vmem:[%s353] sm:$0x7]
        %v765 = vld [vmem:[%s353 + $0x4] sm:$0x7]
        %v766 = vld [vmem:[%s353 + $0x8] sm:$0x7]
        %v767 = vld [vmem:[%s353 + $0xc] sm:$0x7]
        %s768 = scalar_lea.vmem [#allocation10], 48
        %v769 = vld [vmem:[%s768] sm:$0xf]
        %v770 = vld [vmem:[%s768 + $0x4] sm:$0xf]
        %v771 = vld [vmem:[%s768 + $0x8] sm:$0xf]
        %v772 = vld [vmem:[%s768 + $0xc] sm:$0xf]
        %v777 = vcombine.low %v764, %v765
        %v778 = vcombine.low %v766, %v767
        %v780 = vunpack.c.l.s4 1983009808
        %v781 = vunpack.c.0.s8 %v780
        %v782 = vlaneseq
        %v783 = vshrl.u32 %v782, 7
        %v784 = vsub.s32 %v781, %v783
        %v785 = vrot.slane %v777, %v784
        %v787 = vunpack.c.l.s4 1983009808
        %v788 = vunpack.c.0.s8 %v787
        %v789 = vlaneseq
        %v790 = vshrl.u32 %v789, 7
        %v791 = vsub.s32 %v788, %v790
        %v792 = vrot.slane %v778, %v791
        %v793 = vcombine.low %v785, %v792
        %v798 = vunpack.c.l.b16 %v769
        %v799 = vunpack.c.l.b16 %v770
        %v800 = vunpack.c.l.b16 %v771
        %v801 = vunpack.c.l.b16 %v772
        %v802 = vpack.c.b16 %v799, %v798
        %v803 = vpack.c.b16 %v801, %v800
        %v807 = vsel %vm467, %v793, 0
        %809 = vmatprep.subr.bf16.mxu0 0
        %810 = vmatpush1.bf16.msra.mxu0 %v802
        %811 = vmatprep.subr.bf16.mxu0 0
        %812 = vmatpush1.bf16.msra.mxu0 %v803
        %813 = vmatprep.subr.bf16.mxu0 0
        %814 = vmatpush1.bf16.msra.mxu0 0
        %815 = vmatprep.subr.bf16.mxu0 0
        %816 = vmatpush1.bf16.msra.mxu0 0
        %817 = vmatprep.subr.bf16.mxu0 0
        %818 = vmatpush1.bf16.msra.mxu0 0
        %819 = vmatprep.subr.bf16.mxu0 0
        %820 = vmatpush1.bf16.msra.mxu0 0
        %821 = vmatprep.subr.bf16.mxu0 0
        %822 = vmatpush1.bf16.msra.mxu0 0
        %823 = vmatprep.subr.bf16.mxu0 0
        %824 = vmatpush1.bf16.msra.mxu0 0
        %825 = vmatprep.subr.bf16.mxu0 0
        %826 = vmatpush1.bf16.msra.mxu0 0
        %827 = vmatprep.subr.bf16.mxu0 0
        %828 = vmatpush1.bf16.msra.mxu0 0
        %829 = vmatprep.subr.bf16.mxu0 0
        %830 = vmatpush1.bf16.msra.mxu0 0
        %831 = vmatprep.subr.bf16.mxu0 0
        %832 = vmatpush1.bf16.msra.mxu0 0
        %833 = vmatprep.subr.bf16.mxu0 0
        %834 = vmatpush1.bf16.msra.mxu0 0
        %835 = vmatprep.subr.bf16.mxu0 0
        %836 = vmatpush1.bf16.msra.mxu0 0
        %837 = vmatprep.subr.bf16.mxu0 0
        %838 = vmatpush1.bf16.msra.mxu0 0
        %839 = vmatprep.subr.bf16.mxu0 0
        %840 = vmatpush1.bf16.msra.mxu0 0
        %841 = vmatprep.mubr.bf16.mxu0 0
        %842 = vmatmul.mubr.bf16.gmra.mrb[0].mxu0 %v807
        %v843 = vpop.f32.mrb[0].mxu0
        %v844 = vadd.f32 0.0, %v843
        %v845 = vpop.f32.mrb[0].mxu0
        %v846 = vpop.f32.mrb[0].mxu0
        %v847 = vadd.f32 0.0, %v846
        %v848 = vpop.f32.mrb[0].mxu0
        %849 = vdwg.mxu0
        %v850 = vadd.f32 %v762, %v844
        %v851 = vadd.f32 %v763, %v847
        %v852 = vld [vmem:[%s362] sm:$0x7]
        %v853 = vld [vmem:[%s362 + $0x4] sm:$0x7]
        %v854 = vld [vmem:[%s362 + $0x8] sm:$0x7]
        %v855 = vld [vmem:[%s362 + $0xc] sm:$0x7]
        %s856 = scalar_lea.vmem [#allocation10], 64
        %v857 = vld [vmem:[%s856] sm:$0xf]
        %v858 = vld [vmem:[%s856 + $0x4] sm:$0xf]
        %v859 = vld [vmem:[%s856 + $0x8] sm:$0xf]
        %v860 = vld [vmem:[%s856 + $0xc] sm:$0xf]
        %v865 = vcombine.low %v852, %v853
        %v866 = vcombine.low %v854, %v855
        %v868 = vunpack.c.l.s4 1983009808
        %v869 = vunpack.c.0.s8 %v868
        %v870 = vlaneseq
        %v871 = vshrl.u32 %v870, 7
        %v872 = vsub.s32 %v869, %v871
        %v873 = vrot.slane %v865, %v872
        %v875 = vunpack.c.l.s4 1983009808
        %v876 = vunpack.c.0.s8 %v875
        %v877 = vlaneseq
        %v878 = vshrl.u32 %v877, 7
        %v879 = vsub.s32 %v876, %v878
        %v880 = vrot.slane %v866, %v879
        %v881 = vcombine.low %v873, %v880
        %v886 = vunpack.c.l.b16 %v857
        %v887 = vunpack.c.l.b16 %v858
        %v888 = vunpack.c.l.b16 %v859
        %v889 = vunpack.c.l.b16 %v860
        %v890 = vpack.c.b16 %v887, %v886
        %v891 = vpack.c.b16 %v889, %v888
        %v895 = vsel %vm467, %v881, 0
        %897 = vmatprep.subr.bf16.mxu0 0
        %898 = vmatpush1.bf16.msra.mxu0 %v890
        %899 = vmatprep.subr.bf16.mxu0 0
        %900 = vmatpush1.bf16.msra.mxu0 %v891
        %901 = vmatprep.subr.bf16.mxu0 0
        %902 = vmatpush1.bf16.msra.mxu0 0
        %903 = vmatprep.subr.bf16.mxu0 0
        %904 = vmatpush1.bf16.msra.mxu0 0
        %905 = vmatprep.subr.bf16.mxu0 0
        %906 = vmatpush1.bf16.msra.mxu0 0
        %907 = vmatprep.subr.bf16.mxu0 0
        %908 = vmatpush1.bf16.msra.mxu0 0
        %909 = vmatprep.subr.bf16.mxu0 0
        %910 = vmatpush1.bf16.msra.mxu0 0
        %911 = vmatprep.subr.bf16.mxu0 0
        %912 = vmatpush1.bf16.msra.mxu0 0
        %913 = vmatprep.subr.bf16.mxu0 0
        %914 = vmatpush1.bf16.msra.mxu0 0
        %915 = vmatprep.subr.bf16.mxu0 0
        %916 = vmatpush1.bf16.msra.mxu0 0
        %917 = vmatprep.subr.bf16.mxu0 0
        %918 = vmatpush1.bf16.msra.mxu0 0
        %919 = vmatprep.subr.bf16.mxu0 0
        %920 = vmatpush1.bf16.msra.mxu0 0
        %921 = vmatprep.subr.bf16.mxu0 0
        %922 = vmatpush1.bf16.msra.mxu0 0
        %923 = vmatprep.subr.bf16.mxu0 0
        %924 = vmatpush1.bf16.msra.mxu0 0
        %925 = vmatprep.subr.bf16.mxu0 0
        %926 = vmatpush1.bf16.msra.mxu0 0
        %927 = vmatprep.subr.bf16.mxu0 0
        %928 = vmatpush1.bf16.msra.mxu0 0
        %929 = vmatprep.mubr.bf16.mxu0 0
        %930 = vmatmul.mubr.bf16.gmra.mrb[0].mxu0 %v895
        %v931 = vpop.f32.mrb[0].mxu0
        %v932 = vadd.f32 0.0, %v931
        %v933 = vpop.f32.mrb[0].mxu0
        %v934 = vpop.f32.mrb[0].mxu0
        %v935 = vadd.f32 0.0, %v934
        %v936 = vpop.f32.mrb[0].mxu0
        %937 = vdwg.mxu0
        %v938 = vadd.f32 %v850, %v932
        %v939 = vadd.f32 %v851, %v935
        %v941 = vunpack.c.l.s4 1983009808
        %v942 = vunpack.c.0.s8 %v941
        %v943 = vlaneseq
        %v944 = vshrl.u32 %v943, 7
        %v945 = vsub.s32 %v942, %v944
        %v946 = vrot.slane %v764, %v945
        %v947 = vcombine.high %v946, %v946
        %v949 = vunpack.c.l.s4 1983009808
        %v950 = vunpack.c.0.s8 %v949
        %v951 = vlaneseq
        %v952 = vshrl.u32 %v951, 7
        %v953 = vsub.s32 %v950, %v952
        %v954 = vrot.slane %v765, %v953
        %v955 = vcombine.high %v954, %v954
        %v957 = vunpack.c.l.s4 1983009808
        %v958 = vunpack.c.0.s8 %v957
        %v959 = vlaneseq
        %v960 = vshrl.u32 %v959, 7
        %v961 = vsub.s32 %v958, %v960
        %v962 = vrot.slane %v766, %v961
        %v963 = vcombine.high %v962, %v962
        %v965 = vunpack.c.l.s4 1983009808
        %v966 = vunpack.c.0.s8 %v965
        %v967 = vlaneseq
        %v968 = vshrl.u32 %v967, 7
        %v969 = vsub.s32 %v966, %v968
        %v970 = vrot.slane %v767, %v969
        %v971 = vcombine.high %v970, %v970
        %v973 = vshrl.u32 %v946, 16
        %v975 = vrot.slane %v973, 6
        %v976 = vshll.u32 %v946, 16
        %v978 = vrot.slane %v976, 7
        %v979 = vor.u32 %v975, %v978
        %v980 = vrot.slane %v979, 2
        %v982 = vshll.u32 %v947, 16
        %v984 = vrot.slane %v982, 7
        %v985 = vsel %vm627, %v980, %v984
        %v987 = vshrl.u32 %v954, 16
        %v989 = vrot.slane %v987, 6
        %v990 = vshll.u32 %v954, 16
        %v992 = vrot.slane %v990, 7
        %v993 = vor.u32 %v989, %v992
        %v994 = vrot.slane %v993, 2
        %v996 = vshll.u32 %v955, 16
        %v998 = vrot.slane %v996, 7
        %v999 = vsel %vm627, %v994, %v998
        %v1001 = vshrl.u32 %v962, 16
        %v1003 = vrot.slane %v1001, 6
        %v1004 = vshll.u32 %v962, 16
        %v1006 = vrot.slane %v1004, 7
        %v1007 = vor.u32 %v1003, %v1006
        %v1008 = vrot.slane %v1007, 2
        %v1010 = vshll.u32 %v963, 16
        %v1012 = vrot.slane %v1010, 7
        %v1013 = vsel %vm627, %v1008, %v1012
        %v1015 = vshrl.u32 %v970, 16
        %v1017 = vrot.slane %v1015, 6
        %v1018 = vshll.u32 %v970, 16
        %v1020 = vrot.slane %v1018, 7
        %v1021 = vor.u32 %v1017, %v1020
        %v1022 = vrot.slane %v1021, 2
        %v1024 = vshll.u32 %v971, 16
        %v1026 = vrot.slane %v1024, 7
        %v1027 = vsel %vm627, %v1022, %v1026
        %s1028 = scalar_lea.vmem [#allocation10], 80
        %v1029 = vld [vmem:[%s1028] sm:$0xf]
        %v1030 = vld [vmem:[%s1028 + $0x4] sm:$0xf]
        %v1031 = vld [vmem:[%s1028 + $0x8] sm:$0xf]
        %v1032 = vld [vmem:[%s1028 + $0xc] sm:$0xf]
        %v1033 = vcombine.low %v985, %v999
        %v1034 = vcombine.low %v1013, %v1027
        %v1036 = vunpack.c.l.s4 1983009808
        %v1037 = vunpack.c.0.s8 %v1036
        %v1038 = vlaneseq
        %v1039 = vshrl.u32 %v1038, 7
        %v1040 = vsub.s32 %v1037, %v1039
        %v1041 = vrot.slane %v1033, %v1040
        %v1043 = vunpack.c.l.s4 1983009808
        %v1044 = vunpack.c.0.s8 %v1043
        %v1045 = vlaneseq
        %v1046 = vshrl.u32 %v1045, 7
        %v1047 = vsub.s32 %v1044, %v1046
        %v1048 = vrot.slane %v1034, %v1047
        %v1049 = vcombine.low %v1041, %v1048
        %v1054 = vunpack.c.l.b16 %v1029
        %v1055 = vunpack.c.l.b16 %v1030
        %v1056 = vunpack.c.l.b16 %v1031
        %v1057 = vunpack.c.l.b16 %v1032
        %v1058 = vpack.c.b16 %v1055, %v1054
        %v1059 = vpack.c.b16 %v1057, %v1056
        %v1063 = vsel %vm467, %v1049, 0
        %1065 = vmatprep.subr.bf16.mxu0 0
        %1066 = vmatpush1.bf16.msra.mxu0 %v1058
        %1067 = vmatprep.subr.bf16.mxu0 0
        %1068 = vmatpush1.bf16.msra.mxu0 %v1059
        %1069 = vmatprep.subr.bf16.mxu0 0
        %1070 = vmatpush1.bf16.msra.mxu0 0
        %1071 = vmatprep.subr.bf16.mxu0 0
        %1072 = vmatpush1.bf16.msra.mxu0 0
        %1073 = vmatprep.subr.bf16.mxu0 0
        %1074 = vmatpush1.bf16.msra.mxu0 0
        %1075 = vmatprep.subr.bf16.mxu0 0
        %1076 = vmatpush1.bf16.msra.mxu0 0
        %1077 = vmatprep.subr.bf16.mxu0 0
        %1078 = vmatpush1.bf16.msra.mxu0 0
        %1079 = vmatprep.subr.bf16.mxu0 0
        %1080 = vmatpush1.bf16.msra.mxu0 0
        %1081 = vmatprep.subr.bf16.mxu0 0
        %1082 = vmatpush1.bf16.msra.mxu0 0
        %1083 = vmatprep.subr.bf16.mxu0 0
        %1084 = vmatpush1.bf16.msra.mxu0 0
        %1085 = vmatprep.subr.bf16.mxu0 0
        %1086 = vmatpush1.bf16.msra.mxu0 0
        %1087 = vmatprep.subr.bf16.mxu0 0
        %1088 = vmatpush1.bf16.msra.mxu0 0
        %1089 = vmatprep.subr.bf16.mxu0 0
        %1090 = vmatpush1.bf16.msra.mxu0 0
        %1091 = vmatprep.subr.bf16.mxu0 0
        %1092 = vmatpush1.bf16.msra.mxu0 0
        %1093 = vmatprep.subr.bf16.mxu0 0
        %1094 = vmatpush1.bf16.msra.mxu0 0
        %1095 = vmatprep.subr.bf16.mxu0 0
        %1096 = vmatpush1.bf16.msra.mxu0 0
        %1097 = vmatprep.mubr.bf16.mxu0 0
        %1098 = vmatmul.mubr.bf16.gmra.mrb[0].mxu0 %v1063
        %v1099 = vpop.f32.mrb[0].mxu0
        %v1100 = vadd.f32 0.0, %v1099
        %v1101 = vpop.f32.mrb[0].mxu0
        %v1102 = vpop.f32.mrb[0].mxu0
        %v1103 = vadd.f32 0.0, %v1102
        %v1104 = vpop.f32.mrb[0].mxu0
        %1105 = vdwg.mxu0
        %v1106 = vadd.f32 %v938, %v1100
        %v1107 = vadd.f32 %v939, %v1103
        %s1108 = scalar_lea.vmem [#allocation10], 96
        %v1109 = vld [vmem:[%s1108] sm:$0xf]
        %v1110 = vld [vmem:[%s1108 + $0x4] sm:$0xf]
        %v1111 = vld [vmem:[%s1108 + $0x8] sm:$0xf]
        %v1112 = vld [vmem:[%s1108 + $0xc] sm:$0xf]
        %v1114 = vcombine.low %v416, %v417
        %v1115 = vcombine.low %v418, %v419
        %v1117 = vunpack.c.l.s4 1983009808
        %v1118 = vunpack.c.0.s8 %v1117
        %v1119 = vlaneseq
        %v1120 = vshrl.u32 %v1119, 7
        %v1121 = vsub.s32 %v1118, %v1120
        %v1122 = vrot.slane %v1114, %v1121
        %v1124 = vunpack.c.l.s4 1983009808
        %v1125 = vunpack.c.0.s8 %v1124
        %v1126 = vlaneseq
        %v1127 = vshrl.u32 %v1126, 7
        %v1128 = vsub.s32 %v1125, %v1127
        %v1129 = vrot.slane %v1115, %v1128
        %v1130 = vcombine.low %v1122, %v1129
        %v1135 = vunpack.c.l.b16 %v1109
        %v1136 = vunpack.c.l.b16 %v1110
        %v1137 = vunpack.c.l.b16 %v1111
        %v1138 = vunpack.c.l.b16 %v1112
        %v1139 = vpack.c.b16 %v1136, %v1135
        %v1140 = vpack.c.b16 %v1138, %v1137
        %v1144 = vsel %vm467, %v1130, 0
        %1146 = vmatprep.subr.bf16.mxu0 0
        %1147 = vmatpush1.bf16.msra.mxu0 %v1139
        %1148 = vmatprep.subr.bf16.mxu0 0
        %1149 = vmatpush1.bf16.msra.mxu0 %v1140
        %1150 = vmatprep.subr.bf16.mxu0 0
        %1151 = vmatpush1.bf16.msra.mxu0 0
        %1152 = vmatprep.subr.bf16.mxu0 0
        %1153 = vmatpush1.bf16.msra.mxu0 0
        %1154 = vmatprep.subr.bf16.mxu0 0
        %1155 = vmatpush1.bf16.msra.mxu0 0
        %1156 = vmatprep.subr.bf16.mxu0 0
        %1157 = vmatpush1.bf16.msra.mxu0 0
        %1158 = vmatprep.subr.bf16.mxu0 0
        %1159 = vmatpush1.bf16.msra.mxu0 0
        %1160 = vmatprep.subr.bf16.mxu0 0
        %1161 = vmatpush1.bf16.msra.mxu0 0
        %1162 = vmatprep.subr.bf16.mxu0 0
        %1163 = vmatpush1.bf16.msra.mxu0 0
        %1164 = vmatprep.subr.bf16.mxu0 0
        %1165 = vmatpush1.bf16.msra.mxu0 0
        %1166 = vmatprep.subr.bf16.mxu0 0
        %1167 = vmatpush1.bf16.msra.mxu0 0
        %1168 = vmatprep.subr.bf16.mxu0 0
        %1169 = vmatpush1.bf16.msra.mxu0 0
        %1170 = vmatprep.subr.bf16.mxu0 0
        %1171 = vmatpush1.bf16.msra.mxu0 0
        %1172 = vmatprep.subr.bf16.mxu0 0
        %1173 = vmatpush1.bf16.msra.mxu0 0
        %1174 = vmatprep.subr.bf16.mxu0 0
        %1175 = vmatpush1.bf16.msra.mxu0 0
        %1176 = vmatprep.subr.bf16.mxu0 0
        %1177 = vmatpush1.bf16.msra.mxu0 0
        %1178 = vmatprep.mubr.bf16.mxu0 0
        %1179 = vmatmul.mubr.bf16.gmra.mrb[0].mxu0 %v1144
        %v1180 = vpop.f32.mrb[0].mxu0
        %v1181 = vadd.f32 0.0, %v1180
        %v1182 = vpop.f32.mrb[0].mxu0
        %v1183 = vpop.f32.mrb[0].mxu0
        %v1184 = vadd.f32 0.0, %v1183
        %v1185 = vpop.f32.mrb[0].mxu0
        %1186 = vdwg.mxu0
        %v1187 = vadd.f32 %v1106, %v1181
        %v1188 = vadd.f32 %v1107, %v1184
        %s1189 = scalar_lea.vmem [#allocation10], 112
        %v1190 = vld [vmem:[%s1189] sm:$0xf]
        %v1191 = vld [vmem:[%s1189 + $0x4] sm:$0xf]
        %v1192 = vld [vmem:[%s1189 + $0x8] sm:$0xf]
        %v1193 = vld [vmem:[%s1189 + $0xc] sm:$0xf]
        %v1195 = vcombine.low %v425, %v426
        %v1196 = vcombine.low %v427, %v428
        %v1198 = vunpack.c.l.s4 1983009808
        %v1199 = vunpack.c.0.s8 %v1198
        %v1200 = vlaneseq
        %v1201 = vshrl.u32 %v1200, 7
        %v1202 = vsub.s32 %v1199, %v1201
        %v1203 = vrot.slane %v1195, %v1202
        %v1205 = vunpack.c.l.s4 1983009808
        %v1206 = vunpack.c.0.s8 %v1205
        %v1207 = vlaneseq
        %v1208 = vshrl.u32 %v1207, 7
        %v1209 = vsub.s32 %v1206, %v1208
        %v1210 = vrot.slane %v1196, %v1209
        %v1211 = vcombine.low %v1203, %v1210
        %v1216 = vunpack.c.l.b16 %v1190
        %v1217 = vunpack.c.l.b16 %v1191
        %v1218 = vunpack.c.l.b16 %v1192
        %v1219 = vunpack.c.l.b16 %v1193
        %v1220 = vpack.c.b16 %v1217, %v1216
        %v1221 = vpack.c.b16 %v1219, %v1218
        %v1225 = vsel %vm467, %v1211, 0
        %1227 = vmatprep.subr.bf16.mxu0 0
        %1228 = vmatpush1.bf16.msra.mxu0 %v1220
        %1229 = vmatprep.subr.bf16.mxu0 0
        %1230 = vmatpush1.bf16.msra.mxu0 %v1221
        %1231 = vmatprep.subr.bf16.mxu0 0
        %1232 = vmatpush1.bf16.msra.mxu0 0
        %1233 = vmatprep.subr.bf16.mxu0 0
        %1234 = vmatpush1.bf16.msra.mxu0 0
        %1235 = vmatprep.subr.bf16.mxu0 0
        %1236 = vmatpush1.bf16.msra.mxu0 0
        %1237 = vmatprep.subr.bf16.mxu0 0
        %1238 = vmatpush1.bf16.msra.mxu0 0
        %1239 = vmatprep.subr.bf16.mxu0 0
        %1240 = vmatpush1.bf16.msra.mxu0 0
        %1241 = vmatprep.subr.bf16.mxu0 0
        %1242 = vmatpush1.bf16.msra.mxu0 0
        %1243 = vmatprep.subr.bf16.mxu0 0
        %1244 = vmatpush1.bf16.msra.mxu0 0
        %1245 = vmatprep.subr.bf16.mxu0 0
        %1246 = vmatpush1.bf16.msra.mxu0 0
        %1247 = vmatprep.subr.bf16.mxu0 0
        %1248 = vmatpush1.bf16.msra.mxu0 0
        %1249 = vmatprep.subr.bf16.mxu0 0
        %1250 = vmatpush1.bf16.msra.mxu0 0
        %1251 = vmatprep.subr.bf16.mxu0 0
        %1252 = vmatpush1.bf16.msra.mxu0 0
        %1253 = vmatprep.subr.bf16.mxu0 0
        %1254 = vmatpush1.bf16.msra.mxu0 0
        %1255 = vmatprep.subr.bf16.mxu0 0
        %1256 = vmatpush1.bf16.msra.mxu0 0
        %1257 = vmatprep.subr.bf16.mxu0 0
        %1258 = vmatpush1.bf16.msra.mxu0 0
        %1259 = vmatprep.mubr.bf16.mxu0 0
        %1260 = vmatmul.mubr.bf16.gmra.mrb[0].mxu0 %v1225
        %v1261 = vpop.f32.mrb[0].mxu0
        %v1262 = vadd.f32 0.0, %v1261
        %v1263 = vpop.f32.mrb[0].mxu0
        %v1264 = vpop.f32.mrb[0].mxu0
        %v1265 = vadd.f32 0.0, %v1264
        %v1266 = vpop.f32.mrb[0].mxu0
        %1267 = vdwg.mxu0
        %v1268 = vadd.f32 %v1187, %v1262
        %v1269 = vadd.f32 %v1188, %v1265
        %v1271 = vunpack.c.l.s4 1983009808
        %v1272 = vunpack.c.0.s8 %v1271
        %v1273 = vlaneseq
        %v1274 = vshrl.u32 %v1273, 7
        %v1275 = vsub.s32 %v1272, %v1274
        %v1276 = vrot.slane %v419, %v1275
        %v1277 = vcombine.high %v1276, %v1276
        %v1279 = vshrl.u32 %v1276, 16
        %v1281 = vrot.slane %v1279, 6
        %v1282 = vshll.u32 %v1276, 16
        %v1284 = vrot.slane %v1282, 7
        %v1285 = vor.u32 %v1281, %v1284
        %v1286 = vrot.slane %v1285, 2
        %v1288 = vshll.u32 %v1277, 16
        %v1290 = vrot.slane %v1288, 7
        %v1291 = vsel %vm627, %v1286, %v1290
        %s1292 = scalar_lea.vmem [#allocation10], 128
        %v1293 = vld [vmem:[%s1292] sm:$0xf]
        %v1294 = vld [vmem:[%s1292 + $0x4] sm:$0xf]
        %v1295 = vld [vmem:[%s1292 + $0x8] sm:$0xf]
        %v1296 = vld [vmem:[%s1292 + $0xc] sm:$0xf]
        %v1297 = vcombine.low %v655, %v669
        %v1298 = vcombine.low %v683, %v1291
        %v1300 = vunpack.c.l.s4 1983009808
        %v1301 = vunpack.c.0.s8 %v1300
        %v1302 = vlaneseq
        %v1303 = vshrl.u32 %v1302, 7
        %v1304 = vsub.s32 %v1301, %v1303
        %v1305 = vrot.slane %v1297, %v1304
        %v1307 = vunpack.c.l.s4 1983009808
        %v1308 = vunpack.c.0.s8 %v1307
        %v1309 = vlaneseq
        %v1310 = vshrl.u32 %v1309, 7
        %v1311 = vsub.s32 %v1308, %v1310
        %v1312 = vrot.slane %v1298, %v1311
        %v1313 = vcombine.low %v1305, %v1312
        %v1318 = vunpack.c.l.b16 %v1293
        %v1319 = vunpack.c.l.b16 %v1294
        %v1320 = vunpack.c.l.b16 %v1295
        %v1321 = vunpack.c.l.b16 %v1296
        %v1322 = vpack.c.b16 %v1319, %v1318
        %v1323 = vpack.c.b16 %v1321, %v1320
        %v1327 = vsel %vm467, %v1313, 0
        %1329 = vmatprep.subr.bf16.mxu0 0
        %1330 = vmatpush1.bf16.msra.mxu0 %v1322
        %1331 = vmatprep.subr.bf16.mxu0 0
        %1332 = vmatpush1.bf16.msra.mxu0 %v1323
        %1333 = vmatprep.subr.bf16.mxu0 0
        %1334 = vmatpush1.bf16.msra.mxu0 0
        %1335 = vmatprep.subr.bf16.mxu0 0
        %1336 = vmatpush1.bf16.msra.mxu0 0
        %1337 = vmatprep.subr.bf16.mxu0 0
        %1338 = vmatpush1.bf16.msra.mxu0 0
        %1339 = vmatprep.subr.bf16.mxu0 0
        %1340 = vmatpush1.bf16.msra.mxu0 0
        %1341 = vmatprep.subr.bf16.mxu0 0
        %1342 = vmatpush1.bf16.msra.mxu0 0
        %1343 = vmatprep.subr.bf16.mxu0 0
        %1344 = vmatpush1.bf16.msra.mxu0 0
        %1345 = vmatprep.subr.bf16.mxu0 0
        %1346 = vmatpush1.bf16.msra.mxu0 0
        %1347 = vmatprep.subr.bf16.mxu0 0
        %1348 = vmatpush1.bf16.msra.mxu0 0
        %1349 = vmatprep.subr.bf16.mxu0 0
        %1350 = vmatpush1.bf16.msra.mxu0 0
        %1351 = vmatprep.subr.bf16.mxu0 0
        %1352 = vmatpush1.bf16.msra.mxu0 0
        %1353 = vmatprep.subr.bf16.mxu0 0
        %1354 = vmatpush1.bf16.msra.mxu0 0
        %1355 = vmatprep.subr.bf16.mxu0 0
        %1356 = vmatpush1.bf16.msra.mxu0 0
        %1357 = vmatprep.subr.bf16.mxu0 0
        %1358 = vmatpush1.bf16.msra.mxu0 0
        %1359 = vmatprep.subr.bf16.mxu0 0
        %1360 = vmatpush1.bf16.msra.mxu0 0
        %1361 = vmatprep.mubr.bf16.mxu0 0
        %1362 = vmatmul.mubr.bf16.gmra.mrb[0].mxu0 %v1327
        %v1363 = vpop.f32.mrb[0].mxu0
        %v1364 = vadd.f32 0.0, %v1363
        %v1365 = vpop.f32.mrb[0].mxu0
        %v1366 = vpop.f32.mrb[0].mxu0
        %v1367 = vadd.f32 0.0, %v1366
        %v1368 = vpop.f32.mrb[0].mxu0
        %1369 = vdwg.mxu0
        %v1370 = vadd.f32 %v1268, %v1364
        %v1371 = vadd.f32 %v1269, %v1367
        %v1372 = vld [vmem:[#allocation11] sm:$0x1]
        %v1374 = vlaneseq
        %v1375 = vshrl.u32 %v1374, 7
        %v1376 = vsub.s32 0, %v1375
        %v1377 = vrot.slane %v1372, %v1376
        %v1379 = vadd.f32 %v1370, %v1377
        %v1380 = vadd.f32 %v1371, %v1377
        %v1381 = vmax.f32 %v1379, 0.0
        %v1382 = vmax.f32 %v1380, 0.0
        %v1383 = vpack.c.bf16 %v1382, %v1381
        %v1385 = vunpack.c.l.b16 %v1383
        %v1386 = vunpack.c.h.b16 %v1383
        %v1387 = vpack.c.b16 %v1385, %v1385
        %v1388 = vpack.c.b16 %v1386, %v1386
        %vm1391 = vcmask 519168
        %1392 = vst.msk [vmem:[%s413] sm:$0xf] %vm1391, %v1387
        %1393 = vst.msk [vmem:[%s413 + $0x4] sm:$0xf] %vm1391, %v1388
        %s1394 = sand.u32 %s184, 1
        %s1395 = scalar_lea.sflag [#allocation4], %s1394
        %s1396 = sand.u32 %s184, 1
        %s1397 = smul.addr %s1396, 8
        %s1398 = scalar_lea.vmem [#allocation13], %s1397
        // Predicated region
        $region69: #{encoder_forward.6} parent=43 // pred_check
          %p1399 = pneg %p194
        $region70: #{encoder_forward.6} parent=43 // pred_check_branch
          %1401 = sbr.rel (%p1399) target = $region72
        $region71: #{encoder_forward.6} parent=43 // pred_region
          %s1403 = ssub.s32 128, 128
          %1404 = vsyncadd %s1395, %s1403
          %s1405 = smul.addr %s30, 2
          %s1406 = smul.addr %s1405, 64
          %s1407 = scalar_lea.hbm %s6, %s1406
          %s1408 = sshll.u32 %s1398, 4
          %s1409 = int_to_ptr.vmem [resolvable:$true] %s1408
          %1414 = dma.vmem_to_hbm [thread:$0]  %s1409, 128, %s1407, %s1395, 64, 64, 4
        $region72: #{encoder_forward.6} parent=43 // pred_fallthru
          _
      $region44: #{encoder_forward.6} parent=5 // pred_fallthru
        _
      %p1415 = scmp.le.s32.totalorder 2, %s25
      // Predicated region
      $region73: #{encoder_forward.6} parent=5 // pred_check
        %p1416 = pneg %p1415
      $region74: #{encoder_forward.6} parent=5 // pred_check_branch
        %1418 = sbr.rel (%p1416) target = $region76
      $region75: #{encoder_forward.6} parent=5 // pred_region
        %s1419 = ssub.s32 %s25, 2
        // Predicated region
        $region77: #{encoder_forward.6} parent=75 // pred_check
          %p1420 = pneg %p200
        $region78: #{encoder_forward.6} parent=75 // pred_check_branch
          %1422 = sbr.rel (%p1420) target = $region80
        $region79: #{encoder_forward.6} parent=75 // pred_region
          %s1423 = sand.u32 %s185, 1
          %s1424 = scalar_lea.sflag [#allocation4], %s1423
          %s1425 = sand.u32 %s185, 1
          %s1426 = smul.addr %s1425, 8
          %s1427 = scalar_lea.vmem [#allocation13], %s1426
          %1428 = dma.done %s1424, 128
        $region80: #{encoder_forward.6} parent=75 // pred_fallthru
          _
      $region76: #{encoder_forward.6} parent=5 // pred_fallthru
        _
    $region6: #{encoder_forward.6} parent=1 // loop_footer
      %s29 = sadd.s32 1, %s25
    $region7: #{encoder_forward.6} parent=1 // loop_footer_branch
      %24 = sbr.rel target = $region3
    $region8: #{encoder_forward.6} parent=1 // loop_exit
      _
    %1429 = vsyncpa [#allocation3], 1
    %s1430 = scalar_lea.sflag [#allocation3], 1
    %1431 = vsyncpa %s1430, 1
    %1432 = vsyncpa [#allocation6], 1
    %s1433 = scalar_lea.sflag [#allocation6], 1
    %1434 = vsyncpa %s1433, 1
    %1435 = vsyncpa [#allocation9], 1
    %s1436 = scalar_lea.sflag [#allocation9], 1
    %1437 = vsyncpa %s1436, 1
    %1438 = vsyncpa [#allocation12], 1
    %1439 = vsyncpa [#allocation4], 1
    %s1440 = scalar_lea.sflag [#allocation4], 1
    %1441 = vsyncpa %s1440, 1

// kernel: encoder_forward.5
$region0: #{encoder_forward.5}
  #allocation0 [shape = 'u32[]', space=smem, size = 0x4, offset = 0x4, fixed_abs, tag = 'smem constant byte address 0x4 - core index']
  #allocation1 [shape = 'u32[144,128]{1,0:T(1,128)}', space=vmem, size = 0x12000, scoped, tag = 'internal scratch']
  %s0 = inlined_call_operand.hbm [shape: bf16[2,9,9,8], index: 0, kind: input, shape index: {}]
  %s1 = inlined_call_operand.hbm [shape: bf16[2,9,9,8], index: 1, kind: input, shape index: {}]
  %s2 = inlined_call_operand.hbm [shape: bf16[2,9,9,8], index: 2, kind: input, shape index: {}]
  %s3 = inlined_call_operand.hbm [shape: bf16[2,9,9,8], index: 3, kind: input, shape index: {}]
  %s4 = inlined_call_operand.hbm [shape: bf16[9,8,32], index: 4, kind: input, shape index: {}]
  %s5 = inlined_call_operand.hbm [shape: f32[1,32], index: 5, kind: input, shape index: {}]
  %s6 = inlined_call_operand.hbm [shape: bf16[2,64,32], index: 6, kind: output, shape index: {}]
  %s7 = sld [smem:[#allocation0]]
  $region81: #{encoder_forward.5} parent=0
    _
  %s9 = ssub.s32 1, %s7
  %s10 = scalar_select 0, %s9, %s7
  $region1: #{encoder_forward.5} parent=0
    #allocation2 [shape = 'u8[73728]{0}', space=vmem, size = 0x12000, scoped, tag = 'input window, operand 0']
    #allocation3 [shape = 's32[2]{0}', space=sflag, size = 0x8, scoped, tag = 'scoped memory for encoder_forward.5']
    #allocation4 [shape = 's32[2]{0}', space=sflag, size = 0x8, scoped, tag = 'scoped memory for encoder_forward.5']
    #allocation5 [shape = 'u8[73728]{0}', space=vmem, size = 0x12000, scoped, tag = 'input window, operand 1']
    #allocation6 [shape = 's32[2]{0}', space=sflag, size = 0x8, scoped, tag = 'scoped memory for encoder_forward.5']
    #allocation7 [shape = 'u8[73728]{0}', space=vmem, size = 0x12000, scoped, tag = 'input window, operand 2']
    #allocation8 [shape = 'u8[73728]{0}', space=vmem, size = 0x12000, scoped, tag = 'input window, operand 3']
    #allocation9 [shape = 's32[2]{0}', space=sflag, size = 0x8, scoped, tag = 'scoped memory for encoder_forward.5']
    #allocation10 [shape = 'u8[18432]{0}', space=vmem, size = 0x4800, scoped, tag = 'input window, operand 4, single buffered']
    #allocation11 [shape = 'u8[512]{0}', space=vmem, size = 0x400, scoped, tag = 'input window, operand 5, single buffered']
    #allocation12 [shape = 's32[1]{0}', space=sflag, size = 0x4, scoped, tag = 'scoped memory for encoder_forward.5']
    #allocation13 [shape = 'u8[32768]{0}', space=vmem, size = 0x8000, scoped, tag = 'output window, operand 0']
    %11 = vsyncpa [#allocation3], 0
    %s12 = scalar_lea.sflag [#allocation3], 1
    %13 = vsyncpa %s12, 0
    %14 = vsyncpa [#allocation6], 0
    %s15 = scalar_lea.sflag [#allocation6], 1
    %16 = vsyncpa %s15, 0
    %17 = vsyncpa [#allocation9], 0
    %s18 = scalar_lea.sflag [#allocation9], 1
    %19 = vsyncpa %s18, 0
    %20 = vsyncpa [#allocation12], 0
    %21 = vsyncpa [#allocation4], 0
    %s22 = scalar_lea.sflag [#allocation4], 1
    %23 = vsyncpa %s22, 0
    loop: start=0, step=1, limit=4
    $region2: #{encoder_forward.5} parent=1 // loop_pre_header
      _
    $region3: #{encoder_forward.5} parent=1 // loop_header
      %s25 = sphi 0, %s29
      %p26 = scmp.ge.s32.totalorder %s25, 4
      %s35 = sphi 0, %s37
      %s38 = sphi 0, %s35
      %s39 = sphi 0, %s38
      %s55 = sphi 0, %s39
      %s61 = sphi 0, %s63
      %s64 = sphi 0, %s61
      %s65 = sphi 0, %s64
      %s81 = sphi 0, %s65
      %s87 = sphi 0, %s89
      %s90 = sphi 0, %s87
      %s91 = sphi 0, %s90
      %s107 = sphi 0, %s91
      %s113 = sphi 0, %s115
      %s116 = sphi 0, %s113
      %s117 = sphi 0, %s116
      %s133 = sphi 0, %s117
      %s137 = sphi 0, %s137
      %s139 = sphi 0, %s137
      %s140 = sphi 0, %s139
      %s154 = sphi 0, %s140
      %s158 = sphi 0, %s158
      %s160 = sphi 0, %s158
      %s161 = sphi 0, %s160
      %s175 = sphi 0, %s161
      %s181 = sphi 0, %s183
      %s184 = sphi 0, %s181
      %s185 = sphi 0, %s184
      %s201 = sphi 0, %s185
    $region4: #{encoder_forward.5} parent=1 // loop_header_branch
      %28 = sbr.rel (%p26) target = $region8
    $region5: #{encoder_forward.5} parent=1 // loop_body
      %s30 = ssub.s32 %s25, 1
      %s31 = ssub.s32 %s25, 2
      %s32 = sadd.s32 %s25, 1
      %s33 = ssub.s32 %s25, %s32
      %p34 = scmp.eq.s32.totalorder %s33, 0
      %s36 = sadd.s32 %s35, 1
      %s37 = scalar_select %p34, %s35, %s36
      %p40 = pneg %p34
      %p41 = scmp.eq.s32.totalorder %s25, 1
      %p42 = por %p40, %p41
      %p43 = scmp.ne.s32.totalorder %s35, %s38
      %p44 = scmp.eq.s32.totalorder %s25, 0
      %p45 = por %p43, %p44
      %p46 = scmp.ne.s32.totalorder %s35, %s38
      %p47 = scmp.eq.s32.totalorder %s30, 1
      %p48 = por %p46, %p47
      %p49 = scmp.ne.s32.totalorder %s38, %s39
      %p50 = scmp.eq.s32.totalorder %s30, 0
      %p51 = por %p49, %p50
      %p52 = scmp.ne.s32.totalorder %s38, %s39
      %p53 = scmp.eq.s32.totalorder %s31, 1
      %p54 = por %p52, %p53
      %p56 = scmp.ne.s32.totalorder %s39, %s55
      %p57 = scmp.eq.s32.totalorder %s31, 0
      %p58 = por %p56, %p57
      %s59 = ssub.s32 %s25, %s32
      %p60 = scmp.eq.s32.totalorder %s59, 0
      %s62 = sadd.s32 %s61, 1
      %s63 = scalar_select %p60, %s61, %s62
      %p66 = pneg %p60
      %p67 = scmp.eq.s32.totalorder %s25, 1
      %p68 = por %p66, %p67
      %p69 = scmp.ne.s32.totalorder %s61, %s64
      %p70 = scmp.eq.s32.totalorder %s25, 0
      %p71 = por %p69, %p70
      %p72 = scmp.ne.s32.totalorder %s61, %s64
      %p73 = scmp.eq.s32.totalorder %s30, 1
      %p74 = por %p72, %p73
      %p75 = scmp.ne.s32.totalorder %s64, %s65
      %p76 = scmp.eq.s32.totalorder %s30, 0
      %p77 = por %p75, %p76
      %p78 = scmp.ne.s32.totalorder %s64, %s65
      %p79 = scmp.eq.s32.totalorder %s31, 1
      %p80 = por %p78, %p79
      %p82 = scmp.ne.s32.totalorder %s65, %s81
      %p83 = scmp.eq.s32.totalorder %s31, 0
      %p84 = por %p82, %p83
      %s85 = ssub.s32 %s25, %s32
      %p86 = scmp.eq.s32.totalorder %s85, 0
      %s88 = sadd.s32 %s87, 1
      %s89 = scalar_select %p86, %s87, %s88
      %p92 = pneg %p86
      %p93 = scmp.eq.s32.totalorder %s25, 1
      %p94 = por %p92, %p93
      %p95 = scmp.ne.s32.totalorder %s87, %s90
      %p96 = scmp.eq.s32.totalorder %s25, 0
      %p97 = por %p95, %p96
      %p98 = scmp.ne.s32.totalorder %s87, %s90
      %p99 = scmp.eq.s32.totalorder %s30, 1
      %p100 = por %p98, %p99
      %p101 = scmp.ne.s32.totalorder %s90, %s91
      %p102 = scmp.eq.s32.totalorder %s30, 0
      %p103 = por %p101, %p102
      %p104 = scmp.ne.s32.totalorder %s90, %s91
      %p105 = scmp.eq.s32.totalorder %s31, 1
      %p106 = por %p104, %p105
      %p108 = scmp.ne.s32.totalorder %s91, %s107
      %p109 = scmp.eq.s32.totalorder %s31, 0
      %p110 = por %p108, %p109
      %s111 = ssub.s32 %s25, %s32
      %p112 = scmp.eq.s32.totalorder %s111, 0
      %s114 = sadd.s32 %s113, 1
      %s115 = scalar_select %p112, %s113, %s114
      %p118 = pneg %p112
      %p119 = scmp.eq.s32.totalorder %s25, 1
      %p120 = por %p118, %p119
      %p121 = scmp.ne.s32.totalorder %s113, %s116
      %p122 = scmp.eq.s32.totalorder %s25, 0
      %p123 = por %p121, %p122
      %p124 = scmp.ne.s32.totalorder %s113, %s116
      %p125 = scmp.eq.s32.totalorder %s30, 1
      %p126 = por %p124, %p125
      %p127 = scmp.ne.s32.totalorder %s116, %s117
      %p128 = scmp.eq.s32.totalorder %s30, 0
      %p129 = por %p127, %p128
      %p130 = scmp.ne.s32.totalorder %s116, %s117
      %p131 = scmp.eq.s32.totalorder %s31, 1
      %p132 = por %p130, %p131
      %p134 = scmp.ne.s32.totalorder %s117, %s133
      %p135 = scmp.eq.s32.totalorder %s31, 0
      %p136 = por %p134, %p135
      %s138 = sadd.s32 %s137, 1
      %p141 = scmp.eq.s32.totalorder %s25, 1
      %p142 = scmp.ne.s32.totalorder %s137, %s139
      %p143 = scmp.eq.s32.totalorder %s25, 0
      %p144 = por %p142, %p143
      %p145 = scmp.ne.s32.totalorder %s137, %s139
      %p146 = scmp.eq.s32.totalorder %s30, 1
      %p147 = por %p145, %p146
      %p148 = scmp.ne.s32.totalorder %s139, %s140
      %p149 = scmp.eq.s32.totalorder %s30, 0
      %p150 = por %p148, %p149
      %p151 = scmp.ne.s32.totalorder %s139, %s140
      %p152 = scmp.eq.s32.totalorder %s31, 1
      %p153 = por %p151, %p152
      %p155 = scmp.ne.s32.totalorder %s140, %s154
      %p156 = scmp.eq.s32.totalorder %s31, 0
      %p157 = por %p155, %p156
      %s159 = sadd.s32 %s158, 1
      %p162 = scmp.eq.s32.totalorder %s25, 1
      %p163 = scmp.ne.s32.totalorder %s158, %s160
      %p164 = scmp.eq.s32.totalorder %s25, 0
      %p165 = por %p163, %p164
      %p166 = scmp.ne.s32.totalorder %s158, %s160
      %p167 = scmp.eq.s32.totalorder %s30, 1
      %p168 = por %p166, %p167
      %p169 = scmp.ne.s32.totalorder %s160, %s161
      %p170 = scmp.eq.s32.totalorder %s30, 0
      %p171 = por %p169, %p170
      %p172 = scmp.ne.s32.totalorder %s160, %s161
      %p173 = scmp.eq.s32.totalorder %s31, 1
      %p174 = por %p172, %p173
      %p176 = scmp.ne.s32.totalorder %s161, %s175
      %p177 = scmp.eq.s32.totalorder %s31, 0
      %p178 = por %p176, %p177
      %s179 = ssub.s32 %s25, %s32
      %p180 = scmp.eq.s32.totalorder %s179, 0
      %s182 = sadd.s32 %s181, 1
      %s183 = scalar_select %p180, %s181, %s182
      %p186 = pneg %p180
      %p187 = scmp.eq.s32.totalorder %s25, 1
      %p188 = por %p186, %p187
      %p189 = scmp.ne.s32.totalorder %s181, %s184
      %p190 = scmp.eq.s32.totalorder %s25, 0
      %p191 = por %p189, %p190
      %p192 = scmp.ne.s32.totalorder %s181, %s184
      %p193 = scmp.eq.s32.totalorder %s30, 1
      %p194 = por %p192, %p193
      %p195 = scmp.ne.s32.totalorder %s184, %s185
      %p196 = scmp.eq.s32.totalorder %s30, 0
      %p197 = por %p195, %p196
      %p198 = scmp.ne.s32.totalorder %s184, %s185
      %p199 = scmp.eq.s32.totalorder %s31, 1
      %p200 = por %p198, %p199
      %p202 = scmp.ne.s32.totalorder %s185, %s201
      %p203 = scmp.eq.s32.totalorder %s31, 0
      %p204 = por %p202, %p203
      %p205 = scmp.le.s32.totalorder 1, %s25
      %p206 = scmp.lt.s32.totalorder %s25, 3
      %p207 = pnand %p205, %p206
      %p208 = pneg %p207
      // Predicated region
      $region9: #{encoder_forward.5} parent=5 // pred_check
        _
      $region10: #{encoder_forward.5} parent=5 // pred_check_branch
        %210 = sbr.rel (%p207) target = $region12
      $region11: #{encoder_forward.5} parent=5 // pred_region
        %s211 = ssub.s32 %s25, 1
        // Predicated region
        $region13: #{encoder_forward.5} parent=11 // pred_check
          %p212 = pneg %p150
        $region14: #{encoder_forward.5} parent=11 // pred_check_branch
          %214 = sbr.rel (%p212) target = $region16
        $region15: #{encoder_forward.5} parent=11 // pred_region
          %s216 = ssub.s32 576, 576
          %217 = vsyncadd [#allocation9], %s216
          %s218 = sshll.u32 [#allocation10], 4
          %s219 = int_to_ptr.vmem [resolvable:$true] %s218
          %224 = dma.hbm_to_vmem [thread:$0]  %s4, 576, %s219, [#allocation9], 64, 64, 4
        $region16: #{encoder_forward.5} parent=11 // pred_fallthru
          _
        // Predicated region
        $region17: #{encoder_forward.5} parent=11 // pred_check
          %p225 = pneg %p171
        $region18: #{encoder_forward.5} parent=11 // pred_check_branch
          %227 = sbr.rel (%p225) target = $region20
        $region19: #{encoder_forward.5} parent=11 // pred_region
          %s229 = ssub.s32 16, 16
          %230 = vsyncadd [#allocation12], %s229
          %s232 = sshll.u32 [#allocation11], 4
          %s233 = int_to_ptr.vmem [resolvable:$true] %s232
          %235 = dma.hbm_to_vmem [thread:$0]  %s5, 16, %s233, [#allocation12]
        $region20: #{encoder_forward.5} parent=11 // pred_fallthru
          _
      $region12: #{encoder_forward.5} parent=5 // pred_fallthru
        _
      %p236 = scmp.lt.s32.totalorder %s25, 2
      // Predicated region
      $region21: #{encoder_forward.5} parent=5 // pred_check
        %p237 = pneg %p236
      $region22: #{encoder_forward.5} parent=5 // pred_check_branch
        %239 = sbr.rel (%p237) target = $region24
      $region23: #{encoder_forward.5} parent=5 // pred_region
        // Predicated region
        $region25: #{encoder_forward.5} parent=23 // pred_check
          %p240 = pneg %p45
        $region26: #{encoder_forward.5} parent=23 // pred_check_branch
          %242 = sbr.rel (%p240) target = $region28
        $region27: #{encoder_forward.5} parent=23 // pred_region
          %s243 = sand.u32 %s35, 1
          %s244 = scalar_lea.sflag [#allocation3], %s243
          %s245 = sand.u32 %s35, 1
          %s246 = smul.addr %s245, 72
          %s247 = scalar_lea.vmem [#allocation2], %s246
          %s249 = ssub.s32 1152, 1152
          %250 = vsyncadd %s244, %s249
          %s251 = smul.addr %s25, 18
          %s252 = smul.addr %s251, 64
          %s253 = scalar_lea.hbm %s0, %s252
          %s254 = sshll.u32 %s247, 4
          %s255 = int_to_ptr.vmem [resolvable:$true] %s254
          %260 = dma.hbm_to_vmem [thread:$0]  %s253, 1152, %s255, %s244, 64, 64, 4
        $region28: #{encoder_forward.5} parent=23 // pred_fallthru
          _
        // Predicated region
        $region29: #{encoder_forward.5} parent=23 // pred_check
          %p261 = pneg %p71
        $region30: #{encoder_forward.5} parent=23 // pred_check_branch
          %263 = sbr.rel (%p261) target = $region32
        $region31: #{encoder_forward.5} parent=23 // pred_region
          %s264 = sand.u32 %s25, 1
          %s265 = scalar_lea.sflag [#allocation6], %s264
          %s266 = sand.u32 %s61, 1
          %s267 = smul.addr %s266, 72
          %s268 = scalar_lea.vmem [#allocation5], %s267
          %s270 = ssub.s32 1152, 1152
          %271 = vsyncadd %s265, %s270
          %s272 = smul.addr %s25, 18
          %s273 = smul.addr %s272, 64
          %s274 = scalar_lea.hbm %s1, %s273
          %s275 = sshll.u32 %s268, 4
          %s276 = int_to_ptr.vmem [resolvable:$true] %s275
          %281 = dma.hbm_to_vmem [thread:$0]  %s274, 1152, %s276, %s265, 64, 64, 4
        $region32: #{encoder_forward.5} parent=23 // pred_fallthru
          _
        // Predicated region
        $region33: #{encoder_forward.5} parent=23 // pred_check
          %p282 = pneg %p97
        $region34: #{encoder_forward.5} parent=23 // pred_check_branch
          %284 = sbr.rel (%p282) target = $region36
        $region35: #{encoder_forward.5} parent=23 // pred_region
          %s285 = sand.u32 %s25, 1
          %s286 = scalar_lea.sflag [#allocation6], %s285
          %s287 = sand.u32 %s87, 1
          %s288 = smul.addr %s287, 72
          %s289 = scalar_lea.vmem [#allocation7], %s288
          %s291 = ssub.s32 1152, 1152
          %292 = vsyncadd %s286, %s291
          %s293 = smul.addr %s25, 18
          %s294 = smul.addr %s293, 64
          %s295 = scalar_lea.hbm %s2, %s294
          %s296 = sshll.u32 %s289, 4
          %s297 = int_to_ptr.vmem [resolvable:$true] %s296
          %302 = dma.hbm_to_vmem [thread:$0]  %s295, 1152, %s297, %s286, 64, 64, 4
        $region36: #{encoder_forward.5} parent=23 // pred_fallthru
          _
        // Predicated region
        $region37: #{encoder_forward.5} parent=23 // pred_check
          %p303 = pneg %p123
        $region38: #{encoder_forward.5} parent=23 // pred_check_branch
          %305 = sbr.rel (%p303) target = $region40
        $region39: #{encoder_forward.5} parent=23 // pred_region
          %s306 = sand.u32 %s25, 1
          %s307 = scalar_lea.sflag [#allocation9], %s306
          %s308 = sand.u32 %s113, 1
          %s309 = smul.addr %s308, 72
          %s310 = scalar_lea.vmem [#allocation8], %s309
          %s312 = ssub.s32 1152, 1152
          %313 = vsyncadd %s307, %s312
          %s314 = smul.addr %s25, 18
          %s315 = smul.addr %s314, 64
          %s316 = scalar_lea.hbm %s3, %s315
          %s317 = sshll.u32 %s310, 4
          %s318 = int_to_ptr.vmem [resolvable:$true] %s317
          %323 = dma.hbm_to_vmem [thread:$0]  %s316, 1152, %s318, %s307, 64, 64, 4
        $region40: #{encoder_forward.5} parent=23 // pred_fallthru
          _
      $region24: #{encoder_forward.5} parent=5 // pred_fallthru
        _
      %p324 = scmp.le.s32.totalorder 1, %s25
      %p325 = scmp.lt.s32.totalorder %s25, 3
      %p326 = pnand %p324, %p325
      %p327 = pneg %p326
      // Predicated region
      $region41: #{encoder_forward.5} parent=5 // pred_check
        _
      $region42: #{encoder_forward.5} parent=5 // pred_check_branch
        %329 = sbr.rel (%p326) target = $region44
      $region43: #{encoder_forward.5} parent=5 // pred_region
        %s330 = ssub.s32 %s25, 1
        %s331 = sand.u32 %s38, 1
        %s332 = scalar_lea.sflag [#allocation3], %s331
        %s333 = sand.u32 %s38, 1
        %s334 = smul.addr %s333, 72
        %s335 = scalar_lea.vmem [#allocation2], %s334
        // Predicated region
        $region45: #{encoder_forward.5} parent=43 // pred_check
          %p336 = pneg %p51
        $region46: #{encoder_forward.5} parent=43 // pred_check_branch
          %338 = sbr.rel (%p336) target = $region48
        $region47: #{encoder_forward.5} parent=43 // pred_region
          %339 = dma.done %s332, 1152
        $region48: #{encoder_forward.5} parent=43 // pred_fallthru
          _
        %s340 = sand.u32 %s30, 1
        %s341 = scalar_lea.sflag [#allocation6], %s340
        %s342 = sand.u32 %s64, 1
        %s343 = smul.addr %s342, 72
        %s344 = scalar_lea.vmem [#allocation5], %s343
        // Predicated region
        $region49: #{encoder_forward.5} parent=43 // pred_check
          %p345 = pneg %p77
        $region50: #{encoder_forward.5} parent=43 // pred_check_branch
          %347 = sbr.rel (%p345) target = $region52
        $region51: #{encoder_forward.5} parent=43 // pred_region
          %348 = dma.done %s341, 1152
        $region52: #{encoder_forward.5} parent=43 // pred_fallthru
          _
        %s349 = sand.u32 %s30, 1
        %s350 = scalar_lea.sflag [#allocation6], %s349
        %s351 = sand.u32 %s90, 1
        %s352 = smul.addr %s351, 72
        %s353 = scalar_lea.vmem [#allocation7], %s352
        // Predicated region
        $region53: #{encoder_forward.5} parent=43 // pred_check
          %p354 = pneg %p103
        $region54: #{encoder_forward.5} parent=43 // pred_check_branch
          %356 = sbr.rel (%p354) target = $region56
        $region55: #{encoder_forward.5} parent=43 // pred_region
          %357 = dma.done %s350, 1152
        $region56: #{encoder_forward.5} parent=43 // pred_fallthru
          _
        %s358 = sand.u32 %s30, 1
        %s359 = scalar_lea.sflag [#allocation9], %s358
        %s360 = sand.u32 %s116, 1
        %s361 = smul.addr %s360, 72
        %s362 = scalar_lea.vmem [#allocation8], %s361
        // Predicated region
        $region57: #{encoder_forward.5} parent=43 // pred_check
          %p363 = pneg %p129
        $region58: #{encoder_forward.5} parent=43 // pred_check_branch
          %365 = sbr.rel (%p363) target = $region60
        $region59: #{encoder_forward.5} parent=43 // pred_region
          %366 = dma.done %s359, 1152
        $region60: #{encoder_forward.5} parent=43 // pred_fallthru
          _
        // Predicated region
        $region61: #{encoder_forward.5} parent=43 // pred_check
          %p367 = pneg %p150
        $region62: #{encoder_forward.5} parent=43 // pred_check_branch
          %369 = sbr.rel (%p367) target = $region64
        $region63: #{encoder_forward.5} parent=43 // pred_region
          %370 = dma.done [#allocation9], 576
        $region64: #{encoder_forward.5} parent=43 // pred_fallthru
          _
        // Predicated region
        $region65: #{encoder_forward.5} parent=43 // pred_check
          %p371 = pneg %p171
        $region66: #{encoder_forward.5} parent=43 // pred_check_branch
          %373 = sbr.rel (%p371) target = $region68
        $region67: #{encoder_forward.5} parent=43 // pred_region
          %374 = dma.done [#allocation12], 16
        $region68: #{encoder_forward.5} parent=43 // pred_fallthru
          _
        %s375 = sand.u32 %s38, 1
        %s376 = scalar_lea.sflag [#allocation3], %s375
        %s377 = sand.u32 %s38, 1
        %s378 = smul.addr %s377, 72
        %s379 = scalar_lea.vmem [#allocation2], %s378
        %p380 = pneg %p51
        %p381 = pneg %p48
        %s382 = sand.u32 %s30, 1
        %s383 = scalar_lea.sflag [#allocation6], %s382
        %s384 = sand.u32 %s64, 1
        %s385 = smul.addr %s384, 72
        %s386 = scalar_lea.vmem [#allocation5], %s385
        %p387 = pneg %p77
        %p388 = pneg %p74
        %s389 = sand.u32 %s30, 1
        %s390 = scalar_lea.sflag [#allocation6], %s389
        %s391 = sand.u32 %s90, 1
        %s392 = smul.addr %s391, 72
        %s393 = scalar_lea.vmem [#allocation7], %s392
        %p394 = pneg %p103
        %p395 = pneg %p100
        %s396 = sand.u32 %s30, 1
        %s397 = scalar_lea.sflag [#allocation9], %s396
        %s398 = sand.u32 %s116, 1
        %s399 = smul.addr %s398, 72
        %s400 = scalar_lea.vmem [#allocation8], %s399
        %p401 = pneg %p129
        %p402 = pneg %p126
        %p403 = pneg %p150
        %p404 = pneg %p147
        %p405 = pneg %p171
        %p406 = pneg %p168
        %p407 = pneg %p197
        %p408 = pneg %p194
        %s409 = sand.u32 %s184, 1
        %s410 = scalar_lea.sflag [#allocation4], %s409
        %s411 = sand.u32 %s184, 1
        %s412 = smul.addr %s411, 32
        %s413 = scalar_lea.vmem [#allocation13], %s412
        %v415 = vld [vmem:[%s335] sm:$0xf]
        %v416 = vld [vmem:[%s335 + $0x4] sm:$0x1]
        %v417 = vld [vmem:[%s335 + $0x8] sm:$0xf]
        %v418 = vld [vmem:[%s335 + $0xc] sm:$0x1]
        %v419 = vld [vmem:[%s335 + $0x10] sm:$0xf]
        %v420 = vld [vmem:[%s335 + $0x14] sm:$0x1]
        %v421 = vld [vmem:[%s335 + $0x18] sm:$0xf]
        %v422 = vld [vmem:[%s335 + $0x1c] sm:$0x1]
        %v423 = vld [vmem:[%s335 + $0x20] sm:$0xf]
        %v424 = vld [vmem:[%s335 + $0x24] sm:$0x1]
        %v425 = vld [vmem:[%s335 + $0x28] sm:$0xf]
        %v426 = vld [vmem:[%s335 + $0x2c] sm:$0x1]
        %v427 = vld [vmem:[%s335 + $0x30] sm:$0xf]
        %v428 = vld [vmem:[%s335 + $0x34] sm:$0x1]
        %v429 = vld [vmem:[%s335 + $0x38] sm:$0xf]
        %v430 = vld [vmem:[%s335 + $0x3c] sm:$0x1]
        %v431 = vld [vmem:[%s335 + $0x40] sm:$0xf]
        %v432 = vld [vmem:[%s335 + $0x44] sm:$0x1]
        %v433 = vld [vmem:[#allocation10] sm:$0xf]
        %v434 = vld [vmem:[%s344] sm:$0xf]
        %v435 = vld [vmem:[%s344 + $0x8] sm:$0xf]
        %v436 = vld [vmem:[%s344 + $0x10] sm:$0xf]
        %v437 = vld [vmem:[%s344 + $0x18] sm:$0xf]
        %v438 = vld [vmem:[%s344 + $0x20] sm:$0xf]
        %v439 = vld [vmem:[%s344 + $0x28] sm:$0xf]
        %v440 = vld [vmem:[%s344 + $0x30] sm:$0xf]
        %v441 = vld [vmem:[%s344 + $0x38] sm:$0xf]
        %v442 = vld [vmem:[%s344 + $0x40] sm:$0xf]
        %s443 = scalar_lea.vmem [#allocation10], 4
        %v444 = vld [vmem:[%s443] sm:$0xf]
        %v453 = vunpack.c.l.b16 %v434
        %v454 = vunpack.c.l.b16 %v435
        %v455 = vunpack.c.l.b16 %v436
        %v456 = vunpack.c.l.b16 %v437
        %v457 = vunpack.c.l.b16 %v438
        %v458 = vunpack.c.l.b16 %v439
        %v459 = vunpack.c.l.b16 %v440
        %v460 = vunpack.c.l.b16 %v441
        %v461 = vpack.c.b16 %v454, %v453
        %v462 = vpack.c.b16 %v456, %v455
        %v463 = vpack.c.b16 %v458, %v457
        %v464 = vpack.c.b16 %v460, %v459
        %vm465 = vcmask 64512
        %v467 = vsel %vm465, %v461, 0
        %v470 = vsel %vm465, %v462, 0
        %v473 = vsel %vm465, %v463, 0
        %v476 = vsel %vm465, %v464, 0
        %vm478 = vcmask 1043456
        %v480 = vsel %vm478, %v444, 0
        %482 = vmatprep.subr.bf16.mxu0 0
        %483 = vmatpush1.bf16.msra.mxu0 %v480
        %484 = vmatprep.subr.bf16.mxu0 0
        %485 = vmatpush1.bf16.msra.mxu0 0
        %486 = vmatprep.subr.bf16.mxu0 0
        %487 = vmatpush1.bf16.msra.mxu0 0
        %488 = vmatprep.subr.bf16.mxu0 0
        %489 = vmatpush1.bf16.msra.mxu0 0
        %490 = vmatprep.subr.bf16.mxu0 0
        %491 = vmatpush1.bf16.msra.mxu0 0
        %492 = vmatprep.subr.bf16.mxu0 0
        %493 = vmatpush1.bf16.msra.mxu0 0
        %494 = vmatprep.subr.bf16.mxu0 0
        %495 = vmatpush1.bf16.msra.mxu0 0
        %496 = vmatprep.subr.bf16.mxu0 0
        %497 = vmatpush1.bf16.msra.mxu0 0
        %498 = vmatprep.subr.bf16.mxu0 0
        %499 = vmatpush1.bf16.msra.mxu0 0
        %500 = vmatprep.subr.bf16.mxu0 0
        %501 = vmatpush1.bf16.msra.mxu0 0
        %502 = vmatprep.subr.bf16.mxu0 0
        %503 = vmatpush1.bf16.msra.mxu0 0
        %504 = vmatprep.subr.bf16.mxu0 0
        %505 = vmatpush1.bf16.msra.mxu0 0
        %506 = vmatprep.subr.bf16.mxu0 0
        %507 = vmatpush1.bf16.msra.mxu0 0
        %508 = vmatprep.subr.bf16.mxu0 0
        %509 = vmatpush1.bf16.msra.mxu0 0
        %510 = vmatprep.subr.bf16.mxu0 0
        %511 = vmatpush1.bf16.msra.mxu0 0
        %512 = vmatprep.subr.bf16.mxu0 0
        %513 = vmatpush1.bf16.msra.mxu0 0
        %514 = vmatprep.mubr.bf16.mxu0 0
        %515 = vmatmul.mubr.bf16.gmra.mrb[0].mxu0 %v467
        %v516 = vpop.f32.mrb[0].mxu0
        %v517 = vadd.f32 0.0, %v516
        %v518 = vpop.f32.mrb[0].mxu0
        %v519 = vpop.f32.mrb[0].mxu0
        %v520 = vadd.f32 0.0, %v519
        %v521 = vpop.f32.mrb[0].mxu0
        %522 = vmatprep.mubr.bf16.mxu0 0
        %523 = vmatmul.mubr.bf16.gmra.mrb[0].mxu0 %v470
        %v524 = vpop.f32.mrb[0].mxu0
        %v525 = vadd.f32 0.0, %v524
        %v526 = vpop.f32.mrb[0].mxu0
        %v527 = vpop.f32.mrb[0].mxu0
        %v528 = vadd.f32 0.0, %v527
        %v529 = vpop.f32.mrb[0].mxu0
        %530 = vmatprep.mubr.bf16.mxu0 0
        %531 = vmatmul.mubr.bf16.gmra.mrb[0].mxu0 %v473
        %v532 = vpop.f32.mrb[0].mxu0
        %v533 = vadd.f32 0.0, %v532
        %v534 = vpop.f32.mrb[0].mxu0
        %v535 = vpop.f32.mrb[0].mxu0
        %v536 = vadd.f32 0.0, %v535
        %v537 = vpop.f32.mrb[0].mxu0
        %538 = vmatprep.mubr.bf16.mxu0 0
        %539 = vmatmul.mubr.bf16.gmra.mrb[0].mxu0 %v476
        %v540 = vpop.f32.mrb[0].mxu0
        %v541 = vadd.f32 0.0, %v540
        %v542 = vpop.f32.mrb[0].mxu0
        %v543 = vpop.f32.mrb[0].mxu0
        %v544 = vadd.f32 0.0, %v543
        %v545 = vpop.f32.mrb[0].mxu0
        %546 = vdwg.mxu0
        %v555 = vunpack.c.l.b16 %v415
        %v556 = vunpack.c.l.b16 %v417
        %v557 = vunpack.c.l.b16 %v419
        %v558 = vunpack.c.l.b16 %v421
        %v559 = vunpack.c.l.b16 %v423
        %v560 = vunpack.c.l.b16 %v425
        %v561 = vunpack.c.l.b16 %v427
        %v562 = vunpack.c.l.b16 %v429
        %v563 = vpack.c.b16 %v556, %v555
        %v564 = vpack.c.b16 %v558, %v557
        %v565 = vpack.c.b16 %v560, %v559
        %v566 = vpack.c.b16 %v562, %v561
        %v568 = vsel %vm465, %v563, 0
        %v571 = vsel %vm465, %v564, 0
        %v574 = vsel %vm465, %v565, 0
        %v577 = vsel %vm465, %v566, 0
        %v580 = vsel %vm478, %v433, 0
        %582 = vmatprep.subr.bf16.mxu0 0
        %583 = vmatpush1.bf16.msra.mxu0 %v580
        %584 = vmatprep.subr.bf16.mxu0 0
        %585 = vmatpush1.bf16.msra.mxu0 0
        %586 = vmatprep.subr.bf16.mxu0 0
        %587 = vmatpush1.bf16.msra.mxu0 0
        %588 = vmatprep.subr.bf16.mxu0 0
        %589 = vmatpush1.bf16.msra.mxu0 0
        %590 = vmatprep.subr.bf16.mxu0 0
        %591 = vmatpush1.bf16.msra.mxu0 0
        %592 = vmatprep.subr.bf16.mxu0 0
        %593 = vmatpush1.bf16.msra.mxu0 0
        %594 = vmatprep.subr.bf16.mxu0 0
        %595 = vmatpush1.bf16.msra.mxu0 0
        %596 = vmatprep.subr.bf16.mxu0 0
        %597 = vmatpush1.bf16.msra.mxu0 0
        %598 = vmatprep.subr.bf16.mxu0 0
        %599 = vmatpush1.bf16.msra.mxu0 0
        %600 = vmatprep.subr.bf16.mxu0 0
        %601 = vmatpush1.bf16.msra.mxu0 0
        %602 = vmatprep.subr.bf16.mxu0 0
        %603 = vmatpush1.bf16.msra.mxu0 0
        %604 = vmatprep.subr.bf16.mxu0 0
        %605 = vmatpush1.bf16.msra.mxu0 0
        %606 = vmatprep.subr.bf16.mxu0 0
        %607 = vmatpush1.bf16.msra.mxu0 0
        %608 = vmatprep.subr.bf16.mxu0 0
        %609 = vmatpush1.bf16.msra.mxu0 0
        %610 = vmatprep.subr.bf16.mxu0 0
        %611 = vmatpush1.bf16.msra.mxu0 0
        %612 = vmatprep.subr.bf16.mxu0 0
        %613 = vmatpush1.bf16.msra.mxu0 0
        %614 = vmatprep.mubr.bf16.mxu0 0
        %615 = vmatmul.mubr.bf16.gmra.mrb[0].mxu0 %v568
        %v616 = vpop.f32.mrb[0].mxu0
        %v617 = vadd.f32 %v517, %v616
        %v618 = vpop.f32.mrb[0].mxu0
        %v619 = vpop.f32.mrb[0].mxu0
        %v620 = vadd.f32 %v520, %v619
        %v621 = vpop.f32.mrb[0].mxu0
        %622 = vmatprep.mubr.bf16.mxu0 0
        %623 = vmatmul.mubr.bf16.gmra.mrb[0].mxu0 %v571
        %v624 = vpop.f32.mrb[0].mxu0
        %v625 = vadd.f32 %v525, %v624
        %v626 = vpop.f32.mrb[0].mxu0
        %v627 = vpop.f32.mrb[0].mxu0
        %v628 = vadd.f32 %v528, %v627
        %v629 = vpop.f32.mrb[0].mxu0
        %630 = vmatprep.mubr.bf16.mxu0 0
        %631 = vmatmul.mubr.bf16.gmra.mrb[0].mxu0 %v574
        %v632 = vpop.f32.mrb[0].mxu0
        %v633 = vadd.f32 %v533, %v632
        %v634 = vpop.f32.mrb[0].mxu0
        %v635 = vpop.f32.mrb[0].mxu0
        %v636 = vadd.f32 %v536, %v635
        %v637 = vpop.f32.mrb[0].mxu0
        %638 = vmatprep.mubr.bf16.mxu0 0
        %639 = vmatmul.mubr.bf16.gmra.mrb[0].mxu0 %v577
        %v640 = vpop.f32.mrb[0].mxu0
        %v641 = vadd.f32 %v541, %v640
        %v642 = vpop.f32.mrb[0].mxu0
        %v643 = vpop.f32.mrb[0].mxu0
        %v644 = vadd.f32 %v544, %v643
        %v645 = vpop.f32.mrb[0].mxu0
        %646 = vdwg.mxu0
        %vm647 = vsmask.f32 3328
        %vm648 = vsmask.f32 7440
        %vm649 = vmor %vm647, %vm648
        %v651 = vshrl.u32 %v415, 16
        %v653 = vrot.slane %v651, 4
        %v654 = vshll.u32 %v415, 16
        %v656 = vrot.slane %v654, 5
        %v657 = vor.u32 %v653, %v656
        %v658 = vrot.slane %v657, 4
        %v660 = vshll.u32 %v416, 16
        %v662 = vrot.slane %v660, 5
        %v663 = vsel %vm649, %v658, %v662
        %v665 = vshrl.u32 %v417, 16
        %v667 = vrot.slane %v665, 4
        %v668 = vshll.u32 %v417, 16
        %v670 = vrot.slane %v668, 5
        %v671 = vor.u32 %v667, %v670
        %v672 = vrot.slane %v671, 4
        %v674 = vshll.u32 %v418, 16
        %v676 = vrot.slane %v674, 5
        %v677 = vsel %vm649, %v672, %v676
        %v679 = vshrl.u32 %v419, 16
        %v681 = vrot.slane %v679, 4
        %v682 = vshll.u32 %v419, 16
        %v684 = vrot.slane %v682, 5
        %v685 = vor.u32 %v681, %v684
        %v686 = vrot.slane %v685, 4
        %v688 = vshll.u32 %v420, 16
        %v690 = vrot.slane %v688, 5
        %v691 = vsel %vm649, %v686, %v690
        %v693 = vshrl.u32 %v421, 16
        %v695 = vrot.slane %v693, 4
        %v696 = vshll.u32 %v421, 16
        %v698 = vrot.slane %v696, 5
        %v699 = vor.u32 %v695, %v698
        %v700 = vrot.slane %v699, 4
        %v702 = vshll.u32 %v422, 16
        %v704 = vrot.slane %v702, 5
        %v705 = vsel %vm649, %v700, %v704
        %v707 = vshrl.u32 %v423, 16
        %v709 = vrot.slane %v707, 4
        %v710 = vshll.u32 %v423, 16
        %v712 = vrot.slane %v710, 5
        %v713 = vor.u32 %v709, %v712
        %v714 = vrot.slane %v713, 4
        %v716 = vshll.u32 %v424, 16
        %v718 = vrot.slane %v716, 5
        %v719 = vsel %vm649, %v714, %v718
        %v721 = vshrl.u32 %v425, 16
        %v723 = vrot.slane %v721, 4
        %v724 = vshll.u32 %v425, 16
        %v726 = vrot.slane %v724, 5
        %v727 = vor.u32 %v723, %v726
        %v728 = vrot.slane %v727, 4
        %v730 = vshll.u32 %v426, 16
        %v732 = vrot.slane %v730, 5
        %v733 = vsel %vm649, %v728, %v732
        %v735 = vshrl.u32 %v427, 16
        %v737 = vrot.slane %v735, 4
        %v738 = vshll.u32 %v427, 16
        %v740 = vrot.slane %v738, 5
        %v741 = vor.u32 %v737, %v740
        %v742 = vrot.slane %v741, 4
        %v744 = vshll.u32 %v428, 16
        %v746 = vrot.slane %v744, 5
        %v747 = vsel %vm649, %v742, %v746
        %v749 = vshrl.u32 %v429, 16
        %v751 = vrot.slane %v749, 4
        %v752 = vshll.u32 %v429, 16
        %v754 = vrot.slane %v752, 5
        %v755 = vor.u32 %v751, %v754
        %v756 = vrot.slane %v755, 4
        %v758 = vshll.u32 %v430, 16
        %v760 = vrot.slane %v758, 5
        %v761 = vsel %vm649, %v756, %v760
        %s762 = scalar_lea.vmem [#allocation10], 8
        %v763 = vld [vmem:[%s762] sm:$0xf]
        %v764 = vunpack.c.l.b16 %v663
        %v765 = vunpack.c.l.b16 %v677
        %v766 = vunpack.c.l.b16 %v691
        %v767 = vunpack.c.l.b16 %v705
        %v768 = vunpack.c.l.b16 %v719
        %v769 = vunpack.c.l.b16 %v733
        %v770 = vunpack.c.l.b16 %v747
        %v771 = vunpack.c.l.b16 %v761
        %v772 = vpack.c.b16 %v765, %v764
        %v773 = vpack.c.b16 %v767, %v766
        %v774 = vpack.c.b16 %v769, %v768
        %v775 = vpack.c.b16 %v771, %v770
        %v777 = vsel %vm465, %v772, 0
        %v780 = vsel %vm465, %v773, 0
        %v783 = vsel %vm465, %v774, 0
        %v786 = vsel %vm465, %v775, 0
        %v789 = vsel %vm478, %v763, 0
        %791 = vmatprep.subr.bf16.mxu0 0
        %792 = vmatpush1.bf16.msra.mxu0 %v789
        %793 = vmatprep.subr.bf16.mxu0 0
        %794 = vmatpush1.bf16.msra.mxu0 0
        %795 = vmatprep.subr.bf16.mxu0 0
        %796 = vmatpush1.bf16.msra.mxu0 0
        %797 = vmatprep.subr.bf16.mxu0 0
        %798 = vmatpush1.bf16.msra.mxu0 0
        %799 = vmatprep.subr.bf16.mxu0 0
        %800 = vmatpush1.bf16.msra.mxu0 0
        %801 = vmatprep.subr.bf16.mxu0 0
        %802 = vmatpush1.bf16.msra.mxu0 0
        %803 = vmatprep.subr.bf16.mxu0 0
        %804 = vmatpush1.bf16.msra.mxu0 0
        %805 = vmatprep.subr.bf16.mxu0 0
        %806 = vmatpush1.bf16.msra.mxu0 0
        %807 = vmatprep.subr.bf16.mxu0 0
        %808 = vmatpush1.bf16.msra.mxu0 0
        %809 = vmatprep.subr.bf16.mxu0 0
        %810 = vmatpush1.bf16.msra.mxu0 0
        %811 = vmatprep.subr.bf16.mxu0 0
        %812 = vmatpush1.bf16.msra.mxu0 0
        %813 = vmatprep.subr.bf16.mxu0 0
        %814 = vmatpush1.bf16.msra.mxu0 0
        %815 = vmatprep.subr.bf16.mxu0 0
        %816 = vmatpush1.bf16.msra.mxu0 0
        %817 = vmatprep.subr.bf16.mxu0 0
        %818 = vmatpush1.bf16.msra.mxu0 0
        %819 = vmatprep.subr.bf16.mxu0 0
        %820 = vmatpush1.bf16.msra.mxu0 0
        %821 = vmatprep.subr.bf16.mxu0 0
        %822 = vmatpush1.bf16.msra.mxu0 0
        %823 = vmatprep.mubr.bf16.mxu0 0
        %824 = vmatmul.mubr.bf16.gmra.mrb[0].mxu0 %v777
        %v825 = vpop.f32.mrb[0].mxu0
        %v826 = vadd.f32 0.0, %v825
        %v827 = vpop.f32.mrb[0].mxu0
        %v828 = vpop.f32.mrb[0].mxu0
        %v829 = vadd.f32 0.0, %v828
        %v830 = vpop.f32.mrb[0].mxu0
        %831 = vmatprep.mubr.bf16.mxu0 0
        %832 = vmatmul.mubr.bf16.gmra.mrb[0].mxu0 %v780
        %v833 = vpop.f32.mrb[0].mxu0
        %v834 = vadd.f32 0.0, %v833
        %v835 = vpop.f32.mrb[0].mxu0
        %v836 = vpop.f32.mrb[0].mxu0
        %v837 = vadd.f32 0.0, %v836
        %v838 = vpop.f32.mrb[0].mxu0
        %839 = vmatprep.mubr.bf16.mxu0 0
        %840 = vmatmul.mubr.bf16.gmra.mrb[0].mxu0 %v783
        %v841 = vpop.f32.mrb[0].mxu0
        %v842 = vadd.f32 0.0, %v841
        %v843 = vpop.f32.mrb[0].mxu0
        %v844 = vpop.f32.mrb[0].mxu0
        %v845 = vadd.f32 0.0, %v844
        %v846 = vpop.f32.mrb[0].mxu0
        %847 = vmatprep.mubr.bf16.mxu0 0
        %848 = vmatmul.mubr.bf16.gmra.mrb[0].mxu0 %v786
        %v849 = vpop.f32.mrb[0].mxu0
        %v850 = vadd.f32 0.0, %v849
        %v851 = vpop.f32.mrb[0].mxu0
        %v852 = vpop.f32.mrb[0].mxu0
        %v853 = vadd.f32 0.0, %v852
        %v854 = vpop.f32.mrb[0].mxu0
        %855 = vdwg.mxu0
        %v856 = vadd.f32 %v617, %v826
        %v857 = vadd.f32 %v620, %v829
        %v858 = vadd.f32 %v625, %v834
        %v859 = vadd.f32 %v628, %v837
        %v860 = vadd.f32 %v633, %v842
        %v861 = vadd.f32 %v636, %v845
        %v862 = vadd.f32 %v641, %v850
        %v863 = vadd.f32 %v644, %v853
        %v864 = vld [vmem:[%s353] sm:$0xf]
        %v865 = vld [vmem:[%s353 + $0x4] sm:$0x1]
        %v866 = vld [vmem:[%s353 + $0x8] sm:$0xf]
        %v867 = vld [vmem:[%s353 + $0xc] sm:$0x1]
        %v868 = vld [vmem:[%s353 + $0x10] sm:$0xf]
        %v869 = vld [vmem:[%s353 + $0x14] sm:$0x1]
        %v870 = vld [vmem:[%s353 + $0x18] sm:$0xf]
        %v871 = vld [vmem:[%s353 + $0x1c] sm:$0x1]
        %v872 = vld [vmem:[%s353 + $0x20] sm:$0xf]
        %v873 = vld [vmem:[%s353 + $0x24] sm:$0x1]
        %v874 = vld [vmem:[%s353 + $0x28] sm:$0xf]
        %v875 = vld [vmem:[%s353 + $0x2c] sm:$0x1]
        %v876 = vld [vmem:[%s353 + $0x30] sm:$0xf]
        %v877 = vld [vmem:[%s353 + $0x34] sm:$0x1]
        %v878 = vld [vmem:[%s353 + $0x38] sm:$0xf]
        %v879 = vld [vmem:[%s353 + $0x3c] sm:$0x1]
        %s880 = scalar_lea.vmem [#allocation10], 12
        %v881 = vld [vmem:[%s880] sm:$0xf]
        %v890 = vunpack.c.l.b16 %v864
        %v891 = vunpack.c.l.b16 %v866
        %v892 = vunpack.c.l.b16 %v868
        %v893 = vunpack.c.l.b16 %v870
        %v894 = vunpack.c.l.b16 %v872
        %v895 = vunpack.c.l.b16 %v874
        %v896 = vunpack.c.l.b16 %v876
        %v897 = vunpack.c.l.b16 %v878
        %v898 = vpack.c.b16 %v891, %v890
        %v899 = vpack.c.b16 %v893, %v892
        %v900 = vpack.c.b16 %v895, %v894
        %v901 = vpack.c.b16 %v897, %v896
        %v903 = vsel %vm465, %v898, 0
        %v906 = vsel %vm465, %v899, 0
        %v909 = vsel %vm465, %v900, 0
        %v912 = vsel %vm465, %v901, 0
        %v915 = vsel %vm478, %v881, 0
        %917 = vmatprep.subr.bf16.mxu0 0
        %918 = vmatpush1.bf16.msra.mxu0 %v915
        %919 = vmatprep.subr.bf16.mxu0 0
        %920 = vmatpush1.bf16.msra.mxu0 0
        %921 = vmatprep.subr.bf16.mxu0 0
        %922 = vmatpush1.bf16.msra.mxu0 0
        %923 = vmatprep.subr.bf16.mxu0 0
        %924 = vmatpush1.bf16.msra.mxu0 0
        %925 = vmatprep.subr.bf16.mxu0 0
        %926 = vmatpush1.bf16.msra.mxu0 0
        %927 = vmatprep.subr.bf16.mxu0 0
        %928 = vmatpush1.bf16.msra.mxu0 0
        %929 = vmatprep.subr.bf16.mxu0 0
        %930 = vmatpush1.bf16.msra.mxu0 0
        %931 = vmatprep.subr.bf16.mxu0 0
        %932 = vmatpush1.bf16.msra.mxu0 0
        %933 = vmatprep.subr.bf16.mxu0 0
        %934 = vmatpush1.bf16.msra.mxu0 0
        %935 = vmatprep.subr.bf16.mxu0 0
        %936 = vmatpush1.bf16.msra.mxu0 0
        %937 = vmatprep.subr.bf16.mxu0 0
        %938 = vmatpush1.bf16.msra.mxu0 0
        %939 = vmatprep.subr.bf16.mxu0 0
        %940 = vmatpush1.bf16.msra.mxu0 0
        %941 = vmatprep.subr.bf16.mxu0 0
        %942 = vmatpush1.bf16.msra.mxu0 0
        %943 = vmatprep.subr.bf16.mxu0 0
        %944 = vmatpush1.bf16.msra.mxu0 0
        %945 = vmatprep.subr.bf16.mxu0 0
        %946 = vmatpush1.bf16.msra.mxu0 0
        %947 = vmatprep.subr.bf16.mxu0 0
        %948 = vmatpush1.bf16.msra.mxu0 0
        %949 = vmatprep.mubr.bf16.mxu0 0
        %950 = vmatmul.mubr.bf16.gmra.mrb[0].mxu0 %v903
        %v951 = vpop.f32.mrb[0].mxu0
        %v952 = vadd.f32 0.0, %v951
        %v953 = vpop.f32.mrb[0].mxu0
        %v954 = vpop.f32.mrb[0].mxu0
        %v955 = vadd.f32 0.0, %v954
        %v956 = vpop.f32.mrb[0].mxu0
        %957 = vmatprep.mubr.bf16.mxu0 0
        %958 = vmatmul.mubr.bf16.gmra.mrb[0].mxu0 %v906
        %v959 = vpop.f32.mrb[0].mxu0
        %v960 = vadd.f32 0.0, %v959
        %v961 = vpop.f32.mrb[0].mxu0
        %v962 = vpop.f32.mrb[0].mxu0
        %v963 = vadd.f32 0.0, %v962
        %v964 = vpop.f32.mrb[0].mxu0
        %965 = vmatprep.mubr.bf16.mxu0 0
        %966 = vmatmul.mubr.bf16.gmra.mrb[0].mxu0 %v909
        %v967 = vpop.f32.mrb[0].mxu0
        %v968 = vadd.f32 0.0, %v967
        %v969 = vpop.f32.mrb[0].mxu0
        %v970 = vpop.f32.mrb[0].mxu0
        %v971 = vadd.f32 0.0, %v970
        %v972 = vpop.f32.mrb[0].mxu0
        %973 = vmatprep.mubr.bf16.mxu0 0
        %974 = vmatmul.mubr.bf16.gmra.mrb[0].mxu0 %v912
        %v975 = vpop.f32.mrb[0].mxu0
        %v976 = vadd.f32 0.0, %v975
        %v977 = vpop.f32.mrb[0].mxu0
        %v978 = vpop.f32.mrb[0].mxu0
        %v979 = vadd.f32 0.0, %v978
        %v980 = vpop.f32.mrb[0].mxu0
        %981 = vdwg.mxu0
        %v982 = vadd.f32 %v856, %v952
        %v983 = vadd.f32 %v857, %v955
        %v984 = vadd.f32 %v858, %v960
        %v985 = vadd.f32 %v859, %v963
        %v986 = vadd.f32 %v860, %v968
        %v987 = vadd.f32 %v861, %v971
        %v988 = vadd.f32 %v862, %v976
        %v989 = vadd.f32 %v863, %v979
        %v990 = vld [vmem:[%s362] sm:$0xf]
        %v991 = vld [vmem:[%s362 + $0x8] sm:$0xf]
        %v992 = vld [vmem:[%s362 + $0x10] sm:$0xf]
        %v993 = vld [vmem:[%s362 + $0x18] sm:$0xf]
        %v994 = vld [vmem:[%s362 + $0x20] sm:$0xf]
        %v995 = vld [vmem:[%s362 + $0x28] sm:$0xf]
        %v996 = vld [vmem:[%s362 + $0x30] sm:$0xf]
        %v997 = vld [vmem:[%s362 + $0x38] sm:$0xf]
        %s998 = scalar_lea.vmem [#allocation10], 16
        %v999 = vld [vmem:[%s998] sm:$0xf]
        %v1008 = vunpack.c.l.b16 %v990
        %v1009 = vunpack.c.l.b16 %v991
        %v1010 = vunpack.c.l.b16 %v992
        %v1011 = vunpack.c.l.b16 %v993
        %v1012 = vunpack.c.l.b16 %v994
        %v1013 = vunpack.c.l.b16 %v995
        %v1014 = vunpack.c.l.b16 %v996
        %v1015 = vunpack.c.l.b16 %v997
        %v1016 = vpack.c.b16 %v1009, %v1008
        %v1017 = vpack.c.b16 %v1011, %v1010
        %v1018 = vpack.c.b16 %v1013, %v1012
        %v1019 = vpack.c.b16 %v1015, %v1014
        %v1021 = vsel %vm465, %v1016, 0
        %v1024 = vsel %vm465, %v1017, 0
        %v1027 = vsel %vm465, %v1018, 0
        %v1030 = vsel %vm465, %v1019, 0
        %v1033 = vsel %vm478, %v999, 0
        %1035 = vmatprep.subr.bf16.mxu0 0
        %1036 = vmatpush1.bf16.msra.mxu0 %v1033
        %1037 = vmatprep.subr.bf16.mxu0 0
        %1038 = vmatpush1.bf16.msra.mxu0 0
        %1039 = vmatprep.subr.bf16.mxu0 0
        %1040 = vmatpush1.bf16.msra.mxu0 0
        %1041 = vmatprep.subr.bf16.mxu0 0
        %1042 = vmatpush1.bf16.msra.mxu0 0
        %1043 = vmatprep.subr.bf16.mxu0 0
        %1044 = vmatpush1.bf16.msra.mxu0 0
        %1045 = vmatprep.subr.bf16.mxu0 0
        %1046 = vmatpush1.bf16.msra.mxu0 0
        %1047 = vmatprep.subr.bf16.mxu0 0
        %1048 = vmatpush1.bf16.msra.mxu0 0
        %1049 = vmatprep.subr.bf16.mxu0 0
        %1050 = vmatpush1.bf16.msra.mxu0 0
        %1051 = vmatprep.subr.bf16.mxu0 0
        %1052 = vmatpush1.bf16.msra.mxu0 0
        %1053 = vmatprep.subr.bf16.mxu0 0
        %1054 = vmatpush1.bf16.msra.mxu0 0
        %1055 = vmatprep.subr.bf16.mxu0 0
        %1056 = vmatpush1.bf16.msra.mxu0 0
        %1057 = vmatprep.subr.bf16.mxu0 0
        %1058 = vmatpush1.bf16.msra.mxu0 0
        %1059 = vmatprep.subr.bf16.mxu0 0
        %1060 = vmatpush1.bf16.msra.mxu0 0
        %1061 = vmatprep.subr.bf16.mxu0 0
        %1062 = vmatpush1.bf16.msra.mxu0 0
        %1063 = vmatprep.subr.bf16.mxu0 0
        %1064 = vmatpush1.bf16.msra.mxu0 0
        %1065 = vmatprep.subr.bf16.mxu0 0
        %1066 = vmatpush1.bf16.msra.mxu0 0
        %1067 = vmatprep.mubr.bf16.mxu0 0
        %1068 = vmatmul.mubr.bf16.gmra.mrb[0].mxu0 %v1021
        %v1069 = vpop.f32.mrb[0].mxu0
        %v1070 = vadd.f32 0.0, %v1069
        %v1071 = vpop.f32.mrb[0].mxu0
        %v1072 = vpop.f32.mrb[0].mxu0
        %v1073 = vadd.f32 0.0, %v1072
        %v1074 = vpop.f32.mrb[0].mxu0
        %1075 = vmatprep.mubr.bf16.mxu0 0
        %1076 = vmatmul.mubr.bf16.gmra.mrb[0].mxu0 %v1024
        %v1077 = vpop.f32.mrb[0].mxu0
        %v1078 = vadd.f32 0.0, %v1077
        %v1079 = vpop.f32.mrb[0].mxu0
        %v1080 = vpop.f32.mrb[0].mxu0
        %v1081 = vadd.f32 0.0, %v1080
        %v1082 = vpop.f32.mrb[0].mxu0
        %1083 = vmatprep.mubr.bf16.mxu0 0
        %1084 = vmatmul.mubr.bf16.gmra.mrb[0].mxu0 %v1027
        %v1085 = vpop.f32.mrb[0].mxu0
        %v1086 = vadd.f32 0.0, %v1085
        %v1087 = vpop.f32.mrb[0].mxu0
        %v1088 = vpop.f32.mrb[0].mxu0
        %v1089 = vadd.f32 0.0, %v1088
        %v1090 = vpop.f32.mrb[0].mxu0
        %1091 = vmatprep.mubr.bf16.mxu0 0
        %1092 = vmatmul.mubr.bf16.gmra.mrb[0].mxu0 %v1030
        %v1093 = vpop.f32.mrb[0].mxu0
        %v1094 = vadd.f32 0.0, %v1093
        %v1095 = vpop.f32.mrb[0].mxu0
        %v1096 = vpop.f32.mrb[0].mxu0
        %v1097 = vadd.f32 0.0, %v1096
        %v1098 = vpop.f32.mrb[0].mxu0
        %1099 = vdwg.mxu0
        %v1100 = vadd.f32 %v982, %v1070
        %v1101 = vadd.f32 %v983, %v1073
        %v1102 = vadd.f32 %v984, %v1078
        %v1103 = vadd.f32 %v985, %v1081
        %v1104 = vadd.f32 %v986, %v1086
        %v1105 = vadd.f32 %v987, %v1089
        %v1106 = vadd.f32 %v988, %v1094
        %v1107 = vadd.f32 %v989, %v1097
        %v1109 = vshrl.u32 %v864, 16
        %v1111 = vrot.slane %v1109, 4
        %v1112 = vshll.u32 %v864, 16
        %v1114 = vrot.slane %v1112, 5
        %v1115 = vor.u32 %v1111, %v1114
        %v1116 = vrot.slane %v1115, 4
        %v1118 = vshll.u32 %v865, 16
        %v1120 = vrot.slane %v1118, 5
        %v1121 = vsel %vm649, %v1116, %v1120
        %v1123 = vshrl.u32 %v866, 16
        %v1125 = vrot.slane %v1123, 4
        %v1126 = vshll.u32 %v866, 16
        %v1128 = vrot.slane %v1126, 5
        %v1129 = vor.u32 %v1125, %v1128
        %v1130 = vrot.slane %v1129, 4
        %v1132 = vshll.u32 %v867, 16
        %v1134 = vrot.slane %v1132, 5
        %v1135 = vsel %vm649, %v1130, %v1134
        %v1137 = vshrl.u32 %v868, 16
        %v1139 = vrot.slane %v1137, 4
        %v1140 = vshll.u32 %v868, 16
        %v1142 = vrot.slane %v1140, 5
        %v1143 = vor.u32 %v1139, %v1142
        %v1144 = vrot.slane %v1143, 4
        %v1146 = vshll.u32 %v869, 16
        %v1148 = vrot.slane %v1146, 5
        %v1149 = vsel %vm649, %v1144, %v1148
        %v1151 = vshrl.u32 %v870, 16
        %v1153 = vrot.slane %v1151, 4
        %v1154 = vshll.u32 %v870, 16
        %v1156 = vrot.slane %v1154, 5
        %v1157 = vor.u32 %v1153, %v1156
        %v1158 = vrot.slane %v1157, 4
        %v1160 = vshll.u32 %v871, 16
        %v1162 = vrot.slane %v1160, 5
        %v1163 = vsel %vm649, %v1158, %v1162
        %v1165 = vshrl.u32 %v872, 16
        %v1167 = vrot.slane %v1165, 4
        %v1168 = vshll.u32 %v872, 16
        %v1170 = vrot.slane %v1168, 5
        %v1171 = vor.u32 %v1167, %v1170
        %v1172 = vrot.slane %v1171, 4
        %v1174 = vshll.u32 %v873, 16
        %v1176 = vrot.slane %v1174, 5
        %v1177 = vsel %vm649, %v1172, %v1176
        %v1179 = vshrl.u32 %v874, 16
        %v1181 = vrot.slane %v1179, 4
        %v1182 = vshll.u32 %v874, 16
        %v1184 = vrot.slane %v1182, 5
        %v1185 = vor.u32 %v1181, %v1184
        %v1186 = vrot.slane %v1185, 4
        %v1188 = vshll.u32 %v875, 16
        %v1190 = vrot.slane %v1188, 5
        %v1191 = vsel %vm649, %v1186, %v1190
        %v1193 = vshrl.u32 %v876, 16
        %v1195 = vrot.slane %v1193, 4
        %v1196 = vshll.u32 %v876, 16
        %v1198 = vrot.slane %v1196, 5
        %v1199 = vor.u32 %v1195, %v1198
        %v1200 = vrot.slane %v1199, 4
        %v1202 = vshll.u32 %v877, 16
        %v1204 = vrot.slane %v1202, 5
        %v1205 = vsel %vm649, %v1200, %v1204
        %v1207 = vshrl.u32 %v878, 16
        %v1209 = vrot.slane %v1207, 4
        %v1210 = vshll.u32 %v878, 16
        %v1212 = vrot.slane %v1210, 5
        %v1213 = vor.u32 %v1209, %v1212
        %v1214 = vrot.slane %v1213, 4
        %v1216 = vshll.u32 %v879, 16
        %v1218 = vrot.slane %v1216, 5
        %v1219 = vsel %vm649, %v1214, %v1218
        %s1220 = scalar_lea.vmem [#allocation10], 20
        %v1221 = vld [vmem:[%s1220] sm:$0xf]
        %v1222 = vunpack.c.l.b16 %v1121
        %v1223 = vunpack.c.l.b16 %v1135
        %v1224 = vunpack.c.l.b16 %v1149
        %v1225 = vunpack.c.l.b16 %v1163
        %v1226 = vunpack.c.l.b16 %v1177
        %v1227 = vunpack.c.l.b16 %v1191
        %v1228 = vunpack.c.l.b16 %v1205
        %v1229 = vunpack.c.l.b16 %v1219
        %v1230 = vpack.c.b16 %v1223, %v1222
        %v1231 = vpack.c.b16 %v1225, %v1224
        %v1232 = vpack.c.b16 %v1227, %v1226
        %v1233 = vpack.c.b16 %v1229, %v1228
        %v1235 = vsel %vm465, %v1230, 0
        %v1238 = vsel %vm465, %v1231, 0
        %v1241 = vsel %vm465, %v1232, 0
        %v1244 = vsel %vm465, %v1233, 0
        %v1247 = vsel %vm478, %v1221, 0
        %1249 = vmatprep.subr.bf16.mxu0 0
        %1250 = vmatpush1.bf16.msra.mxu0 %v1247
        %1251 = vmatprep.subr.bf16.mxu0 0
        %1252 = vmatpush1.bf16.msra.mxu0 0
        %1253 = vmatprep.subr.bf16.mxu0 0
        %1254 = vmatpush1.bf16.msra.mxu0 0
        %1255 = vmatprep.subr.bf16.mxu0 0
        %1256 = vmatpush1.bf16.msra.mxu0 0
        %1257 = vmatprep.subr.bf16.mxu0 0
        %1258 = vmatpush1.bf16.msra.mxu0 0
        %1259 = vmatprep.subr.bf16.mxu0 0
        %1260 = vmatpush1.bf16.msra.mxu0 0
        %1261 = vmatprep.subr.bf16.mxu0 0
        %1262 = vmatpush1.bf16.msra.mxu0 0
        %1263 = vmatprep.subr.bf16.mxu0 0
        %1264 = vmatpush1.bf16.msra.mxu0 0
        %1265 = vmatprep.subr.bf16.mxu0 0
        %1266 = vmatpush1.bf16.msra.mxu0 0
        %1267 = vmatprep.subr.bf16.mxu0 0
        %1268 = vmatpush1.bf16.msra.mxu0 0
        %1269 = vmatprep.subr.bf16.mxu0 0
        %1270 = vmatpush1.bf16.msra.mxu0 0
        %1271 = vmatprep.subr.bf16.mxu0 0
        %1272 = vmatpush1.bf16.msra.mxu0 0
        %1273 = vmatprep.subr.bf16.mxu0 0
        %1274 = vmatpush1.bf16.msra.mxu0 0
        %1275 = vmatprep.subr.bf16.mxu0 0
        %1276 = vmatpush1.bf16.msra.mxu0 0
        %1277 = vmatprep.subr.bf16.mxu0 0
        %1278 = vmatpush1.bf16.msra.mxu0 0
        %1279 = vmatprep.subr.bf16.mxu0 0
        %1280 = vmatpush1.bf16.msra.mxu0 0
        %1281 = vmatprep.mubr.bf16.mxu0 0
        %1282 = vmatmul.mubr.bf16.gmra.mrb[0].mxu0 %v1235
        %v1283 = vpop.f32.mrb[0].mxu0
        %v1284 = vadd.f32 0.0, %v1283
        %v1285 = vpop.f32.mrb[0].mxu0
        %v1286 = vpop.f32.mrb[0].mxu0
        %v1287 = vadd.f32 0.0, %v1286
        %v1288 = vpop.f32.mrb[0].mxu0
        %1289 = vmatprep.mubr.bf16.mxu0 0
        %1290 = vmatmul.mubr.bf16.gmra.mrb[0].mxu0 %v1238
        %v1291 = vpop.f32.mrb[0].mxu0
        %v1292 = vadd.f32 0.0, %v1291
        %v1293 = vpop.f32.mrb[0].mxu0
        %v1294 = vpop.f32.mrb[0].mxu0
        %v1295 = vadd.f32 0.0, %v1294
        %v1296 = vpop.f32.mrb[0].mxu0
        %1297 = vmatprep.mubr.bf16.mxu0 0
        %1298 = vmatmul.mubr.bf16.gmra.mrb[0].mxu0 %v1241
        %v1299 = vpop.f32.mrb[0].mxu0
        %v1300 = vadd.f32 0.0, %v1299
        %v1301 = vpop.f32.mrb[0].mxu0
        %v1302 = vpop.f32.mrb[0].mxu0
        %v1303 = vadd.f32 0.0, %v1302
        %v1304 = vpop.f32.mrb[0].mxu0
        %1305 = vmatprep.mubr.bf16.mxu0 0
        %1306 = vmatmul.mubr.bf16.gmra.mrb[0].mxu0 %v1244
        %v1307 = vpop.f32.mrb[0].mxu0
        %v1308 = vadd.f32 0.0, %v1307
        %v1309 = vpop.f32.mrb[0].mxu0
        %v1310 = vpop.f32.mrb[0].mxu0
        %v1311 = vadd.f32 0.0, %v1310
        %v1312 = vpop.f32.mrb[0].mxu0
        %1313 = vdwg.mxu0
        %v1314 = vadd.f32 %v1100, %v1284
        %v1315 = vadd.f32 %v1101, %v1287
        %v1316 = vadd.f32 %v1102, %v1292
        %v1317 = vadd.f32 %v1103, %v1295
        %v1318 = vadd.f32 %v1104, %v1300
        %v1319 = vadd.f32 %v1105, %v1303
        %v1320 = vadd.f32 %v1106, %v1308
        %v1321 = vadd.f32 %v1107, %v1311
        %s1322 = scalar_lea.vmem [#allocation10], 24
        %v1323 = vld [vmem:[%s1322] sm:$0xf]
        %v1325 = vunpack.c.l.b16 %v431
        %v1326 = vpack.c.b16 %v557, %v556
        %v1327 = vpack.c.b16 %v559, %v558
        %v1328 = vpack.c.b16 %v561, %v560
        %v1329 = vpack.c.b16 %v1325, %v562
        %v1331 = vsel %vm465, %v1326, 0
        %v1334 = vsel %vm465, %v1327, 0
        %v1337 = vsel %vm465, %v1328, 0
        %v1340 = vsel %vm465, %v1329, 0
        %v1343 = vsel %vm478, %v1323, 0
        %1345 = vmatprep.subr.bf16.mxu0 0
        %1346 = vmatpush1.bf16.msra.mxu0 %v1343
        %1347 = vmatprep.subr.bf16.mxu0 0
        %1348 = vmatpush1.bf16.msra.mxu0 0
        %1349 = vmatprep.subr.bf16.mxu0 0
        %1350 = vmatpush1.bf16.msra.mxu0 0
        %1351 = vmatprep.subr.bf16.mxu0 0
        %1352 = vmatpush1.bf16.msra.mxu0 0
        %1353 = vmatprep.subr.bf16.mxu0 0
        %1354 = vmatpush1.bf16.msra.mxu0 0
        %1355 = vmatprep.subr.bf16.mxu0 0
        %1356 = vmatpush1.bf16.msra.mxu0 0
        %1357 = vmatprep.subr.bf16.mxu0 0
        %1358 = vmatpush1.bf16.msra.mxu0 0
        %1359 = vmatprep.subr.bf16.mxu0 0
        %1360 = vmatpush1.bf16.msra.mxu0 0
        %1361 = vmatprep.subr.bf16.mxu0 0
        %1362 = vmatpush1.bf16.msra.mxu0 0
        %1363 = vmatprep.subr.bf16.mxu0 0
        %1364 = vmatpush1.bf16.msra.mxu0 0
        %1365 = vmatprep.subr.bf16.mxu0 0
        %1366 = vmatpush1.bf16.msra.mxu0 0
        %1367 = vmatprep.subr.bf16.mxu0 0
        %1368 = vmatpush1.bf16.msra.mxu0 0
        %1369 = vmatprep.subr.bf16.mxu0 0
        %1370 = vmatpush1.bf16.msra.mxu0 0
        %1371 = vmatprep.subr.bf16.mxu0 0
        %1372 = vmatpush1.bf16.msra.mxu0 0
        %1373 = vmatprep.subr.bf16.mxu0 0
        %1374 = vmatpush1.bf16.msra.mxu0 0
        %1375 = vmatprep.subr.bf16.mxu0 0
        %1376 = vmatpush1.bf16.msra.mxu0 0
        %1377 = vmatprep.mubr.bf16.mxu0 0
        %1378 = vmatmul.mubr.bf16.gmra.mrb[0].mxu0 %v1331
        %v1379 = vpop.f32.mrb[0].mxu0
        %v1380 = vadd.f32 0.0, %v1379
        %v1381 = vpop.f32.mrb[0].mxu0
        %v1382 = vpop.f32.mrb[0].mxu0
        %v1383 = vadd.f32 0.0, %v1382
        %v1384 = vpop.f32.mrb[0].mxu0
        %1385 = vmatprep.mubr.bf16.mxu0 0
        %1386 = vmatmul.mubr.bf16.gmra.mrb[0].mxu0 %v1334
        %v1387 = vpop.f32.mrb[0].mxu0
        %v1388 = vadd.f32 0.0, %v1387
        %v1389 = vpop.f32.mrb[0].mxu0
        %v1390 = vpop.f32.mrb[0].mxu0
        %v1391 = vadd.f32 0.0, %v1390
        %v1392 = vpop.f32.mrb[0].mxu0
        %1393 = vmatprep.mubr.bf16.mxu0 0
        %1394 = vmatmul.mubr.bf16.gmra.mrb[0].mxu0 %v1337
        %v1395 = vpop.f32.mrb[0].mxu0
        %v1396 = vadd.f32 0.0, %v1395
        %v1397 = vpop.f32.mrb[0].mxu0
        %v1398 = vpop.f32.mrb[0].mxu0
        %v1399 = vadd.f32 0.0, %v1398
        %v1400 = vpop.f32.mrb[0].mxu0
        %1401 = vmatprep.mubr.bf16.mxu0 0
        %1402 = vmatmul.mubr.bf16.gmra.mrb[0].mxu0 %v1340
        %v1403 = vpop.f32.mrb[0].mxu0
        %v1404 = vadd.f32 0.0, %v1403
        %v1405 = vpop.f32.mrb[0].mxu0
        %v1406 = vpop.f32.mrb[0].mxu0
        %v1407 = vadd.f32 0.0, %v1406
        %v1408 = vpop.f32.mrb[0].mxu0
        %1409 = vdwg.mxu0
        %v1410 = vadd.f32 %v1314, %v1380
        %v1411 = vadd.f32 %v1315, %v1383
        %v1412 = vadd.f32 %v1316, %v1388
        %v1413 = vadd.f32 %v1317, %v1391
        %v1414 = vadd.f32 %v1318, %v1396
        %v1415 = vadd.f32 %v1319, %v1399
        %v1416 = vadd.f32 %v1320, %v1404
        %v1417 = vadd.f32 %v1321, %v1407
        %s1418 = scalar_lea.vmem [#allocation10], 28
        %v1419 = vld [vmem:[%s1418] sm:$0xf]
        %v1421 = vunpack.c.l.b16 %v442
        %v1422 = vpack.c.b16 %v455, %v454
        %v1423 = vpack.c.b16 %v457, %v456
        %v1424 = vpack.c.b16 %v459, %v458
        %v1425 = vpack.c.b16 %v1421, %v460
        %v1427 = vsel %vm465, %v1422, 0
        %v1430 = vsel %vm465, %v1423, 0
        %v1433 = vsel %vm465, %v1424, 0
        %v1436 = vsel %vm465, %v1425, 0
        %v1439 = vsel %vm478, %v1419, 0
        %1441 = vmatprep.subr.bf16.mxu0 0
        %1442 = vmatpush1.bf16.msra.mxu0 %v1439
        %1443 = vmatprep.subr.bf16.mxu0 0
        %1444 = vmatpush1.bf16.msra.mxu0 0
        %1445 = vmatprep.subr.bf16.mxu0 0
        %1446 = vmatpush1.bf16.msra.mxu0 0
        %1447 = vmatprep.subr.bf16.mxu0 0
        %1448 = vmatpush1.bf16.msra.mxu0 0
        %1449 = vmatprep.subr.bf16.mxu0 0
        %1450 = vmatpush1.bf16.msra.mxu0 0
        %1451 = vmatprep.subr.bf16.mxu0 0
        %1452 = vmatpush1.bf16.msra.mxu0 0
        %1453 = vmatprep.subr.bf16.mxu0 0
        %1454 = vmatpush1.bf16.msra.mxu0 0
        %1455 = vmatprep.subr.bf16.mxu0 0
        %1456 = vmatpush1.bf16.msra.mxu0 0
        %1457 = vmatprep.subr.bf16.mxu0 0
        %1458 = vmatpush1.bf16.msra.mxu0 0
        %1459 = vmatprep.subr.bf16.mxu0 0
        %1460 = vmatpush1.bf16.msra.mxu0 0
        %1461 = vmatprep.subr.bf16.mxu0 0
        %1462 = vmatpush1.bf16.msra.mxu0 0
        %1463 = vmatprep.subr.bf16.mxu0 0
        %1464 = vmatpush1.bf16.msra.mxu0 0
        %1465 = vmatprep.subr.bf16.mxu0 0
        %1466 = vmatpush1.bf16.msra.mxu0 0
        %1467 = vmatprep.subr.bf16.mxu0 0
        %1468 = vmatpush1.bf16.msra.mxu0 0
        %1469 = vmatprep.subr.bf16.mxu0 0
        %1470 = vmatpush1.bf16.msra.mxu0 0
        %1471 = vmatprep.subr.bf16.mxu0 0
        %1472 = vmatpush1.bf16.msra.mxu0 0
        %1473 = vmatprep.mubr.bf16.mxu0 0
        %1474 = vmatmul.mubr.bf16.gmra.mrb[0].mxu0 %v1427
        %v1475 = vpop.f32.mrb[0].mxu0
        %v1476 = vadd.f32 0.0, %v1475
        %v1477 = vpop.f32.mrb[0].mxu0
        %v1478 = vpop.f32.mrb[0].mxu0
        %v1479 = vadd.f32 0.0, %v1478
        %v1480 = vpop.f32.mrb[0].mxu0
        %1481 = vmatprep.mubr.bf16.mxu0 0
        %1482 = vmatmul.mubr.bf16.gmra.mrb[0].mxu0 %v1430
        %v1483 = vpop.f32.mrb[0].mxu0
        %v1484 = vadd.f32 0.0, %v1483
        %v1485 = vpop.f32.mrb[0].mxu0
        %v1486 = vpop.f32.mrb[0].mxu0
        %v1487 = vadd.f32 0.0, %v1486
        %v1488 = vpop.f32.mrb[0].mxu0
        %1489 = vmatprep.mubr.bf16.mxu0 0
        %1490 = vmatmul.mubr.bf16.gmra.mrb[0].mxu0 %v1433
        %v1491 = vpop.f32.mrb[0].mxu0
        %v1492 = vadd.f32 0.0, %v1491
        %v1493 = vpop.f32.mrb[0].mxu0
        %v1494 = vpop.f32.mrb[0].mxu0
        %v1495 = vadd.f32 0.0, %v1494
        %v1496 = vpop.f32.mrb[0].mxu0
        %1497 = vmatprep.mubr.bf16.mxu0 0
        %1498 = vmatmul.mubr.bf16.gmra.mrb[0].mxu0 %v1436
        %v1499 = vpop.f32.mrb[0].mxu0
        %v1500 = vadd.f32 0.0, %v1499
        %v1501 = vpop.f32.mrb[0].mxu0
        %v1502 = vpop.f32.mrb[0].mxu0
        %v1503 = vadd.f32 0.0, %v1502
        %v1504 = vpop.f32.mrb[0].mxu0
        %1505 = vdwg.mxu0
        %v1506 = vadd.f32 %v1410, %v1476
        %v1507 = vadd.f32 %v1411, %v1479
        %v1508 = vadd.f32 %v1412, %v1484
        %v1509 = vadd.f32 %v1413, %v1487
        %v1510 = vadd.f32 %v1414, %v1492
        %v1511 = vadd.f32 %v1415, %v1495
        %v1512 = vadd.f32 %v1416, %v1500
        %v1513 = vadd.f32 %v1417, %v1503
        %v1515 = vshrl.u32 %v431, 16
        %v1517 = vrot.slane %v1515, 4
        %v1518 = vshll.u32 %v431, 16
        %v1520 = vrot.slane %v1518, 5
        %v1521 = vor.u32 %v1517, %v1520
        %v1522 = vrot.slane %v1521, 4
        %v1524 = vshll.u32 %v432, 16
        %v1526 = vrot.slane %v1524, 5
        %v1527 = vsel %vm649, %v1522, %v1526
        %s1528 = scalar_lea.vmem [#allocation10], 32
        %v1529 = vld [vmem:[%s1528] sm:$0xf]
        %v1530 = vunpack.c.l.b16 %v1527
        %v1531 = vpack.c.b16 %v766, %v765
        %v1532 = vpack.c.b16 %v768, %v767
        %v1533 = vpack.c.b16 %v770, %v769
        %v1534 = vpack.c.b16 %v1530, %v771
        %v1536 = vsel %vm465, %v1531, 0
        %v1539 = vsel %vm465, %v1532, 0
        %v1542 = vsel %vm465, %v1533, 0
        %v1545 = vsel %vm465, %v1534, 0
        %v1548 = vsel %vm478, %v1529, 0
        %1550 = vmatprep.subr.bf16.mxu0 0
        %1551 = vmatpush1.bf16.msra.mxu0 %v1548
        %1552 = vmatprep.subr.bf16.mxu0 0
        %1553 = vmatpush1.bf16.msra.mxu0 0
        %1554 = vmatprep.subr.bf16.mxu0 0
        %1555 = vmatpush1.bf16.msra.mxu0 0
        %1556 = vmatprep.subr.bf16.mxu0 0
        %1557 = vmatpush1.bf16.msra.mxu0 0
        %1558 = vmatprep.subr.bf16.mxu0 0
        %1559 = vmatpush1.bf16.msra.mxu0 0
        %1560 = vmatprep.subr.bf16.mxu0 0
        %1561 = vmatpush1.bf16.msra.mxu0 0
        %1562 = vmatprep.subr.bf16.mxu0 0
        %1563 = vmatpush1.bf16.msra.mxu0 0
        %1564 = vmatprep.subr.bf16.mxu0 0
        %1565 = vmatpush1.bf16.msra.mxu0 0
        %1566 = vmatprep.subr.bf16.mxu0 0
        %1567 = vmatpush1.bf16.msra.mxu0 0
        %1568 = vmatprep.subr.bf16.mxu0 0
        %1569 = vmatpush1.bf16.msra.mxu0 0
        %1570 = vmatprep.subr.bf16.mxu0 0
        %1571 = vmatpush1.bf16.msra.mxu0 0
        %1572 = vmatprep.subr.bf16.mxu0 0
        %1573 = vmatpush1.bf16.msra.mxu0 0
        %1574 = vmatprep.subr.bf16.mxu0 0
        %1575 = vmatpush1.bf16.msra.mxu0 0
        %1576 = vmatprep.subr.bf16.mxu0 0
        %1577 = vmatpush1.bf16.msra.mxu0 0
        %1578 = vmatprep.subr.bf16.mxu0 0
        %1579 = vmatpush1.bf16.msra.mxu0 0
        %1580 = vmatprep.subr.bf16.mxu0 0
        %1581 = vmatpush1.bf16.msra.mxu0 0
        %1582 = vmatprep.mubr.bf16.mxu0 0
        %1583 = vmatmul.mubr.bf16.gmra.mrb[0].mxu0 %v1536
        %v1584 = vpop.f32.mrb[0].mxu0
        %v1585 = vadd.f32 0.0, %v1584
        %v1586 = vpop.f32.mrb[0].mxu0
        %v1587 = vpop.f32.mrb[0].mxu0
        %v1588 = vadd.f32 0.0, %v1587
        %v1589 = vpop.f32.mrb[0].mxu0
        %1590 = vmatprep.mubr.bf16.mxu0 0
        %1591 = vmatmul.mubr.bf16.gmra.mrb[0].mxu0 %v1539
        %v1592 = vpop.f32.mrb[0].mxu0
        %v1593 = vadd.f32 0.0, %v1592
        %v1594 = vpop.f32.mrb[0].mxu0
        %v1595 = vpop.f32.mrb[0].mxu0
        %v1596 = vadd.f32 0.0, %v1595
        %v1597 = vpop.f32.mrb[0].mxu0
        %1598 = vmatprep.mubr.bf16.mxu0 0
        %1599 = vmatmul.mubr.bf16.gmra.mrb[0].mxu0 %v1542
        %v1600 = vpop.f32.mrb[0].mxu0
        %v1601 = vadd.f32 0.0, %v1600
        %v1602 = vpop.f32.mrb[0].mxu0
        %v1603 = vpop.f32.mrb[0].mxu0
        %v1604 = vadd.f32 0.0, %v1603
        %v1605 = vpop.f32.mrb[0].mxu0
        %1606 = vmatprep.mubr.bf16.mxu0 0
        %1607 = vmatmul.mubr.bf16.gmra.mrb[0].mxu0 %v1545
        %v1608 = vpop.f32.mrb[0].mxu0
        %v1609 = vadd.f32 0.0, %v1608
        %v1610 = vpop.f32.mrb[0].mxu0
        %v1611 = vpop.f32.mrb[0].mxu0
        %v1612 = vadd.f32 0.0, %v1611
        %v1613 = vpop.f32.mrb[0].mxu0
        %1614 = vdwg.mxu0
        %v1615 = vadd.f32 %v1506, %v1585
        %v1616 = vadd.f32 %v1507, %v1588
        %v1617 = vadd.f32 %v1508, %v1593
        %v1618 = vadd.f32 %v1509, %v1596
        %v1619 = vadd.f32 %v1510, %v1601
        %v1620 = vadd.f32 %v1511, %v1604
        %v1621 = vadd.f32 %v1512, %v1609
        %v1622 = vadd.f32 %v1513, %v1612
        %v1623 = vld [vmem:[#allocation11] sm:$0x1]
        %v1625 = vlaneseq
        %v1626 = vshrl.u32 %v1625, 7
        %v1627 = vsub.s32 0, %v1626
        %v1628 = vrot.slane %v1623, %v1627
        %v1630 = vadd.f32 %v1615, %v1628
        %v1631 = vadd.f32 %v1616, %v1628
        %v1632 = vadd.f32 %v1617, %v1628
        %v1633 = vadd.f32 %v1618, %v1628
        %v1634 = vadd.f32 %v1619, %v1628
        %v1635 = vadd.f32 %v1620, %v1628
        %v1636 = vadd.f32 %v1621, %v1628
        %v1637 = vadd.f32 %v1622, %v1628
        %v1638 = vmax.f32 %v1630, 0.0
        %v1639 = vmax.f32 %v1631, 0.0
        %v1640 = vmax.f32 %v1632, 0.0
        %v1641 = vmax.f32 %v1633, 0.0
        %v1642 = vmax.f32 %v1634, 0.0
        %v1643 = vmax.f32 %v1635, 0.0
        %v1644 = vmax.f32 %v1636, 0.0
        %v1645 = vmax.f32 %v1637, 0.0
        %v1646 = vpack.c.bf16 %v1639, %v1638
        %v1647 = vpack.c.bf16 %v1641, %v1640
        %v1648 = vpack.c.bf16 %v1643, %v1642
        %v1649 = vpack.c.bf16 %v1645, %v1644
        %v1654 = vunpack.c.l.b16 %v1646
        %v1655 = vunpack.c.h.b16 %v1646
        %v1656 = vunpack.c.l.b16 %v1647
        %v1657 = vunpack.c.h.b16 %v1647
        %v1658 = vunpack.c.l.b16 %v1648
        %v1659 = vunpack.c.h.b16 %v1648
        %v1660 = vunpack.c.l.b16 %v1649
        %v1661 = vunpack.c.h.b16 %v1649
        %v1662 = vpack.c.b16 %v1654, %v1654
        %v1663 = vpack.c.b16 %v1655, %v1655
        %v1664 = vpack.c.b16 %v1656, %v1656
        %v1665 = vpack.c.b16 %v1657, %v1657
        %v1666 = vpack.c.b16 %v1658, %v1658
        %v1667 = vpack.c.b16 %v1659, %v1659
        %v1668 = vpack.c.b16 %v1660, %v1660
        %v1669 = vpack.c.b16 %v1661, %v1661
        %vm1678 = vcmask 257024
        %1679 = vst.msk [vmem:[%s413] sm:$0xf] %vm1678, %v1662
        %1680 = vst.msk [vmem:[%s413 + $0x4] sm:$0xf] %vm1678, %v1663
        %1681 = vst.msk [vmem:[%s413 + $0x8] sm:$0xf] %vm1678, %v1664
        %1682 = vst.msk [vmem:[%s413 + $0xc] sm:$0xf] %vm1678, %v1665
        %1683 = vst.msk [vmem:[%s413 + $0x10] sm:$0xf] %vm1678, %v1666
        %1684 = vst.msk [vmem:[%s413 + $0x14] sm:$0xf] %vm1678, %v1667
        %1685 = vst.msk [vmem:[%s413 + $0x18] sm:$0xf] %vm1678, %v1668
        %1686 = vst.msk [vmem:[%s413 + $0x1c] sm:$0xf] %vm1678, %v1669
        %s1687 = sand.u32 %s184, 1
        %s1688 = scalar_lea.sflag [#allocation4], %s1687
        %s1689 = sand.u32 %s184, 1
        %s1690 = smul.addr %s1689, 32
        %s1691 = scalar_lea.vmem [#allocation13], %s1690
        // Predicated region
        $region69: #{encoder_forward.5} parent=43 // pred_check
          %p1692 = pneg %p194
        $region70: #{encoder_forward.5} parent=43 // pred_check_branch
          %1694 = sbr.rel (%p1692) target = $region72
        $region71: #{encoder_forward.5} parent=43 // pred_region
          %s1696 = ssub.s32 512, 512
          %1697 = vsyncadd %s1688, %s1696
          %s1698 = smul.addr %s30, 8
          %s1699 = smul.addr %s1698, 64
          %s1700 = scalar_lea.hbm %s6, %s1699
          %s1701 = sshll.u32 %s1691, 4
          %s1702 = int_to_ptr.vmem [resolvable:$true] %s1701
          %1707 = dma.vmem_to_hbm [thread:$0]  %s1702, 512, %s1700, %s1688, 64, 64, 4
        $region72: #{encoder_forward.5} parent=43 // pred_fallthru
          _
      $region44: #{encoder_forward.5} parent=5 // pred_fallthru
        _
      %p1708 = scmp.le.s32.totalorder 2, %s25
      // Predicated region
      $region73: #{encoder_forward.5} parent=5 // pred_check
        %p1709 = pneg %p1708
      $region74: #{encoder_forward.5} parent=5 // pred_check_branch
        %1711 = sbr.rel (%p1709) target = $region76
      $region75: #{encoder_forward.5} parent=5 // pred_region
        %s1712 = ssub.s32 %s25, 2
        // Predicated region
        $region77: #{encoder_forward.5} parent=75 // pred_check
          %p1713 = pneg %p200
        $region78: #{encoder_forward.5} parent=75 // pred_check_branch
          %1715 = sbr.rel (%p1713) target = $region80
        $region79: #{encoder_forward.5} parent=75 // pred_region
          %s1716 = sand.u32 %s185, 1
          %s1717 = scalar_lea.sflag [#allocation4], %s1716
          %s1718 = sand.u32 %s185, 1
          %s1719 = smul.addr %s1718, 32
          %s1720 = scalar_lea.vmem [#allocation13], %s1719
          %1721 = dma.done %s1717, 512
        $region80: #{encoder_forward.5} parent=75 // pred_fallthru
          _
      $region76: #{encoder_forward.5} parent=5 // pred_fallthru
        _
    $region6: #{encoder_forward.5} parent=1 // loop_footer
      %s29 = sadd.s32 1, %s25
    $region7: #{encoder_forward.5} parent=1 // loop_footer_branch
      %24 = sbr.rel target = $region3
    $region8: #{encoder_forward.5} parent=1 // loop_exit
      _
    %1722 = vsyncpa [#allocation3], 1
    %s1723 = scalar_lea.sflag [#allocation3], 1
    %1724 = vsyncpa %s1723, 1
    %1725 = vsyncpa [#allocation6], 1
    %s1726 = scalar_lea.sflag [#allocation6], 1
    %1727 = vsyncpa %s1726, 1
    %1728 = vsyncpa [#allocation9], 1
    %s1729 = scalar_lea.sflag [#allocation9], 1
    %1730 = vsyncpa %s1729, 1
    %1731 = vsyncpa [#allocation12], 1
    %1732 = vsyncpa [#allocation4], 1
    %s1733 = scalar_lea.sflag [#allocation4], 1
    %1734 = vsyncpa %s1733, 1

// kernel: encoder_forward.7
$region0: #{encoder_forward.7}
  #allocation0 [shape = 'u32[]', space=smem, size = 0x4, offset = 0x4, fixed_abs, tag = 'smem constant byte address 0x4 - core index']
  #allocation1 [shape = 'u32[144,128]{1,0:T(1,128)}', space=vmem, size = 0x12000, scoped, tag = 'internal scratch']
  %s0 = inlined_call_operand.hbm [shape: bf16[2,3,3,64], index: 0, kind: input, shape index: {}]
  %s1 = inlined_call_operand.hbm [shape: bf16[2,3,3,64], index: 1, kind: input, shape index: {}]
  %s2 = inlined_call_operand.hbm [shape: bf16[2,3,3,64], index: 2, kind: input, shape index: {}]
  %s3 = inlined_call_operand.hbm [shape: bf16[2,3,3,64], index: 3, kind: input, shape index: {}]
  %s4 = inlined_call_operand.hbm [shape: bf16[9,64,128], index: 4, kind: input, shape index: {}]
  %s5 = inlined_call_operand.hbm [shape: f32[1,128], index: 5, kind: input, shape index: {}]
  %s6 = inlined_call_operand.hbm [shape: bf16[2,4,128], index: 6, kind: output, shape index: {}]
  %s7 = sld [smem:[#allocation0]]
  $region81: #{encoder_forward.7} parent=0
    _
  %s9 = ssub.s32 1, %s7
  %s10 = scalar_select 0, %s9, %s7
  $region1: #{encoder_forward.7} parent=0
    #allocation2 [shape = 'u8[6144]{0}', space=vmem, size = 0x1800, scoped, tag = 'input window, operand 0']
    #allocation3 [shape = 's32[2]{0}', space=sflag, size = 0x8, scoped, tag = 'scoped memory for encoder_forward.7']
    #allocation4 [shape = 's32[2]{0}', space=sflag, size = 0x8, scoped, tag = 'scoped memory for encoder_forward.7']
    #allocation5 [shape = 'u8[6144]{0}', space=vmem, size = 0x1800, scoped, tag = 'input window, operand 1']
    #allocation6 [shape = 's32[2]{0}', space=sflag, size = 0x8, scoped, tag = 'scoped memory for encoder_forward.7']
    #allocation7 [shape = 'u8[6144]{0}', space=vmem, size = 0x1800, scoped, tag = 'input window, operand 2']
    #allocation8 [shape = 'u8[6144]{0}', space=vmem, size = 0x1800, scoped, tag = 'input window, operand 3']
    #allocation9 [shape = 's32[2]{0}', space=sflag, size = 0x8, scoped, tag = 'scoped memory for encoder_forward.7']
    #allocation10 [shape = 'u8[147456]{0}', space=vmem, size = 0x24000, scoped, tag = 'input window, operand 4, single buffered']
    #allocation11 [shape = 'u8[512]{0}', space=vmem, size = 0x400, scoped, tag = 'input window, operand 5, single buffered']
    #allocation12 [shape = 's32[1]{0}', space=sflag, size = 0x4, scoped, tag = 'scoped memory for encoder_forward.7']
    #allocation13 [shape = 'u8[2048]{0}', space=vmem, size = 0x800, scoped, tag = 'output window, operand 0']
    %11 = vsyncpa [#allocation3], 0
    %s12 = scalar_lea.sflag [#allocation3], 1
    %13 = vsyncpa %s12, 0
    %14 = vsyncpa [#allocation6], 0
    %s15 = scalar_lea.sflag [#allocation6], 1
    %16 = vsyncpa %s15, 0
    %17 = vsyncpa [#allocation9], 0
    %s18 = scalar_lea.sflag [#allocation9], 1
    %19 = vsyncpa %s18, 0
    %20 = vsyncpa [#allocation12], 0
    %21 = vsyncpa [#allocation4], 0
    %s22 = scalar_lea.sflag [#allocation4], 1
    %23 = vsyncpa %s22, 0
    loop: start=0, step=1, limit=4
    $region2: #{encoder_forward.7} parent=1 // loop_pre_header
      _
    $region3: #{encoder_forward.7} parent=1 // loop_header
      %s25 = sphi 0, %s29
      %p26 = scmp.ge.s32.totalorder %s25, 4
      %s35 = sphi 0, %s37
      %s38 = sphi 0, %s35
      %s39 = sphi 0, %s38
      %s55 = sphi 0, %s39
      %s61 = sphi 0, %s63
      %s64 = sphi 0, %s61
      %s65 = sphi 0, %s64
      %s81 = sphi 0, %s65
      %s87 = sphi 0, %s89
      %s90 = sphi 0, %s87
      %s91 = sphi 0, %s90
      %s107 = sphi 0, %s91
      %s113 = sphi 0, %s115
      %s116 = sphi 0, %s113
      %s117 = sphi 0, %s116
      %s133 = sphi 0, %s117
      %s137 = sphi 0, %s137
      %s139 = sphi 0, %s137
      %s140 = sphi 0, %s139
      %s154 = sphi 0, %s140
      %s158 = sphi 0, %s158
      %s160 = sphi 0, %s158
      %s161 = sphi 0, %s160
      %s175 = sphi 0, %s161
      %s181 = sphi 0, %s183
      %s184 = sphi 0, %s181
      %s185 = sphi 0, %s184
      %s201 = sphi 0, %s185
    $region4: #{encoder_forward.7} parent=1 // loop_header_branch
      %28 = sbr.rel (%p26) target = $region8
    $region5: #{encoder_forward.7} parent=1 // loop_body
      %s30 = ssub.s32 %s25, 1
      %s31 = ssub.s32 %s25, 2
      %s32 = sadd.s32 %s25, 1
      %s33 = ssub.s32 %s25, %s32
      %p34 = scmp.eq.s32.totalorder %s33, 0
      %s36 = sadd.s32 %s35, 1
      %s37 = scalar_select %p34, %s35, %s36
      %p40 = pneg %p34
      %p41 = scmp.eq.s32.totalorder %s25, 1
      %p42 = por %p40, %p41
      %p43 = scmp.ne.s32.totalorder %s35, %s38
      %p44 = scmp.eq.s32.totalorder %s25, 0
      %p45 = por %p43, %p44
      %p46 = scmp.ne.s32.totalorder %s35, %s38
      %p47 = scmp.eq.s32.totalorder %s30, 1
      %p48 = por %p46, %p47
      %p49 = scmp.ne.s32.totalorder %s38, %s39
      %p50 = scmp.eq.s32.totalorder %s30, 0
      %p51 = por %p49, %p50
      %p52 = scmp.ne.s32.totalorder %s38, %s39
      %p53 = scmp.eq.s32.totalorder %s31, 1
      %p54 = por %p52, %p53
      %p56 = scmp.ne.s32.totalorder %s39, %s55
      %p57 = scmp.eq.s32.totalorder %s31, 0
      %p58 = por %p56, %p57
      %s59 = ssub.s32 %s25, %s32
      %p60 = scmp.eq.s32.totalorder %s59, 0
      %s62 = sadd.s32 %s61, 1
      %s63 = scalar_select %p60, %s61, %s62
      %p66 = pneg %p60
      %p67 = scmp.eq.s32.totalorder %s25, 1
      %p68 = por %p66, %p67
      %p69 = scmp.ne.s32.totalorder %s61, %s64
      %p70 = scmp.eq.s32.totalorder %s25, 0
      %p71 = por %p69, %p70
      %p72 = scmp.ne.s32.totalorder %s61, %s64
      %p73 = scmp.eq.s32.totalorder %s30, 1
      %p74 = por %p72, %p73
      %p75 = scmp.ne.s32.totalorder %s64, %s65
      %p76 = scmp.eq.s32.totalorder %s30, 0
      %p77 = por %p75, %p76
      %p78 = scmp.ne.s32.totalorder %s64, %s65
      %p79 = scmp.eq.s32.totalorder %s31, 1
      %p80 = por %p78, %p79
      %p82 = scmp.ne.s32.totalorder %s65, %s81
      %p83 = scmp.eq.s32.totalorder %s31, 0
      %p84 = por %p82, %p83
      %s85 = ssub.s32 %s25, %s32
      %p86 = scmp.eq.s32.totalorder %s85, 0
      %s88 = sadd.s32 %s87, 1
      %s89 = scalar_select %p86, %s87, %s88
      %p92 = pneg %p86
      %p93 = scmp.eq.s32.totalorder %s25, 1
      %p94 = por %p92, %p93
      %p95 = scmp.ne.s32.totalorder %s87, %s90
      %p96 = scmp.eq.s32.totalorder %s25, 0
      %p97 = por %p95, %p96
      %p98 = scmp.ne.s32.totalorder %s87, %s90
      %p99 = scmp.eq.s32.totalorder %s30, 1
      %p100 = por %p98, %p99
      %p101 = scmp.ne.s32.totalorder %s90, %s91
      %p102 = scmp.eq.s32.totalorder %s30, 0
      %p103 = por %p101, %p102
      %p104 = scmp.ne.s32.totalorder %s90, %s91
      %p105 = scmp.eq.s32.totalorder %s31, 1
      %p106 = por %p104, %p105
      %p108 = scmp.ne.s32.totalorder %s91, %s107
      %p109 = scmp.eq.s32.totalorder %s31, 0
      %p110 = por %p108, %p109
      %s111 = ssub.s32 %s25, %s32
      %p112 = scmp.eq.s32.totalorder %s111, 0
      %s114 = sadd.s32 %s113, 1
      %s115 = scalar_select %p112, %s113, %s114
      %p118 = pneg %p112
      %p119 = scmp.eq.s32.totalorder %s25, 1
      %p120 = por %p118, %p119
      %p121 = scmp.ne.s32.totalorder %s113, %s116
      %p122 = scmp.eq.s32.totalorder %s25, 0
      %p123 = por %p121, %p122
      %p124 = scmp.ne.s32.totalorder %s113, %s116
      %p125 = scmp.eq.s32.totalorder %s30, 1
      %p126 = por %p124, %p125
      %p127 = scmp.ne.s32.totalorder %s116, %s117
      %p128 = scmp.eq.s32.totalorder %s30, 0
      %p129 = por %p127, %p128
      %p130 = scmp.ne.s32.totalorder %s116, %s117
      %p131 = scmp.eq.s32.totalorder %s31, 1
      %p132 = por %p130, %p131
      %p134 = scmp.ne.s32.totalorder %s117, %s133
      %p135 = scmp.eq.s32.totalorder %s31, 0
      %p136 = por %p134, %p135
      %s138 = sadd.s32 %s137, 1
      %p141 = scmp.eq.s32.totalorder %s25, 1
      %p142 = scmp.ne.s32.totalorder %s137, %s139
      %p143 = scmp.eq.s32.totalorder %s25, 0
      %p144 = por %p142, %p143
      %p145 = scmp.ne.s32.totalorder %s137, %s139
      %p146 = scmp.eq.s32.totalorder %s30, 1
      %p147 = por %p145, %p146
      %p148 = scmp.ne.s32.totalorder %s139, %s140
      %p149 = scmp.eq.s32.totalorder %s30, 0
      %p150 = por %p148, %p149
      %p151 = scmp.ne.s32.totalorder %s139, %s140
      %p152 = scmp.eq.s32.totalorder %s31, 1
      %p153 = por %p151, %p152
      %p155 = scmp.ne.s32.totalorder %s140, %s154
      %p156 = scmp.eq.s32.totalorder %s31, 0
      %p157 = por %p155, %p156
      %s159 = sadd.s32 %s158, 1
      %p162 = scmp.eq.s32.totalorder %s25, 1
      %p163 = scmp.ne.s32.totalorder %s158, %s160
      %p164 = scmp.eq.s32.totalorder %s25, 0
      %p165 = por %p163, %p164
      %p166 = scmp.ne.s32.totalorder %s158, %s160
      %p167 = scmp.eq.s32.totalorder %s30, 1
      %p168 = por %p166, %p167
      %p169 = scmp.ne.s32.totalorder %s160, %s161
      %p170 = scmp.eq.s32.totalorder %s30, 0
      %p171 = por %p169, %p170
      %p172 = scmp.ne.s32.totalorder %s160, %s161
      %p173 = scmp.eq.s32.totalorder %s31, 1
      %p174 = por %p172, %p173
      %p176 = scmp.ne.s32.totalorder %s161, %s175
      %p177 = scmp.eq.s32.totalorder %s31, 0
      %p178 = por %p176, %p177
      %s179 = ssub.s32 %s25, %s32
      %p180 = scmp.eq.s32.totalorder %s179, 0
      %s182 = sadd.s32 %s181, 1
      %s183 = scalar_select %p180, %s181, %s182
      %p186 = pneg %p180
      %p187 = scmp.eq.s32.totalorder %s25, 1
      %p188 = por %p186, %p187
      %p189 = scmp.ne.s32.totalorder %s181, %s184
      %p190 = scmp.eq.s32.totalorder %s25, 0
      %p191 = por %p189, %p190
      %p192 = scmp.ne.s32.totalorder %s181, %s184
      %p193 = scmp.eq.s32.totalorder %s30, 1
      %p194 = por %p192, %p193
      %p195 = scmp.ne.s32.totalorder %s184, %s185
      %p196 = scmp.eq.s32.totalorder %s30, 0
      %p197 = por %p195, %p196
      %p198 = scmp.ne.s32.totalorder %s184, %s185
      %p199 = scmp.eq.s32.totalorder %s31, 1
      %p200 = por %p198, %p199
      %p202 = scmp.ne.s32.totalorder %s185, %s201
      %p203 = scmp.eq.s32.totalorder %s31, 0
      %p204 = por %p202, %p203
      %p205 = scmp.le.s32.totalorder 1, %s25
      %p206 = scmp.lt.s32.totalorder %s25, 3
      %p207 = pnand %p205, %p206
      %p208 = pneg %p207
      // Predicated region
      $region9: #{encoder_forward.7} parent=5 // pred_check
        _
      $region10: #{encoder_forward.7} parent=5 // pred_check_branch
        %210 = sbr.rel (%p207) target = $region12
      $region11: #{encoder_forward.7} parent=5 // pred_region
        %s211 = ssub.s32 %s25, 1
        // Predicated region
        $region13: #{encoder_forward.7} parent=11 // pred_check
          %p212 = pneg %p150
        $region14: #{encoder_forward.7} parent=11 // pred_check_branch
          %214 = sbr.rel (%p212) target = $region16
        $region15: #{encoder_forward.7} parent=11 // pred_region
          %s216 = ssub.s32 4608, 4608
          %217 = vsyncadd [#allocation9], %s216
          %s218 = sshll.u32 [#allocation10], 4
          %s219 = int_to_ptr.vmem [resolvable:$true] %s218
          %224 = dma.hbm_to_vmem [thread:$0]  %s4, 4608, %s219, [#allocation9], 64, 64, 4
        $region16: #{encoder_forward.7} parent=11 // pred_fallthru
          _
        // Predicated region
        $region17: #{encoder_forward.7} parent=11 // pred_check
          %p225 = pneg %p171
        $region18: #{encoder_forward.7} parent=11 // pred_check_branch
          %227 = sbr.rel (%p225) target = $region20
        $region19: #{encoder_forward.7} parent=11 // pred_region
          %s229 = ssub.s32 16, 16
          %230 = vsyncadd [#allocation12], %s229
          %s232 = sshll.u32 [#allocation11], 4
          %s233 = int_to_ptr.vmem [resolvable:$true] %s232
          %235 = dma.hbm_to_vmem [thread:$0]  %s5, 16, %s233, [#allocation12]
        $region20: #{encoder_forward.7} parent=11 // pred_fallthru
          _
      $region12: #{encoder_forward.7} parent=5 // pred_fallthru
        _
      %p236 = scmp.lt.s32.totalorder %s25, 2
      // Predicated region
      $region21: #{encoder_forward.7} parent=5 // pred_check
        %p237 = pneg %p236
      $region22: #{encoder_forward.7} parent=5 // pred_check_branch
        %239 = sbr.rel (%p237) target = $region24
      $region23: #{encoder_forward.7} parent=5 // pred_region
        // Predicated region
        $region25: #{encoder_forward.7} parent=23 // pred_check
          %p240 = pneg %p45
        $region26: #{encoder_forward.7} parent=23 // pred_check_branch
          %242 = sbr.rel (%p240) target = $region28
        $region27: #{encoder_forward.7} parent=23 // pred_region
          %s243 = sand.u32 %s35, 1
          %s244 = scalar_lea.sflag [#allocation3], %s243
          %s245 = sand.u32 %s35, 1
          %s246 = smul.addr %s245, 6
          %s247 = scalar_lea.vmem [#allocation2], %s246
          %s249 = ssub.s32 96, 96
          %250 = vsyncadd %s244, %s249
          %s251 = smul.addr %s25, 3
          %s252 = smul.addr %s251, 32
          %s253 = scalar_lea.hbm %s0, %s252
          %s254 = sshll.u32 %s247, 4
          %s255 = int_to_ptr.vmem [resolvable:$true] %s254
          %260 = dma.hbm_to_vmem [thread:$0]  %s253, 96, %s255, %s244, 32, 32, 2
        $region28: #{encoder_forward.7} parent=23 // pred_fallthru
          _
        // Predicated region
        $region29: #{encoder_forward.7} parent=23 // pred_check
          %p261 = pneg %p71
        $region30: #{encoder_forward.7} parent=23 // pred_check_branch
          %263 = sbr.rel (%p261) target = $region32
        $region31: #{encoder_forward.7} parent=23 // pred_region
          %s264 = sand.u32 %s25, 1
          %s265 = scalar_lea.sflag [#allocation6], %s264
          %s266 = sand.u32 %s61, 1
          %s267 = smul.addr %s266, 6
          %s268 = scalar_lea.vmem [#allocation5], %s267
          %s270 = ssub.s32 96, 96
          %271 = vsyncadd %s265, %s270
          %s272 = smul.addr %s25, 3
          %s273 = smul.addr %s272, 32
          %s274 = scalar_lea.hbm %s1, %s273
          %s275 = sshll.u32 %s268, 4
          %s276 = int_to_ptr.vmem [resolvable:$true] %s275
          %281 = dma.hbm_to_vmem [thread:$0]  %s274, 96, %s276, %s265, 32, 32, 2
        $region32: #{encoder_forward.7} parent=23 // pred_fallthru
          _
        // Predicated region
        $region33: #{encoder_forward.7} parent=23 // pred_check
          %p282 = pneg %p97
        $region34: #{encoder_forward.7} parent=23 // pred_check_branch
          %284 = sbr.rel (%p282) target = $region36
        $region35: #{encoder_forward.7} parent=23 // pred_region
          %s285 = sand.u32 %s25, 1
          %s286 = scalar_lea.sflag [#allocation6], %s285
          %s287 = sand.u32 %s87, 1
          %s288 = smul.addr %s287, 6
          %s289 = scalar_lea.vmem [#allocation7], %s288
          %s291 = ssub.s32 96, 96
          %292 = vsyncadd %s286, %s291
          %s293 = smul.addr %s25, 3
          %s294 = smul.addr %s293, 32
          %s295 = scalar_lea.hbm %s2, %s294
          %s296 = sshll.u32 %s289, 4
          %s297 = int_to_ptr.vmem [resolvable:$true] %s296
          %302 = dma.hbm_to_vmem [thread:$0]  %s295, 96, %s297, %s286, 32, 32, 2
        $region36: #{encoder_forward.7} parent=23 // pred_fallthru
          _
        // Predicated region
        $region37: #{encoder_forward.7} parent=23 // pred_check
          %p303 = pneg %p123
        $region38: #{encoder_forward.7} parent=23 // pred_check_branch
          %305 = sbr.rel (%p303) target = $region40
        $region39: #{encoder_forward.7} parent=23 // pred_region
          %s306 = sand.u32 %s25, 1
          %s307 = scalar_lea.sflag [#allocation9], %s306
          %s308 = sand.u32 %s113, 1
          %s309 = smul.addr %s308, 6
          %s310 = scalar_lea.vmem [#allocation8], %s309
          %s312 = ssub.s32 96, 96
          %313 = vsyncadd %s307, %s312
          %s314 = smul.addr %s25, 3
          %s315 = smul.addr %s314, 32
          %s316 = scalar_lea.hbm %s3, %s315
          %s317 = sshll.u32 %s310, 4
          %s318 = int_to_ptr.vmem [resolvable:$true] %s317
          %323 = dma.hbm_to_vmem [thread:$0]  %s316, 96, %s318, %s307, 32, 32, 2
        $region40: #{encoder_forward.7} parent=23 // pred_fallthru
          _
      $region24: #{encoder_forward.7} parent=5 // pred_fallthru
        _
      %p324 = scmp.le.s32.totalorder 1, %s25
      %p325 = scmp.lt.s32.totalorder %s25, 3
      %p326 = pnand %p324, %p325
      %p327 = pneg %p326
      // Predicated region
      $region41: #{encoder_forward.7} parent=5 // pred_check
        _
      $region42: #{encoder_forward.7} parent=5 // pred_check_branch
        %329 = sbr.rel (%p326) target = $region44
      $region43: #{encoder_forward.7} parent=5 // pred_region
        %s330 = ssub.s32 %s25, 1
        %s331 = sand.u32 %s38, 1
        %s332 = scalar_lea.sflag [#allocation3], %s331
        %s333 = sand.u32 %s38, 1
        %s334 = smul.addr %s333, 6
        %s335 = scalar_lea.vmem [#allocation2], %s334
        // Predicated region
        $region45: #{encoder_forward.7} parent=43 // pred_check
          %p336 = pneg %p51
        $region46: #{encoder_forward.7} parent=43 // pred_check_branch
          %338 = sbr.rel (%p336) target = $region48
        $region47: #{encoder_forward.7} parent=43 // pred_region
          %339 = dma.done %s332, 96
        $region48: #{encoder_forward.7} parent=43 // pred_fallthru
          _
        %s340 = sand.u32 %s30, 1
        %s341 = scalar_lea.sflag [#allocation6], %s340
        %s342 = sand.u32 %s64, 1
        %s343 = smul.addr %s342, 6
        %s344 = scalar_lea.vmem [#allocation5], %s343
        // Predicated region
        $region49: #{encoder_forward.7} parent=43 // pred_check
          %p345 = pneg %p77
        $region50: #{encoder_forward.7} parent=43 // pred_check_branch
          %347 = sbr.rel (%p345) target = $region52
        $region51: #{encoder_forward.7} parent=43 // pred_region
          %348 = dma.done %s341, 96
        $region52: #{encoder_forward.7} parent=43 // pred_fallthru
          _
        %s349 = sand.u32 %s30, 1
        %s350 = scalar_lea.sflag [#allocation6], %s349
        %s351 = sand.u32 %s90, 1
        %s352 = smul.addr %s351, 6
        %s353 = scalar_lea.vmem [#allocation7], %s352
        // Predicated region
        $region53: #{encoder_forward.7} parent=43 // pred_check
          %p354 = pneg %p103
        $region54: #{encoder_forward.7} parent=43 // pred_check_branch
          %356 = sbr.rel (%p354) target = $region56
        $region55: #{encoder_forward.7} parent=43 // pred_region
          %357 = dma.done %s350, 96
        $region56: #{encoder_forward.7} parent=43 // pred_fallthru
          _
        %s358 = sand.u32 %s30, 1
        %s359 = scalar_lea.sflag [#allocation9], %s358
        %s360 = sand.u32 %s116, 1
        %s361 = smul.addr %s360, 6
        %s362 = scalar_lea.vmem [#allocation8], %s361
        // Predicated region
        $region57: #{encoder_forward.7} parent=43 // pred_check
          %p363 = pneg %p129
        $region58: #{encoder_forward.7} parent=43 // pred_check_branch
          %365 = sbr.rel (%p363) target = $region60
        $region59: #{encoder_forward.7} parent=43 // pred_region
          %366 = dma.done %s359, 96
        $region60: #{encoder_forward.7} parent=43 // pred_fallthru
          _
        // Predicated region
        $region61: #{encoder_forward.7} parent=43 // pred_check
          %p367 = pneg %p150
        $region62: #{encoder_forward.7} parent=43 // pred_check_branch
          %369 = sbr.rel (%p367) target = $region64
        $region63: #{encoder_forward.7} parent=43 // pred_region
          %370 = dma.done [#allocation9], 4608
        $region64: #{encoder_forward.7} parent=43 // pred_fallthru
          _
        // Predicated region
        $region65: #{encoder_forward.7} parent=43 // pred_check
          %p371 = pneg %p171
        $region66: #{encoder_forward.7} parent=43 // pred_check_branch
          %373 = sbr.rel (%p371) target = $region68
        $region67: #{encoder_forward.7} parent=43 // pred_region
          %374 = dma.done [#allocation12], 16
        $region68: #{encoder_forward.7} parent=43 // pred_fallthru
          _
        %s375 = sand.u32 %s38, 1
        %s376 = scalar_lea.sflag [#allocation3], %s375
        %s377 = sand.u32 %s38, 1
        %s378 = smul.addr %s377, 6
        %s379 = scalar_lea.vmem [#allocation2], %s378
        %p380 = pneg %p51
        %p381 = pneg %p48
        %s382 = sand.u32 %s30, 1
        %s383 = scalar_lea.sflag [#allocation6], %s382
        %s384 = sand.u32 %s64, 1
        %s385 = smul.addr %s384, 6
        %s386 = scalar_lea.vmem [#allocation5], %s385
        %p387 = pneg %p77
        %p388 = pneg %p74
        %s389 = sand.u32 %s30, 1
        %s390 = scalar_lea.sflag [#allocation6], %s389
        %s391 = sand.u32 %s90, 1
        %s392 = smul.addr %s391, 6
        %s393 = scalar_lea.vmem [#allocation7], %s392
        %p394 = pneg %p103
        %p395 = pneg %p100
        %s396 = sand.u32 %s30, 1
        %s397 = scalar_lea.sflag [#allocation9], %s396
        %s398 = sand.u32 %s116, 1
        %s399 = smul.addr %s398, 6
        %s400 = scalar_lea.vmem [#allocation8], %s399
        %p401 = pneg %p129
        %p402 = pneg %p126
        %p403 = pneg %p150
        %p404 = pneg %p147
        %p405 = pneg %p171
        %p406 = pneg %p168
        %p407 = pneg %p197
        %p408 = pneg %p194
        %s409 = sand.u32 %s184, 1
        %s410 = scalar_lea.sflag [#allocation4], %s409
        %s411 = sand.u32 %s184, 1
        %s412 = smul.addr %s411, 2
        %s413 = scalar_lea.vmem [#allocation13], %s412
        %v415 = vld [vmem:[%s335] sm:$0x3]
        %v416 = vld [vmem:[%s335 + $0x2] sm:$0x3]
        %v417 = vld [vmem:[%s335 + $0x4] sm:$0x3]
        %v418 = vld [vmem:[#allocation10] sm:$0xf]
        %v419 = vld [vmem:[#allocation10 + $0x4] sm:$0xf]
        %v420 = vld [vmem:[#allocation10 + $0x8] sm:$0xf]
        %v421 = vld [vmem:[#allocation10 + $0xc] sm:$0xf]
        %v422 = vld [vmem:[#allocation10 + $0x10] sm:$0xf]
        %v423 = vld [vmem:[#allocation10 + $0x14] sm:$0xf]
        %v424 = vld [vmem:[#allocation10 + $0x18] sm:$0xf]
        %v425 = vld [vmem:[#allocation10 + $0x1c] sm:$0xf]
        %v426 = vld [vmem:[%s344] sm:$0x3]
        %v427 = vld [vmem:[%s344 + $0x2] sm:$0x3]
        %v428 = vld [vmem:[%s344 + $0x4] sm:$0x3]
        %s429 = scalar_lea.vmem [#allocation10], 32
        %v430 = vld [vmem:[%s429] sm:$0xf]
        %v431 = vld [vmem:[%s429 + $0x4] sm:$0xf]
        %v432 = vld [vmem:[%s429 + $0x8] sm:$0xf]
        %v433 = vld [vmem:[%s429 + $0xc] sm:$0xf]
        %v434 = vld [vmem:[%s429 + $0x10] sm:$0xf]
        %v435 = vld [vmem:[%s429 + $0x14] sm:$0xf]
        %v436 = vld [vmem:[%s429 + $0x18] sm:$0xf]
        %v437 = vld [vmem:[%s429 + $0x1c] sm:$0xf]
        %v440 = vcombine.low %v426, %v427
        %v442 = vunpack.c.l.s4 1966171168
        %v443 = vunpack.c.0.s8 %v442
        %v444 = vlaneseq
        %v445 = vshrl.u32 %v444, 7
        %v446 = vsub.s32 %v443, %v445
        %v447 = vrot.slane %v440, %v446
        %v449 = vunpack.c.l.s4 1966171168
        %v450 = vunpack.c.0.s8 %v449
        %v451 = vlaneseq
        %v452 = vshrl.u32 %v451, 7
        %v453 = vsub.s32 %v450, %v452
        %v454 = vrot.slane %v447, %v453
        %v463 = vunpack.c.l.b16 %v430
        %v464 = vunpack.c.l.b16 %v431
        %v465 = vunpack.c.l.b16 %v432
        %v466 = vunpack.c.l.b16 %v433
        %v467 = vunpack.c.l.b16 %v434
        %v468 = vunpack.c.l.b16 %v435
        %v469 = vunpack.c.l.b16 %v436
        %v470 = vunpack.c.l.b16 %v437
        %v471 = vpack.c.b16 %v464, %v463
        %v472 = vpack.c.b16 %v466, %v465
        %v473 = vpack.c.b16 %v468, %v467
        %v474 = vpack.c.b16 %v470, %v469
        %vm479 = vcmask 523264
        %v481 = vsel %vm479, %v454, 0
        %483 = vmatprep.subr.bf16.mxu0 0
        %484 = vmatpush1.bf16.msra.mxu0 %v471
        %485 = vmatprep.subr.bf16.mxu0 0
        %486 = vmatpush1.bf16.msra.mxu0 %v472
        %487 = vmatprep.subr.bf16.mxu0 0
        %488 = vmatpush1.bf16.msra.mxu0 %v473
        %489 = vmatprep.subr.bf16.mxu0 0
        %490 = vmatpush1.bf16.msra.mxu0 %v474
        %491 = vmatprep.subr.bf16.mxu0 0
        %492 = vmatpush1.bf16.msra.mxu0 0
        %493 = vmatprep.subr.bf16.mxu0 0
        %494 = vmatpush1.bf16.msra.mxu0 0
        %495 = vmatprep.subr.bf16.mxu0 0
        %496 = vmatpush1.bf16.msra.mxu0 0
        %497 = vmatprep.subr.bf16.mxu0 0
        %498 = vmatpush1.bf16.msra.mxu0 0
        %499 = vmatprep.subr.bf16.mxu0 0
        %500 = vmatpush1.bf16.msra.mxu0 0
        %501 = vmatprep.subr.bf16.mxu0 0
        %502 = vmatpush1.bf16.msra.mxu0 0
        %503 = vmatprep.subr.bf16.mxu0 0
        %504 = vmatpush1.bf16.msra.mxu0 0
        %505 = vmatprep.subr.bf16.mxu0 0
        %506 = vmatpush1.bf16.msra.mxu0 0
        %507 = vmatprep.subr.bf16.mxu0 0
        %508 = vmatpush1.bf16.msra.mxu0 0
        %509 = vmatprep.subr.bf16.mxu0 0
        %510 = vmatpush1.bf16.msra.mxu0 0
        %511 = vmatprep.subr.bf16.mxu0 0
        %512 = vmatpush1.bf16.msra.mxu0 0
        %513 = vmatprep.subr.bf16.mxu0 0
        %514 = vmatpush1.bf16.msra.mxu0 0
        %515 = vmatprep.mubr.bf16.mxu0 0
        %516 = vmatmul.mubr.bf16.gmra.mrb[0].mxu0 %v481
        %v517 = vpop.f32.mrb[0].mxu0
        %v518 = vadd.f32 0.0, %v517
        %v519 = vpop.f32.mrb[0].mxu0
        %v520 = vpop.f32.mrb[0].mxu0
        %v521 = vpop.f32.mrb[0].mxu0
        %522 = vdwg.mxu0
        %v525 = vcombine.low %v415, %v416
        %v527 = vunpack.c.l.s4 1966171168
        %v528 = vunpack.c.0.s8 %v527
        %v529 = vlaneseq
        %v530 = vshrl.u32 %v529, 7
        %v531 = vsub.s32 %v528, %v530
        %v532 = vrot.slane %v525, %v531
        %v534 = vunpack.c.l.s4 1966171168
        %v535 = vunpack.c.0.s8 %v534
        %v536 = vlaneseq
        %v537 = vshrl.u32 %v536, 7
        %v538 = vsub.s32 %v535, %v537
        %v539 = vrot.slane %v532, %v538
        %v548 = vunpack.c.l.b16 %v418
        %v549 = vunpack.c.l.b16 %v419
        %v550 = vunpack.c.l.b16 %v420
        %v551 = vunpack.c.l.b16 %v421
        %v552 = vunpack.c.l.b16 %v422
        %v553 = vunpack.c.l.b16 %v423
        %v554 = vunpack.c.l.b16 %v424
        %v555 = vunpack.c.l.b16 %v425
        %v556 = vpack.c.b16 %v549, %v548
        %v557 = vpack.c.b16 %v551, %v550
        %v558 = vpack.c.b16 %v553, %v552
        %v559 = vpack.c.b16 %v555, %v554
        %v565 = vsel %vm479, %v539, 0
        %567 = vmatprep.subr.bf16.mxu0 0
        %568 = vmatpush1.bf16.msra.mxu0 %v556
        %569 = vmatprep.subr.bf16.mxu0 0
        %570 = vmatpush1.bf16.msra.mxu0 %v557
        %571 = vmatprep.subr.bf16.mxu0 0
        %572 = vmatpush1.bf16.msra.mxu0 %v558
        %573 = vmatprep.subr.bf16.mxu0 0
        %574 = vmatpush1.bf16.msra.mxu0 %v559
        %575 = vmatprep.subr.bf16.mxu0 0
        %576 = vmatpush1.bf16.msra.mxu0 0
        %577 = vmatprep.subr.bf16.mxu0 0
        %578 = vmatpush1.bf16.msra.mxu0 0
        %579 = vmatprep.subr.bf16.mxu0 0
        %580 = vmatpush1.bf16.msra.mxu0 0
        %581 = vmatprep.subr.bf16.mxu0 0
        %582 = vmatpush1.bf16.msra.mxu0 0
        %583 = vmatprep.subr.bf16.mxu0 0
        %584 = vmatpush1.bf16.msra.mxu0 0
        %585 = vmatprep.subr.bf16.mxu0 0
        %586 = vmatpush1.bf16.msra.mxu0 0
        %587 = vmatprep.subr.bf16.mxu0 0
        %588 = vmatpush1.bf16.msra.mxu0 0
        %589 = vmatprep.subr.bf16.mxu0 0
        %590 = vmatpush1.bf16.msra.mxu0 0
        %591 = vmatprep.subr.bf16.mxu0 0
        %592 = vmatpush1.bf16.msra.mxu0 0
        %593 = vmatprep.subr.bf16.mxu0 0
        %594 = vmatpush1.bf16.msra.mxu0 0
        %595 = vmatprep.subr.bf16.mxu0 0
        %596 = vmatpush1.bf16.msra.mxu0 0
        %597 = vmatprep.subr.bf16.mxu0 0
        %598 = vmatpush1.bf16.msra.mxu0 0
        %599 = vmatprep.mubr.bf16.mxu0 0
        %600 = vmatmul.mubr.bf16.gmra.mrb[0].mxu0 %v565
        %v601 = vpop.f32.mrb[0].mxu0
        %v602 = vadd.f32 %v518, %v601
        %v603 = vpop.f32.mrb[0].mxu0
        %v604 = vpop.f32.mrb[0].mxu0
        %v605 = vpop.f32.mrb[0].mxu0
        %606 = vdwg.mxu0
        %v608 = vunpack.c.l.s4 1966171168
        %v609 = vunpack.c.0.s8 %v608
        %v610 = vlaneseq
        %v611 = vshrl.u32 %v610, 7
        %v612 = vsub.s32 %v609, %v611
        %v613 = vrot.slane %v415, %v612
        %v614 = vcombine.high %v613, %v613
        %v616 = vunpack.c.l.s4 1966171168
        %v617 = vunpack.c.0.s8 %v616
        %v618 = vlaneseq
        %v619 = vshrl.u32 %v618, 7
        %v620 = vsub.s32 %v617, %v619
        %v621 = vrot.slane %v416, %v620
        %v622 = vcombine.high %v621, %v621
        %vm623 = vsmask.f32 256
        %vm624 = vsmask.f32 1284
        %vm625 = vmor %vm623, %vm624
        %vm626 = vsmask.f32 2312
        %vm627 = vmor %vm625, %vm626
        %vm628 = vsmask.f32 3340
        %vm629 = vmor %vm627, %vm628
        %vm630 = vsmask.f32 4368
        %vm631 = vmor %vm629, %vm630
        %vm632 = vsmask.f32 5396
        %vm633 = vmor %vm631, %vm632
        %vm634 = vsmask.f32 6424
        %vm635 = vmor %vm633, %vm634
        %vm636 = vsmask.f32 7452
        %vm637 = vmor %vm635, %vm636
        %v639 = vshrl.u32 %v613, 16
        %v641 = vrot.slane %v639, 7
        %v642 = vrot.slane %v641, 1
        %v644 = vshll.u32 %v614, 16
        %v646 = vsel %vm637, %v642, %v644
        %v648 = vshrl.u32 %v621, 16
        %v650 = vrot.slane %v648, 7
        %v651 = vrot.slane %v650, 1
        %v653 = vshll.u32 %v622, 16
        %v655 = vsel %vm637, %v651, %v653
        %s656 = scalar_lea.vmem [#allocation10], 64
        %v657 = vld [vmem:[%s656] sm:$0xf]
        %v658 = vld [vmem:[%s656 + $0x4] sm:$0xf]
        %v659 = vld [vmem:[%s656 + $0x8] sm:$0xf]
        %v660 = vld [vmem:[%s656 + $0xc] sm:$0xf]
        %v661 = vld [vmem:[%s656 + $0x10] sm:$0xf]
        %v662 = vld [vmem:[%s656 + $0x14] sm:$0xf]
        %v663 = vld [vmem:[%s656 + $0x18] sm:$0xf]
        %v664 = vld [vmem:[%s656 + $0x1c] sm:$0xf]
        %v665 = vcombine.low %v646, %v655
        %v667 = vunpack.c.l.s4 1966171168
        %v668 = vunpack.c.0.s8 %v667
        %v669 = vlaneseq
        %v670 = vshrl.u32 %v669, 7
        %v671 = vsub.s32 %v668, %v670
        %v672 = vrot.slane %v665, %v671
        %v674 = vunpack.c.l.s4 1966171168
        %v675 = vunpack.c.0.s8 %v674
        %v676 = vlaneseq
        %v677 = vshrl.u32 %v676, 7
        %v678 = vsub.s32 %v675, %v677
        %v679 = vrot.slane %v672, %v678
        %v688 = vunpack.c.l.b16 %v657
        %v689 = vunpack.c.l.b16 %v658
        %v690 = vunpack.c.l.b16 %v659
        %v691 = vunpack.c.l.b16 %v660
        %v692 = vunpack.c.l.b16 %v661
        %v693 = vunpack.c.l.b16 %v662
        %v694 = vunpack.c.l.b16 %v663
        %v695 = vunpack.c.l.b16 %v664
        %v696 = vpack.c.b16 %v689, %v688
        %v697 = vpack.c.b16 %v691, %v690
        %v698 = vpack.c.b16 %v693, %v692
        %v699 = vpack.c.b16 %v695, %v694
        %v705 = vsel %vm479, %v679, 0
        %707 = vmatprep.subr.bf16.mxu0 0
        %708 = vmatpush1.bf16.msra.mxu0 %v696
        %709 = vmatprep.subr.bf16.mxu0 0
        %710 = vmatpush1.bf16.msra.mxu0 %v697
        %711 = vmatprep.subr.bf16.mxu0 0
        %712 = vmatpush1.bf16.msra.mxu0 %v698
        %713 = vmatprep.subr.bf16.mxu0 0
        %714 = vmatpush1.bf16.msra.mxu0 %v699
        %715 = vmatprep.subr.bf16.mxu0 0
        %716 = vmatpush1.bf16.msra.mxu0 0
        %717 = vmatprep.subr.bf16.mxu0 0
        %718 = vmatpush1.bf16.msra.mxu0 0
        %719 = vmatprep.subr.bf16.mxu0 0
        %720 = vmatpush1.bf16.msra.mxu0 0
        %721 = vmatprep.subr.bf16.mxu0 0
        %722 = vmatpush1.bf16.msra.mxu0 0
        %723 = vmatprep.subr.bf16.mxu0 0
        %724 = vmatpush1.bf16.msra.mxu0 0
        %725 = vmatprep.subr.bf16.mxu0 0
        %726 = vmatpush1.bf16.msra.mxu0 0
        %727 = vmatprep.subr.bf16.mxu0 0
        %728 = vmatpush1.bf16.msra.mxu0 0
        %729 = vmatprep.subr.bf16.mxu0 0
        %730 = vmatpush1.bf16.msra.mxu0 0
        %731 = vmatprep.subr.bf16.mxu0 0
        %732 = vmatpush1.bf16.msra.mxu0 0
        %733 = vmatprep.subr.bf16.mxu0 0
        %734 = vmatpush1.bf16.msra.mxu0 0
        %735 = vmatprep.subr.bf16.mxu0 0
        %736 = vmatpush1.bf16.msra.mxu0 0
        %737 = vmatprep.subr.bf16.mxu0 0
        %738 = vmatpush1.bf16.msra.mxu0 0
        %739 = vmatprep.mubr.bf16.mxu0 0
        %740 = vmatmul.mubr.bf16.gmra.mrb[0].mxu0 %v705
        %v741 = vpop.f32.mrb[0].mxu0
        %v742 = vadd.f32 0.0, %v741
        %v743 = vpop.f32.mrb[0].mxu0
        %v744 = vpop.f32.mrb[0].mxu0
        %v745 = vpop.f32.mrb[0].mxu0
        %746 = vdwg.mxu0
        %v747 = vadd.f32 %v602, %v742
        %v748 = vld [vmem:[%s353] sm:$0x3]
        %v749 = vld [vmem:[%s353 + $0x2] sm:$0x3]
        %s750 = scalar_lea.vmem [#allocation10], 96
        %v751 = vld [vmem:[%s750] sm:$0xf]
        %v752 = vld [vmem:[%s750 + $0x4] sm:$0xf]
        %v753 = vld [vmem:[%s750 + $0x8] sm:$0xf]
        %v754 = vld [vmem:[%s750 + $0xc] sm:$0xf]
        %v755 = vld [vmem:[%s750 + $0x10] sm:$0xf]
        %v756 = vld [vmem:[%s750 + $0x14] sm:$0xf]
        %v757 = vld [vmem:[%s750 + $0x18] sm:$0xf]
        %v758 = vld [vmem:[%s750 + $0x1c] sm:$0xf]
        %v761 = vcombine.low %v748, %v749
        %v763 = vunpack.c.l.s4 1966171168
        %v764 = vunpack.c.0.s8 %v763
        %v765 = vlaneseq
        %v766 = vshrl.u32 %v765, 7
        %v767 = vsub.s32 %v764, %v766
        %v768 = vrot.slane %v761, %v767
        %v770 = vunpack.c.l.s4 1966171168
        %v771 = vunpack.c.0.s8 %v770
        %v772 = vlaneseq
        %v773 = vshrl.u32 %v772, 7
        %v774 = vsub.s32 %v771, %v773
        %v775 = vrot.slane %v768, %v774
        %v784 = vunpack.c.l.b16 %v751
        %v785 = vunpack.c.l.b16 %v752
        %v786 = vunpack.c.l.b16 %v753
        %v787 = vunpack.c.l.b16 %v754
        %v788 = vunpack.c.l.b16 %v755
        %v789 = vunpack.c.l.b16 %v756
        %v790 = vunpack.c.l.b16 %v757
        %v791 = vunpack.c.l.b16 %v758
        %v792 = vpack.c.b16 %v785, %v784
        %v793 = vpack.c.b16 %v787, %v786
        %v794 = vpack.c.b16 %v789, %v788
        %v795 = vpack.c.b16 %v791, %v790
        %v801 = vsel %vm479, %v775, 0
        %803 = vmatprep.subr.bf16.mxu0 0
        %804 = vmatpush1.bf16.msra.mxu0 %v792
        %805 = vmatprep.subr.bf16.mxu0 0
        %806 = vmatpush1.bf16.msra.mxu0 %v793
        %807 = vmatprep.subr.bf16.mxu0 0
        %808 = vmatpush1.bf16.msra.mxu0 %v794
        %809 = vmatprep.subr.bf16.mxu0 0
        %810 = vmatpush1.bf16.msra.mxu0 %v795
        %811 = vmatprep.subr.bf16.mxu0 0
        %812 = vmatpush1.bf16.msra.mxu0 0
        %813 = vmatprep.subr.bf16.mxu0 0
        %814 = vmatpush1.bf16.msra.mxu0 0
        %815 = vmatprep.subr.bf16.mxu0 0
        %816 = vmatpush1.bf16.msra.mxu0 0
        %817 = vmatprep.subr.bf16.mxu0 0
        %818 = vmatpush1.bf16.msra.mxu0 0
        %819 = vmatprep.subr.bf16.mxu0 0
        %820 = vmatpush1.bf16.msra.mxu0 0
        %821 = vmatprep.subr.bf16.mxu0 0
        %822 = vmatpush1.bf16.msra.mxu0 0
        %823 = vmatprep.subr.bf16.mxu0 0
        %824 = vmatpush1.bf16.msra.mxu0 0
        %825 = vmatprep.subr.bf16.mxu0 0
        %826 = vmatpush1.bf16.msra.mxu0 0
        %827 = vmatprep.subr.bf16.mxu0 0
        %828 = vmatpush1.bf16.msra.mxu0 0
        %829 = vmatprep.subr.bf16.mxu0 0
        %830 = vmatpush1.bf16.msra.mxu0 0
        %831 = vmatprep.subr.bf16.mxu0 0
        %832 = vmatpush1.bf16.msra.mxu0 0
        %833 = vmatprep.subr.bf16.mxu0 0
        %834 = vmatpush1.bf16.msra.mxu0 0
        %835 = vmatprep.mubr.bf16.mxu0 0
        %836 = vmatmul.mubr.bf16.gmra.mrb[0].mxu0 %v801
        %v837 = vpop.f32.mrb[0].mxu0
        %v838 = vadd.f32 0.0, %v837
        %v839 = vpop.f32.mrb[0].mxu0
        %v840 = vpop.f32.mrb[0].mxu0
        %v841 = vpop.f32.mrb[0].mxu0
        %842 = vdwg.mxu0
        %v843 = vadd.f32 %v747, %v838
        %v844 = vld [vmem:[%s362] sm:$0x3]
        %v845 = vld [vmem:[%s362 + $0x2] sm:$0x3]
        %s846 = scalar_lea.vmem [#allocation10], 128
        %v847 = vld [vmem:[%s846] sm:$0xf]
        %v848 = vld [vmem:[%s846 + $0x4] sm:$0xf]
        %v849 = vld [vmem:[%s846 + $0x8] sm:$0xf]
        %v850 = vld [vmem:[%s846 + $0xc] sm:$0xf]
        %v851 = vld [vmem:[%s846 + $0x10] sm:$0xf]
        %v852 = vld [vmem:[%s846 + $0x14] sm:$0xf]
        %v853 = vld [vmem:[%s846 + $0x18] sm:$0xf]
        %v854 = vld [vmem:[%s846 + $0x1c] sm:$0xf]
        %v857 = vcombine.low %v844, %v845
        %v859 = vunpack.c.l.s4 1966171168
        %v860 = vunpack.c.0.s8 %v859
        %v861 = vlaneseq
        %v862 = vshrl.u32 %v861, 7
        %v863 = vsub.s32 %v860, %v862
        %v864 = vrot.slane %v857, %v863
        %v866 = vunpack.c.l.s4 1966171168
        %v867 = vunpack.c.0.s8 %v866
        %v868 = vlaneseq
        %v869 = vshrl.u32 %v868, 7
        %v870 = vsub.s32 %v867, %v869
        %v871 = vrot.slane %v864, %v870
        %v880 = vunpack.c.l.b16 %v847
        %v881 = vunpack.c.l.b16 %v848
        %v882 = vunpack.c.l.b16 %v849
        %v883 = vunpack.c.l.b16 %v850
        %v884 = vunpack.c.l.b16 %v851
        %v885 = vunpack.c.l.b16 %v852
        %v886 = vunpack.c.l.b16 %v853
        %v887 = vunpack.c.l.b16 %v854
        %v888 = vpack.c.b16 %v881, %v880
        %v889 = vpack.c.b16 %v883, %v882
        %v890 = vpack.c.b16 %v885, %v884
        %v891 = vpack.c.b16 %v887, %v886
        %v897 = vsel %vm479, %v871, 0
        %899 = vmatprep.subr.bf16.mxu0 0
        %900 = vmatpush1.bf16.msra.mxu0 %v888
        %901 = vmatprep.subr.bf16.mxu0 0
        %902 = vmatpush1.bf16.msra.mxu0 %v889
        %903 = vmatprep.subr.bf16.mxu0 0
        %904 = vmatpush1.bf16.msra.mxu0 %v890
        %905 = vmatprep.subr.bf16.mxu0 0
        %906 = vmatpush1.bf16.msra.mxu0 %v891
        %907 = vmatprep.subr.bf16.mxu0 0
        %908 = vmatpush1.bf16.msra.mxu0 0
        %909 = vmatprep.subr.bf16.mxu0 0
        %910 = vmatpush1.bf16.msra.mxu0 0
        %911 = vmatprep.subr.bf16.mxu0 0
        %912 = vmatpush1.bf16.msra.mxu0 0
        %913 = vmatprep.subr.bf16.mxu0 0
        %914 = vmatpush1.bf16.msra.mxu0 0
        %915 = vmatprep.subr.bf16.mxu0 0
        %916 = vmatpush1.bf16.msra.mxu0 0
        %917 = vmatprep.subr.bf16.mxu0 0
        %918 = vmatpush1.bf16.msra.mxu0 0
        %919 = vmatprep.subr.bf16.mxu0 0
        %920 = vmatpush1.bf16.msra.mxu0 0
        %921 = vmatprep.subr.bf16.mxu0 0
        %922 = vmatpush1.bf16.msra.mxu0 0
        %923 = vmatprep.subr.bf16.mxu0 0
        %924 = vmatpush1.bf16.msra.mxu0 0
        %925 = vmatprep.subr.bf16.mxu0 0
        %926 = vmatpush1.bf16.msra.mxu0 0
        %927 = vmatprep.subr.bf16.mxu0 0
        %928 = vmatpush1.bf16.msra.mxu0 0
        %929 = vmatprep.subr.bf16.mxu0 0
        %930 = vmatpush1.bf16.msra.mxu0 0
        %931 = vmatprep.mubr.bf16.mxu0 0
        %932 = vmatmul.mubr.bf16.gmra.mrb[0].mxu0 %v897
        %v933 = vpop.f32.mrb[0].mxu0
        %v934 = vadd.f32 0.0, %v933
        %v935 = vpop.f32.mrb[0].mxu0
        %v936 = vpop.f32.mrb[0].mxu0
        %v937 = vpop.f32.mrb[0].mxu0
        %938 = vdwg.mxu0
        %v939 = vadd.f32 %v843, %v934
        %v941 = vunpack.c.l.s4 1966171168
        %v942 = vunpack.c.0.s8 %v941
        %v943 = vlaneseq
        %v944 = vshrl.u32 %v943, 7
        %v945 = vsub.s32 %v942, %v944
        %v946 = vrot.slane %v748, %v945
        %v947 = vcombine.high %v946, %v946
        %v949 = vunpack.c.l.s4 1966171168
        %v950 = vunpack.c.0.s8 %v949
        %v951 = vlaneseq
        %v952 = vshrl.u32 %v951, 7
        %v953 = vsub.s32 %v950, %v952
        %v954 = vrot.slane %v749, %v953
        %v955 = vcombine.high %v954, %v954
        %v957 = vshrl.u32 %v946, 16
        %v959 = vrot.slane %v957, 7
        %v960 = vrot.slane %v959, 1
        %v962 = vshll.u32 %v947, 16
        %v964 = vsel %vm637, %v960, %v962
        %v966 = vshrl.u32 %v954, 16
        %v968 = vrot.slane %v966, 7
        %v969 = vrot.slane %v968, 1
        %v971 = vshll.u32 %v955, 16
        %v973 = vsel %vm637, %v969, %v971
        %s974 = scalar_lea.vmem [#allocation10], 160
        %v975 = vld [vmem:[%s974] sm:$0xf]
        %v976 = vld [vmem:[%s974 + $0x4] sm:$0xf]
        %v977 = vld [vmem:[%s974 + $0x8] sm:$0xf]
        %v978 = vld [vmem:[%s974 + $0xc] sm:$0xf]
        %v979 = vld [vmem:[%s974 + $0x10] sm:$0xf]
        %v980 = vld [vmem:[%s974 + $0x14] sm:$0xf]
        %v981 = vld [vmem:[%s974 + $0x18] sm:$0xf]
        %v982 = vld [vmem:[%s974 + $0x1c] sm:$0xf]
        %v983 = vcombine.low %v964, %v973
        %v985 = vunpack.c.l.s4 1966171168
        %v986 = vunpack.c.0.s8 %v985
        %v987 = vlaneseq
        %v988 = vshrl.u32 %v987, 7
        %v989 = vsub.s32 %v986, %v988
        %v990 = vrot.slane %v983, %v989
        %v992 = vunpack.c.l.s4 1966171168
        %v993 = vunpack.c.0.s8 %v992
        %v994 = vlaneseq
        %v995 = vshrl.u32 %v994, 7
        %v996 = vsub.s32 %v993, %v995
        %v997 = vrot.slane %v990, %v996
        %v1006 = vunpack.c.l.b16 %v975
        %v1007 = vunpack.c.l.b16 %v976
        %v1008 = vunpack.c.l.b16 %v977
        %v1009 = vunpack.c.l.b16 %v978
        %v1010 = vunpack.c.l.b16 %v979
        %v1011 = vunpack.c.l.b16 %v980
        %v1012 = vunpack.c.l.b16 %v981
        %v1013 = vunpack.c.l.b16 %v982
        %v1014 = vpack.c.b16 %v1007, %v1006
        %v1015 = vpack.c.b16 %v1009, %v1008
        %v1016 = vpack.c.b16 %v1011, %v1010
        %v1017 = vpack.c.b16 %v1013, %v1012
        %v1023 = vsel %vm479, %v997, 0
        %1025 = vmatprep.subr.bf16.mxu0 0
        %1026 = vmatpush1.bf16.msra.mxu0 %v1014
        %1027 = vmatprep.subr.bf16.mxu0 0
        %1028 = vmatpush1.bf16.msra.mxu0 %v1015
        %1029 = vmatprep.subr.bf16.mxu0 0
        %1030 = vmatpush1.bf16.msra.mxu0 %v1016
        %1031 = vmatprep.subr.bf16.mxu0 0
        %1032 = vmatpush1.bf16.msra.mxu0 %v1017
        %1033 = vmatprep.subr.bf16.mxu0 0
        %1034 = vmatpush1.bf16.msra.mxu0 0
        %1035 = vmatprep.subr.bf16.mxu0 0
        %1036 = vmatpush1.bf16.msra.mxu0 0
        %1037 = vmatprep.subr.bf16.mxu0 0
        %1038 = vmatpush1.bf16.msra.mxu0 0
        %1039 = vmatprep.subr.bf16.mxu0 0
        %1040 = vmatpush1.bf16.msra.mxu0 0
        %1041 = vmatprep.subr.bf16.mxu0 0
        %1042 = vmatpush1.bf16.msra.mxu0 0
        %1043 = vmatprep.subr.bf16.mxu0 0
        %1044 = vmatpush1.bf16.msra.mxu0 0
        %1045 = vmatprep.subr.bf16.mxu0 0
        %1046 = vmatpush1.bf16.msra.mxu0 0
        %1047 = vmatprep.subr.bf16.mxu0 0
        %1048 = vmatpush1.bf16.msra.mxu0 0
        %1049 = vmatprep.subr.bf16.mxu0 0
        %1050 = vmatpush1.bf16.msra.mxu0 0
        %1051 = vmatprep.subr.bf16.mxu0 0
        %1052 = vmatpush1.bf16.msra.mxu0 0
        %1053 = vmatprep.subr.bf16.mxu0 0
        %1054 = vmatpush1.bf16.msra.mxu0 0
        %1055 = vmatprep.subr.bf16.mxu0 0
        %1056 = vmatpush1.bf16.msra.mxu0 0
        %1057 = vmatprep.mubr.bf16.mxu0 0
        %1058 = vmatmul.mubr.bf16.gmra.mrb[0].mxu0 %v1023
        %v1059 = vpop.f32.mrb[0].mxu0
        %v1060 = vadd.f32 0.0, %v1059
        %v1061 = vpop.f32.mrb[0].mxu0
        %v1062 = vpop.f32.mrb[0].mxu0
        %v1063 = vpop.f32.mrb[0].mxu0
        %1064 = vdwg.mxu0
        %v1065 = vadd.f32 %v939, %v1060
        %s1066 = scalar_lea.vmem [#allocation10], 192
        %v1067 = vld [vmem:[%s1066] sm:$0xf]
        %v1068 = vld [vmem:[%s1066 + $0x4] sm:$0xf]
        %v1069 = vld [vmem:[%s1066 + $0x8] sm:$0xf]
        %v1070 = vld [vmem:[%s1066 + $0xc] sm:$0xf]
        %v1071 = vld [vmem:[%s1066 + $0x10] sm:$0xf]
        %v1072 = vld [vmem:[%s1066 + $0x14] sm:$0xf]
        %v1073 = vld [vmem:[%s1066 + $0x18] sm:$0xf]
        %v1074 = vld [vmem:[%s1066 + $0x1c] sm:$0xf]
        %v1076 = vcombine.low %v416, %v417
        %v1078 = vunpack.c.l.s4 1966171168
        %v1079 = vunpack.c.0.s8 %v1078
        %v1080 = vlaneseq
        %v1081 = vshrl.u32 %v1080, 7
        %v1082 = vsub.s32 %v1079, %v1081
        %v1083 = vrot.slane %v1076, %v1082
        %v1085 = vunpack.c.l.s4 1966171168
        %v1086 = vunpack.c.0.s8 %v1085
        %v1087 = vlaneseq
        %v1088 = vshrl.u32 %v1087, 7
        %v1089 = vsub.s32 %v1086, %v1088
        %v1090 = vrot.slane %v1083, %v1089
        %v1099 = vunpack.c.l.b16 %v1067
        %v1100 = vunpack.c.l.b16 %v1068
        %v1101 = vunpack.c.l.b16 %v1069
        %v1102 = vunpack.c.l.b16 %v1070
        %v1103 = vunpack.c.l.b16 %v1071
        %v1104 = vunpack.c.l.b16 %v1072
        %v1105 = vunpack.c.l.b16 %v1073
        %v1106 = vunpack.c.l.b16 %v1074
        %v1107 = vpack.c.b16 %v1100, %v1099
        %v1108 = vpack.c.b16 %v1102, %v1101
        %v1109 = vpack.c.b16 %v1104, %v1103
        %v1110 = vpack.c.b16 %v1106, %v1105
        %v1116 = vsel %vm479, %v1090, 0
        %1118 = vmatprep.subr.bf16.mxu0 0
        %1119 = vmatpush1.bf16.msra.mxu0 %v1107
        %1120 = vmatprep.subr.bf16.mxu0 0
        %1121 = vmatpush1.bf16.msra.mxu0 %v1108
        %1122 = vmatprep.subr.bf16.mxu0 0
        %1123 = vmatpush1.bf16.msra.mxu0 %v1109
        %1124 = vmatprep.subr.bf16.mxu0 0
        %1125 = vmatpush1.bf16.msra.mxu0 %v1110
        %1126 = vmatprep.subr.bf16.mxu0 0
        %1127 = vmatpush1.bf16.msra.mxu0 0
        %1128 = vmatprep.subr.bf16.mxu0 0
        %1129 = vmatpush1.bf16.msra.mxu0 0
        %1130 = vmatprep.subr.bf16.mxu0 0
        %1131 = vmatpush1.bf16.msra.mxu0 0
        %1132 = vmatprep.subr.bf16.mxu0 0
        %1133 = vmatpush1.bf16.msra.mxu0 0
        %1134 = vmatprep.subr.bf16.mxu0 0
        %1135 = vmatpush1.bf16.msra.mxu0 0
        %1136 = vmatprep.subr.bf16.mxu0 0
        %1137 = vmatpush1.bf16.msra.mxu0 0
        %1138 = vmatprep.subr.bf16.mxu0 0
        %1139 = vmatpush1.bf16.msra.mxu0 0
        %1140 = vmatprep.subr.bf16.mxu0 0
        %1141 = vmatpush1.bf16.msra.mxu0 0
        %1142 = vmatprep.subr.bf16.mxu0 0
        %1143 = vmatpush1.bf16.msra.mxu0 0
        %1144 = vmatprep.subr.bf16.mxu0 0
        %1145 = vmatpush1.bf16.msra.mxu0 0
        %1146 = vmatprep.subr.bf16.mxu0 0
        %1147 = vmatpush1.bf16.msra.mxu0 0
        %1148 = vmatprep.subr.bf16.mxu0 0
        %1149 = vmatpush1.bf16.msra.mxu0 0
        %1150 = vmatprep.mubr.bf16.mxu0 0
        %1151 = vmatmul.mubr.bf16.gmra.mrb[0].mxu0 %v1116
        %v1152 = vpop.f32.mrb[0].mxu0
        %v1153 = vadd.f32 0.0, %v1152
        %v1154 = vpop.f32.mrb[0].mxu0
        %v1155 = vpop.f32.mrb[0].mxu0
        %v1156 = vpop.f32.mrb[0].mxu0
        %1157 = vdwg.mxu0
        %v1158 = vadd.f32 %v1065, %v1153
        %s1159 = scalar_lea.vmem [#allocation10], 224
        %v1160 = vld [vmem:[%s1159] sm:$0xf]
        %v1161 = vld [vmem:[%s1159 + $0x4] sm:$0xf]
        %v1162 = vld [vmem:[%s1159 + $0x8] sm:$0xf]
        %v1163 = vld [vmem:[%s1159 + $0xc] sm:$0xf]
        %v1164 = vld [vmem:[%s1159 + $0x10] sm:$0xf]
        %v1165 = vld [vmem:[%s1159 + $0x14] sm:$0xf]
        %v1166 = vld [vmem:[%s1159 + $0x18] sm:$0xf]
        %v1167 = vld [vmem:[%s1159 + $0x1c] sm:$0xf]
        %v1169 = vcombine.low %v427, %v428
        %v1171 = vunpack.c.l.s4 1966171168
        %v1172 = vunpack.c.0.s8 %v1171
        %v1173 = vlaneseq
        %v1174 = vshrl.u32 %v1173, 7
        %v1175 = vsub.s32 %v1172, %v1174
        %v1176 = vrot.slane %v1169, %v1175
        %v1178 = vunpack.c.l.s4 1966171168
        %v1179 = vunpack.c.0.s8 %v1178
        %v1180 = vlaneseq
        %v1181 = vshrl.u32 %v1180, 7
        %v1182 = vsub.s32 %v1179, %v1181
        %v1183 = vrot.slane %v1176, %v1182
        %v1192 = vunpack.c.l.b16 %v1160
        %v1193 = vunpack.c.l.b16 %v1161
        %v1194 = vunpack.c.l.b16 %v1162
        %v1195 = vunpack.c.l.b16 %v1163
        %v1196 = vunpack.c.l.b16 %v1164
        %v1197 = vunpack.c.l.b16 %v1165
        %v1198 = vunpack.c.l.b16 %v1166
        %v1199 = vunpack.c.l.b16 %v1167
        %v1200 = vpack.c.b16 %v1193, %v1192
        %v1201 = vpack.c.b16 %v1195, %v1194
        %v1202 = vpack.c.b16 %v1197, %v1196
        %v1203 = vpack.c.b16 %v1199, %v1198
        %v1209 = vsel %vm479, %v1183, 0
        %1211 = vmatprep.subr.bf16.mxu0 0
        %1212 = vmatpush1.bf16.msra.mxu0 %v1200
        %1213 = vmatprep.subr.bf16.mxu0 0
        %1214 = vmatpush1.bf16.msra.mxu0 %v1201
        %1215 = vmatprep.subr.bf16.mxu0 0
        %1216 = vmatpush1.bf16.msra.mxu0 %v1202
        %1217 = vmatprep.subr.bf16.mxu0 0
        %1218 = vmatpush1.bf16.msra.mxu0 %v1203
        %1219 = vmatprep.subr.bf16.mxu0 0
        %1220 = vmatpush1.bf16.msra.mxu0 0
        %1221 = vmatprep.subr.bf16.mxu0 0
        %1222 = vmatpush1.bf16.msra.mxu0 0
        %1223 = vmatprep.subr.bf16.mxu0 0
        %1224 = vmatpush1.bf16.msra.mxu0 0
        %1225 = vmatprep.subr.bf16.mxu0 0
        %1226 = vmatpush1.bf16.msra.mxu0 0
        %1227 = vmatprep.subr.bf16.mxu0 0
        %1228 = vmatpush1.bf16.msra.mxu0 0
        %1229 = vmatprep.subr.bf16.mxu0 0
        %1230 = vmatpush1.bf16.msra.mxu0 0
        %1231 = vmatprep.subr.bf16.mxu0 0
        %1232 = vmatpush1.bf16.msra.mxu0 0
        %1233 = vmatprep.subr.bf16.mxu0 0
        %1234 = vmatpush1.bf16.msra.mxu0 0
        %1235 = vmatprep.subr.bf16.mxu0 0
        %1236 = vmatpush1.bf16.msra.mxu0 0
        %1237 = vmatprep.subr.bf16.mxu0 0
        %1238 = vmatpush1.bf16.msra.mxu0 0
        %1239 = vmatprep.subr.bf16.mxu0 0
        %1240 = vmatpush1.bf16.msra.mxu0 0
        %1241 = vmatprep.subr.bf16.mxu0 0
        %1242 = vmatpush1.bf16.msra.mxu0 0
        %1243 = vmatprep.mubr.bf16.mxu0 0
        %1244 = vmatmul.mubr.bf16.gmra.mrb[0].mxu0 %v1209
        %v1245 = vpop.f32.mrb[0].mxu0
        %v1246 = vadd.f32 0.0, %v1245
        %v1247 = vpop.f32.mrb[0].mxu0
        %v1248 = vpop.f32.mrb[0].mxu0
        %v1249 = vpop.f32.mrb[0].mxu0
        %1250 = vdwg.mxu0
        %v1251 = vadd.f32 %v1158, %v1246
        %v1253 = vunpack.c.l.s4 1966171168
        %v1254 = vunpack.c.0.s8 %v1253
        %v1255 = vlaneseq
        %v1256 = vshrl.u32 %v1255, 7
        %v1257 = vsub.s32 %v1254, %v1256
        %v1258 = vrot.slane %v417, %v1257
        %v1259 = vcombine.high %v1258, %v1258
        %v1261 = vshrl.u32 %v1258, 16
        %v1263 = vrot.slane %v1261, 7
        %v1264 = vrot.slane %v1263, 1
        %v1266 = vshll.u32 %v1259, 16
        %v1268 = vsel %vm637, %v1264, %v1266
        %s1269 = scalar_lea.vmem [#allocation10], 256
        %v1270 = vld [vmem:[%s1269] sm:$0xf]
        %v1271 = vld [vmem:[%s1269 + $0x4] sm:$0xf]
        %v1272 = vld [vmem:[%s1269 + $0x8] sm:$0xf]
        %v1273 = vld [vmem:[%s1269 + $0xc] sm:$0xf]
        %v1274 = vld [vmem:[%s1269 + $0x10] sm:$0xf]
        %v1275 = vld [vmem:[%s1269 + $0x14] sm:$0xf]
        %v1276 = vld [vmem:[%s1269 + $0x18] sm:$0xf]
        %v1277 = vld [vmem:[%s1269 + $0x1c] sm:$0xf]
        %v1278 = vcombine.low %v655, %v1268
        %v1280 = vunpack.c.l.s4 1966171168
        %v1281 = vunpack.c.0.s8 %v1280
        %v1282 = vlaneseq
        %v1283 = vshrl.u32 %v1282, 7
        %v1284 = vsub.s32 %v1281, %v1283
        %v1285 = vrot.slane %v1278, %v1284
        %v1287 = vunpack.c.l.s4 1966171168
        %v1288 = vunpack.c.0.s8 %v1287
        %v1289 = vlaneseq
        %v1290 = vshrl.u32 %v1289, 7
        %v1291 = vsub.s32 %v1288, %v1290
        %v1292 = vrot.slane %v1285, %v1291
        %v1301 = vunpack.c.l.b16 %v1270
        %v1302 = vunpack.c.l.b16 %v1271
        %v1303 = vunpack.c.l.b16 %v1272
        %v1304 = vunpack.c.l.b16 %v1273
        %v1305 = vunpack.c.l.b16 %v1274
        %v1306 = vunpack.c.l.b16 %v1275
        %v1307 = vunpack.c.l.b16 %v1276
        %v1308 = vunpack.c.l.b16 %v1277
        %v1309 = vpack.c.b16 %v1302, %v1301
        %v1310 = vpack.c.b16 %v1304, %v1303
        %v1311 = vpack.c.b16 %v1306, %v1305
        %v1312 = vpack.c.b16 %v1308, %v1307
        %v1318 = vsel %vm479, %v1292, 0
        %1320 = vmatprep.subr.bf16.mxu0 0
        %1321 = vmatpush1.bf16.msra.mxu0 %v1309
        %1322 = vmatprep.subr.bf16.mxu0 0
        %1323 = vmatpush1.bf16.msra.mxu0 %v1310
        %1324 = vmatprep.subr.bf16.mxu0 0
        %1325 = vmatpush1.bf16.msra.mxu0 %v1311
        %1326 = vmatprep.subr.bf16.mxu0 0
        %1327 = vmatpush1.bf16.msra.mxu0 %v1312
        %1328 = vmatprep.subr.bf16.mxu0 0
        %1329 = vmatpush1.bf16.msra.mxu0 0
        %1330 = vmatprep.subr.bf16.mxu0 0
        %1331 = vmatpush1.bf16.msra.mxu0 0
        %1332 = vmatprep.subr.bf16.mxu0 0
        %1333 = vmatpush1.bf16.msra.mxu0 0
        %1334 = vmatprep.subr.bf16.mxu0 0
        %1335 = vmatpush1.bf16.msra.mxu0 0
        %1336 = vmatprep.subr.bf16.mxu0 0
        %1337 = vmatpush1.bf16.msra.mxu0 0
        %1338 = vmatprep.subr.bf16.mxu0 0
        %1339 = vmatpush1.bf16.msra.mxu0 0
        %1340 = vmatprep.subr.bf16.mxu0 0
        %1341 = vmatpush1.bf16.msra.mxu0 0
        %1342 = vmatprep.subr.bf16.mxu0 0
        %1343 = vmatpush1.bf16.msra.mxu0 0
        %1344 = vmatprep.subr.bf16.mxu0 0
        %1345 = vmatpush1.bf16.msra.mxu0 0
        %1346 = vmatprep.subr.bf16.mxu0 0
        %1347 = vmatpush1.bf16.msra.mxu0 0
        %1348 = vmatprep.subr.bf16.mxu0 0
        %1349 = vmatpush1.bf16.msra.mxu0 0
        %1350 = vmatprep.subr.bf16.mxu0 0
        %1351 = vmatpush1.bf16.msra.mxu0 0
        %1352 = vmatprep.mubr.bf16.mxu0 0
        %1353 = vmatmul.mubr.bf16.gmra.mrb[0].mxu0 %v1318
        %v1354 = vpop.f32.mrb[0].mxu0
        %v1355 = vadd.f32 0.0, %v1354
        %v1356 = vpop.f32.mrb[0].mxu0
        %v1357 = vpop.f32.mrb[0].mxu0
        %v1358 = vpop.f32.mrb[0].mxu0
        %1359 = vdwg.mxu0
        %v1360 = vadd.f32 %v1251, %v1355
        %v1361 = vld [vmem:[#allocation11] sm:$0x1]
        %v1363 = vlaneseq
        %v1364 = vshrl.u32 %v1363, 7
        %v1365 = vsub.s32 0, %v1364
        %v1366 = vrot.slane %v1361, %v1365
        %v1368 = vadd.f32 %v1360, %v1366
        %v1369 = vmax.f32 %v1368, 0.0
        %v1370 = vpack.c.bf16 %v1369, %v1369
        %1371 = vst [vmem:[%s413] sm:$0x3] %v1370
        %s1372 = sand.u32 %s184, 1
        %s1373 = scalar_lea.sflag [#allocation4], %s1372
        %s1374 = sand.u32 %s184, 1
        %s1375 = smul.addr %s1374, 2
        %s1376 = scalar_lea.vmem [#allocation13], %s1375
        // Predicated region
        $region69: #{encoder_forward.7} parent=43 // pred_check
          %p1377 = pneg %p194
        $region70: #{encoder_forward.7} parent=43 // pred_check_branch
          %1379 = sbr.rel (%p1377) target = $region72
        $region71: #{encoder_forward.7} parent=43 // pred_region
          %s1381 = ssub.s32 32, 32
          %1382 = vsyncadd %s1373, %s1381
          %s1383 = smul.addr %s30, 32
          %s1384 = scalar_lea.hbm %s6, %s1383
          %s1386 = sshll.u32 %s1376, 4
          %s1387 = int_to_ptr.vmem [resolvable:$true] %s1386
          %1389 = dma.vmem_to_hbm [thread:$0]  %s1387, 32, %s1384, %s1373
        $region72: #{encoder_forward.7} parent=43 // pred_fallthru
          _
      $region44: #{encoder_forward.7} parent=5 // pred_fallthru
        _
      %p1390 = scmp.le.s32.totalorder 2, %s25
      // Predicated region
      $region73: #{encoder_forward.7} parent=5 // pred_check
        %p1391 = pneg %p1390
      $region74: #{encoder_forward.7} parent=5 // pred_check_branch
        %1393 = sbr.rel (%p1391) target = $region76
      $region75: #{encoder_forward.7} parent=5 // pred_region
        %s1394 = ssub.s32 %s25, 2
        // Predicated region
        $region77: #{encoder_forward.7} parent=75 // pred_check
          %p1395 = pneg %p200
        $region78: #{encoder_forward.7} parent=75 // pred_check_branch
          %1397 = sbr.rel (%p1395) target = $region80
        $region79: #{encoder_forward.7} parent=75 // pred_region
          %s1398 = sand.u32 %s185, 1
          %s1399 = scalar_lea.sflag [#allocation4], %s1398
          %s1400 = sand.u32 %s185, 1
          %s1401 = smul.addr %s1400, 2
          %s1402 = scalar_lea.vmem [#allocation13], %s1401
          %1403 = dma.done %s1399, 32
        $region80: #{encoder_forward.7} parent=75 // pred_fallthru
          _
      $region76: #{encoder_forward.7} parent=5 // pred_fallthru
        _
    $region6: #{encoder_forward.7} parent=1 // loop_footer
      %s29 = sadd.s32 1, %s25
    $region7: #{encoder_forward.7} parent=1 // loop_footer_branch
      %24 = sbr.rel target = $region3
    $region8: #{encoder_forward.7} parent=1 // loop_exit
      _
    %1404 = vsyncpa [#allocation3], 1
    %s1405 = scalar_lea.sflag [#allocation3], 1
    %1406 = vsyncpa %s1405, 1
    %1407 = vsyncpa [#allocation6], 1
    %s1408 = scalar_lea.sflag [#allocation6], 1
    %1409 = vsyncpa %s1408, 1
    %1410 = vsyncpa [#allocation9], 1
    %s1411 = scalar_lea.sflag [#allocation9], 1
    %1412 = vsyncpa %s1411, 1
    %1413 = vsyncpa [#allocation12], 1
    %1414 = vsyncpa [#allocation4], 1
    %s1415 = scalar_lea.sflag [#allocation4], 1
    %1416 = vsyncpa %s1415, 1

// kernel: encoder_forward.8
$region0: #{encoder_forward.8}
  #allocation0 [shape = 'u32[]', space=smem, size = 0x4, offset = 0x4, fixed_abs, tag = 'smem constant byte address 0x4 - core index']
  #allocation1 [shape = 'u32[144,128]{1,0:T(1,128)}', space=vmem, size = 0x12000, scoped, tag = 'internal scratch']
  %s0 = inlined_call_operand.hbm [shape: bf16[2,2,2,128], index: 0, kind: input, shape index: {}]
  %s1 = inlined_call_operand.hbm [shape: bf16[2,2,2,128], index: 1, kind: input, shape index: {}]
  %s2 = inlined_call_operand.hbm [shape: bf16[2,2,2,128], index: 2, kind: input, shape index: {}]
  %s3 = inlined_call_operand.hbm [shape: bf16[2,2,2,128], index: 3, kind: input, shape index: {}]
  %s4 = inlined_call_operand.hbm [shape: bf16[9,128,256], index: 4, kind: input, shape index: {}]
  %s5 = inlined_call_operand.hbm [shape: f32[1,256], index: 5, kind: input, shape index: {}]
  %s6 = inlined_call_operand.hbm [shape: bf16[2,1,256], index: 6, kind: output, shape index: {}]
  %s7 = sld [smem:[#allocation0]]
  $region81: #{encoder_forward.8} parent=0
    _
  %s9 = ssub.s32 1, %s7
  %s10 = scalar_select 0, %s9, %s7
  $region1: #{encoder_forward.8} parent=0
    #allocation2 [shape = 'u8[2048]{0}', space=vmem, size = 0x800, scoped, tag = 'input window, operand 0']
    #allocation3 [shape = 's32[2]{0}', space=sflag, size = 0x8, scoped, tag = 'scoped memory for encoder_forward.8']
    #allocation4 [shape = 's32[2]{0}', space=sflag, size = 0x8, scoped, tag = 'scoped memory for encoder_forward.8']
    #allocation5 [shape = 'u8[2048]{0}', space=vmem, size = 0x800, scoped, tag = 'input window, operand 1']
    #allocation6 [shape = 's32[2]{0}', space=sflag, size = 0x8, scoped, tag = 'scoped memory for encoder_forward.8']
    #allocation7 [shape = 'u8[2048]{0}', space=vmem, size = 0x800, scoped, tag = 'input window, operand 2']
    #allocation8 [shape = 'u8[2048]{0}', space=vmem, size = 0x800, scoped, tag = 'input window, operand 3']
    #allocation9 [shape = 's32[2]{0}', space=sflag, size = 0x8, scoped, tag = 'scoped memory for encoder_forward.8']
    #allocation10 [shape = 'u8[589824]{0}', space=vmem, size = 0x90000, scoped, tag = 'input window, operand 4, single buffered']
    #allocation11 [shape = 'u8[1024]{0}', space=vmem, size = 0x400, scoped, tag = 'input window, operand 5, single buffered']
    #allocation12 [shape = 's32[1]{0}', space=sflag, size = 0x4, scoped, tag = 'scoped memory for encoder_forward.8']
    #allocation13 [shape = 'u8[2048]{0}', space=vmem, size = 0x800, scoped, tag = 'output window, operand 0']
    %11 = vsyncpa [#allocation3], 0
    %s12 = scalar_lea.sflag [#allocation3], 1
    %13 = vsyncpa %s12, 0
    %14 = vsyncpa [#allocation6], 0
    %s15 = scalar_lea.sflag [#allocation6], 1
    %16 = vsyncpa %s15, 0
    %17 = vsyncpa [#allocation9], 0
    %s18 = scalar_lea.sflag [#allocation9], 1
    %19 = vsyncpa %s18, 0
    %20 = vsyncpa [#allocation12], 0
    %21 = vsyncpa [#allocation4], 0
    %s22 = scalar_lea.sflag [#allocation4], 1
    %23 = vsyncpa %s22, 0
    loop: start=0, step=1, limit=4
    $region2: #{encoder_forward.8} parent=1 // loop_pre_header
      _
    $region3: #{encoder_forward.8} parent=1 // loop_header
      %s25 = sphi 0, %s29
      %p26 = scmp.ge.s32.totalorder %s25, 4
      %s35 = sphi 0, %s37
      %s38 = sphi 0, %s35
      %s39 = sphi 0, %s38
      %s55 = sphi 0, %s39
      %s61 = sphi 0, %s63
      %s64 = sphi 0, %s61
      %s65 = sphi 0, %s64
      %s81 = sphi 0, %s65
      %s87 = sphi 0, %s89
      %s90 = sphi 0, %s87
      %s91 = sphi 0, %s90
      %s107 = sphi 0, %s91
      %s113 = sphi 0, %s115
      %s116 = sphi 0, %s113
      %s117 = sphi 0, %s116
      %s133 = sphi 0, %s117
      %s137 = sphi 0, %s137
      %s139 = sphi 0, %s137
      %s140 = sphi 0, %s139
      %s154 = sphi 0, %s140
      %s158 = sphi 0, %s158
      %s160 = sphi 0, %s158
      %s161 = sphi 0, %s160
      %s175 = sphi 0, %s161
      %s181 = sphi 0, %s183
      %s184 = sphi 0, %s181
      %s185 = sphi 0, %s184
      %s201 = sphi 0, %s185
    $region4: #{encoder_forward.8} parent=1 // loop_header_branch
      %28 = sbr.rel (%p26) target = $region8
    $region5: #{encoder_forward.8} parent=1 // loop_body
      %s30 = ssub.s32 %s25, 1
      %s31 = ssub.s32 %s25, 2
      %s32 = sadd.s32 %s25, 1
      %s33 = ssub.s32 %s25, %s32
      %p34 = scmp.eq.s32.totalorder %s33, 0
      %s36 = sadd.s32 %s35, 1
      %s37 = scalar_select %p34, %s35, %s36
      %p40 = pneg %p34
      %p41 = scmp.eq.s32.totalorder %s25, 1
      %p42 = por %p40, %p41
      %p43 = scmp.ne.s32.totalorder %s35, %s38
      %p44 = scmp.eq.s32.totalorder %s25, 0
      %p45 = por %p43, %p44
      %p46 = scmp.ne.s32.totalorder %s35, %s38
      %p47 = scmp.eq.s32.totalorder %s30, 1
      %p48 = por %p46, %p47
      %p49 = scmp.ne.s32.totalorder %s38, %s39
      %p50 = scmp.eq.s32.totalorder %s30, 0
      %p51 = por %p49, %p50
      %p52 = scmp.ne.s32.totalorder %s38, %s39
      %p53 = scmp.eq.s32.totalorder %s31, 1
      %p54 = por %p52, %p53
      %p56 = scmp.ne.s32.totalorder %s39, %s55
      %p57 = scmp.eq.s32.totalorder %s31, 0
      %p58 = por %p56, %p57
      %s59 = ssub.s32 %s25, %s32
      %p60 = scmp.eq.s32.totalorder %s59, 0
      %s62 = sadd.s32 %s61, 1
      %s63 = scalar_select %p60, %s61, %s62
      %p66 = pneg %p60
      %p67 = scmp.eq.s32.totalorder %s25, 1
      %p68 = por %p66, %p67
      %p69 = scmp.ne.s32.totalorder %s61, %s64
      %p70 = scmp.eq.s32.totalorder %s25, 0
      %p71 = por %p69, %p70
      %p72 = scmp.ne.s32.totalorder %s61, %s64
      %p73 = scmp.eq.s32.totalorder %s30, 1
      %p74 = por %p72, %p73
      %p75 = scmp.ne.s32.totalorder %s64, %s65
      %p76 = scmp.eq.s32.totalorder %s30, 0
      %p77 = por %p75, %p76
      %p78 = scmp.ne.s32.totalorder %s64, %s65
      %p79 = scmp.eq.s32.totalorder %s31, 1
      %p80 = por %p78, %p79
      %p82 = scmp.ne.s32.totalorder %s65, %s81
      %p83 = scmp.eq.s32.totalorder %s31, 0
      %p84 = por %p82, %p83
      %s85 = ssub.s32 %s25, %s32
      %p86 = scmp.eq.s32.totalorder %s85, 0
      %s88 = sadd.s32 %s87, 1
      %s89 = scalar_select %p86, %s87, %s88
      %p92 = pneg %p86
      %p93 = scmp.eq.s32.totalorder %s25, 1
      %p94 = por %p92, %p93
      %p95 = scmp.ne.s32.totalorder %s87, %s90
      %p96 = scmp.eq.s32.totalorder %s25, 0
      %p97 = por %p95, %p96
      %p98 = scmp.ne.s32.totalorder %s87, %s90
      %p99 = scmp.eq.s32.totalorder %s30, 1
      %p100 = por %p98, %p99
      %p101 = scmp.ne.s32.totalorder %s90, %s91
      %p102 = scmp.eq.s32.totalorder %s30, 0
      %p103 = por %p101, %p102
      %p104 = scmp.ne.s32.totalorder %s90, %s91
      %p105 = scmp.eq.s32.totalorder %s31, 1
      %p106 = por %p104, %p105
      %p108 = scmp.ne.s32.totalorder %s91, %s107
      %p109 = scmp.eq.s32.totalorder %s31, 0
      %p110 = por %p108, %p109
      %s111 = ssub.s32 %s25, %s32
      %p112 = scmp.eq.s32.totalorder %s111, 0
      %s114 = sadd.s32 %s113, 1
      %s115 = scalar_select %p112, %s113, %s114
      %p118 = pneg %p112
      %p119 = scmp.eq.s32.totalorder %s25, 1
      %p120 = por %p118, %p119
      %p121 = scmp.ne.s32.totalorder %s113, %s116
      %p122 = scmp.eq.s32.totalorder %s25, 0
      %p123 = por %p121, %p122
      %p124 = scmp.ne.s32.totalorder %s113, %s116
      %p125 = scmp.eq.s32.totalorder %s30, 1
      %p126 = por %p124, %p125
      %p127 = scmp.ne.s32.totalorder %s116, %s117
      %p128 = scmp.eq.s32.totalorder %s30, 0
      %p129 = por %p127, %p128
      %p130 = scmp.ne.s32.totalorder %s116, %s117
      %p131 = scmp.eq.s32.totalorder %s31, 1
      %p132 = por %p130, %p131
      %p134 = scmp.ne.s32.totalorder %s117, %s133
      %p135 = scmp.eq.s32.totalorder %s31, 0
      %p136 = por %p134, %p135
      %s138 = sadd.s32 %s137, 1
      %p141 = scmp.eq.s32.totalorder %s25, 1
      %p142 = scmp.ne.s32.totalorder %s137, %s139
      %p143 = scmp.eq.s32.totalorder %s25, 0
      %p144 = por %p142, %p143
      %p145 = scmp.ne.s32.totalorder %s137, %s139
      %p146 = scmp.eq.s32.totalorder %s30, 1
      %p147 = por %p145, %p146
      %p148 = scmp.ne.s32.totalorder %s139, %s140
      %p149 = scmp.eq.s32.totalorder %s30, 0
      %p150 = por %p148, %p149
      %p151 = scmp.ne.s32.totalorder %s139, %s140
      %p152 = scmp.eq.s32.totalorder %s31, 1
      %p153 = por %p151, %p152
      %p155 = scmp.ne.s32.totalorder %s140, %s154
      %p156 = scmp.eq.s32.totalorder %s31, 0
      %p157 = por %p155, %p156
      %s159 = sadd.s32 %s158, 1
      %p162 = scmp.eq.s32.totalorder %s25, 1
      %p163 = scmp.ne.s32.totalorder %s158, %s160
      %p164 = scmp.eq.s32.totalorder %s25, 0
      %p165 = por %p163, %p164
      %p166 = scmp.ne.s32.totalorder %s158, %s160
      %p167 = scmp.eq.s32.totalorder %s30, 1
      %p168 = por %p166, %p167
      %p169 = scmp.ne.s32.totalorder %s160, %s161
      %p170 = scmp.eq.s32.totalorder %s30, 0
      %p171 = por %p169, %p170
      %p172 = scmp.ne.s32.totalorder %s160, %s161
      %p173 = scmp.eq.s32.totalorder %s31, 1
      %p174 = por %p172, %p173
      %p176 = scmp.ne.s32.totalorder %s161, %s175
      %p177 = scmp.eq.s32.totalorder %s31, 0
      %p178 = por %p176, %p177
      %s179 = ssub.s32 %s25, %s32
      %p180 = scmp.eq.s32.totalorder %s179, 0
      %s182 = sadd.s32 %s181, 1
      %s183 = scalar_select %p180, %s181, %s182
      %p186 = pneg %p180
      %p187 = scmp.eq.s32.totalorder %s25, 1
      %p188 = por %p186, %p187
      %p189 = scmp.ne.s32.totalorder %s181, %s184
      %p190 = scmp.eq.s32.totalorder %s25, 0
      %p191 = por %p189, %p190
      %p192 = scmp.ne.s32.totalorder %s181, %s184
      %p193 = scmp.eq.s32.totalorder %s30, 1
      %p194 = por %p192, %p193
      %p195 = scmp.ne.s32.totalorder %s184, %s185
      %p196 = scmp.eq.s32.totalorder %s30, 0
      %p197 = por %p195, %p196
      %p198 = scmp.ne.s32.totalorder %s184, %s185
      %p199 = scmp.eq.s32.totalorder %s31, 1
      %p200 = por %p198, %p199
      %p202 = scmp.ne.s32.totalorder %s185, %s201
      %p203 = scmp.eq.s32.totalorder %s31, 0
      %p204 = por %p202, %p203
      %p205 = scmp.le.s32.totalorder 1, %s25
      %p206 = scmp.lt.s32.totalorder %s25, 3
      %p207 = pnand %p205, %p206
      %p208 = pneg %p207
      // Predicated region
      $region9: #{encoder_forward.8} parent=5 // pred_check
        _
      $region10: #{encoder_forward.8} parent=5 // pred_check_branch
        %210 = sbr.rel (%p207) target = $region12
      $region11: #{encoder_forward.8} parent=5 // pred_region
        %s211 = ssub.s32 %s25, 1
        // Predicated region
        $region13: #{encoder_forward.8} parent=11 // pred_check
          %p212 = pneg %p150
        $region14: #{encoder_forward.8} parent=11 // pred_check_branch
          %214 = sbr.rel (%p212) target = $region16
        $region15: #{encoder_forward.8} parent=11 // pred_region
          %s216 = ssub.s32 18432, 18432
          %217 = vsyncadd [#allocation9], %s216
          %s218 = sshll.u32 [#allocation10], 4
          %s219 = int_to_ptr.vmem [resolvable:$true] %s218
          %224 = dma.hbm_to_vmem [thread:$0]  %s4, 18432, %s219, [#allocation9], 128, 128, 8
        $region16: #{encoder_forward.8} parent=11 // pred_fallthru
          _
        // Predicated region
        $region17: #{encoder_forward.8} parent=11 // pred_check
          %p225 = pneg %p171
        $region18: #{encoder_forward.8} parent=11 // pred_check_branch
          %227 = sbr.rel (%p225) target = $region20
        $region19: #{encoder_forward.8} parent=11 // pred_region
          %s229 = ssub.s32 32, 32
          %230 = vsyncadd [#allocation12], %s229
          %s232 = sshll.u32 [#allocation11], 4
          %s233 = int_to_ptr.vmem [resolvable:$true] %s232
          %235 = dma.hbm_to_vmem [thread:$0]  %s5, 32, %s233, [#allocation12]
        $region20: #{encoder_forward.8} parent=11 // pred_fallthru
          _
      $region12: #{encoder_forward.8} parent=5 // pred_fallthru
        _
      %p236 = scmp.lt.s32.totalorder %s25, 2
      // Predicated region
      $region21: #{encoder_forward.8} parent=5 // pred_check
        %p237 = pneg %p236
      $region22: #{encoder_forward.8} parent=5 // pred_check_branch
        %239 = sbr.rel (%p237) target = $region24
      $region23: #{encoder_forward.8} parent=5 // pred_region
        // Predicated region
        $region25: #{encoder_forward.8} parent=23 // pred_check
          %p240 = pneg %p45
        $region26: #{encoder_forward.8} parent=23 // pred_check_branch
          %242 = sbr.rel (%p240) target = $region28
        $region27: #{encoder_forward.8} parent=23 // pred_region
          %s243 = sand.u32 %s35, 1
          %s244 = scalar_lea.sflag [#allocation3], %s243
          %s245 = sand.u32 %s35, 1
          %s246 = smul.addr %s245, 2
          %s247 = scalar_lea.vmem [#allocation2], %s246
          %s249 = ssub.s32 32, 32
          %250 = vsyncadd %s244, %s249
          %s251 = smul.addr %s25, 2
          %s252 = smul.addr %s251, 16
          %s253 = scalar_lea.hbm %s0, %s252
          %s254 = sshll.u32 %s247, 4
          %s255 = int_to_ptr.vmem [resolvable:$true] %s254
          %260 = dma.hbm_to_vmem [thread:$0]  %s253, 32, %s255, %s244, 16, 16, 1
        $region28: #{encoder_forward.8} parent=23 // pred_fallthru
          _
        // Predicated region
        $region29: #{encoder_forward.8} parent=23 // pred_check
          %p261 = pneg %p71
        $region30: #{encoder_forward.8} parent=23 // pred_check_branch
          %263 = sbr.rel (%p261) target = $region32
        $region31: #{encoder_forward.8} parent=23 // pred_region
          %s264 = sand.u32 %s25, 1
          %s265 = scalar_lea.sflag [#allocation6], %s264
          %s266 = sand.u32 %s61, 1
          %s267 = smul.addr %s266, 2
          %s268 = scalar_lea.vmem [#allocation5], %s267
          %s270 = ssub.s32 32, 32
          %271 = vsyncadd %s265, %s270
          %s272 = smul.addr %s25, 2
          %s273 = smul.addr %s272, 16
          %s274 = scalar_lea.hbm %s1, %s273
          %s275 = sshll.u32 %s268, 4
          %s276 = int_to_ptr.vmem [resolvable:$true] %s275
          %281 = dma.hbm_to_vmem [thread:$0]  %s274, 32, %s276, %s265, 16, 16, 1
        $region32: #{encoder_forward.8} parent=23 // pred_fallthru
          _
        // Predicated region
        $region33: #{encoder_forward.8} parent=23 // pred_check
          %p282 = pneg %p97
        $region34: #{encoder_forward.8} parent=23 // pred_check_branch
          %284 = sbr.rel (%p282) target = $region36
        $region35: #{encoder_forward.8} parent=23 // pred_region
          %s285 = sand.u32 %s25, 1
          %s286 = scalar_lea.sflag [#allocation6], %s285
          %s287 = sand.u32 %s87, 1
          %s288 = smul.addr %s287, 2
          %s289 = scalar_lea.vmem [#allocation7], %s288
          %s291 = ssub.s32 32, 32
          %292 = vsyncadd %s286, %s291
          %s293 = smul.addr %s25, 2
          %s294 = smul.addr %s293, 16
          %s295 = scalar_lea.hbm %s2, %s294
          %s296 = sshll.u32 %s289, 4
          %s297 = int_to_ptr.vmem [resolvable:$true] %s296
          %302 = dma.hbm_to_vmem [thread:$0]  %s295, 32, %s297, %s286, 16, 16, 1
        $region36: #{encoder_forward.8} parent=23 // pred_fallthru
          _
        // Predicated region
        $region37: #{encoder_forward.8} parent=23 // pred_check
          %p303 = pneg %p123
        $region38: #{encoder_forward.8} parent=23 // pred_check_branch
          %305 = sbr.rel (%p303) target = $region40
        $region39: #{encoder_forward.8} parent=23 // pred_region
          %s306 = sand.u32 %s25, 1
          %s307 = scalar_lea.sflag [#allocation9], %s306
          %s308 = sand.u32 %s113, 1
          %s309 = smul.addr %s308, 2
          %s310 = scalar_lea.vmem [#allocation8], %s309
          %s312 = ssub.s32 32, 32
          %313 = vsyncadd %s307, %s312
          %s314 = smul.addr %s25, 2
          %s315 = smul.addr %s314, 16
          %s316 = scalar_lea.hbm %s3, %s315
          %s317 = sshll.u32 %s310, 4
          %s318 = int_to_ptr.vmem [resolvable:$true] %s317
          %323 = dma.hbm_to_vmem [thread:$0]  %s316, 32, %s318, %s307, 16, 16, 1
        $region40: #{encoder_forward.8} parent=23 // pred_fallthru
          _
      $region24: #{encoder_forward.8} parent=5 // pred_fallthru
        _
      %p324 = scmp.le.s32.totalorder 1, %s25
      %p325 = scmp.lt.s32.totalorder %s25, 3
      %p326 = pnand %p324, %p325
      %p327 = pneg %p326
      // Predicated region
      $region41: #{encoder_forward.8} parent=5 // pred_check
        _
      $region42: #{encoder_forward.8} parent=5 // pred_check_branch
        %329 = sbr.rel (%p326) target = $region44
      $region43: #{encoder_forward.8} parent=5 // pred_region
        %s330 = ssub.s32 %s25, 1
        %s331 = sand.u32 %s38, 1
        %s332 = scalar_lea.sflag [#allocation3], %s331
        %s333 = sand.u32 %s38, 1
        %s334 = smul.addr %s333, 2
        %s335 = scalar_lea.vmem [#allocation2], %s334
        // Predicated region
        $region45: #{encoder_forward.8} parent=43 // pred_check
          %p336 = pneg %p51
        $region46: #{encoder_forward.8} parent=43 // pred_check_branch
          %338 = sbr.rel (%p336) target = $region48
        $region47: #{encoder_forward.8} parent=43 // pred_region
          %339 = dma.done %s332, 32
        $region48: #{encoder_forward.8} parent=43 // pred_fallthru
          _
        %s340 = sand.u32 %s30, 1
        %s341 = scalar_lea.sflag [#allocation6], %s340
        %s342 = sand.u32 %s64, 1
        %s343 = smul.addr %s342, 2
        %s344 = scalar_lea.vmem [#allocation5], %s343
        // Predicated region
        $region49: #{encoder_forward.8} parent=43 // pred_check
          %p345 = pneg %p77
        $region50: #{encoder_forward.8} parent=43 // pred_check_branch
          %347 = sbr.rel (%p345) target = $region52
        $region51: #{encoder_forward.8} parent=43 // pred_region
          %348 = dma.done %s341, 32
        $region52: #{encoder_forward.8} parent=43 // pred_fallthru
          _
        %s349 = sand.u32 %s30, 1
        %s350 = scalar_lea.sflag [#allocation6], %s349
        %s351 = sand.u32 %s90, 1
        %s352 = smul.addr %s351, 2
        %s353 = scalar_lea.vmem [#allocation7], %s352
        // Predicated region
        $region53: #{encoder_forward.8} parent=43 // pred_check
          %p354 = pneg %p103
        $region54: #{encoder_forward.8} parent=43 // pred_check_branch
          %356 = sbr.rel (%p354) target = $region56
        $region55: #{encoder_forward.8} parent=43 // pred_region
          %357 = dma.done %s350, 32
        $region56: #{encoder_forward.8} parent=43 // pred_fallthru
          _
        %s358 = sand.u32 %s30, 1
        %s359 = scalar_lea.sflag [#allocation9], %s358
        %s360 = sand.u32 %s116, 1
        %s361 = smul.addr %s360, 2
        %s362 = scalar_lea.vmem [#allocation8], %s361
        // Predicated region
        $region57: #{encoder_forward.8} parent=43 // pred_check
          %p363 = pneg %p129
        $region58: #{encoder_forward.8} parent=43 // pred_check_branch
          %365 = sbr.rel (%p363) target = $region60
        $region59: #{encoder_forward.8} parent=43 // pred_region
          %366 = dma.done %s359, 32
        $region60: #{encoder_forward.8} parent=43 // pred_fallthru
          _
        // Predicated region
        $region61: #{encoder_forward.8} parent=43 // pred_check
          %p367 = pneg %p150
        $region62: #{encoder_forward.8} parent=43 // pred_check_branch
          %369 = sbr.rel (%p367) target = $region64
        $region63: #{encoder_forward.8} parent=43 // pred_region
          %370 = dma.done [#allocation9], 18432
        $region64: #{encoder_forward.8} parent=43 // pred_fallthru
          _
        // Predicated region
        $region65: #{encoder_forward.8} parent=43 // pred_check
          %p371 = pneg %p171
        $region66: #{encoder_forward.8} parent=43 // pred_check_branch
          %373 = sbr.rel (%p371) target = $region68
        $region67: #{encoder_forward.8} parent=43 // pred_region
          %374 = dma.done [#allocation12], 32
        $region68: #{encoder_forward.8} parent=43 // pred_fallthru
          _
        %s375 = sand.u32 %s38, 1
        %s376 = scalar_lea.sflag [#allocation3], %s375
        %s377 = sand.u32 %s38, 1
        %s378 = smul.addr %s377, 2
        %s379 = scalar_lea.vmem [#allocation2], %s378
        %p380 = pneg %p51
        %p381 = pneg %p48
        %s382 = sand.u32 %s30, 1
        %s383 = scalar_lea.sflag [#allocation6], %s382
        %s384 = sand.u32 %s64, 1
        %s385 = smul.addr %s384, 2
        %s386 = scalar_lea.vmem [#allocation5], %s385
        %p387 = pneg %p77
        %p388 = pneg %p74
        %s389 = sand.u32 %s30, 1
        %s390 = scalar_lea.sflag [#allocation6], %s389
        %s391 = sand.u32 %s90, 1
        %s392 = smul.addr %s391, 2
        %s393 = scalar_lea.vmem [#allocation7], %s392
        %p394 = pneg %p103
        %p395 = pneg %p100
        %s396 = sand.u32 %s30, 1
        %s397 = scalar_lea.sflag [#allocation9], %s396
        %s398 = sand.u32 %s116, 1
        %s399 = smul.addr %s398, 2
        %s400 = scalar_lea.vmem [#allocation8], %s399
        %p401 = pneg %p129
        %p402 = pneg %p126
        %p403 = pneg %p150
        %p404 = pneg %p147
        %p405 = pneg %p171
        %p406 = pneg %p168
        %p407 = pneg %p197
        %p408 = pneg %p194
        %s409 = sand.u32 %s184, 1
        %s410 = scalar_lea.sflag [#allocation4], %s409
        %s411 = sand.u32 %s184, 1
        %s412 = smul.addr %s411, 2
        %s413 = scalar_lea.vmem [#allocation13], %s412
        %v415 = vld [vmem:[%s335] sm:$0x1]
        %v416 = vld [vmem:[%s335 + $0x1] sm:$0x1]
        %v417 = vld [vmem:[#allocation10] sm:$0xff]
        %v418 = vld [vmem:[#allocation10 + $0x8] sm:$0xff]
        %v419 = vld [vmem:[#allocation10 + $0x10] sm:$0xff]
        %v420 = vld [vmem:[#allocation10 + $0x18] sm:$0xff]
        %v421 = vld [vmem:[#allocation10 + $0x20] sm:$0xff]
        %v422 = vld [vmem:[#allocation10 + $0x28] sm:$0xff]
        %v423 = vld [vmem:[#allocation10 + $0x30] sm:$0xff]
        %v424 = vld [vmem:[#allocation10 + $0x38] sm:$0xff]
        %v425 = vld [vmem:[#allocation10 + $0x40] sm:$0xff]
        %v426 = vld [vmem:[#allocation10 + $0x48] sm:$0xff]
        %v427 = vld [vmem:[#allocation10 + $0x50] sm:$0xff]
        %v428 = vld [vmem:[#allocation10 + $0x58] sm:$0xff]
        %v429 = vld [vmem:[#allocation10 + $0x60] sm:$0xff]
        %v430 = vld [vmem:[#allocation10 + $0x68] sm:$0xff]
        %v431 = vld [vmem:[#allocation10 + $0x70] sm:$0xff]
        %v432 = vld [vmem:[#allocation10 + $0x78] sm:$0xff]
        %v433 = vld [vmem:[%s344] sm:$0x1]
        %v434 = vld [vmem:[%s344 + $0x1] sm:$0x1]
        %s435 = scalar_lea.vmem [#allocation10], 128
        %v436 = vld [vmem:[%s435] sm:$0xff]
        %v437 = vld [vmem:[%s435 + $0x8] sm:$0xff]
        %v438 = vld [vmem:[%s435 + $0x10] sm:$0xff]
        %v439 = vld [vmem:[%s435 + $0x18] sm:$0xff]
        %v440 = vld [vmem:[%s435 + $0x20] sm:$0xff]
        %v441 = vld [vmem:[%s435 + $0x28] sm:$0xff]
        %v442 = vld [vmem:[%s435 + $0x30] sm:$0xff]
        %v443 = vld [vmem:[%s435 + $0x38] sm:$0xff]
        %v444 = vld [vmem:[%s435 + $0x40] sm:$0xff]
        %v445 = vld [vmem:[%s435 + $0x48] sm:$0xff]
        %v446 = vld [vmem:[%s435 + $0x50] sm:$0xff]
        %v447 = vld [vmem:[%s435 + $0x58] sm:$0xff]
        %v448 = vld [vmem:[%s435 + $0x60] sm:$0xff]
        %v449 = vld [vmem:[%s435 + $0x68] sm:$0xff]
        %v450 = vld [vmem:[%s435 + $0x70] sm:$0xff]
        %v451 = vld [vmem:[%s435 + $0x78] sm:$0xff]
        %v468 = vunpack.c.l.b16 %v436
        %v469 = vunpack.c.h.b16 %v436
        %v470 = vunpack.c.l.b16 %v437
        %v471 = vunpack.c.h.b16 %v437
        %v472 = vunpack.c.l.b16 %v438
        %v473 = vunpack.c.h.b16 %v438
        %v474 = vunpack.c.l.b16 %v439
        %v475 = vunpack.c.h.b16 %v439
        %v476 = vunpack.c.l.b16 %v440
        %v477 = vunpack.c.h.b16 %v440
        %v478 = vunpack.c.l.b16 %v441
        %v479 = vunpack.c.h.b16 %v441
        %v480 = vunpack.c.l.b16 %v442
        %v481 = vunpack.c.h.b16 %v442
        %v482 = vunpack.c.l.b16 %v443
        %v483 = vunpack.c.h.b16 %v443
        %v484 = vunpack.c.l.b16 %v444
        %v485 = vunpack.c.h.b16 %v444
        %v486 = vunpack.c.l.b16 %v445
        %v487 = vunpack.c.h.b16 %v445
        %v488 = vunpack.c.l.b16 %v446
        %v489 = vunpack.c.h.b16 %v446
        %v490 = vunpack.c.l.b16 %v447
        %v491 = vunpack.c.h.b16 %v447
        %v492 = vunpack.c.l.b16 %v448
        %v493 = vunpack.c.h.b16 %v448
        %v494 = vunpack.c.l.b16 %v449
        %v495 = vunpack.c.h.b16 %v449
        %v496 = vunpack.c.l.b16 %v450
        %v497 = vunpack.c.h.b16 %v450
        %v498 = vunpack.c.l.b16 %v451
        %v499 = vunpack.c.h.b16 %v451
        %v500 = vpack.c.b16 %v470, %v468
        %v501 = vpack.c.b16 %v471, %v469
        %v502 = vpack.c.b16 %v474, %v472
        %v503 = vpack.c.b16 %v475, %v473
        %v504 = vpack.c.b16 %v478, %v476
        %v505 = vpack.c.b16 %v479, %v477
        %v506 = vpack.c.b16 %v482, %v480
        %v507 = vpack.c.b16 %v483, %v481
        %v508 = vpack.c.b16 %v486, %v484
        %v509 = vpack.c.b16 %v487, %v485
        %v510 = vpack.c.b16 %v490, %v488
        %v511 = vpack.c.b16 %v491, %v489
        %v512 = vpack.c.b16 %v494, %v492
        %v513 = vpack.c.b16 %v495, %v493
        %v514 = vpack.c.b16 %v498, %v496
        %v515 = vpack.c.b16 %v499, %v497
        %532 = vmatprep.subr.bf16.mxu0 %v501
        %533 = vmatpush1.bf16.msra.mxu0 %v500
        %534 = vmatprep.subr.bf16.mxu0 %v503
        %535 = vmatpush1.bf16.msra.mxu0 %v502
        %536 = vmatprep.subr.bf16.mxu0 %v505
        %537 = vmatpush1.bf16.msra.mxu0 %v504
        %538 = vmatprep.subr.bf16.mxu0 %v507
        %539 = vmatpush1.bf16.msra.mxu0 %v506
        %540 = vmatprep.subr.bf16.mxu0 %v509
        %541 = vmatpush1.bf16.msra.mxu0 %v508
        %542 = vmatprep.subr.bf16.mxu0 %v511
        %543 = vmatpush1.bf16.msra.mxu0 %v510
        %544 = vmatprep.subr.bf16.mxu0 %v513
        %545 = vmatpush1.bf16.msra.mxu0 %v512
        %546 = vmatprep.subr.bf16.mxu0 %v515
        %547 = vmatpush1.bf16.msra.mxu0 %v514
        %548 = vmatprep.subr.bf16.mxu0 0
        %549 = vmatpush1.bf16.msra.mxu0 0
        %550 = vmatprep.subr.bf16.mxu0 0
        %551 = vmatpush1.bf16.msra.mxu0 0
        %552 = vmatprep.subr.bf16.mxu0 0
        %553 = vmatpush1.bf16.msra.mxu0 0
        %554 = vmatprep.subr.bf16.mxu0 0
        %555 = vmatpush1.bf16.msra.mxu0 0
        %556 = vmatprep.subr.bf16.mxu0 0
        %557 = vmatpush1.bf16.msra.mxu0 0
        %558 = vmatprep.subr.bf16.mxu0 0
        %559 = vmatpush1.bf16.msra.mxu0 0
        %560 = vmatprep.subr.bf16.mxu0 0
        %561 = vmatpush1.bf16.msra.mxu0 0
        %562 = vmatprep.subr.bf16.mxu0 0
        %563 = vmatpush1.bf16.msra.mxu0 0
        %564 = vmatprep.mubr.bf16.mxu0 0
        %565 = vmatmul.mubr.bf16.gmra.mrb[0].mxu0 %v433
        %v566 = vpop.f32.mrb[0].mxu0
        %v567 = vadd.f32 0.0, %v566
        %v568 = vpop.f32.mrb[0].mxu0
        %v569 = vadd.f32 0.0, %v568
        %v570 = vpop.f32.mrb[0].mxu0
        %v571 = vpop.f32.mrb[0].mxu0
        %572 = vdwg.mxu0
        %v589 = vunpack.c.l.b16 %v417
        %v590 = vunpack.c.h.b16 %v417
        %v591 = vunpack.c.l.b16 %v418
        %v592 = vunpack.c.h.b16 %v418
        %v593 = vunpack.c.l.b16 %v419
        %v594 = vunpack.c.h.b16 %v419
        %v595 = vunpack.c.l.b16 %v420
        %v596 = vunpack.c.h.b16 %v420
        %v597 = vunpack.c.l.b16 %v421
        %v598 = vunpack.c.h.b16 %v421
        %v599 = vunpack.c.l.b16 %v422
        %v600 = vunpack.c.h.b16 %v422
        %v601 = vunpack.c.l.b16 %v423
        %v602 = vunpack.c.h.b16 %v423
        %v603 = vunpack.c.l.b16 %v424
        %v604 = vunpack.c.h.b16 %v424
        %v605 = vunpack.c.l.b16 %v425
        %v606 = vunpack.c.h.b16 %v425
        %v607 = vunpack.c.l.b16 %v426
        %v608 = vunpack.c.h.b16 %v426
        %v609 = vunpack.c.l.b16 %v427
        %v610 = vunpack.c.h.b16 %v427
        %v611 = vunpack.c.l.b16 %v428
        %v612 = vunpack.c.h.b16 %v428
        %v613 = vunpack.c.l.b16 %v429
        %v614 = vunpack.c.h.b16 %v429
        %v615 = vunpack.c.l.b16 %v430
        %v616 = vunpack.c.h.b16 %v430
        %v617 = vunpack.c.l.b16 %v431
        %v618 = vunpack.c.h.b16 %v431
        %v619 = vunpack.c.l.b16 %v432
        %v620 = vunpack.c.h.b16 %v432
        %v621 = vpack.c.b16 %v591, %v589
        %v622 = vpack.c.b16 %v592, %v590
        %v623 = vpack.c.b16 %v595, %v593
        %v624 = vpack.c.b16 %v596, %v594
        %v625 = vpack.c.b16 %v599, %v597
        %v626 = vpack.c.b16 %v600, %v598
        %v627 = vpack.c.b16 %v603, %v601
        %v628 = vpack.c.b16 %v604, %v602
        %v629 = vpack.c.b16 %v607, %v605
        %v630 = vpack.c.b16 %v608, %v606
        %v631 = vpack.c.b16 %v611, %v609
        %v632 = vpack.c.b16 %v612, %v610
        %v633 = vpack.c.b16 %v615, %v613
        %v634 = vpack.c.b16 %v616, %v614
        %v635 = vpack.c.b16 %v619, %v617
        %v636 = vpack.c.b16 %v620, %v618
        %653 = vmatprep.subr.bf16.mxu0 %v622
        %654 = vmatpush1.bf16.msra.mxu0 %v621
        %655 = vmatprep.subr.bf16.mxu0 %v624
        %656 = vmatpush1.bf16.msra.mxu0 %v623
        %657 = vmatprep.subr.bf16.mxu0 %v626
        %658 = vmatpush1.bf16.msra.mxu0 %v625
        %659 = vmatprep.subr.bf16.mxu0 %v628
        %660 = vmatpush1.bf16.msra.mxu0 %v627
        %661 = vmatprep.subr.bf16.mxu0 %v630
        %662 = vmatpush1.bf16.msra.mxu0 %v629
        %663 = vmatprep.subr.bf16.mxu0 %v632
        %664 = vmatpush1.bf16.msra.mxu0 %v631
        %665 = vmatprep.subr.bf16.mxu0 %v634
        %666 = vmatpush1.bf16.msra.mxu0 %v633
        %667 = vmatprep.subr.bf16.mxu0 %v636
        %668 = vmatpush1.bf16.msra.mxu0 %v635
        %669 = vmatprep.subr.bf16.mxu0 0
        %670 = vmatpush1.bf16.msra.mxu0 0
        %671 = vmatprep.subr.bf16.mxu0 0
        %672 = vmatpush1.bf16.msra.mxu0 0
        %673 = vmatprep.subr.bf16.mxu0 0
        %674 = vmatpush1.bf16.msra.mxu0 0
        %675 = vmatprep.subr.bf16.mxu0 0
        %676 = vmatpush1.bf16.msra.mxu0 0
        %677 = vmatprep.subr.bf16.mxu0 0
        %678 = vmatpush1.bf16.msra.mxu0 0
        %679 = vmatprep.subr.bf16.mxu0 0
        %680 = vmatpush1.bf16.msra.mxu0 0
        %681 = vmatprep.subr.bf16.mxu0 0
        %682 = vmatpush1.bf16.msra.mxu0 0
        %683 = vmatprep.subr.bf16.mxu0 0
        %684 = vmatpush1.bf16.msra.mxu0 0
        %685 = vmatprep.mubr.bf16.mxu0 0
        %686 = vmatmul.mubr.bf16.gmra.mrb[0].mxu0 %v415
        %v687 = vpop.f32.mrb[0].mxu0
        %v688 = vadd.f32 %v567, %v687
        %v689 = vpop.f32.mrb[0].mxu0
        %v690 = vadd.f32 %v569, %v689
        %v691 = vpop.f32.mrb[0].mxu0
        %v692 = vpop.f32.mrb[0].mxu0
        %693 = vdwg.mxu0
        %s694 = scalar_lea.vmem [#allocation10], 256
        %v695 = vld [vmem:[%s694] sm:$0xff]
        %v696 = vld [vmem:[%s694 + $0x8] sm:$0xff]
        %v697 = vld [vmem:[%s694 + $0x10] sm:$0xff]
        %v698 = vld [vmem:[%s694 + $0x18] sm:$0xff]
        %v699 = vld [vmem:[%s694 + $0x20] sm:$0xff]
        %v700 = vld [vmem:[%s694 + $0x28] sm:$0xff]
        %v701 = vld [vmem:[%s694 + $0x30] sm:$0xff]
        %v702 = vld [vmem:[%s694 + $0x38] sm:$0xff]
        %v703 = vld [vmem:[%s694 + $0x40] sm:$0xff]
        %v704 = vld [vmem:[%s694 + $0x48] sm:$0xff]
        %v705 = vld [vmem:[%s694 + $0x50] sm:$0xff]
        %v706 = vld [vmem:[%s694 + $0x58] sm:$0xff]
        %v707 = vld [vmem:[%s694 + $0x60] sm:$0xff]
        %v708 = vld [vmem:[%s694 + $0x68] sm:$0xff]
        %v709 = vld [vmem:[%s694 + $0x70] sm:$0xff]
        %v710 = vld [vmem:[%s694 + $0x78] sm:$0xff]
        %v713 = vunpack.c.l.s4 1966171168
        %v714 = vunpack.c.0.s8 %v713
        %v715 = vlaneseq
        %v716 = vshrl.u32 %v715, 7
        %v717 = vsub.s32 %v714, %v716
        %v718 = vrot.slane %v415, %v717
        %v720 = vunpack.c.l.s4 1966171168
        %v721 = vunpack.c.0.s8 %v720
        %v722 = vlaneseq
        %v723 = vshrl.u32 %v722, 7
        %v724 = vsub.s32 %v721, %v723
        %v725 = vrot.slane %v718, %v724
        %v727 = vshrl.u32 %v725, 16
        %v746 = vunpack.c.l.b16 %v695
        %v747 = vunpack.c.h.b16 %v695
        %v748 = vunpack.c.l.b16 %v696
        %v749 = vunpack.c.h.b16 %v696
        %v750 = vunpack.c.l.b16 %v697
        %v751 = vunpack.c.h.b16 %v697
        %v752 = vunpack.c.l.b16 %v698
        %v753 = vunpack.c.h.b16 %v698
        %v754 = vunpack.c.l.b16 %v699
        %v755 = vunpack.c.h.b16 %v699
        %v756 = vunpack.c.l.b16 %v700
        %v757 = vunpack.c.h.b16 %v700
        %v758 = vunpack.c.l.b16 %v701
        %v759 = vunpack.c.h.b16 %v701
        %v760 = vunpack.c.l.b16 %v702
        %v761 = vunpack.c.h.b16 %v702
        %v762 = vunpack.c.l.b16 %v703
        %v763 = vunpack.c.h.b16 %v703
        %v764 = vunpack.c.l.b16 %v704
        %v765 = vunpack.c.h.b16 %v704
        %v766 = vunpack.c.l.b16 %v705
        %v767 = vunpack.c.h.b16 %v705
        %v768 = vunpack.c.l.b16 %v706
        %v769 = vunpack.c.h.b16 %v706
        %v770 = vunpack.c.l.b16 %v707
        %v771 = vunpack.c.h.b16 %v707
        %v772 = vunpack.c.l.b16 %v708
        %v773 = vunpack.c.h.b16 %v708
        %v774 = vunpack.c.l.b16 %v709
        %v775 = vunpack.c.h.b16 %v709
        %v776 = vunpack.c.l.b16 %v710
        %v777 = vunpack.c.h.b16 %v710
        %v778 = vpack.c.b16 %v748, %v746
        %v779 = vpack.c.b16 %v749, %v747
        %v780 = vpack.c.b16 %v752, %v750
        %v781 = vpack.c.b16 %v753, %v751
        %v782 = vpack.c.b16 %v756, %v754
        %v783 = vpack.c.b16 %v757, %v755
        %v784 = vpack.c.b16 %v760, %v758
        %v785 = vpack.c.b16 %v761, %v759
        %v786 = vpack.c.b16 %v764, %v762
        %v787 = vpack.c.b16 %v765, %v763
        %v788 = vpack.c.b16 %v768, %v766
        %v789 = vpack.c.b16 %v769, %v767
        %v790 = vpack.c.b16 %v772, %v770
        %v791 = vpack.c.b16 %v773, %v771
        %v792 = vpack.c.b16 %v776, %v774
        %v793 = vpack.c.b16 %v777, %v775
        %810 = vmatprep.subr.bf16.mxu0 %v779
        %811 = vmatpush1.bf16.msra.mxu0 %v778
        %812 = vmatprep.subr.bf16.mxu0 %v781
        %813 = vmatpush1.bf16.msra.mxu0 %v780
        %814 = vmatprep.subr.bf16.mxu0 %v783
        %815 = vmatpush1.bf16.msra.mxu0 %v782
        %816 = vmatprep.subr.bf16.mxu0 %v785
        %817 = vmatpush1.bf16.msra.mxu0 %v784
        %818 = vmatprep.subr.bf16.mxu0 %v787
        %819 = vmatpush1.bf16.msra.mxu0 %v786
        %820 = vmatprep.subr.bf16.mxu0 %v789
        %821 = vmatpush1.bf16.msra.mxu0 %v788
        %822 = vmatprep.subr.bf16.mxu0 %v791
        %823 = vmatpush1.bf16.msra.mxu0 %v790
        %824 = vmatprep.subr.bf16.mxu0 %v793
        %825 = vmatpush1.bf16.msra.mxu0 %v792
        %826 = vmatprep.subr.bf16.mxu0 0
        %827 = vmatpush1.bf16.msra.mxu0 0
        %828 = vmatprep.subr.bf16.mxu0 0
        %829 = vmatpush1.bf16.msra.mxu0 0
        %830 = vmatprep.subr.bf16.mxu0 0
        %831 = vmatpush1.bf16.msra.mxu0 0
        %832 = vmatprep.subr.bf16.mxu0 0
        %833 = vmatpush1.bf16.msra.mxu0 0
        %834 = vmatprep.subr.bf16.mxu0 0
        %835 = vmatpush1.bf16.msra.mxu0 0
        %836 = vmatprep.subr.bf16.mxu0 0
        %837 = vmatpush1.bf16.msra.mxu0 0
        %838 = vmatprep.subr.bf16.mxu0 0
        %839 = vmatpush1.bf16.msra.mxu0 0
        %840 = vmatprep.subr.bf16.mxu0 0
        %841 = vmatpush1.bf16.msra.mxu0 0
        %842 = vmatprep.mubr.bf16.mxu0 0
        %843 = vmatmul.mubr.bf16.gmra.mrb[0].mxu0 %v727
        %v844 = vpop.f32.mrb[0].mxu0
        %v845 = vadd.f32 0.0, %v844
        %v846 = vpop.f32.mrb[0].mxu0
        %v847 = vadd.f32 0.0, %v846
        %v848 = vpop.f32.mrb[0].mxu0
        %v849 = vpop.f32.mrb[0].mxu0
        %850 = vdwg.mxu0
        %v851 = vadd.f32 %v688, %v845
        %v852 = vadd.f32 %v690, %v847
        %v853 = vld [vmem:[%s353] sm:$0x1]
        %s854 = scalar_lea.vmem [#allocation10], 384
        %v855 = vld [vmem:[%s854] sm:$0xff]
        %v856 = vld [vmem:[%s854 + $0x8] sm:$0xff]
        %v857 = vld [vmem:[%s854 + $0x10] sm:$0xff]
        %v858 = vld [vmem:[%s854 + $0x18] sm:$0xff]
        %v859 = vld [vmem:[%s854 + $0x20] sm:$0xff]
        %v860 = vld [vmem:[%s854 + $0x28] sm:$0xff]
        %v861 = vld [vmem:[%s854 + $0x30] sm:$0xff]
        %v862 = vld [vmem:[%s854 + $0x38] sm:$0xff]
        %v863 = vld [vmem:[%s854 + $0x40] sm:$0xff]
        %v864 = vld [vmem:[%s854 + $0x48] sm:$0xff]
        %v865 = vld [vmem:[%s854 + $0x50] sm:$0xff]
        %v866 = vld [vmem:[%s854 + $0x58] sm:$0xff]
        %v867 = vld [vmem:[%s854 + $0x60] sm:$0xff]
        %v868 = vld [vmem:[%s854 + $0x68] sm:$0xff]
        %v869 = vld [vmem:[%s854 + $0x70] sm:$0xff]
        %v870 = vld [vmem:[%s854 + $0x78] sm:$0xff]
        %v887 = vunpack.c.l.b16 %v855
        %v888 = vunpack.c.h.b16 %v855
        %v889 = vunpack.c.l.b16 %v856
        %v890 = vunpack.c.h.b16 %v856
        %v891 = vunpack.c.l.b16 %v857
        %v892 = vunpack.c.h.b16 %v857
        %v893 = vunpack.c.l.b16 %v858
        %v894 = vunpack.c.h.b16 %v858
        %v895 = vunpack.c.l.b16 %v859
        %v896 = vunpack.c.h.b16 %v859
        %v897 = vunpack.c.l.b16 %v860
        %v898 = vunpack.c.h.b16 %v860
        %v899 = vunpack.c.l.b16 %v861
        %v900 = vunpack.c.h.b16 %v861
        %v901 = vunpack.c.l.b16 %v862
        %v902 = vunpack.c.h.b16 %v862
        %v903 = vunpack.c.l.b16 %v863
        %v904 = vunpack.c.h.b16 %v863
        %v905 = vunpack.c.l.b16 %v864
        %v906 = vunpack.c.h.b16 %v864
        %v907 = vunpack.c.l.b16 %v865
        %v908 = vunpack.c.h.b16 %v865
        %v909 = vunpack.c.l.b16 %v866
        %v910 = vunpack.c.h.b16 %v866
        %v911 = vunpack.c.l.b16 %v867
        %v912 = vunpack.c.h.b16 %v867
        %v913 = vunpack.c.l.b16 %v868
        %v914 = vunpack.c.h.b16 %v868
        %v915 = vunpack.c.l.b16 %v869
        %v916 = vunpack.c.h.b16 %v869
        %v917 = vunpack.c.l.b16 %v870
        %v918 = vunpack.c.h.b16 %v870
        %v919 = vpack.c.b16 %v889, %v887
        %v920 = vpack.c.b16 %v890, %v888
        %v921 = vpack.c.b16 %v893, %v891
        %v922 = vpack.c.b16 %v894, %v892
        %v923 = vpack.c.b16 %v897, %v895
        %v924 = vpack.c.b16 %v898, %v896
        %v925 = vpack.c.b16 %v901, %v899
        %v926 = vpack.c.b16 %v902, %v900
        %v927 = vpack.c.b16 %v905, %v903
        %v928 = vpack.c.b16 %v906, %v904
        %v929 = vpack.c.b16 %v909, %v907
        %v930 = vpack.c.b16 %v910, %v908
        %v931 = vpack.c.b16 %v913, %v911
        %v932 = vpack.c.b16 %v914, %v912
        %v933 = vpack.c.b16 %v917, %v915
        %v934 = vpack.c.b16 %v918, %v916
        %951 = vmatprep.subr.bf16.mxu0 %v920
        %952 = vmatpush1.bf16.msra.mxu0 %v919
        %953 = vmatprep.subr.bf16.mxu0 %v922
        %954 = vmatpush1.bf16.msra.mxu0 %v921
        %955 = vmatprep.subr.bf16.mxu0 %v924
        %956 = vmatpush1.bf16.msra.mxu0 %v923
        %957 = vmatprep.subr.bf16.mxu0 %v926
        %958 = vmatpush1.bf16.msra.mxu0 %v925
        %959 = vmatprep.subr.bf16.mxu0 %v928
        %960 = vmatpush1.bf16.msra.mxu0 %v927
        %961 = vmatprep.subr.bf16.mxu0 %v930
        %962 = vmatpush1.bf16.msra.mxu0 %v929
        %963 = vmatprep.subr.bf16.mxu0 %v932
        %964 = vmatpush1.bf16.msra.mxu0 %v931
        %965 = vmatprep.subr.bf16.mxu0 %v934
        %966 = vmatpush1.bf16.msra.mxu0 %v933
        %967 = vmatprep.subr.bf16.mxu0 0
        %968 = vmatpush1.bf16.msra.mxu0 0
        %969 = vmatprep.subr.bf16.mxu0 0
        %970 = vmatpush1.bf16.msra.mxu0 0
        %971 = vmatprep.subr.bf16.mxu0 0
        %972 = vmatpush1.bf16.msra.mxu0 0
        %973 = vmatprep.subr.bf16.mxu0 0
        %974 = vmatpush1.bf16.msra.mxu0 0
        %975 = vmatprep.subr.bf16.mxu0 0
        %976 = vmatpush1.bf16.msra.mxu0 0
        %977 = vmatprep.subr.bf16.mxu0 0
        %978 = vmatpush1.bf16.msra.mxu0 0
        %979 = vmatprep.subr.bf16.mxu0 0
        %980 = vmatpush1.bf16.msra.mxu0 0
        %981 = vmatprep.subr.bf16.mxu0 0
        %982 = vmatpush1.bf16.msra.mxu0 0
        %983 = vmatprep.mubr.bf16.mxu0 0
        %984 = vmatmul.mubr.bf16.gmra.mrb[0].mxu0 %v853
        %v985 = vpop.f32.mrb[0].mxu0
        %v986 = vadd.f32 0.0, %v985
        %v987 = vpop.f32.mrb[0].mxu0
        %v988 = vadd.f32 0.0, %v987
        %v989 = vpop.f32.mrb[0].mxu0
        %v990 = vpop.f32.mrb[0].mxu0
        %991 = vdwg.mxu0
        %v992 = vadd.f32 %v851, %v986
        %v993 = vadd.f32 %v852, %v988
        %v994 = vld [vmem:[%s362] sm:$0x1]
        %s995 = scalar_lea.vmem [#allocation10], 512
        %v996 = vld [vmem:[%s995] sm:$0xff]
        %v997 = vld [vmem:[%s995 + $0x8] sm:$0xff]
        %v998 = vld [vmem:[%s995 + $0x10] sm:$0xff]
        %v999 = vld [vmem:[%s995 + $0x18] sm:$0xff]
        %v1000 = vld [vmem:[%s995 + $0x20] sm:$0xff]
        %v1001 = vld [vmem:[%s995 + $0x28] sm:$0xff]
        %v1002 = vld [vmem:[%s995 + $0x30] sm:$0xff]
        %v1003 = vld [vmem:[%s995 + $0x38] sm:$0xff]
        %v1004 = vld [vmem:[%s995 + $0x40] sm:$0xff]
        %v1005 = vld [vmem:[%s995 + $0x48] sm:$0xff]
        %v1006 = vld [vmem:[%s995 + $0x50] sm:$0xff]
        %v1007 = vld [vmem:[%s995 + $0x58] sm:$0xff]
        %v1008 = vld [vmem:[%s995 + $0x60] sm:$0xff]
        %v1009 = vld [vmem:[%s995 + $0x68] sm:$0xff]
        %v1010 = vld [vmem:[%s995 + $0x70] sm:$0xff]
        %v1011 = vld [vmem:[%s995 + $0x78] sm:$0xff]
        %v1028 = vunpack.c.l.b16 %v996
        %v1029 = vunpack.c.h.b16 %v996
        %v1030 = vunpack.c.l.b16 %v997
        %v1031 = vunpack.c.h.b16 %v997
        %v1032 = vunpack.c.l.b16 %v998
        %v1033 = vunpack.c.h.b16 %v998
        %v1034 = vunpack.c.l.b16 %v999
        %v1035 = vunpack.c.h.b16 %v999
        %v1036 = vunpack.c.l.b16 %v1000
        %v1037 = vunpack.c.h.b16 %v1000
        %v1038 = vunpack.c.l.b16 %v1001
        %v1039 = vunpack.c.h.b16 %v1001
        %v1040 = vunpack.c.l.b16 %v1002
        %v1041 = vunpack.c.h.b16 %v1002
        %v1042 = vunpack.c.l.b16 %v1003
        %v1043 = vunpack.c.h.b16 %v1003
        %v1044 = vunpack.c.l.b16 %v1004
        %v1045 = vunpack.c.h.b16 %v1004
        %v1046 = vunpack.c.l.b16 %v1005
        %v1047 = vunpack.c.h.b16 %v1005
        %v1048 = vunpack.c.l.b16 %v1006
        %v1049 = vunpack.c.h.b16 %v1006
        %v1050 = vunpack.c.l.b16 %v1007
        %v1051 = vunpack.c.h.b16 %v1007
        %v1052 = vunpack.c.l.b16 %v1008
        %v1053 = vunpack.c.h.b16 %v1008
        %v1054 = vunpack.c.l.b16 %v1009
        %v1055 = vunpack.c.h.b16 %v1009
        %v1056 = vunpack.c.l.b16 %v1010
        %v1057 = vunpack.c.h.b16 %v1010
        %v1058 = vunpack.c.l.b16 %v1011
        %v1059 = vunpack.c.h.b16 %v1011
        %v1060 = vpack.c.b16 %v1030, %v1028
        %v1061 = vpack.c.b16 %v1031, %v1029
        %v1062 = vpack.c.b16 %v1034, %v1032
        %v1063 = vpack.c.b16 %v1035, %v1033
        %v1064 = vpack.c.b16 %v1038, %v1036
        %v1065 = vpack.c.b16 %v1039, %v1037
        %v1066 = vpack.c.b16 %v1042, %v1040
        %v1067 = vpack.c.b16 %v1043, %v1041
        %v1068 = vpack.c.b16 %v1046, %v1044
        %v1069 = vpack.c.b16 %v1047, %v1045
        %v1070 = vpack.c.b16 %v1050, %v1048
        %v1071 = vpack.c.b16 %v1051, %v1049
        %v1072 = vpack.c.b16 %v1054, %v1052
        %v1073 = vpack.c.b16 %v1055, %v1053
        %v1074 = vpack.c.b16 %v1058, %v1056
        %v1075 = vpack.c.b16 %v1059, %v1057
        %1092 = vmatprep.subr.bf16.mxu0 %v1061
        %1093 = vmatpush1.bf16.msra.mxu0 %v1060
        %1094 = vmatprep.subr.bf16.mxu0 %v1063
        %1095 = vmatpush1.bf16.msra.mxu0 %v1062
        %1096 = vmatprep.subr.bf16.mxu0 %v1065
        %1097 = vmatpush1.bf16.msra.mxu0 %v1064
        %1098 = vmatprep.subr.bf16.mxu0 %v1067
        %1099 = vmatpush1.bf16.msra.mxu0 %v1066
        %1100 = vmatprep.subr.bf16.mxu0 %v1069
        %1101 = vmatpush1.bf16.msra.mxu0 %v1068
        %1102 = vmatprep.subr.bf16.mxu0 %v1071
        %1103 = vmatpush1.bf16.msra.mxu0 %v1070
        %1104 = vmatprep.subr.bf16.mxu0 %v1073
        %1105 = vmatpush1.bf16.msra.mxu0 %v1072
        %1106 = vmatprep.subr.bf16.mxu0 %v1075
        %1107 = vmatpush1.bf16.msra.mxu0 %v1074
        %1108 = vmatprep.subr.bf16.mxu0 0
        %1109 = vmatpush1.bf16.msra.mxu0 0
        %1110 = vmatprep.subr.bf16.mxu0 0
        %1111 = vmatpush1.bf16.msra.mxu0 0
        %1112 = vmatprep.subr.bf16.mxu0 0
        %1113 = vmatpush1.bf16.msra.mxu0 0
        %1114 = vmatprep.subr.bf16.mxu0 0
        %1115 = vmatpush1.bf16.msra.mxu0 0
        %1116 = vmatprep.subr.bf16.mxu0 0
        %1117 = vmatpush1.bf16.msra.mxu0 0
        %1118 = vmatprep.subr.bf16.mxu0 0
        %1119 = vmatpush1.bf16.msra.mxu0 0
        %1120 = vmatprep.subr.bf16.mxu0 0
        %1121 = vmatpush1.bf16.msra.mxu0 0
        %1122 = vmatprep.subr.bf16.mxu0 0
        %1123 = vmatpush1.bf16.msra.mxu0 0
        %1124 = vmatprep.mubr.bf16.mxu0 0
        %1125 = vmatmul.mubr.bf16.gmra.mrb[0].mxu0 %v994
        %v1126 = vpop.f32.mrb[0].mxu0
        %v1127 = vadd.f32 0.0, %v1126
        %v1128 = vpop.f32.mrb[0].mxu0
        %v1129 = vadd.f32 0.0, %v1128
        %v1130 = vpop.f32.mrb[0].mxu0
        %v1131 = vpop.f32.mrb[0].mxu0
        %1132 = vdwg.mxu0
        %v1133 = vadd.f32 %v992, %v1127
        %v1134 = vadd.f32 %v993, %v1129
        %s1135 = scalar_lea.vmem [#allocation10], 640
        %v1136 = vld [vmem:[%s1135] sm:$0xff]
        %v1137 = vld [vmem:[%s1135 + $0x8] sm:$0xff]
        %v1138 = vld [vmem:[%s1135 + $0x10] sm:$0xff]
        %v1139 = vld [vmem:[%s1135 + $0x18] sm:$0xff]
        %v1140 = vld [vmem:[%s1135 + $0x20] sm:$0xff]
        %v1141 = vld [vmem:[%s1135 + $0x28] sm:$0xff]
        %v1142 = vld [vmem:[%s1135 + $0x30] sm:$0xff]
        %v1143 = vld [vmem:[%s1135 + $0x38] sm:$0xff]
        %v1144 = vld [vmem:[%s1135 + $0x40] sm:$0xff]
        %v1145 = vld [vmem:[%s1135 + $0x48] sm:$0xff]
        %v1146 = vld [vmem:[%s1135 + $0x50] sm:$0xff]
        %v1147 = vld [vmem:[%s1135 + $0x58] sm:$0xff]
        %v1148 = vld [vmem:[%s1135 + $0x60] sm:$0xff]
        %v1149 = vld [vmem:[%s1135 + $0x68] sm:$0xff]
        %v1150 = vld [vmem:[%s1135 + $0x70] sm:$0xff]
        %v1151 = vld [vmem:[%s1135 + $0x78] sm:$0xff]
        %v1154 = vunpack.c.l.s4 1966171168
        %v1155 = vunpack.c.0.s8 %v1154
        %v1156 = vlaneseq
        %v1157 = vshrl.u32 %v1156, 7
        %v1158 = vsub.s32 %v1155, %v1157
        %v1159 = vrot.slane %v853, %v1158
        %v1161 = vunpack.c.l.s4 1966171168
        %v1162 = vunpack.c.0.s8 %v1161
        %v1163 = vlaneseq
        %v1164 = vshrl.u32 %v1163, 7
        %v1165 = vsub.s32 %v1162, %v1164
        %v1166 = vrot.slane %v1159, %v1165
        %v1168 = vshrl.u32 %v1166, 16
        %v1187 = vunpack.c.l.b16 %v1136
        %v1188 = vunpack.c.h.b16 %v1136
        %v1189 = vunpack.c.l.b16 %v1137
        %v1190 = vunpack.c.h.b16 %v1137
        %v1191 = vunpack.c.l.b16 %v1138
        %v1192 = vunpack.c.h.b16 %v1138
        %v1193 = vunpack.c.l.b16 %v1139
        %v1194 = vunpack.c.h.b16 %v1139
        %v1195 = vunpack.c.l.b16 %v1140
        %v1196 = vunpack.c.h.b16 %v1140
        %v1197 = vunpack.c.l.b16 %v1141
        %v1198 = vunpack.c.h.b16 %v1141
        %v1199 = vunpack.c.l.b16 %v1142
        %v1200 = vunpack.c.h.b16 %v1142
        %v1201 = vunpack.c.l.b16 %v1143
        %v1202 = vunpack.c.h.b16 %v1143
        %v1203 = vunpack.c.l.b16 %v1144
        %v1204 = vunpack.c.h.b16 %v1144
        %v1205 = vunpack.c.l.b16 %v1145
        %v1206 = vunpack.c.h.b16 %v1145
        %v1207 = vunpack.c.l.b16 %v1146
        %v1208 = vunpack.c.h.b16 %v1146
        %v1209 = vunpack.c.l.b16 %v1147
        %v1210 = vunpack.c.h.b16 %v1147
        %v1211 = vunpack.c.l.b16 %v1148
        %v1212 = vunpack.c.h.b16 %v1148
        %v1213 = vunpack.c.l.b16 %v1149
        %v1214 = vunpack.c.h.b16 %v1149
        %v1215 = vunpack.c.l.b16 %v1150
        %v1216 = vunpack.c.h.b16 %v1150
        %v1217 = vunpack.c.l.b16 %v1151
        %v1218 = vunpack.c.h.b16 %v1151
        %v1219 = vpack.c.b16 %v1189, %v1187
        %v1220 = vpack.c.b16 %v1190, %v1188
        %v1221 = vpack.c.b16 %v1193, %v1191
        %v1222 = vpack.c.b16 %v1194, %v1192
        %v1223 = vpack.c.b16 %v1197, %v1195
        %v1224 = vpack.c.b16 %v1198, %v1196
        %v1225 = vpack.c.b16 %v1201, %v1199
        %v1226 = vpack.c.b16 %v1202, %v1200
        %v1227 = vpack.c.b16 %v1205, %v1203
        %v1228 = vpack.c.b16 %v1206, %v1204
        %v1229 = vpack.c.b16 %v1209, %v1207
        %v1230 = vpack.c.b16 %v1210, %v1208
        %v1231 = vpack.c.b16 %v1213, %v1211
        %v1232 = vpack.c.b16 %v1214, %v1212
        %v1233 = vpack.c.b16 %v1217, %v1215
        %v1234 = vpack.c.b16 %v1218, %v1216
        %1251 = vmatprep.subr.bf16.mxu0 %v1220
        %1252 = vmatpush1.bf16.msra.mxu0 %v1219
        %1253 = vmatprep.subr.bf16.mxu0 %v1222
        %1254 = vmatpush1.bf16.msra.mxu0 %v1221
        %1255 = vmatprep.subr.bf16.mxu0 %v1224
        %1256 = vmatpush1.bf16.msra.mxu0 %v1223
        %1257 = vmatprep.subr.bf16.mxu0 %v1226
        %1258 = vmatpush1.bf16.msra.mxu0 %v1225
        %1259 = vmatprep.subr.bf16.mxu0 %v1228
        %1260 = vmatpush1.bf16.msra.mxu0 %v1227
        %1261 = vmatprep.subr.bf16.mxu0 %v1230
        %1262 = vmatpush1.bf16.msra.mxu0 %v1229
        %1263 = vmatprep.subr.bf16.mxu0 %v1232
        %1264 = vmatpush1.bf16.msra.mxu0 %v1231
        %1265 = vmatprep.subr.bf16.mxu0 %v1234
        %1266 = vmatpush1.bf16.msra.mxu0 %v1233
        %1267 = vmatprep.subr.bf16.mxu0 0
        %1268 = vmatpush1.bf16.msra.mxu0 0
        %1269 = vmatprep.subr.bf16.mxu0 0
        %1270 = vmatpush1.bf16.msra.mxu0 0
        %1271 = vmatprep.subr.bf16.mxu0 0
        %1272 = vmatpush1.bf16.msra.mxu0 0
        %1273 = vmatprep.subr.bf16.mxu0 0
        %1274 = vmatpush1.bf16.msra.mxu0 0
        %1275 = vmatprep.subr.bf16.mxu0 0
        %1276 = vmatpush1.bf16.msra.mxu0 0
        %1277 = vmatprep.subr.bf16.mxu0 0
        %1278 = vmatpush1.bf16.msra.mxu0 0
        %1279 = vmatprep.subr.bf16.mxu0 0
        %1280 = vmatpush1.bf16.msra.mxu0 0
        %1281 = vmatprep.subr.bf16.mxu0 0
        %1282 = vmatpush1.bf16.msra.mxu0 0
        %1283 = vmatprep.mubr.bf16.mxu0 0
        %1284 = vmatmul.mubr.bf16.gmra.mrb[0].mxu0 %v1168
        %v1285 = vpop.f32.mrb[0].mxu0
        %v1286 = vadd.f32 0.0, %v1285
        %v1287 = vpop.f32.mrb[0].mxu0
        %v1288 = vadd.f32 0.0, %v1287
        %v1289 = vpop.f32.mrb[0].mxu0
        %v1290 = vpop.f32.mrb[0].mxu0
        %1291 = vdwg.mxu0
        %v1292 = vadd.f32 %v1133, %v1286
        %v1293 = vadd.f32 %v1134, %v1288
        %s1294 = scalar_lea.vmem [#allocation10], 768
        %v1295 = vld [vmem:[%s1294] sm:$0xff]
        %v1296 = vld [vmem:[%s1294 + $0x8] sm:$0xff]
        %v1297 = vld [vmem:[%s1294 + $0x10] sm:$0xff]
        %v1298 = vld [vmem:[%s1294 + $0x18] sm:$0xff]
        %v1299 = vld [vmem:[%s1294 + $0x20] sm:$0xff]
        %v1300 = vld [vmem:[%s1294 + $0x28] sm:$0xff]
        %v1301 = vld [vmem:[%s1294 + $0x30] sm:$0xff]
        %v1302 = vld [vmem:[%s1294 + $0x38] sm:$0xff]
        %v1303 = vld [vmem:[%s1294 + $0x40] sm:$0xff]
        %v1304 = vld [vmem:[%s1294 + $0x48] sm:$0xff]
        %v1305 = vld [vmem:[%s1294 + $0x50] sm:$0xff]
        %v1306 = vld [vmem:[%s1294 + $0x58] sm:$0xff]
        %v1307 = vld [vmem:[%s1294 + $0x60] sm:$0xff]
        %v1308 = vld [vmem:[%s1294 + $0x68] sm:$0xff]
        %v1309 = vld [vmem:[%s1294 + $0x70] sm:$0xff]
        %v1310 = vld [vmem:[%s1294 + $0x78] sm:$0xff]
        %v1327 = vunpack.c.l.b16 %v1295
        %v1328 = vunpack.c.h.b16 %v1295
        %v1329 = vunpack.c.l.b16 %v1296
        %v1330 = vunpack.c.h.b16 %v1296
        %v1331 = vunpack.c.l.b16 %v1297
        %v1332 = vunpack.c.h.b16 %v1297
        %v1333 = vunpack.c.l.b16 %v1298
        %v1334 = vunpack.c.h.b16 %v1298
        %v1335 = vunpack.c.l.b16 %v1299
        %v1336 = vunpack.c.h.b16 %v1299
        %v1337 = vunpack.c.l.b16 %v1300
        %v1338 = vunpack.c.h.b16 %v1300
        %v1339 = vunpack.c.l.b16 %v1301
        %v1340 = vunpack.c.h.b16 %v1301
        %v1341 = vunpack.c.l.b16 %v1302
        %v1342 = vunpack.c.h.b16 %v1302
        %v1343 = vunpack.c.l.b16 %v1303
        %v1344 = vunpack.c.h.b16 %v1303
        %v1345 = vunpack.c.l.b16 %v1304
        %v1346 = vunpack.c.h.b16 %v1304
        %v1347 = vunpack.c.l.b16 %v1305
        %v1348 = vunpack.c.h.b16 %v1305
        %v1349 = vunpack.c.l.b16 %v1306
        %v1350 = vunpack.c.h.b16 %v1306
        %v1351 = vunpack.c.l.b16 %v1307
        %v1352 = vunpack.c.h.b16 %v1307
        %v1353 = vunpack.c.l.b16 %v1308
        %v1354 = vunpack.c.h.b16 %v1308
        %v1355 = vunpack.c.l.b16 %v1309
        %v1356 = vunpack.c.h.b16 %v1309
        %v1357 = vunpack.c.l.b16 %v1310
        %v1358 = vunpack.c.h.b16 %v1310
        %v1359 = vpack.c.b16 %v1329, %v1327
        %v1360 = vpack.c.b16 %v1330, %v1328
        %v1361 = vpack.c.b16 %v1333, %v1331
        %v1362 = vpack.c.b16 %v1334, %v1332
        %v1363 = vpack.c.b16 %v1337, %v1335
        %v1364 = vpack.c.b16 %v1338, %v1336
        %v1365 = vpack.c.b16 %v1341, %v1339
        %v1366 = vpack.c.b16 %v1342, %v1340
        %v1367 = vpack.c.b16 %v1345, %v1343
        %v1368 = vpack.c.b16 %v1346, %v1344
        %v1369 = vpack.c.b16 %v1349, %v1347
        %v1370 = vpack.c.b16 %v1350, %v1348
        %v1371 = vpack.c.b16 %v1353, %v1351
        %v1372 = vpack.c.b16 %v1354, %v1352
        %v1373 = vpack.c.b16 %v1357, %v1355
        %v1374 = vpack.c.b16 %v1358, %v1356
        %1391 = vmatprep.subr.bf16.mxu0 %v1360
        %1392 = vmatpush1.bf16.msra.mxu0 %v1359
        %1393 = vmatprep.subr.bf16.mxu0 %v1362
        %1394 = vmatpush1.bf16.msra.mxu0 %v1361
        %1395 = vmatprep.subr.bf16.mxu0 %v1364
        %1396 = vmatpush1.bf16.msra.mxu0 %v1363
        %1397 = vmatprep.subr.bf16.mxu0 %v1366
        %1398 = vmatpush1.bf16.msra.mxu0 %v1365
        %1399 = vmatprep.subr.bf16.mxu0 %v1368
        %1400 = vmatpush1.bf16.msra.mxu0 %v1367
        %1401 = vmatprep.subr.bf16.mxu0 %v1370
        %1402 = vmatpush1.bf16.msra.mxu0 %v1369
        %1403 = vmatprep.subr.bf16.mxu0 %v1372
        %1404 = vmatpush1.bf16.msra.mxu0 %v1371
        %1405 = vmatprep.subr.bf16.mxu0 %v1374
        %1406 = vmatpush1.bf16.msra.mxu0 %v1373
        %1407 = vmatprep.subr.bf16.mxu0 0
        %1408 = vmatpush1.bf16.msra.mxu0 0
        %1409 = vmatprep.subr.bf16.mxu0 0
        %1410 = vmatpush1.bf16.msra.mxu0 0
        %1411 = vmatprep.subr.bf16.mxu0 0
        %1412 = vmatpush1.bf16.msra.mxu0 0
        %1413 = vmatprep.subr.bf16.mxu0 0
        %1414 = vmatpush1.bf16.msra.mxu0 0
        %1415 = vmatprep.subr.bf16.mxu0 0
        %1416 = vmatpush1.bf16.msra.mxu0 0
        %1417 = vmatprep.subr.bf16.mxu0 0
        %1418 = vmatpush1.bf16.msra.mxu0 0
        %1419 = vmatprep.subr.bf16.mxu0 0
        %1420 = vmatpush1.bf16.msra.mxu0 0
        %1421 = vmatprep.subr.bf16.mxu0 0
        %1422 = vmatpush1.bf16.msra.mxu0 0
        %1423 = vmatprep.mubr.bf16.mxu0 0
        %1424 = vmatmul.mubr.bf16.gmra.mrb[0].mxu0 %v416
        %v1425 = vpop.f32.mrb[0].mxu0
        %v1426 = vadd.f32 0.0, %v1425
        %v1427 = vpop.f32.mrb[0].mxu0
        %v1428 = vadd.f32 0.0, %v1427
        %v1429 = vpop.f32.mrb[0].mxu0
        %v1430 = vpop.f32.mrb[0].mxu0
        %1431 = vdwg.mxu0
        %v1432 = vadd.f32 %v1292, %v1426
        %v1433 = vadd.f32 %v1293, %v1428
        %s1434 = scalar_lea.vmem [#allocation10], 896
        %v1435 = vld [vmem:[%s1434] sm:$0xff]
        %v1436 = vld [vmem:[%s1434 + $0x8] sm:$0xff]
        %v1437 = vld [vmem:[%s1434 + $0x10] sm:$0xff]
        %v1438 = vld [vmem:[%s1434 + $0x18] sm:$0xff]
        %v1439 = vld [vmem:[%s1434 + $0x20] sm:$0xff]
        %v1440 = vld [vmem:[%s1434 + $0x28] sm:$0xff]
        %v1441 = vld [vmem:[%s1434 + $0x30] sm:$0xff]
        %v1442 = vld [vmem:[%s1434 + $0x38] sm:$0xff]
        %v1443 = vld [vmem:[%s1434 + $0x40] sm:$0xff]
        %v1444 = vld [vmem:[%s1434 + $0x48] sm:$0xff]
        %v1445 = vld [vmem:[%s1434 + $0x50] sm:$0xff]
        %v1446 = vld [vmem:[%s1434 + $0x58] sm:$0xff]
        %v1447 = vld [vmem:[%s1434 + $0x60] sm:$0xff]
        %v1448 = vld [vmem:[%s1434 + $0x68] sm:$0xff]
        %v1449 = vld [vmem:[%s1434 + $0x70] sm:$0xff]
        %v1450 = vld [vmem:[%s1434 + $0x78] sm:$0xff]
        %v1467 = vunpack.c.l.b16 %v1435
        %v1468 = vunpack.c.h.b16 %v1435
        %v1469 = vunpack.c.l.b16 %v1436
        %v1470 = vunpack.c.h.b16 %v1436
        %v1471 = vunpack.c.l.b16 %v1437
        %v1472 = vunpack.c.h.b16 %v1437
        %v1473 = vunpack.c.l.b16 %v1438
        %v1474 = vunpack.c.h.b16 %v1438
        %v1475 = vunpack.c.l.b16 %v1439
        %v1476 = vunpack.c.h.b16 %v1439
        %v1477 = vunpack.c.l.b16 %v1440
        %v1478 = vunpack.c.h.b16 %v1440
        %v1479 = vunpack.c.l.b16 %v1441
        %v1480 = vunpack.c.h.b16 %v1441
        %v1481 = vunpack.c.l.b16 %v1442
        %v1482 = vunpack.c.h.b16 %v1442
        %v1483 = vunpack.c.l.b16 %v1443
        %v1484 = vunpack.c.h.b16 %v1443
        %v1485 = vunpack.c.l.b16 %v1444
        %v1486 = vunpack.c.h.b16 %v1444
        %v1487 = vunpack.c.l.b16 %v1445
        %v1488 = vunpack.c.h.b16 %v1445
        %v1489 = vunpack.c.l.b16 %v1446
        %v1490 = vunpack.c.h.b16 %v1446
        %v1491 = vunpack.c.l.b16 %v1447
        %v1492 = vunpack.c.h.b16 %v1447
        %v1493 = vunpack.c.l.b16 %v1448
        %v1494 = vunpack.c.h.b16 %v1448
        %v1495 = vunpack.c.l.b16 %v1449
        %v1496 = vunpack.c.h.b16 %v1449
        %v1497 = vunpack.c.l.b16 %v1450
        %v1498 = vunpack.c.h.b16 %v1450
        %v1499 = vpack.c.b16 %v1469, %v1467
        %v1500 = vpack.c.b16 %v1470, %v1468
        %v1501 = vpack.c.b16 %v1473, %v1471
        %v1502 = vpack.c.b16 %v1474, %v1472
        %v1503 = vpack.c.b16 %v1477, %v1475
        %v1504 = vpack.c.b16 %v1478, %v1476
        %v1505 = vpack.c.b16 %v1481, %v1479
        %v1506 = vpack.c.b16 %v1482, %v1480
        %v1507 = vpack.c.b16 %v1485, %v1483
        %v1508 = vpack.c.b16 %v1486, %v1484
        %v1509 = vpack.c.b16 %v1489, %v1487
        %v1510 = vpack.c.b16 %v1490, %v1488
        %v1511 = vpack.c.b16 %v1493, %v1491
        %v1512 = vpack.c.b16 %v1494, %v1492
        %v1513 = vpack.c.b16 %v1497, %v1495
        %v1514 = vpack.c.b16 %v1498, %v1496
        %1531 = vmatprep.subr.bf16.mxu0 %v1500
        %1532 = vmatpush1.bf16.msra.mxu0 %v1499
        %1533 = vmatprep.subr.bf16.mxu0 %v1502
        %1534 = vmatpush1.bf16.msra.mxu0 %v1501
        %1535 = vmatprep.subr.bf16.mxu0 %v1504
        %1536 = vmatpush1.bf16.msra.mxu0 %v1503
        %1537 = vmatprep.subr.bf16.mxu0 %v1506
        %1538 = vmatpush1.bf16.msra.mxu0 %v1505
        %1539 = vmatprep.subr.bf16.mxu0 %v1508
        %1540 = vmatpush1.bf16.msra.mxu0 %v1507
        %1541 = vmatprep.subr.bf16.mxu0 %v1510
        %1542 = vmatpush1.bf16.msra.mxu0 %v1509
        %1543 = vmatprep.subr.bf16.mxu0 %v1512
        %1544 = vmatpush1.bf16.msra.mxu0 %v1511
        %1545 = vmatprep.subr.bf16.mxu0 %v1514
        %1546 = vmatpush1.bf16.msra.mxu0 %v1513
        %1547 = vmatprep.subr.bf16.mxu0 0
        %1548 = vmatpush1.bf16.msra.mxu0 0
        %1549 = vmatprep.subr.bf16.mxu0 0
        %1550 = vmatpush1.bf16.msra.mxu0 0
        %1551 = vmatprep.subr.bf16.mxu0 0
        %1552 = vmatpush1.bf16.msra.mxu0 0
        %1553 = vmatprep.subr.bf16.mxu0 0
        %1554 = vmatpush1.bf16.msra.mxu0 0
        %1555 = vmatprep.subr.bf16.mxu0 0
        %1556 = vmatpush1.bf16.msra.mxu0 0
        %1557 = vmatprep.subr.bf16.mxu0 0
        %1558 = vmatpush1.bf16.msra.mxu0 0
        %1559 = vmatprep.subr.bf16.mxu0 0
        %1560 = vmatpush1.bf16.msra.mxu0 0
        %1561 = vmatprep.subr.bf16.mxu0 0
        %1562 = vmatpush1.bf16.msra.mxu0 0
        %1563 = vmatprep.mubr.bf16.mxu0 0
        %1564 = vmatmul.mubr.bf16.gmra.mrb[0].mxu0 %v434
        %v1565 = vpop.f32.mrb[0].mxu0
        %v1566 = vadd.f32 0.0, %v1565
        %v1567 = vpop.f32.mrb[0].mxu0
        %v1568 = vadd.f32 0.0, %v1567
        %v1569 = vpop.f32.mrb[0].mxu0
        %v1570 = vpop.f32.mrb[0].mxu0
        %1571 = vdwg.mxu0
        %v1572 = vadd.f32 %v1432, %v1566
        %v1573 = vadd.f32 %v1433, %v1568
        %s1574 = scalar_lea.vmem [#allocation10], 1024
        %v1575 = vld [vmem:[%s1574] sm:$0xff]
        %v1576 = vld [vmem:[%s1574 + $0x8] sm:$0xff]
        %v1577 = vld [vmem:[%s1574 + $0x10] sm:$0xff]
        %v1578 = vld [vmem:[%s1574 + $0x18] sm:$0xff]
        %v1579 = vld [vmem:[%s1574 + $0x20] sm:$0xff]
        %v1580 = vld [vmem:[%s1574 + $0x28] sm:$0xff]
        %v1581 = vld [vmem:[%s1574 + $0x30] sm:$0xff]
        %v1582 = vld [vmem:[%s1574 + $0x38] sm:$0xff]
        %v1583 = vld [vmem:[%s1574 + $0x40] sm:$0xff]
        %v1584 = vld [vmem:[%s1574 + $0x48] sm:$0xff]
        %v1585 = vld [vmem:[%s1574 + $0x50] sm:$0xff]
        %v1586 = vld [vmem:[%s1574 + $0x58] sm:$0xff]
        %v1587 = vld [vmem:[%s1574 + $0x60] sm:$0xff]
        %v1588 = vld [vmem:[%s1574 + $0x68] sm:$0xff]
        %v1589 = vld [vmem:[%s1574 + $0x70] sm:$0xff]
        %v1590 = vld [vmem:[%s1574 + $0x78] sm:$0xff]
        %v1593 = vunpack.c.l.s4 1966171168
        %v1594 = vunpack.c.0.s8 %v1593
        %v1595 = vlaneseq
        %v1596 = vshrl.u32 %v1595, 7
        %v1597 = vsub.s32 %v1594, %v1596
        %v1598 = vrot.slane %v416, %v1597
        %v1600 = vunpack.c.l.s4 1966171168
        %v1601 = vunpack.c.0.s8 %v1600
        %v1602 = vlaneseq
        %v1603 = vshrl.u32 %v1602, 7
        %v1604 = vsub.s32 %v1601, %v1603
        %v1605 = vrot.slane %v1598, %v1604
        %v1607 = vshrl.u32 %v1605, 16
        %v1626 = vunpack.c.l.b16 %v1575
        %v1627 = vunpack.c.h.b16 %v1575
        %v1628 = vunpack.c.l.b16 %v1576
        %v1629 = vunpack.c.h.b16 %v1576
        %v1630 = vunpack.c.l.b16 %v1577
        %v1631 = vunpack.c.h.b16 %v1577
        %v1632 = vunpack.c.l.b16 %v1578
        %v1633 = vunpack.c.h.b16 %v1578
        %v1634 = vunpack.c.l.b16 %v1579
        %v1635 = vunpack.c.h.b16 %v1579
        %v1636 = vunpack.c.l.b16 %v1580
        %v1637 = vunpack.c.h.b16 %v1580
        %v1638 = vunpack.c.l.b16 %v1581
        %v1639 = vunpack.c.h.b16 %v1581
        %v1640 = vunpack.c.l.b16 %v1582
        %v1641 = vunpack.c.h.b16 %v1582
        %v1642 = vunpack.c.l.b16 %v1583
        %v1643 = vunpack.c.h.b16 %v1583
        %v1644 = vunpack.c.l.b16 %v1584
        %v1645 = vunpack.c.h.b16 %v1584
        %v1646 = vunpack.c.l.b16 %v1585
        %v1647 = vunpack.c.h.b16 %v1585
        %v1648 = vunpack.c.l.b16 %v1586
        %v1649 = vunpack.c.h.b16 %v1586
        %v1650 = vunpack.c.l.b16 %v1587
        %v1651 = vunpack.c.h.b16 %v1587
        %v1652 = vunpack.c.l.b16 %v1588
        %v1653 = vunpack.c.h.b16 %v1588
        %v1654 = vunpack.c.l.b16 %v1589
        %v1655 = vunpack.c.h.b16 %v1589
        %v1656 = vunpack.c.l.b16 %v1590
        %v1657 = vunpack.c.h.b16 %v1590
        %v1658 = vpack.c.b16 %v1628, %v1626
        %v1659 = vpack.c.b16 %v1629, %v1627
        %v1660 = vpack.c.b16 %v1632, %v1630
        %v1661 = vpack.c.b16 %v1633, %v1631
        %v1662 = vpack.c.b16 %v1636, %v1634
        %v1663 = vpack.c.b16 %v1637, %v1635
        %v1664 = vpack.c.b16 %v1640, %v1638
        %v1665 = vpack.c.b16 %v1641, %v1639
        %v1666 = vpack.c.b16 %v1644, %v1642
        %v1667 = vpack.c.b16 %v1645, %v1643
        %v1668 = vpack.c.b16 %v1648, %v1646
        %v1669 = vpack.c.b16 %v1649, %v1647
        %v1670 = vpack.c.b16 %v1652, %v1650
        %v1671 = vpack.c.b16 %v1653, %v1651
        %v1672 = vpack.c.b16 %v1656, %v1654
        %v1673 = vpack.c.b16 %v1657, %v1655
        %1690 = vmatprep.subr.bf16.mxu0 %v1659
        %1691 = vmatpush1.bf16.msra.mxu0 %v1658
        %1692 = vmatprep.subr.bf16.mxu0 %v1661
        %1693 = vmatpush1.bf16.msra.mxu0 %v1660
        %1694 = vmatprep.subr.bf16.mxu0 %v1663
        %1695 = vmatpush1.bf16.msra.mxu0 %v1662
        %1696 = vmatprep.subr.bf16.mxu0 %v1665
        %1697 = vmatpush1.bf16.msra.mxu0 %v1664
        %1698 = vmatprep.subr.bf16.mxu0 %v1667
        %1699 = vmatpush1.bf16.msra.mxu0 %v1666
        %1700 = vmatprep.subr.bf16.mxu0 %v1669
        %1701 = vmatpush1.bf16.msra.mxu0 %v1668
        %1702 = vmatprep.subr.bf16.mxu0 %v1671
        %1703 = vmatpush1.bf16.msra.mxu0 %v1670
        %1704 = vmatprep.subr.bf16.mxu0 %v1673
        %1705 = vmatpush1.bf16.msra.mxu0 %v1672
        %1706 = vmatprep.subr.bf16.mxu0 0
        %1707 = vmatpush1.bf16.msra.mxu0 0
        %1708 = vmatprep.subr.bf16.mxu0 0
        %1709 = vmatpush1.bf16.msra.mxu0 0
        %1710 = vmatprep.subr.bf16.mxu0 0
        %1711 = vmatpush1.bf16.msra.mxu0 0
        %1712 = vmatprep.subr.bf16.mxu0 0
        %1713 = vmatpush1.bf16.msra.mxu0 0
        %1714 = vmatprep.subr.bf16.mxu0 0
        %1715 = vmatpush1.bf16.msra.mxu0 0
        %1716 = vmatprep.subr.bf16.mxu0 0
        %1717 = vmatpush1.bf16.msra.mxu0 0
        %1718 = vmatprep.subr.bf16.mxu0 0
        %1719 = vmatpush1.bf16.msra.mxu0 0
        %1720 = vmatprep.subr.bf16.mxu0 0
        %1721 = vmatpush1.bf16.msra.mxu0 0
        %1722 = vmatprep.mubr.bf16.mxu0 0
        %1723 = vmatmul.mubr.bf16.gmra.mrb[0].mxu0 %v1607
        %v1724 = vpop.f32.mrb[0].mxu0
        %v1725 = vadd.f32 0.0, %v1724
        %v1726 = vpop.f32.mrb[0].mxu0
        %v1727 = vadd.f32 0.0, %v1726
        %v1728 = vpop.f32.mrb[0].mxu0
        %v1729 = vpop.f32.mrb[0].mxu0
        %1730 = vdwg.mxu0
        %v1731 = vadd.f32 %v1572, %v1725
        %v1732 = vadd.f32 %v1573, %v1727
        %v1733 = vld [vmem:[#allocation11] sm:$0x3]
        %v1735 = vlaneseq
        %v1736 = vshrl.u32 %v1735, 7
        %v1737 = vsub.s32 0, %v1736
        %v1738 = vrot.slane %v1733, %v1737
        %v1739 = vlaneseq
        %v1740 = vshrl.u32 %v1739, 7
        %v1741 = vsub.s32 1, %v1740
        %v1742 = vrot.slane %v1733, %v1741
        %v1745 = vadd.f32 %v1731, %v1738
        %v1746 = vadd.f32 %v1732, %v1742
        %v1747 = vmax.f32 %v1745, 0.0
        %v1748 = vmax.f32 %v1746, 0.0
        %v1749 = vpack.c.bf16 %v1747, %v1747
        %v1750 = vpack.c.bf16 %v1748, %v1748
        %v1753 = vcombine.low %v1749, %v1750
        %v1755 = vunpack.c.l.s4 1966171168
        %v1756 = vunpack.c.0.s8 %v1755
        %v1757 = vlaneseq
        %v1758 = vshrl.u32 %v1757, 7
        %v1759 = vsub.s32 %v1756, %v1758
        %v1760 = vrot.slane %v1753, %v1759
        %v1762 = vunpack.c.l.s4 1966171168
        %v1763 = vunpack.c.0.s8 %v1762
        %v1764 = vlaneseq
        %v1765 = vshrl.u32 %v1764, 7
        %v1766 = vsub.s32 %v1763, %v1765
        %v1767 = vrot.slane %v1760, %v1766
        %vm1769 = vcmask 1040384
        %vm1770 = vsmask.f32 256
        %vm1771 = vmand %vm1769, %vm1770
        %vm1772 = vcmask 1041409
        %vm1773 = vsmask.f32 1280
        %vm1774 = vmand %vm1772, %vm1773
        %vm1775 = vmor %vm1774, %vm1771
        %v1776 = vld [vmem:[%s413] sm:$0x3]
        %v1777 = vsel %vm1775, %v1767, %v1776
        %1778 = vst [vmem:[%s413] sm:$0x3] %v1777
        %s1779 = sand.u32 %s184, 1
        %s1780 = scalar_lea.sflag [#allocation4], %s1779
        %s1781 = sand.u32 %s184, 1
        %s1782 = smul.addr %s1781, 2
        %s1783 = scalar_lea.vmem [#allocation13], %s1782
        // Predicated region
        $region69: #{encoder_forward.8} parent=43 // pred_check
          %p1784 = pneg %p194
        $region70: #{encoder_forward.8} parent=43 // pred_check_branch
          %1786 = sbr.rel (%p1784) target = $region72
        $region71: #{encoder_forward.8} parent=43 // pred_region
          %s1788 = ssub.s32 32, 32
          %1789 = vsyncadd %s1780, %s1788
          %s1790 = smul.addr %s30, 2
          %s1791 = smul.addr %s1790, 16
          %s1792 = scalar_lea.hbm %s6, %s1791
          %s1794 = sshll.u32 %s1783, 4
          %s1795 = int_to_ptr.vmem [resolvable:$true] %s1794
          %1797 = dma.vmem_to_hbm [thread:$0]  %s1795, 32, %s1792, %s1780
        $region72: #{encoder_forward.8} parent=43 // pred_fallthru
          _
      $region44: #{encoder_forward.8} parent=5 // pred_fallthru
        _
      %p1798 = scmp.le.s32.totalorder 2, %s25
      // Predicated region
      $region73: #{encoder_forward.8} parent=5 // pred_check
        %p1799 = pneg %p1798
      $region74: #{encoder_forward.8} parent=5 // pred_check_branch
        %1801 = sbr.rel (%p1799) target = $region76
      $region75: #{encoder_forward.8} parent=5 // pred_region
        %s1802 = ssub.s32 %s25, 2
        // Predicated region
        $region77: #{encoder_forward.8} parent=75 // pred_check
          %p1803 = pneg %p200
        $region78: #{encoder_forward.8} parent=75 // pred_check_branch
          %1805 = sbr.rel (%p1803) target = $region80
        $region79: #{encoder_forward.8} parent=75 // pred_region
          %s1806 = sand.u32 %s185, 1
          %s1807 = scalar_lea.sflag [#allocation4], %s1806
          %s1808 = sand.u32 %s185, 1
          %s1809 = smul.addr %s1808, 2
          %s1810 = scalar_lea.vmem [#allocation13], %s1809
          %1811 = dma.done %s1807, 32
        $region80: #{encoder_forward.8} parent=75 // pred_fallthru
          _
      $region76: #{encoder_forward.8} parent=5 // pred_fallthru
        _
    $region6: #{encoder_forward.8} parent=1 // loop_footer
      %s29 = sadd.s32 1, %s25
    $region7: #{encoder_forward.8} parent=1 // loop_footer_branch
      %24 = sbr.rel target = $region3
    $region8: #{encoder_forward.8} parent=1 // loop_exit
      _
    %1812 = vsyncpa [#allocation3], 1
    %s1813 = scalar_lea.sflag [#allocation3], 1
    %1814 = vsyncpa %s1813, 1
    %1815 = vsyncpa [#allocation6], 1
    %s1816 = scalar_lea.sflag [#allocation6], 1
    %1817 = vsyncpa %s1816, 1
    %1818 = vsyncpa [#allocation9], 1
    %s1819 = scalar_lea.sflag [#allocation9], 1
    %1820 = vsyncpa %s1819, 1
    %1821 = vsyncpa [#allocation12], 1
    %1822 = vsyncpa [#allocation4], 1
    %s1823 = scalar_lea.sflag [#allocation4], 1
    %1824 = vsyncpa %s1823, 1

// kernel: encoder_forward.9
$region0: #{encoder_forward.9}
  #allocation0 [shape = 'u32[]', space=smem, size = 0x4, offset = 0x4, fixed_abs, tag = 'smem constant byte address 0x4 - core index']
  #allocation1 [shape = 'u32[144,128]{1,0:T(1,128)}', space=vmem, size = 0x12000, scoped, tag = 'internal scratch']
  #allocation2 [shape = 'f32[8,1024]{1,0:T(8,128)}', space=vmem, size = 0x8000, scoped, tag = 'scratch operand']
  %s0 = inlined_call_operand.hbm [shape: bf16[8,256], index: 0, kind: input, shape index: {}]
  %s1 = inlined_call_operand.hbm [shape: bf16[256,1024], index: 1, kind: input, shape index: {}]
  %s2 = inlined_call_operand.hbm [shape: f32[1,1024], index: 2, kind: input, shape index: {}]
  %s3 = inlined_call_operand.hbm [shape: bf16[1024,32], index: 3, kind: input, shape index: {}]
  %s4 = inlined_call_operand.hbm [shape: f32[1,32], index: 4, kind: input, shape index: {}]
  %s5 = inlined_call_operand.hbm [shape: f32[8,32], index: 5, kind: output, shape index: {}]
  %s6 = sld [smem:[#allocation0]]
  $region58: #{encoder_forward.9} parent=0
    _
  %s8 = ssub.s32 1, %s6
  %s9 = scalar_select 0, %s8, %s6
  $region1: #{encoder_forward.9} parent=0
    #allocation3 [shape = 'u8[4096]{0}', space=vmem, size = 0x1000, scoped, tag = 'input window, operand 0, single buffered']
    #allocation4 [shape = 's32[1]{0}', space=sflag, size = 0x4, scoped, tag = 'scoped memory for encoder_forward.9']
    #allocation5 [shape = 's32[1]{0}', space=sflag, size = 0x4, scoped, tag = 'scoped memory for encoder_forward.9']
    #allocation6 [shape = 'u8[524288]{0}', space=vmem, size = 0x80000, scoped, tag = 'input window, operand 1, single buffered']
    #allocation7 [shape = 's32[1]{0}', space=sflag, size = 0x4, scoped, tag = 'scoped memory for encoder_forward.9']
    #allocation8 [shape = 'u8[4096]{0}', space=vmem, size = 0x1000, scoped, tag = 'input window, operand 2, single buffered']
    #allocation9 [shape = 'u8[262144]{0}', space=vmem, size = 0x40000, scoped, tag = 'input window, operand 3, single buffered']
    #allocation10 [shape = 's32[1]{0}', space=sflag, size = 0x4, scoped, tag = 'scoped memory for encoder_forward.9']
    #allocation11 [shape = 'u8[512]{0}', space=vmem, size = 0x400, scoped, tag = 'input window, operand 4, single buffered']
    #allocation12 [shape = 'u8[4096]{0}', space=vmem, size = 0x1000, scoped, tag = 'output window, operand 0, single buffered']
    %10 = vsyncpa [#allocation4], 0
    %11 = vsyncpa [#allocation7], 0
    %12 = vsyncpa [#allocation10], 0
    %13 = vsyncpa [#allocation5], 0
    // Predicated region
    $region2: #{encoder_forward.9} parent=1 // pred_check
      _
    $region3: #{encoder_forward.9} parent=1 // pred_check_branch
      %15 = sbr.rel (0) target = $region5
    $region4: #{encoder_forward.9} parent=1 // pred_region
      %s17 = ssub.s32 128, 128
      %18 = vsyncadd [#allocation4], %s17
      %s20 = sshll.u32 [#allocation3], 4
      %s21 = int_to_ptr.vmem [resolvable:$true] %s20
      %23 = dma.hbm_to_vmem [thread:$0]  %s0, 128, %s21, [#allocation4]
    $region5: #{encoder_forward.9} parent=1 // pred_fallthru
      _
    // Predicated region
    $region6: #{encoder_forward.9} parent=1 // pred_check
      _
    $region7: #{encoder_forward.9} parent=1 // pred_check_branch
      %25 = sbr.rel (0) target = $region9
    $region8: #{encoder_forward.9} parent=1 // pred_region
      %s27 = ssub.s32 16384, 16384
      %28 = vsyncadd [#allocation7], %s27
      %s29 = sshll.u32 [#allocation6], 4
      %s30 = int_to_ptr.vmem [resolvable:$true] %s29
      %35 = dma.hbm_to_vmem [thread:$0]  %s1, 16384, %s30, [#allocation7], 512, 512, 32
    $region9: #{encoder_forward.9} parent=1 // pred_fallthru
      _
    // Predicated region
    $region10: #{encoder_forward.9} parent=1 // pred_check
      _
    $region11: #{encoder_forward.9} parent=1 // pred_check_branch
      %37 = sbr.rel (0) target = $region13
    $region12: #{encoder_forward.9} parent=1 // pred_region
      %s39 = ssub.s32 128, 128
      %40 = vsyncadd [#allocation7], %s39
      %s42 = sshll.u32 [#allocation8], 4
      %s43 = int_to_ptr.vmem [resolvable:$true] %s42
      %45 = dma.hbm_to_vmem [thread:$0]  %s2, 128, %s43, [#allocation7]
    $region13: #{encoder_forward.9} parent=1 // pred_fallthru
      _
    // Predicated region
    $region14: #{encoder_forward.9} parent=1 // pred_check
      _
    $region15: #{encoder_forward.9} parent=1 // pred_check_branch
      %47 = sbr.rel (0) target = $region17
    $region16: #{encoder_forward.9} parent=1 // pred_region
      %s49 = ssub.s32 8192, 8192
      %50 = vsyncadd [#allocation10], %s49
      %s51 = sshll.u32 [#allocation9], 4
      %s52 = int_to_ptr.vmem [resolvable:$true] %s51
      %57 = dma.hbm_to_vmem [thread:$0]  %s3, 8192, %s52, [#allocation10], 64, 64, 4
    $region17: #{encoder_forward.9} parent=1 // pred_fallthru
      _
    // Predicated region
    $region18: #{encoder_forward.9} parent=1 // pred_check
      _
    $region19: #{encoder_forward.9} parent=1 // pred_check_branch
      %59 = sbr.rel (0) target = $region21
    $region20: #{encoder_forward.9} parent=1 // pred_region
      %s61 = ssub.s32 16, 16
      %62 = vsyncadd [#allocation10], %s61
      %s64 = sshll.u32 [#allocation11], 4
      %s65 = int_to_ptr.vmem [resolvable:$true] %s64
      %67 = dma.hbm_to_vmem [thread:$0]  %s4, 16, %s65, [#allocation10]
    $region21: #{encoder_forward.9} parent=1 // pred_fallthru
      _
    // Predicated region
    $region22: #{encoder_forward.9} parent=1 // pred_check
      _
    $region23: #{encoder_forward.9} parent=1 // pred_check_branch
      %69 = sbr.rel (0) target = $region25
    $region24: #{encoder_forward.9} parent=1 // pred_region
      %70 = dma.done [#allocation4], 128
    $region25: #{encoder_forward.9} parent=1 // pred_fallthru
      _
    // Predicated region
    $region26: #{encoder_forward.9} parent=1 // pred_check
      _
    $region27: #{encoder_forward.9} parent=1 // pred_check_branch
      %72 = sbr.rel (0) target = $region29
    $region28: #{encoder_forward.9} parent=1 // pred_region
      %73 = dma.done [#allocation7], 16384
    $region29: #{encoder_forward.9} parent=1 // pred_fallthru
      _
    // Predicated region
    $region30: #{encoder_forward.9} parent=1 // pred_check
      _
    $region31: #{encoder_forward.9} parent=1 // pred_check_branch
      %75 = sbr.rel (0) target = $region33
    $region32: #{encoder_forward.9} parent=1 // pred_region
      %76 = dma.done [#allocation7], 128
    $region33: #{encoder_forward.9} parent=1 // pred_fallthru
      _
    // Predicated region
    $region34: #{encoder_forward.9} parent=1 // pred_check
      _
    $region35: #{encoder_forward.9} parent=1 // pred_check_branch
      %78 = sbr.rel (0) target = $region37
    $region36: #{encoder_forward.9} parent=1 // pred_region
      %79 = dma.done [#allocation10], 8192
    $region37: #{encoder_forward.9} parent=1 // pred_fallthru
      _
    // Predicated region
    $region38: #{encoder_forward.9} parent=1 // pred_check
      _
    $region39: #{encoder_forward.9} parent=1 // pred_check_branch
      %81 = sbr.rel (0) target = $region41
    $region40: #{encoder_forward.9} parent=1 // pred_region
      %82 = dma.done [#allocation10], 16
    $region41: #{encoder_forward.9} parent=1 // pred_fallthru
      _
    %p84 = scmp.eq.s32.totalorder 0, 0
    // Predicated region
    $region42: #{encoder_forward.9} parent=1 // pred_check
      %p85 = pneg %p84
    $region43: #{encoder_forward.9} parent=1 // pred_check_branch
      %87 = sbr.rel (%p85) target = $region45
    $region44: #{encoder_forward.9} parent=1 // pred_region
      %88 = vst [vmem:[#allocation2] sm:$0xff] 0.0
      %89 = vst [vmem:[#allocation2 + $0x8] sm:$0xff] 0.0
      %90 = vst [vmem:[#allocation2 + $0x10] sm:$0xff] 0.0
      %91 = vst [vmem:[#allocation2 + $0x18] sm:$0xff] 0.0
      %92 = vst [vmem:[#allocation2 + $0x20] sm:$0xff] 0.0
      %93 = vst [vmem:[#allocation2 + $0x28] sm:$0xff] 0.0
      %94 = vst [vmem:[#allocation2 + $0x30] sm:$0xff] 0.0
      %95 = vst [vmem:[#allocation2 + $0x38] sm:$0xff] 0.0
    $region45: #{encoder_forward.9} parent=1 // pred_fallthru
      _
    %v96 = vld [vmem:[#allocation2] sm:$0xff]
    %v97 = vld [vmem:[#allocation2 + $0x8] sm:$0xff]
    %v98 = vld [vmem:[#allocation2 + $0x10] sm:$0xff]
    %v99 = vld [vmem:[#allocation2 + $0x18] sm:$0xff]
    %v100 = vld [vmem:[#allocation2 + $0x20] sm:$0xff]
    %v101 = vld [vmem:[#allocation2 + $0x28] sm:$0xff]
    %v102 = vld [vmem:[#allocation2 + $0x30] sm:$0xff]
    %v103 = vld [vmem:[#allocation2 + $0x38] sm:$0xff]
    %v104 = vld [vmem:[#allocation3] sm:$0xff]
    %v105 = vld [vmem:[#allocation6] sm:$0xff]
    %v106 = vld [vmem:[#allocation6 + $0x8] sm:$0xff]
    %v107 = vld [vmem:[#allocation6 + $0x10] sm:$0xff]
    %v108 = vld [vmem:[#allocation6 + $0x18] sm:$0xff]
    %v109 = vld [vmem:[#allocation6 + $0x20] sm:$0xff]
    %v110 = vld [vmem:[#allocation6 + $0x28] sm:$0xff]
    %v111 = vld [vmem:[#allocation6 + $0x30] sm:$0xff]
    %v112 = vld [vmem:[#allocation6 + $0x38] sm:$0xff]
    %v113 = vld [vmem:[#allocation6 + $0x40] sm:$0xff]
    %v114 = vld [vmem:[#allocation6 + $0x48] sm:$0xff]
    %v115 = vld [vmem:[#allocation6 + $0x50] sm:$0xff]
    %v116 = vld [vmem:[#allocation6 + $0x58] sm:$0xff]
    %v117 = vld [vmem:[#allocation6 + $0x60] sm:$0xff]
    %v118 = vld [vmem:[#allocation6 + $0x68] sm:$0xff]
    %v119 = vld [vmem:[#allocation6 + $0x70] sm:$0xff]
    %v120 = vld [vmem:[#allocation6 + $0x78] sm:$0xff]
    %v121 = vld [vmem:[#allocation6 + $0x80] sm:$0xff]
    %v122 = vld [vmem:[#allocation6 + $0x88] sm:$0xff]
    %v123 = vld [vmem:[#allocation6 + $0x90] sm:$0xff]
    %v124 = vld [vmem:[#allocation6 + $0x98] sm:$0xff]
    %v125 = vld [vmem:[#allocation6 + $0xa0] sm:$0xff]
    %v126 = vld [vmem:[#allocation6 + $0xa8] sm:$0xff]
    %v127 = vld [vmem:[#allocation6 + $0xb0] sm:$0xff]
    %v128 = vld [vmem:[#allocation6 + $0xb8] sm:$0xff]
    %v129 = vld [vmem:[#allocation6 + $0xc0] sm:$0xff]
    %v130 = vld [vmem:[#allocation6 + $0xc8] sm:$0xff]
    %v131 = vld [vmem:[#allocation6 + $0xd0] sm:$0xff]
    %v132 = vld [vmem:[#allocation6 + $0xd8] sm:$0xff]
    %v133 = vld [vmem:[#allocation6 + $0xe0] sm:$0xff]
    %v134 = vld [vmem:[#allocation6 + $0xe8] sm:$0xff]
    %v135 = vld [vmem:[#allocation6 + $0xf0] sm:$0xff]
    %v136 = vld [vmem:[#allocation6 + $0xf8] sm:$0xff]
    %v137 = vld [vmem:[#allocation6 + $0x100] sm:$0xff]
    %v138 = vld [vmem:[#allocation6 + $0x108] sm:$0xff]
    %v139 = vld [vmem:[#allocation6 + $0x110] sm:$0xff]
    %v140 = vld [vmem:[#allocation6 + $0x118] sm:$0xff]
    %v141 = vld [vmem:[#allocation6 + $0x120] sm:$0xff]
    %v142 = vld [vmem:[#allocation6 + $0x128] sm:$0xff]
    %v143 = vld [vmem:[#allocation6 + $0x130] sm:$0xff]
    %v144 = vld [vmem:[#allocation6 + $0x138] sm:$0xff]
    %v145 = vld [vmem:[#allocation6 + $0x140] sm:$0xff]
    %v146 = vld [vmem:[#allocation6 + $0x148] sm:$0xff]
    %v147 = vld [vmem:[#allocation6 + $0x150] sm:$0xff]
    %v148 = vld [vmem:[#allocation6 + $0x158] sm:$0xff]
    %v149 = vld [vmem:[#allocation6 + $0x160] sm:$0xff]
    %v150 = vld [vmem:[#allocation6 + $0x168] sm:$0xff]
    %v151 = vld [vmem:[#allocation6 + $0x170] sm:$0xff]
    %v152 = vld [vmem:[#allocation6 + $0x178] sm:$0xff]
    %v153 = vld [vmem:[#allocation6 + $0x180] sm:$0xff]
    %v154 = vld [vmem:[#allocation6 + $0x188] sm:$0xff]
    %v155 = vld [vmem:[#allocation6 + $0x190] sm:$0xff]
    %v156 = vld [vmem:[#allocation6 + $0x198] sm:$0xff]
    %v157 = vld [vmem:[#allocation6 + $0x1a0] sm:$0xff]
    %v158 = vld [vmem:[#allocation6 + $0x1a8] sm:$0xff]
    %v159 = vld [vmem:[#allocation6 + $0x1b0] sm:$0xff]
    %v160 = vld [vmem:[#allocation6 + $0x1b8] sm:$0xff]
    %v161 = vld [vmem:[#allocation6 + $0x1c0] sm:$0xff]
    %v162 = vld [vmem:[#allocation6 + $0x1c8] sm:$0xff]
    %v163 = vld [vmem:[#allocation6 + $0x1d0] sm:$0xff]
    %v164 = vld [vmem:[#allocation6 + $0x1d8] sm:$0xff]
    %v165 = vld [vmem:[#allocation6 + $0x1e0] sm:$0xff]
    %v166 = vld [vmem:[#allocation6 + $0x1e8] sm:$0xff]
    %v167 = vld [vmem:[#allocation6 + $0x1f0] sm:$0xff]
    %v168 = vld [vmem:[#allocation6 + $0x1f8] sm:$0xff]
    %v169 = vld [vmem:[#allocation6 + $0x200] sm:$0xff]
    %v170 = vld [vmem:[#allocation6 + $0x208] sm:$0xff]
    %v171 = vld [vmem:[#allocation6 + $0x210] sm:$0xff]
    %v172 = vld [vmem:[#allocation6 + $0x218] sm:$0xff]
    %v173 = vld [vmem:[#allocation6 + $0x220] sm:$0xff]
    %v174 = vld [vmem:[#allocation6 + $0x228] sm:$0xff]
    %v175 = vld [vmem:[#allocation6 + $0x230] sm:$0xff]
    %v176 = vld [vmem:[#allocation6 + $0x238] sm:$0xff]
    %v177 = vld [vmem:[#allocation6 + $0x240] sm:$0xff]
    %v178 = vld [vmem:[#allocation6 + $0x248] sm:$0xff]
    %v179 = vld [vmem:[#allocation6 + $0x250] sm:$0xff]
    %v180 = vld [vmem:[#allocation6 + $0x258] sm:$0xff]
    %v181 = vld [vmem:[#allocation6 + $0x260] sm:$0xff]
    %v182 = vld [vmem:[#allocation6 + $0x268] sm:$0xff]
    %v183 = vld [vmem:[#allocation6 + $0x270] sm:$0xff]
    %v184 = vld [vmem:[#allocation6 + $0x278] sm:$0xff]
    %v185 = vld [vmem:[#allocation6 + $0x280] sm:$0xff]
    %v186 = vld [vmem:[#allocation6 + $0x288] sm:$0xff]
    %v187 = vld [vmem:[#allocation6 + $0x290] sm:$0xff]
    %v188 = vld [vmem:[#allocation6 + $0x298] sm:$0xff]
    %v189 = vld [vmem:[#allocation6 + $0x2a0] sm:$0xff]
    %v190 = vld [vmem:[#allocation6 + $0x2a8] sm:$0xff]
    %v191 = vld [vmem:[#allocation6 + $0x2b0] sm:$0xff]
    %v192 = vld [vmem:[#allocation6 + $0x2b8] sm:$0xff]
    %v193 = vld [vmem:[#allocation6 + $0x2c0] sm:$0xff]
    %v194 = vld [vmem:[#allocation6 + $0x2c8] sm:$0xff]
    %v195 = vld [vmem:[#allocation6 + $0x2d0] sm:$0xff]
    %v196 = vld [vmem:[#allocation6 + $0x2d8] sm:$0xff]
    %v197 = vld [vmem:[#allocation6 + $0x2e0] sm:$0xff]
    %v198 = vld [vmem:[#allocation6 + $0x2e8] sm:$0xff]
    %v199 = vld [vmem:[#allocation6 + $0x2f0] sm:$0xff]
    %v200 = vld [vmem:[#allocation6 + $0x2f8] sm:$0xff]
    %v201 = vld [vmem:[#allocation6 + $0x300] sm:$0xff]
    %v202 = vld [vmem:[#allocation6 + $0x308] sm:$0xff]
    %v203 = vld [vmem:[#allocation6 + $0x310] sm:$0xff]
    %v204 = vld [vmem:[#allocation6 + $0x318] sm:$0xff]
    %v205 = vld [vmem:[#allocation6 + $0x320] sm:$0xff]
    %v206 = vld [vmem:[#allocation6 + $0x328] sm:$0xff]
    %v207 = vld [vmem:[#allocation6 + $0x330] sm:$0xff]
    %v208 = vld [vmem:[#allocation6 + $0x338] sm:$0xff]
    %v209 = vld [vmem:[#allocation6 + $0x340] sm:$0xff]
    %v210 = vld [vmem:[#allocation6 + $0x348] sm:$0xff]
    %v211 = vld [vmem:[#allocation6 + $0x350] sm:$0xff]
    %v212 = vld [vmem:[#allocation6 + $0x358] sm:$0xff]
    %v213 = vld [vmem:[#allocation6 + $0x360] sm:$0xff]
    %v214 = vld [vmem:[#allocation6 + $0x368] sm:$0xff]
    %v215 = vld [vmem:[#allocation6 + $0x370] sm:$0xff]
    %v216 = vld [vmem:[#allocation6 + $0x378] sm:$0xff]
    %v217 = vld [vmem:[#allocation6 + $0x380] sm:$0xff]
    %v218 = vld [vmem:[#allocation6 + $0x388] sm:$0xff]
    %v219 = vld [vmem:[#allocation6 + $0x390] sm:$0xff]
    %v220 = vld [vmem:[#allocation6 + $0x398] sm:$0xff]
    %v221 = vld [vmem:[#allocation6 + $0x3a0] sm:$0xff]
    %v222 = vld [vmem:[#allocation6 + $0x3a8] sm:$0xff]
    %v223 = vld [vmem:[#allocation6 + $0x3b0] sm:$0xff]
    %v224 = vld [vmem:[#allocation6 + $0x3b8] sm:$0xff]
    %v225 = vld [vmem:[#allocation6 + $0x3c0] sm:$0xff]
    %v226 = vld [vmem:[#allocation6 + $0x3c8] sm:$0xff]
    %v227 = vld [vmem:[#allocation6 + $0x3d0] sm:$0xff]
    %v228 = vld [vmem:[#allocation6 + $0x3d8] sm:$0xff]
    %v229 = vld [vmem:[#allocation6 + $0x3e0] sm:$0xff]
    %v230 = vld [vmem:[#allocation6 + $0x3e8] sm:$0xff]
    %v231 = vld [vmem:[#allocation6 + $0x3f0] sm:$0xff]
    %v232 = vld [vmem:[#allocation6 + $0x3f8] sm:$0xff]
    %v234 = vunpack.c.l.b16 %v104
    %v235 = vunpack.c.h.b16 %v104
    %v236 = vpack.c.b16 %v234, %v234
    %v237 = vpack.c.b16 %v235, %v235
    %v368 = vunpack.c.l.b16 %v105
    %v369 = vunpack.c.h.b16 %v105
    %v370 = vunpack.c.l.b16 %v106
    %v371 = vunpack.c.h.b16 %v106
    %v372 = vunpack.c.l.b16 %v107
    %v373 = vunpack.c.h.b16 %v107
    %v374 = vunpack.c.l.b16 %v108
    %v375 = vunpack.c.h.b16 %v108
    %v376 = vunpack.c.l.b16 %v109
    %v377 = vunpack.c.h.b16 %v109
    %v378 = vunpack.c.l.b16 %v110
    %v379 = vunpack.c.h.b16 %v110
    %v380 = vunpack.c.l.b16 %v111
    %v381 = vunpack.c.h.b16 %v111
    %v382 = vunpack.c.l.b16 %v112
    %v383 = vunpack.c.h.b16 %v112
    %v384 = vunpack.c.l.b16 %v113
    %v385 = vunpack.c.h.b16 %v113
    %v386 = vunpack.c.l.b16 %v114
    %v387 = vunpack.c.h.b16 %v114
    %v388 = vunpack.c.l.b16 %v115
    %v389 = vunpack.c.h.b16 %v115
    %v390 = vunpack.c.l.b16 %v116
    %v391 = vunpack.c.h.b16 %v116
    %v392 = vunpack.c.l.b16 %v117
    %v393 = vunpack.c.h.b16 %v117
    %v394 = vunpack.c.l.b16 %v118
    %v395 = vunpack.c.h.b16 %v118
    %v396 = vunpack.c.l.b16 %v119
    %v397 = vunpack.c.h.b16 %v119
    %v398 = vunpack.c.l.b16 %v120
    %v399 = vunpack.c.h.b16 %v120
    %v400 = vunpack.c.l.b16 %v121
    %v401 = vunpack.c.h.b16 %v121
    %v402 = vunpack.c.l.b16 %v122
    %v403 = vunpack.c.h.b16 %v122
    %v404 = vunpack.c.l.b16 %v123
    %v405 = vunpack.c.h.b16 %v123
    %v406 = vunpack.c.l.b16 %v124
    %v407 = vunpack.c.h.b16 %v124
    %v408 = vunpack.c.l.b16 %v125
    %v409 = vunpack.c.h.b16 %v125
    %v410 = vunpack.c.l.b16 %v126
    %v411 = vunpack.c.h.b16 %v126
    %v412 = vunpack.c.l.b16 %v127
    %v413 = vunpack.c.h.b16 %v127
    %v414 = vunpack.c.l.b16 %v128
    %v415 = vunpack.c.h.b16 %v128
    %v416 = vunpack.c.l.b16 %v129
    %v417 = vunpack.c.h.b16 %v129
    %v418 = vunpack.c.l.b16 %v130
    %v419 = vunpack.c.h.b16 %v130
    %v420 = vunpack.c.l.b16 %v131
    %v421 = vunpack.c.h.b16 %v131
    %v422 = vunpack.c.l.b16 %v132
    %v423 = vunpack.c.h.b16 %v132
    %v424 = vunpack.c.l.b16 %v133
    %v425 = vunpack.c.h.b16 %v133
    %v426 = vunpack.c.l.b16 %v134
    %v427 = vunpack.c.h.b16 %v134
    %v428 = vunpack.c.l.b16 %v135
    %v429 = vunpack.c.h.b16 %v135
    %v430 = vunpack.c.l.b16 %v136
    %v431 = vunpack.c.h.b16 %v136
    %v432 = vunpack.c.l.b16 %v137
    %v433 = vunpack.c.h.b16 %v137
    %v434 = vunpack.c.l.b16 %v138
    %v435 = vunpack.c.h.b16 %v138
    %v436 = vunpack.c.l.b16 %v139
    %v437 = vunpack.c.h.b16 %v139
    %v438 = vunpack.c.l.b16 %v140
    %v439 = vunpack.c.h.b16 %v140
    %v440 = vunpack.c.l.b16 %v141
    %v441 = vunpack.c.h.b16 %v141
    %v442 = vunpack.c.l.b16 %v142
    %v443 = vunpack.c.h.b16 %v142
    %v444 = vunpack.c.l.b16 %v143
    %v445 = vunpack.c.h.b16 %v143
    %v446 = vunpack.c.l.b16 %v144
    %v447 = vunpack.c.h.b16 %v144
    %v448 = vunpack.c.l.b16 %v145
    %v449 = vunpack.c.h.b16 %v145
    %v450 = vunpack.c.l.b16 %v146
    %v451 = vunpack.c.h.b16 %v146
    %v452 = vunpack.c.l.b16 %v147
    %v453 = vunpack.c.h.b16 %v147
    %v454 = vunpack.c.l.b16 %v148
    %v455 = vunpack.c.h.b16 %v148
    %v456 = vunpack.c.l.b16 %v149
    %v457 = vunpack.c.h.b16 %v149
    %v458 = vunpack.c.l.b16 %v150
    %v459 = vunpack.c.h.b16 %v150
    %v460 = vunpack.c.l.b16 %v151
    %v461 = vunpack.c.h.b16 %v151
    %v462 = vunpack.c.l.b16 %v152
    %v463 = vunpack.c.h.b16 %v152
    %v464 = vunpack.c.l.b16 %v153
    %v465 = vunpack.c.h.b16 %v153
    %v466 = vunpack.c.l.b16 %v154
    %v467 = vunpack.c.h.b16 %v154
    %v468 = vunpack.c.l.b16 %v155
    %v469 = vunpack.c.h.b16 %v155
    %v470 = vunpack.c.l.b16 %v156
    %v471 = vunpack.c.h.b16 %v156
    %v472 = vunpack.c.l.b16 %v157
    %v473 = vunpack.c.h.b16 %v157
    %v474 = vunpack.c.l.b16 %v158
    %v475 = vunpack.c.h.b16 %v158
    %v476 = vunpack.c.l.b16 %v159
    %v477 = vunpack.c.h.b16 %v159
    %v478 = vunpack.c.l.b16 %v160
    %v479 = vunpack.c.h.b16 %v160
    %v480 = vunpack.c.l.b16 %v161
    %v481 = vunpack.c.h.b16 %v161
    %v482 = vunpack.c.l.b16 %v162
    %v483 = vunpack.c.h.b16 %v162
    %v484 = vunpack.c.l.b16 %v163
    %v485 = vunpack.c.h.b16 %v163
    %v486 = vunpack.c.l.b16 %v164
    %v487 = vunpack.c.h.b16 %v164
    %v488 = vunpack.c.l.b16 %v165
    %v489 = vunpack.c.h.b16 %v165
    %v490 = vunpack.c.l.b16 %v166
    %v491 = vunpack.c.h.b16 %v166
    %v492 = vunpack.c.l.b16 %v167
    %v493 = vunpack.c.h.b16 %v167
    %v494 = vunpack.c.l.b16 %v168
    %v495 = vunpack.c.h.b16 %v168
    %v496 = vunpack.c.l.b16 %v169
    %v497 = vunpack.c.h.b16 %v169
    %v498 = vunpack.c.l.b16 %v170
    %v499 = vunpack.c.h.b16 %v170
    %v500 = vunpack.c.l.b16 %v171
    %v501 = vunpack.c.h.b16 %v171
    %v502 = vunpack.c.l.b16 %v172
    %v503 = vunpack.c.h.b16 %v172
    %v504 = vunpack.c.l.b16 %v173
    %v505 = vunpack.c.h.b16 %v173
    %v506 = vunpack.c.l.b16 %v174
    %v507 = vunpack.c.h.b16 %v174
    %v508 = vunpack.c.l.b16 %v175
    %v509 = vunpack.c.h.b16 %v175
    %v510 = vunpack.c.l.b16 %v176
    %v511 = vunpack.c.h.b16 %v176
    %v512 = vunpack.c.l.b16 %v177
    %v513 = vunpack.c.h.b16 %v177
    %v514 = vunpack.c.l.b16 %v178
    %v515 = vunpack.c.h.b16 %v178
    %v516 = vunpack.c.l.b16 %v179
    %v517 = vunpack.c.h.b16 %v179
    %v518 = vunpack.c.l.b16 %v180
    %v519 = vunpack.c.h.b16 %v180
    %v520 = vunpack.c.l.b16 %v181
    %v521 = vunpack.c.h.b16 %v181
    %v522 = vunpack.c.l.b16 %v182
    %v523 = vunpack.c.h.b16 %v182
    %v524 = vunpack.c.l.b16 %v183
    %v525 = vunpack.c.h.b16 %v183
    %v526 = vunpack.c.l.b16 %v184
    %v527 = vunpack.c.h.b16 %v184
    %v528 = vunpack.c.l.b16 %v185
    %v529 = vunpack.c.h.b16 %v185
    %v530 = vunpack.c.l.b16 %v186
    %v531 = vunpack.c.h.b16 %v186
    %v532 = vunpack.c.l.b16 %v187
    %v533 = vunpack.c.h.b16 %v187
    %v534 = vunpack.c.l.b16 %v188
    %v535 = vunpack.c.h.b16 %v188
    %v536 = vunpack.c.l.b16 %v189
    %v537 = vunpack.c.h.b16 %v189
    %v538 = vunpack.c.l.b16 %v190
    %v539 = vunpack.c.h.b16 %v190
    %v540 = vunpack.c.l.b16 %v191
    %v541 = vunpack.c.h.b16 %v191
    %v542 = vunpack.c.l.b16 %v192
    %v543 = vunpack.c.h.b16 %v192
    %v544 = vunpack.c.l.b16 %v193
    %v545 = vunpack.c.h.b16 %v193
    %v546 = vunpack.c.l.b16 %v194
    %v547 = vunpack.c.h.b16 %v194
    %v548 = vunpack.c.l.b16 %v195
    %v549 = vunpack.c.h.b16 %v195
    %v550 = vunpack.c.l.b16 %v196
    %v551 = vunpack.c.h.b16 %v196
    %v552 = vunpack.c.l.b16 %v197
    %v553 = vunpack.c.h.b16 %v197
    %v554 = vunpack.c.l.b16 %v198
    %v555 = vunpack.c.h.b16 %v198
    %v556 = vunpack.c.l.b16 %v199
    %v557 = vunpack.c.h.b16 %v199
    %v558 = vunpack.c.l.b16 %v200
    %v559 = vunpack.c.h.b16 %v200
    %v560 = vunpack.c.l.b16 %v201
    %v561 = vunpack.c.h.b16 %v201
    %v562 = vunpack.c.l.b16 %v202
    %v563 = vunpack.c.h.b16 %v202
    %v564 = vunpack.c.l.b16 %v203
    %v565 = vunpack.c.h.b16 %v203
    %v566 = vunpack.c.l.b16 %v204
    %v567 = vunpack.c.h.b16 %v204
    %v568 = vunpack.c.l.b16 %v205
    %v569 = vunpack.c.h.b16 %v205
    %v570 = vunpack.c.l.b16 %v206
    %v571 = vunpack.c.h.b16 %v206
    %v572 = vunpack.c.l.b16 %v207
    %v573 = vunpack.c.h.b16 %v207
    %v574 = vunpack.c.l.b16 %v208
    %v575 = vunpack.c.h.b16 %v208
    %v576 = vunpack.c.l.b16 %v209
    %v577 = vunpack.c.h.b16 %v209
    %v578 = vunpack.c.l.b16 %v210
    %v579 = vunpack.c.h.b16 %v210
    %v580 = vunpack.c.l.b16 %v211
    %v581 = vunpack.c.h.b16 %v211
    %v582 = vunpack.c.l.b16 %v212
    %v583 = vunpack.c.h.b16 %v212
    %v584 = vunpack.c.l.b16 %v213
    %v585 = vunpack.c.h.b16 %v213
    %v586 = vunpack.c.l.b16 %v214
    %v587 = vunpack.c.h.b16 %v214
    %v588 = vunpack.c.l.b16 %v215
    %v589 = vunpack.c.h.b16 %v215
    %v590 = vunpack.c.l.b16 %v216
    %v591 = vunpack.c.h.b16 %v216
    %v592 = vunpack.c.l.b16 %v217
    %v593 = vunpack.c.h.b16 %v217
    %v594 = vunpack.c.l.b16 %v218
    %v595 = vunpack.c.h.b16 %v218
    %v596 = vunpack.c.l.b16 %v219
    %v597 = vunpack.c.h.b16 %v219
    %v598 = vunpack.c.l.b16 %v220
    %v599 = vunpack.c.h.b16 %v220
    %v600 = vunpack.c.l.b16 %v221
    %v601 = vunpack.c.h.b16 %v221
    %v602 = vunpack.c.l.b16 %v222
    %v603 = vunpack.c.h.b16 %v222
    %v604 = vunpack.c.l.b16 %v223
    %v605 = vunpack.c.h.b16 %v223
    %v606 = vunpack.c.l.b16 %v224
    %v607 = vunpack.c.h.b16 %v224
    %v608 = vunpack.c.l.b16 %v225
    %v609 = vunpack.c.h.b16 %v225
    %v610 = vunpack.c.l.b16 %v226
    %v611 = vunpack.c.h.b16 %v226
    %v612 = vunpack.c.l.b16 %v227
    %v613 = vunpack.c.h.b16 %v227
    %v614 = vunpack.c.l.b16 %v228
    %v615 = vunpack.c.h.b16 %v228
    %v616 = vunpack.c.l.b16 %v229
    %v617 = vunpack.c.h.b16 %v229
    %v618 = vunpack.c.l.b16 %v230
    %v619 = vunpack.c.h.b16 %v230
    %v620 = vunpack.c.l.b16 %v231
    %v621 = vunpack.c.h.b16 %v231
    %v622 = vunpack.c.l.b16 %v232
    %v623 = vunpack.c.h.b16 %v232
    %v624 = vpack.c.b16 %v376, %v368
    %v625 = vpack.c.b16 %v377, %v369
    %v626 = vpack.c.b16 %v378, %v370
    %v627 = vpack.c.b16 %v379, %v371
    %v628 = vpack.c.b16 %v380, %v372
    %v629 = vpack.c.b16 %v381, %v373
    %v630 = vpack.c.b16 %v382, %v374
    %v631 = vpack.c.b16 %v383, %v375
    %v632 = vpack.c.b16 %v392, %v384
    %v633 = vpack.c.b16 %v393, %v385
    %v634 = vpack.c.b16 %v394, %v386
    %v635 = vpack.c.b16 %v395, %v387
    %v636 = vpack.c.b16 %v396, %v388
    %v637 = vpack.c.b16 %v397, %v389
    %v638 = vpack.c.b16 %v398, %v390
    %v639 = vpack.c.b16 %v399, %v391
    %v640 = vpack.c.b16 %v408, %v400
    %v641 = vpack.c.b16 %v409, %v401
    %v642 = vpack.c.b16 %v410, %v402
    %v643 = vpack.c.b16 %v411, %v403
    %v644 = vpack.c.b16 %v412, %v404
    %v645 = vpack.c.b16 %v413, %v405
    %v646 = vpack.c.b16 %v414, %v406
    %v647 = vpack.c.b16 %v415, %v407
    %v648 = vpack.c.b16 %v424, %v416
    %v649 = vpack.c.b16 %v425, %v417
    %v650 = vpack.c.b16 %v426, %v418
    %v651 = vpack.c.b16 %v427, %v419
    %v652 = vpack.c.b16 %v428, %v420
    %v653 = vpack.c.b16 %v429, %v421
    %v654 = vpack.c.b16 %v430, %v422
    %v655 = vpack.c.b16 %v431, %v423
    %v656 = vpack.c.b16 %v440, %v432
    %v657 = vpack.c.b16 %v441, %v433
    %v658 = vpack.c.b16 %v442, %v434
    %v659 = vpack.c.b16 %v443, %v435
    %v660 = vpack.c.b16 %v444, %v436
    %v661 = vpack.c.b16 %v445, %v437
    %v662 = vpack.c.b16 %v446, %v438
    %v663 = vpack.c.b16 %v447, %v439
    %v664 = vpack.c.b16 %v456, %v448
    %v665 = vpack.c.b16 %v457, %v449
    %v666 = vpack.c.b16 %v458, %v450
    %v667 = vpack.c.b16 %v459, %v451
    %v668 = vpack.c.b16 %v460, %v452
    %v669 = vpack.c.b16 %v461, %v453
    %v670 = vpack.c.b16 %v462, %v454
    %v671 = vpack.c.b16 %v463, %v455
    %v672 = vpack.c.b16 %v472, %v464
    %v673 = vpack.c.b16 %v473, %v465
    %v674 = vpack.c.b16 %v474, %v466
    %v675 = vpack.c.b16 %v475, %v467
    %v676 = vpack.c.b16 %v476, %v468
    %v677 = vpack.c.b16 %v477, %v469
    %v678 = vpack.c.b16 %v478, %v470
    %v679 = vpack.c.b16 %v479, %v471
    %v680 = vpack.c.b16 %v488, %v480
    %v681 = vpack.c.b16 %v489, %v481
    %v682 = vpack.c.b16 %v490, %v482
    %v683 = vpack.c.b16 %v491, %v483
    %v684 = vpack.c.b16 %v492, %v484
    %v685 = vpack.c.b16 %v493, %v485
    %v686 = vpack.c.b16 %v494, %v486
    %v687 = vpack.c.b16 %v495, %v487
    %v688 = vpack.c.b16 %v504, %v496
    %v689 = vpack.c.b16 %v505, %v497
    %v690 = vpack.c.b16 %v506, %v498
    %v691 = vpack.c.b16 %v507, %v499
    %v692 = vpack.c.b16 %v508, %v500
    %v693 = vpack.c.b16 %v509, %v501
    %v694 = vpack.c.b16 %v510, %v502
    %v695 = vpack.c.b16 %v511, %v503
    %v696 = vpack.c.b16 %v520, %v512
    %v697 = vpack.c.b16 %v521, %v513
    %v698 = vpack.c.b16 %v522, %v514
    %v699 = vpack.c.b16 %v523, %v515
    %v700 = vpack.c.b16 %v524, %v516
    %v701 = vpack.c.b16 %v525, %v517
    %v702 = vpack.c.b16 %v526, %v518
    %v703 = vpack.c.b16 %v527, %v519
    %v704 = vpack.c.b16 %v536, %v528
    %v705 = vpack.c.b16 %v537, %v529
    %v706 = vpack.c.b16 %v538, %v530
    %v707 = vpack.c.b16 %v539, %v531
    %v708 = vpack.c.b16 %v540, %v532
    %v709 = vpack.c.b16 %v541, %v533
    %v710 = vpack.c.b16 %v542, %v534
    %v711 = vpack.c.b16 %v543, %v535
    %v712 = vpack.c.b16 %v552, %v544
    %v713 = vpack.c.b16 %v553, %v545
    %v714 = vpack.c.b16 %v554, %v546
    %v715 = vpack.c.b16 %v555, %v547
    %v716 = vpack.c.b16 %v556, %v548
    %v717 = vpack.c.b16 %v557, %v549
    %v718 = vpack.c.b16 %v558, %v550
    %v719 = vpack.c.b16 %v559, %v551
    %v720 = vpack.c.b16 %v568, %v560
    %v721 = vpack.c.b16 %v569, %v561
    %v722 = vpack.c.b16 %v570, %v562
    %v723 = vpack.c.b16 %v571, %v563
    %v724 = vpack.c.b16 %v572, %v564
    %v725 = vpack.c.b16 %v573, %v565
    %v726 = vpack.c.b16 %v574, %v566
    %v727 = vpack.c.b16 %v575, %v567
    %v728 = vpack.c.b16 %v584, %v576
    %v729 = vpack.c.b16 %v585, %v577
    %v730 = vpack.c.b16 %v586, %v578
    %v731 = vpack.c.b16 %v587, %v579
    %v732 = vpack.c.b16 %v588, %v580
    %v733 = vpack.c.b16 %v589, %v581
    %v734 = vpack.c.b16 %v590, %v582
    %v735 = vpack.c.b16 %v591, %v583
    %v736 = vpack.c.b16 %v600, %v592
    %v737 = vpack.c.b16 %v601, %v593
    %v738 = vpack.c.b16 %v602, %v594
    %v739 = vpack.c.b16 %v603, %v595
    %v740 = vpack.c.b16 %v604, %v596
    %v741 = vpack.c.b16 %v605, %v597
    %v742 = vpack.c.b16 %v606, %v598
    %v743 = vpack.c.b16 %v607, %v599
    %v744 = vpack.c.b16 %v616, %v608
    %v745 = vpack.c.b16 %v617, %v609
    %v746 = vpack.c.b16 %v618, %v610
    %v747 = vpack.c.b16 %v619, %v611
    %v748 = vpack.c.b16 %v620, %v612
    %v749 = vpack.c.b16 %v621, %v613
    %v750 = vpack.c.b16 %v622, %v614
    %v751 = vpack.c.b16 %v623, %v615
    %880 = vmatprep.subr.bf16.mxu0 %v625
    %881 = vmatpush1.bf16.msra.mxu0 %v624
    %882 = vmatprep.subr.bf16.mxu0 %v633
    %883 = vmatpush1.bf16.msra.mxu0 %v632
    %884 = vmatprep.subr.bf16.mxu0 %v641
    %885 = vmatpush1.bf16.msra.mxu0 %v640
    %886 = vmatprep.subr.bf16.mxu0 %v649
    %887 = vmatpush1.bf16.msra.mxu0 %v648
    %888 = vmatprep.subr.bf16.mxu0 %v657
    %889 = vmatpush1.bf16.msra.mxu0 %v656
    %890 = vmatprep.subr.bf16.mxu0 %v665
    %891 = vmatpush1.bf16.msra.mxu0 %v664
    %892 = vmatprep.subr.bf16.mxu0 %v673
    %893 = vmatpush1.bf16.msra.mxu0 %v672
    %894 = vmatprep.subr.bf16.mxu0 %v681
    %895 = vmatpush1.bf16.msra.mxu0 %v680
    %896 = vmatprep.subr.bf16.mxu0 %v689
    %897 = vmatpush1.bf16.msra.mxu0 %v688
    %898 = vmatprep.subr.bf16.mxu0 %v697
    %899 = vmatpush1.bf16.msra.mxu0 %v696
    %900 = vmatprep.subr.bf16.mxu0 %v705
    %901 = vmatpush1.bf16.msra.mxu0 %v704
    %902 = vmatprep.subr.bf16.mxu0 %v713
    %903 = vmatpush1.bf16.msra.mxu0 %v712
    %904 = vmatprep.subr.bf16.mxu0 %v721
    %905 = vmatpush1.bf16.msra.mxu0 %v720
    %906 = vmatprep.subr.bf16.mxu0 %v729
    %907 = vmatpush1.bf16.msra.mxu0 %v728
    %908 = vmatprep.subr.bf16.mxu0 %v737
    %909 = vmatpush1.bf16.msra.mxu0 %v736
    %910 = vmatprep.subr.bf16.mxu0 %v745
    %911 = vmatpush1.bf16.msra.mxu0 %v744
    %912 = vmatprep.mubr.bf16.mxu0 %v237
    %913 = vmatmul.mubr.bf16.gmra.mrb[0].mxu0 %v236
    %v914 = vpop.f32.mrb[0].mxu0
    %v915 = vadd.f32 0.0, %v914
    %v916 = vpop.f32.mrb[0].mxu0
    %v917 = vadd.f32 0.0, %v916
    %v918 = vpop.f32.mrb[0].mxu0
    %v919 = vpop.f32.mrb[0].mxu0
    %920 = vdwg.mxu0
    %921 = vmatprep.subr.bf16.mxu0 %v627
    %922 = vmatpush1.bf16.msra.mxu0 %v626
    %923 = vmatprep.subr.bf16.mxu0 %v635
    %924 = vmatpush1.bf16.msra.mxu0 %v634
    %925 = vmatprep.subr.bf16.mxu0 %v643
    %926 = vmatpush1.bf16.msra.mxu0 %v642
    %927 = vmatprep.subr.bf16.mxu0 %v651
    %928 = vmatpush1.bf16.msra.mxu0 %v650
    %929 = vmatprep.subr.bf16.mxu0 %v659
    %930 = vmatpush1.bf16.msra.mxu0 %v658
    %931 = vmatprep.subr.bf16.mxu0 %v667
    %932 = vmatpush1.bf16.msra.mxu0 %v666
    %933 = vmatprep.subr.bf16.mxu0 %v675
    %934 = vmatpush1.bf16.msra.mxu0 %v674
    %935 = vmatprep.subr.bf16.mxu0 %v683
    %936 = vmatpush1.bf16.msra.mxu0 %v682
    %937 = vmatprep.subr.bf16.mxu0 %v691
    %938 = vmatpush1.bf16.msra.mxu0 %v690
    %939 = vmatprep.subr.bf16.mxu0 %v699
    %940 = vmatpush1.bf16.msra.mxu0 %v698
    %941 = vmatprep.subr.bf16.mxu0 %v707
    %942 = vmatpush1.bf16.msra.mxu0 %v706
    %943 = vmatprep.subr.bf16.mxu0 %v715
    %944 = vmatpush1.bf16.msra.mxu0 %v714
    %945 = vmatprep.subr.bf16.mxu0 %v723
    %946 = vmatpush1.bf16.msra.mxu0 %v722
    %947 = vmatprep.subr.bf16.mxu0 %v731
    %948 = vmatpush1.bf16.msra.mxu0 %v730
    %949 = vmatprep.subr.bf16.mxu0 %v739
    %950 = vmatpush1.bf16.msra.mxu0 %v738
    %951 = vmatprep.subr.bf16.mxu0 %v747
    %952 = vmatpush1.bf16.msra.mxu0 %v746
    %953 = vmatprep.mubr.bf16.mxu0 %v237
    %954 = vmatmul.mubr.bf16.gmra.mrb[0].mxu0 %v236
    %v955 = vpop.f32.mrb[0].mxu0
    %v956 = vadd.f32 0.0, %v955
    %v957 = vpop.f32.mrb[0].mxu0
    %v958 = vadd.f32 0.0, %v957
    %v959 = vpop.f32.mrb[0].mxu0
    %v960 = vpop.f32.mrb[0].mxu0
    %961 = vdwg.mxu0
    %962 = vmatprep.subr.bf16.mxu0 %v629
    %963 = vmatpush1.bf16.msra.mxu0 %v628
    %964 = vmatprep.subr.bf16.mxu0 %v637
    %965 = vmatpush1.bf16.msra.mxu0 %v636
    %966 = vmatprep.subr.bf16.mxu0 %v645
    %967 = vmatpush1.bf16.msra.mxu0 %v644
    %968 = vmatprep.subr.bf16.mxu0 %v653
    %969 = vmatpush1.bf16.msra.mxu0 %v652
    %970 = vmatprep.subr.bf16.mxu0 %v661
    %971 = vmatpush1.bf16.msra.mxu0 %v660
    %972 = vmatprep.subr.bf16.mxu0 %v669
    %973 = vmatpush1.bf16.msra.mxu0 %v668
    %974 = vmatprep.subr.bf16.mxu0 %v677
    %975 = vmatpush1.bf16.msra.mxu0 %v676
    %976 = vmatprep.subr.bf16.mxu0 %v685
    %977 = vmatpush1.bf16.msra.mxu0 %v684
    %978 = vmatprep.subr.bf16.mxu0 %v693
    %979 = vmatpush1.bf16.msra.mxu0 %v692
    %980 = vmatprep.subr.bf16.mxu0 %v701
    %981 = vmatpush1.bf16.msra.mxu0 %v700
    %982 = vmatprep.subr.bf16.mxu0 %v709
    %983 = vmatpush1.bf16.msra.mxu0 %v708
    %984 = vmatprep.subr.bf16.mxu0 %v717
    %985 = vmatpush1.bf16.msra.mxu0 %v716
    %986 = vmatprep.subr.bf16.mxu0 %v725
    %987 = vmatpush1.bf16.msra.mxu0 %v724
    %988 = vmatprep.subr.bf16.mxu0 %v733
    %989 = vmatpush1.bf16.msra.mxu0 %v732
    %990 = vmatprep.subr.bf16.mxu0 %v741
    %991 = vmatpush1.bf16.msra.mxu0 %v740
    %992 = vmatprep.subr.bf16.mxu0 %v749
    %993 = vmatpush1.bf16.msra.mxu0 %v748
    %994 = vmatprep.mubr.bf16.mxu0 %v237
    %995 = vmatmul.mubr.bf16.gmra.mrb[0].mxu0 %v236
    %v996 = vpop.f32.mrb[0].mxu0
    %v997 = vadd.f32 0.0, %v996
    %v998 = vpop.f32.mrb[0].mxu0
    %v999 = vadd.f32 0.0, %v998
    %v1000 = vpop.f32.mrb[0].mxu0
    %v1001 = vpop.f32.mrb[0].mxu0
    %1002 = vdwg.mxu0
    %1003 = vmatprep.subr.bf16.mxu0 %v631
    %1004 = vmatpush1.bf16.msra.mxu0 %v630
    %1005 = vmatprep.subr.bf16.mxu0 %v639
    %1006 = vmatpush1.bf16.msra.mxu0 %v638
    %1007 = vmatprep.subr.bf16.mxu0 %v647
    %1008 = vmatpush1.bf16.msra.mxu0 %v646
    %1009 = vmatprep.subr.bf16.mxu0 %v655
    %1010 = vmatpush1.bf16.msra.mxu0 %v654
    %1011 = vmatprep.subr.bf16.mxu0 %v663
    %1012 = vmatpush1.bf16.msra.mxu0 %v662
    %1013 = vmatprep.subr.bf16.mxu0 %v671
    %1014 = vmatpush1.bf16.msra.mxu0 %v670
    %1015 = vmatprep.subr.bf16.mxu0 %v679
    %1016 = vmatpush1.bf16.msra.mxu0 %v678
    %1017 = vmatprep.subr.bf16.mxu0 %v687
    %1018 = vmatpush1.bf16.msra.mxu0 %v686
    %1019 = vmatprep.subr.bf16.mxu0 %v695
    %1020 = vmatpush1.bf16.msra.mxu0 %v694
    %1021 = vmatprep.subr.bf16.mxu0 %v703
    %1022 = vmatpush1.bf16.msra.mxu0 %v702
    %1023 = vmatprep.subr.bf16.mxu0 %v711
    %1024 = vmatpush1.bf16.msra.mxu0 %v710
    %1025 = vmatprep.subr.bf16.mxu0 %v719
    %1026 = vmatpush1.bf16.msra.mxu0 %v718
    %1027 = vmatprep.subr.bf16.mxu0 %v727
    %1028 = vmatpush1.bf16.msra.mxu0 %v726
    %1029 = vmatprep.subr.bf16.mxu0 %v735
    %1030 = vmatpush1.bf16.msra.mxu0 %v734
    %1031 = vmatprep.subr.bf16.mxu0 %v743
    %1032 = vmatpush1.bf16.msra.mxu0 %v742
    %1033 = vmatprep.subr.bf16.mxu0 %v751
    %1034 = vmatpush1.bf16.msra.mxu0 %v750
    %1035 = vmatprep.mubr.bf16.mxu0 %v237
    %1036 = vmatmul.mubr.bf16.gmra.mrb[0].mxu0 %v236
    %v1037 = vpop.f32.mrb[0].mxu0
    %v1038 = vadd.f32 0.0, %v1037
    %v1039 = vpop.f32.mrb[0].mxu0
    %v1040 = vadd.f32 0.0, %v1039
    %v1041 = vpop.f32.mrb[0].mxu0
    %v1042 = vpop.f32.mrb[0].mxu0
    %1043 = vdwg.mxu0
    %v1044 = vadd.f32 %v96, %v915
    %v1045 = vadd.f32 %v97, %v917
    %v1046 = vadd.f32 %v98, %v956
    %v1047 = vadd.f32 %v99, %v958
    %v1048 = vadd.f32 %v100, %v997
    %v1049 = vadd.f32 %v101, %v999
    %v1050 = vadd.f32 %v102, %v1038
    %v1051 = vadd.f32 %v103, %v1040
    %1052 = vst [vmem:[#allocation2] sm:$0xff] %v1044
    %1053 = vst [vmem:[#allocation2 + $0x8] sm:$0xff] %v1045
    %1054 = vst [vmem:[#allocation2 + $0x10] sm:$0xff] %v1046
    %1055 = vst [vmem:[#allocation2 + $0x18] sm:$0xff] %v1047
    %1056 = vst [vmem:[#allocation2 + $0x20] sm:$0xff] %v1048
    %1057 = vst [vmem:[#allocation2 + $0x28] sm:$0xff] %v1049
    %1058 = vst [vmem:[#allocation2 + $0x30] sm:$0xff] %v1050
    %1059 = vst [vmem:[#allocation2 + $0x38] sm:$0xff] %v1051
    // Predicated region
    $region46: #{encoder_forward.9} parent=1 // pred_check
      %p1060 = pneg %p84
    $region47: #{encoder_forward.9} parent=1 // pred_check_branch
      %1062 = sbr.rel (%p1060) target = $region49
    $region48: #{encoder_forward.9} parent=1 // pred_region
      %v1063 = vld [vmem:[#allocation2] sm:$0xff]
      %v1064 = vld [vmem:[#allocation2 + $0x8] sm:$0xff]
      %v1065 = vld [vmem:[#allocation2 + $0x10] sm:$0xff]
      %v1066 = vld [vmem:[#allocation2 + $0x18] sm:$0xff]
      %v1067 = vld [vmem:[#allocation2 + $0x20] sm:$0xff]
      %v1068 = vld [vmem:[#allocation2 + $0x28] sm:$0xff]
      %v1069 = vld [vmem:[#allocation2 + $0x30] sm:$0xff]
      %v1070 = vld [vmem:[#allocation2 + $0x38] sm:$0xff]
      %v1071 = vld [vmem:[#allocation8] sm:$0xff]
      %v1073 = vlaneseq
      %v1074 = vshrl.u32 %v1073, 7
      %v1075 = vsub.s32 0, %v1074
      %v1076 = vrot.slane %v1071, %v1075
      %v1077 = vlaneseq
      %v1078 = vshrl.u32 %v1077, 7
      %v1079 = vsub.s32 1, %v1078
      %v1080 = vrot.slane %v1071, %v1079
      %v1081 = vlaneseq
      %v1082 = vshrl.u32 %v1081, 7
      %v1083 = vsub.s32 2, %v1082
      %v1084 = vrot.slane %v1071, %v1083
      %v1085 = vlaneseq
      %v1086 = vshrl.u32 %v1085, 7
      %v1087 = vsub.s32 3, %v1086
      %v1088 = vrot.slane %v1071, %v1087
      %v1089 = vlaneseq
      %v1090 = vshrl.u32 %v1089, 7
      %v1091 = vsub.s32 4, %v1090
      %v1092 = vrot.slane %v1071, %v1091
      %v1093 = vlaneseq
      %v1094 = vshrl.u32 %v1093, 7
      %v1095 = vsub.s32 5, %v1094
      %v1096 = vrot.slane %v1071, %v1095
      %v1097 = vlaneseq
      %v1098 = vshrl.u32 %v1097, 7
      %v1099 = vsub.s32 6, %v1098
      %v1100 = vrot.slane %v1071, %v1099
      %v1101 = vlaneseq
      %v1102 = vshrl.u32 %v1101, 7
      %v1103 = vsub.s32 7, %v1102
      %v1104 = vrot.slane %v1071, %v1103
      %v1113 = vadd.f32 %v1063, %v1076
      %v1114 = vadd.f32 %v1064, %v1080
      %v1115 = vadd.f32 %v1065, %v1084
      %v1116 = vadd.f32 %v1066, %v1088
      %v1117 = vadd.f32 %v1067, %v1092
      %v1118 = vadd.f32 %v1068, %v1096
      %v1119 = vadd.f32 %v1069, %v1100
      %v1120 = vadd.f32 %v1070, %v1104
      %v1121 = vmax.f32 %v1113, 0.0
      %v1122 = vmax.f32 %v1114, 0.0
      %v1123 = vmax.f32 %v1115, 0.0
      %v1124 = vmax.f32 %v1116, 0.0
      %v1125 = vmax.f32 %v1117, 0.0
      %v1126 = vmax.f32 %v1118, 0.0
      %v1127 = vmax.f32 %v1119, 0.0
      %v1128 = vmax.f32 %v1120, 0.0
      %v1129 = vpack.c.bf16 %v1121, %v1121
      %v1130 = vpack.c.bf16 %v1122, %v1122
      %v1131 = vpack.c.bf16 %v1123, %v1123
      %v1132 = vpack.c.bf16 %v1124, %v1124
      %v1133 = vpack.c.bf16 %v1125, %v1125
      %v1134 = vpack.c.bf16 %v1126, %v1126
      %v1135 = vpack.c.bf16 %v1127, %v1127
      %v1136 = vpack.c.bf16 %v1128, %v1128
      %v1137 = vld [vmem:[#allocation9] sm:$0xf]
      %v1138 = vld [vmem:[#allocation9 + $0x4] sm:$0xf]
      %v1139 = vld [vmem:[#allocation9 + $0x8] sm:$0xf]
      %v1140 = vld [vmem:[#allocation9 + $0xc] sm:$0xf]
      %v1141 = vld [vmem:[#allocation9 + $0x10] sm:$0xf]
      %v1142 = vld [vmem:[#allocation9 + $0x14] sm:$0xf]
      %v1143 = vld [vmem:[#allocation9 + $0x18] sm:$0xf]
      %v1144 = vld [vmem:[#allocation9 + $0x1c] sm:$0xf]
      %v1145 = vld [vmem:[#allocation9 + $0x20] sm:$0xf]
      %v1146 = vld [vmem:[#allocation9 + $0x24] sm:$0xf]
      %v1147 = vld [vmem:[#allocation9 + $0x28] sm:$0xf]
      %v1148 = vld [vmem:[#allocation9 + $0x2c] sm:$0xf]
      %v1149 = vld [vmem:[#allocation9 + $0x30] sm:$0xf]
      %v1150 = vld [vmem:[#allocation9 + $0x34] sm:$0xf]
      %v1151 = vld [vmem:[#allocation9 + $0x38] sm:$0xf]
      %v1152 = vld [vmem:[#allocation9 + $0x3c] sm:$0xf]
      %v1153 = vld [vmem:[#allocation9 + $0x40] sm:$0xf]
      %v1154 = vld [vmem:[#allocation9 + $0x44] sm:$0xf]
      %v1155 = vld [vmem:[#allocation9 + $0x48] sm:$0xf]
      %v1156 = vld [vmem:[#allocation9 + $0x4c] sm:$0xf]
      %v1157 = vld [vmem:[#allocation9 + $0x50] sm:$0xf]
      %v1158 = vld [vmem:[#allocation9 + $0x54] sm:$0xf]
      %v1159 = vld [vmem:[#allocation9 + $0x58] sm:$0xf]
      %v1160 = vld [vmem:[#allocation9 + $0x5c] sm:$0xf]
      %v1161 = vld [vmem:[#allocation9 + $0x60] sm:$0xf]
      %v1162 = vld [vmem:[#allocation9 + $0x64] sm:$0xf]
      %v1163 = vld [vmem:[#allocation9 + $0x68] sm:$0xf]
      %v1164 = vld [vmem:[#allocation9 + $0x6c] sm:$0xf]
      %v1165 = vld [vmem:[#allocation9 + $0x70] sm:$0xf]
      %v1166 = vld [vmem:[#allocation9 + $0x74] sm:$0xf]
      %v1167 = vld [vmem:[#allocation9 + $0x78] sm:$0xf]
      %v1168 = vld [vmem:[#allocation9 + $0x7c] sm:$0xf]
      %v1169 = vld [vmem:[#allocation9 + $0x80] sm:$0xf]
      %v1170 = vld [vmem:[#allocation9 + $0x84] sm:$0xf]
      %v1171 = vld [vmem:[#allocation9 + $0x88] sm:$0xf]
      %v1172 = vld [vmem:[#allocation9 + $0x8c] sm:$0xf]
      %v1173 = vld [vmem:[#allocation9 + $0x90] sm:$0xf]
      %v1174 = vld [vmem:[#allocation9 + $0x94] sm:$0xf]
      %v1175 = vld [vmem:[#allocation9 + $0x98] sm:$0xf]
      %v1176 = vld [vmem:[#allocation9 + $0x9c] sm:$0xf]
      %v1177 = vld [vmem:[#allocation9 + $0xa0] sm:$0xf]
      %v1178 = vld [vmem:[#allocation9 + $0xa4] sm:$0xf]
      %v1179 = vld [vmem:[#allocation9 + $0xa8] sm:$0xf]
      %v1180 = vld [vmem:[#allocation9 + $0xac] sm:$0xf]
      %v1181 = vld [vmem:[#allocation9 + $0xb0] sm:$0xf]
      %v1182 = vld [vmem:[#allocation9 + $0xb4] sm:$0xf]
      %v1183 = vld [vmem:[#allocation9 + $0xb8] sm:$0xf]
      %v1184 = vld [vmem:[#allocation9 + $0xbc] sm:$0xf]
      %v1185 = vld [vmem:[#allocation9 + $0xc0] sm:$0xf]
      %v1186 = vld [vmem:[#allocation9 + $0xc4] sm:$0xf]
      %v1187 = vld [vmem:[#allocation9 + $0xc8] sm:$0xf]
      %v1188 = vld [vmem:[#allocation9 + $0xcc] sm:$0xf]
      %v1189 = vld [vmem:[#allocation9 + $0xd0] sm:$0xf]
      %v1190 = vld [vmem:[#allocation9 + $0xd4] sm:$0xf]
      %v1191 = vld [vmem:[#allocation9 + $0xd8] sm:$0xf]
      %v1192 = vld [vmem:[#allocation9 + $0xdc] sm:$0xf]
      %v1193 = vld [vmem:[#allocation9 + $0xe0] sm:$0xf]
      %v1194 = vld [vmem:[#allocation9 + $0xe4] sm:$0xf]
      %v1195 = vld [vmem:[#allocation9 + $0xe8] sm:$0xf]
      %v1196 = vld [vmem:[#allocation9 + $0xec] sm:$0xf]
      %v1197 = vld [vmem:[#allocation9 + $0xf0] sm:$0xf]
      %v1198 = vld [vmem:[#allocation9 + $0xf4] sm:$0xf]
      %v1199 = vld [vmem:[#allocation9 + $0xf8] sm:$0xf]
      %v1200 = vld [vmem:[#allocation9 + $0xfc] sm:$0xf]
      %v1201 = vld [vmem:[#allocation9 + $0x100] sm:$0xf]
      %v1202 = vld [vmem:[#allocation9 + $0x104] sm:$0xf]
      %v1203 = vld [vmem:[#allocation9 + $0x108] sm:$0xf]
      %v1204 = vld [vmem:[#allocation9 + $0x10c] sm:$0xf]
      %v1205 = vld [vmem:[#allocation9 + $0x110] sm:$0xf]
      %v1206 = vld [vmem:[#allocation9 + $0x114] sm:$0xf]
      %v1207 = vld [vmem:[#allocation9 + $0x118] sm:$0xf]
      %v1208 = vld [vmem:[#allocation9 + $0x11c] sm:$0xf]
      %v1209 = vld [vmem:[#allocation9 + $0x120] sm:$0xf]
      %v1210 = vld [vmem:[#allocation9 + $0x124] sm:$0xf]
      %v1211 = vld [vmem:[#allocation9 + $0x128] sm:$0xf]
      %v1212 = vld [vmem:[#allocation9 + $0x12c] sm:$0xf]
      %v1213 = vld [vmem:[#allocation9 + $0x130] sm:$0xf]
      %v1214 = vld [vmem:[#allocation9 + $0x134] sm:$0xf]
      %v1215 = vld [vmem:[#allocation9 + $0x138] sm:$0xf]
      %v1216 = vld [vmem:[#allocation9 + $0x13c] sm:$0xf]
      %v1217 = vld [vmem:[#allocation9 + $0x140] sm:$0xf]
      %v1218 = vld [vmem:[#allocation9 + $0x144] sm:$0xf]
      %v1219 = vld [vmem:[#allocation9 + $0x148] sm:$0xf]
      %v1220 = vld [vmem:[#allocation9 + $0x14c] sm:$0xf]
      %v1221 = vld [vmem:[#allocation9 + $0x150] sm:$0xf]
      %v1222 = vld [vmem:[#allocation9 + $0x154] sm:$0xf]
      %v1223 = vld [vmem:[#allocation9 + $0x158] sm:$0xf]
      %v1224 = vld [vmem:[#allocation9 + $0x15c] sm:$0xf]
      %v1225 = vld [vmem:[#allocation9 + $0x160] sm:$0xf]
      %v1226 = vld [vmem:[#allocation9 + $0x164] sm:$0xf]
      %v1227 = vld [vmem:[#allocation9 + $0x168] sm:$0xf]
      %v1228 = vld [vmem:[#allocation9 + $0x16c] sm:$0xf]
      %v1229 = vld [vmem:[#allocation9 + $0x170] sm:$0xf]
      %v1230 = vld [vmem:[#allocation9 + $0x174] sm:$0xf]
      %v1231 = vld [vmem:[#allocation9 + $0x178] sm:$0xf]
      %v1232 = vld [vmem:[#allocation9 + $0x17c] sm:$0xf]
      %v1233 = vld [vmem:[#allocation9 + $0x180] sm:$0xf]
      %v1234 = vld [vmem:[#allocation9 + $0x184] sm:$0xf]
      %v1235 = vld [vmem:[#allocation9 + $0x188] sm:$0xf]
      %v1236 = vld [vmem:[#allocation9 + $0x18c] sm:$0xf]
      %v1237 = vld [vmem:[#allocation9 + $0x190] sm:$0xf]
      %v1238 = vld [vmem:[#allocation9 + $0x194] sm:$0xf]
      %v1239 = vld [vmem:[#allocation9 + $0x198] sm:$0xf]
      %v1240 = vld [vmem:[#allocation9 + $0x19c] sm:$0xf]
      %v1241 = vld [vmem:[#allocation9 + $0x1a0] sm:$0xf]
      %v1242 = vld [vmem:[#allocation9 + $0x1a4] sm:$0xf]
      %v1243 = vld [vmem:[#allocation9 + $0x1a8] sm:$0xf]
      %v1244 = vld [vmem:[#allocation9 + $0x1ac] sm:$0xf]
      %v1245 = vld [vmem:[#allocation9 + $0x1b0] sm:$0xf]
      %v1246 = vld [vmem:[#allocation9 + $0x1b4] sm:$0xf]
      %v1247 = vld [vmem:[#allocation9 + $0x1b8] sm:$0xf]
      %v1248 = vld [vmem:[#allocation9 + $0x1bc] sm:$0xf]
      %v1249 = vld [vmem:[#allocation9 + $0x1c0] sm:$0xf]
      %v1250 = vld [vmem:[#allocation9 + $0x1c4] sm:$0xf]
      %v1251 = vld [vmem:[#allocation9 + $0x1c8] sm:$0xf]
      %v1252 = vld [vmem:[#allocation9 + $0x1cc] sm:$0xf]
      %v1253 = vld [vmem:[#allocation9 + $0x1d0] sm:$0xf]
      %v1254 = vld [vmem:[#allocation9 + $0x1d4] sm:$0xf]
      %v1255 = vld [vmem:[#allocation9 + $0x1d8] sm:$0xf]
      %v1256 = vld [vmem:[#allocation9 + $0x1dc] sm:$0xf]
      %v1257 = vld [vmem:[#allocation9 + $0x1e0] sm:$0xf]
      %v1258 = vld [vmem:[#allocation9 + $0x1e4] sm:$0xf]
      %v1259 = vld [vmem:[#allocation9 + $0x1e8] sm:$0xf]
      %v1260 = vld [vmem:[#allocation9 + $0x1ec] sm:$0xf]
      %v1261 = vld [vmem:[#allocation9 + $0x1f0] sm:$0xf]
      %v1262 = vld [vmem:[#allocation9 + $0x1f4] sm:$0xf]
      %v1263 = vld [vmem:[#allocation9 + $0x1f8] sm:$0xf]
      %v1264 = vld [vmem:[#allocation9 + $0x1fc] sm:$0xf]
      %v1265 = vld [vmem:[#allocation11] sm:$0x1]
      %v1267 = vlaneseq
      %v1268 = vshrl.u32 %v1267, 7
      %v1269 = vsub.s32 0, %v1268
      %v1270 = vrot.slane %v1265, %v1269
      %v1400 = vunpack.c.l.b16 %v1137
      %v1401 = vunpack.c.l.b16 %v1138
      %v1402 = vunpack.c.l.b16 %v1139
      %v1403 = vunpack.c.l.b16 %v1140
      %v1404 = vunpack.c.l.b16 %v1141
      %v1405 = vunpack.c.l.b16 %v1142
      %v1406 = vunpack.c.l.b16 %v1143
      %v1407 = vunpack.c.l.b16 %v1144
      %v1408 = vunpack.c.l.b16 %v1145
      %v1409 = vunpack.c.l.b16 %v1146
      %v1410 = vunpack.c.l.b16 %v1147
      %v1411 = vunpack.c.l.b16 %v1148
      %v1412 = vunpack.c.l.b16 %v1149
      %v1413 = vunpack.c.l.b16 %v1150
      %v1414 = vunpack.c.l.b16 %v1151
      %v1415 = vunpack.c.l.b16 %v1152
      %v1416 = vunpack.c.l.b16 %v1153
      %v1417 = vunpack.c.l.b16 %v1154
      %v1418 = vunpack.c.l.b16 %v1155
      %v1419 = vunpack.c.l.b16 %v1156
      %v1420 = vunpack.c.l.b16 %v1157
      %v1421 = vunpack.c.l.b16 %v1158
      %v1422 = vunpack.c.l.b16 %v1159
      %v1423 = vunpack.c.l.b16 %v1160
      %v1424 = vunpack.c.l.b16 %v1161
      %v1425 = vunpack.c.l.b16 %v1162
      %v1426 = vunpack.c.l.b16 %v1163
      %v1427 = vunpack.c.l.b16 %v1164
      %v1428 = vunpack.c.l.b16 %v1165
      %v1429 = vunpack.c.l.b16 %v1166
      %v1430 = vunpack.c.l.b16 %v1167
      %v1431 = vunpack.c.l.b16 %v1168
      %v1432 = vunpack.c.l.b16 %v1169
      %v1433 = vunpack.c.l.b16 %v1170
      %v1434 = vunpack.c.l.b16 %v1171
      %v1435 = vunpack.c.l.b16 %v1172
      %v1436 = vunpack.c.l.b16 %v1173
      %v1437 = vunpack.c.l.b16 %v1174
      %v1438 = vunpack.c.l.b16 %v1175
      %v1439 = vunpack.c.l.b16 %v1176
      %v1440 = vunpack.c.l.b16 %v1177
      %v1441 = vunpack.c.l.b16 %v1178
      %v1442 = vunpack.c.l.b16 %v1179
      %v1443 = vunpack.c.l.b16 %v1180
      %v1444 = vunpack.c.l.b16 %v1181
      %v1445 = vunpack.c.l.b16 %v1182
      %v1446 = vunpack.c.l.b16 %v1183
      %v1447 = vunpack.c.l.b16 %v1184
      %v1448 = vunpack.c.l.b16 %v1185
      %v1449 = vunpack.c.l.b16 %v1186
      %v1450 = vunpack.c.l.b16 %v1187
      %v1451 = vunpack.c.l.b16 %v1188
      %v1452 = vunpack.c.l.b16 %v1189
      %v1453 = vunpack.c.l.b16 %v1190
      %v1454 = vunpack.c.l.b16 %v1191
      %v1455 = vunpack.c.l.b16 %v1192
      %v1456 = vunpack.c.l.b16 %v1193
      %v1457 = vunpack.c.l.b16 %v1194
      %v1458 = vunpack.c.l.b16 %v1195
      %v1459 = vunpack.c.l.b16 %v1196
      %v1460 = vunpack.c.l.b16 %v1197
      %v1461 = vunpack.c.l.b16 %v1198
      %v1462 = vunpack.c.l.b16 %v1199
      %v1463 = vunpack.c.l.b16 %v1200
      %v1464 = vunpack.c.l.b16 %v1201
      %v1465 = vunpack.c.l.b16 %v1202
      %v1466 = vunpack.c.l.b16 %v1203
      %v1467 = vunpack.c.l.b16 %v1204
      %v1468 = vunpack.c.l.b16 %v1205
      %v1469 = vunpack.c.l.b16 %v1206
      %v1470 = vunpack.c.l.b16 %v1207
      %v1471 = vunpack.c.l.b16 %v1208
      %v1472 = vunpack.c.l.b16 %v1209
      %v1473 = vunpack.c.l.b16 %v1210
      %v1474 = vunpack.c.l.b16 %v1211
      %v1475 = vunpack.c.l.b16 %v1212
      %v1476 = vunpack.c.l.b16 %v1213
      %v1477 = vunpack.c.l.b16 %v1214
      %v1478 = vunpack.c.l.b16 %v1215
      %v1479 = vunpack.c.l.b16 %v1216
      %v1480 = vunpack.c.l.b16 %v1217
      %v1481 = vunpack.c.l.b16 %v1218
      %v1482 = vunpack.c.l.b16 %v1219
      %v1483 = vunpack.c.l.b16 %v1220
      %v1484 = vunpack.c.l.b16 %v1221
      %v1485 = vunpack.c.l.b16 %v1222
      %v1486 = vunpack.c.l.b16 %v1223
      %v1487 = vunpack.c.l.b16 %v1224
      %v1488 = vunpack.c.l.b16 %v1225
      %v1489 = vunpack.c.l.b16 %v1226
      %v1490 = vunpack.c.l.b16 %v1227
      %v1491 = vunpack.c.l.b16 %v1228
      %v1492 = vunpack.c.l.b16 %v1229
      %v1493 = vunpack.c.l.b16 %v1230
      %v1494 = vunpack.c.l.b16 %v1231
      %v1495 = vunpack.c.l.b16 %v1232
      %v1496 = vunpack.c.l.b16 %v1233
      %v1497 = vunpack.c.l.b16 %v1234
      %v1498 = vunpack.c.l.b16 %v1235
      %v1499 = vunpack.c.l.b16 %v1236
      %v1500 = vunpack.c.l.b16 %v1237
      %v1501 = vunpack.c.l.b16 %v1238
      %v1502 = vunpack.c.l.b16 %v1239
      %v1503 = vunpack.c.l.b16 %v1240
      %v1504 = vunpack.c.l.b16 %v1241
      %v1505 = vunpack.c.l.b16 %v1242
      %v1506 = vunpack.c.l.b16 %v1243
      %v1507 = vunpack.c.l.b16 %v1244
      %v1508 = vunpack.c.l.b16 %v1245
      %v1509 = vunpack.c.l.b16 %v1246
      %v1510 = vunpack.c.l.b16 %v1247
      %v1511 = vunpack.c.l.b16 %v1248
      %v1512 = vunpack.c.l.b16 %v1249
      %v1513 = vunpack.c.l.b16 %v1250
      %v1514 = vunpack.c.l.b16 %v1251
      %v1515 = vunpack.c.l.b16 %v1252
      %v1516 = vunpack.c.l.b16 %v1253
      %v1517 = vunpack.c.l.b16 %v1254
      %v1518 = vunpack.c.l.b16 %v1255
      %v1519 = vunpack.c.l.b16 %v1256
      %v1520 = vunpack.c.l.b16 %v1257
      %v1521 = vunpack.c.l.b16 %v1258
      %v1522 = vunpack.c.l.b16 %v1259
      %v1523 = vunpack.c.l.b16 %v1260
      %v1524 = vunpack.c.l.b16 %v1261
      %v1525 = vunpack.c.l.b16 %v1262
      %v1526 = vunpack.c.l.b16 %v1263
      %v1527 = vunpack.c.l.b16 %v1264
      %v1528 = vpack.c.b16 %v1401, %v1400
      %v1529 = vpack.c.b16 %v1403, %v1402
      %v1530 = vpack.c.b16 %v1405, %v1404
      %v1531 = vpack.c.b16 %v1407, %v1406
      %v1532 = vpack.c.b16 %v1409, %v1408
      %v1533 = vpack.c.b16 %v1411, %v1410
      %v1534 = vpack.c.b16 %v1413, %v1412
      %v1535 = vpack.c.b16 %v1415, %v1414
      %v1536 = vpack.c.b16 %v1417, %v1416
      %v1537 = vpack.c.b16 %v1419, %v1418
      %v1538 = vpack.c.b16 %v1421, %v1420
      %v1539 = vpack.c.b16 %v1423, %v1422
      %v1540 = vpack.c.b16 %v1425, %v1424
      %v1541 = vpack.c.b16 %v1427, %v1426
      %v1542 = vpack.c.b16 %v1429, %v1428
      %v1543 = vpack.c.b16 %v1431, %v1430
      %v1544 = vpack.c.b16 %v1433, %v1432
      %v1545 = vpack.c.b16 %v1435, %v1434
      %v1546 = vpack.c.b16 %v1437, %v1436
      %v1547 = vpack.c.b16 %v1439, %v1438
      %v1548 = vpack.c.b16 %v1441, %v1440
      %v1549 = vpack.c.b16 %v1443, %v1442
      %v1550 = vpack.c.b16 %v1445, %v1444
      %v1551 = vpack.c.b16 %v1447, %v1446
      %v1552 = vpack.c.b16 %v1449, %v1448
      %v1553 = vpack.c.b16 %v1451, %v1450
      %v1554 = vpack.c.b16 %v1453, %v1452
      %v1555 = vpack.c.b16 %v1455, %v1454
      %v1556 = vpack.c.b16 %v1457, %v1456
      %v1557 = vpack.c.b16 %v1459, %v1458
      %v1558 = vpack.c.b16 %v1461, %v1460
      %v1559 = vpack.c.b16 %v1463, %v1462
      %v1560 = vpack.c.b16 %v1465, %v1464
      %v1561 = vpack.c.b16 %v1467, %v1466
      %v1562 = vpack.c.b16 %v1469, %v1468
      %v1563 = vpack.c.b16 %v1471, %v1470
      %v1564 = vpack.c.b16 %v1473, %v1472
      %v1565 = vpack.c.b16 %v1475, %v1474
      %v1566 = vpack.c.b16 %v1477, %v1476
      %v1567 = vpack.c.b16 %v1479, %v1478
      %v1568 = vpack.c.b16 %v1481, %v1480
      %v1569 = vpack.c.b16 %v1483, %v1482
      %v1570 = vpack.c.b16 %v1485, %v1484
      %v1571 = vpack.c.b16 %v1487, %v1486
      %v1572 = vpack.c.b16 %v1489, %v1488
      %v1573 = vpack.c.b16 %v1491, %v1490
      %v1574 = vpack.c.b16 %v1493, %v1492
      %v1575 = vpack.c.b16 %v1495, %v1494
      %v1576 = vpack.c.b16 %v1497, %v1496
      %v1577 = vpack.c.b16 %v1499, %v1498
      %v1578 = vpack.c.b16 %v1501, %v1500
      %v1579 = vpack.c.b16 %v1503, %v1502
      %v1580 = vpack.c.b16 %v1505, %v1504
      %v1581 = vpack.c.b16 %v1507, %v1506
      %v1582 = vpack.c.b16 %v1509, %v1508
      %v1583 = vpack.c.b16 %v1511, %v1510
      %v1584 = vpack.c.b16 %v1513, %v1512
      %v1585 = vpack.c.b16 %v1515, %v1514
      %v1586 = vpack.c.b16 %v1517, %v1516
      %v1587 = vpack.c.b16 %v1519, %v1518
      %v1588 = vpack.c.b16 %v1521, %v1520
      %v1589 = vpack.c.b16 %v1523, %v1522
      %v1590 = vpack.c.b16 %v1525, %v1524
      %v1591 = vpack.c.b16 %v1527, %v1526
      %1656 = vmatprep.subr.bf16.mxu0 0
      %1657 = vmatpush1.bf16.msra.mxu0 %v1528
      %1658 = vmatprep.subr.bf16.mxu0 0
      %1659 = vmatpush1.bf16.msra.mxu0 %v1529
      %1660 = vmatprep.subr.bf16.mxu0 0
      %1661 = vmatpush1.bf16.msra.mxu0 %v1530
      %1662 = vmatprep.subr.bf16.mxu0 0
      %1663 = vmatpush1.bf16.msra.mxu0 %v1531
      %1664 = vmatprep.subr.bf16.mxu0 0
      %1665 = vmatpush1.bf16.msra.mxu0 %v1532
      %1666 = vmatprep.subr.bf16.mxu0 0
      %1667 = vmatpush1.bf16.msra.mxu0 %v1533
      %1668 = vmatprep.subr.bf16.mxu0 0
      %1669 = vmatpush1.bf16.msra.mxu0 %v1534
      %1670 = vmatprep.subr.bf16.mxu0 0
      %1671 = vmatpush1.bf16.msra.mxu0 %v1535
      %1672 = vmatprep.subr.bf16.mxu0 0
      %1673 = vmatpush1.bf16.msra.mxu0 %v1536
      %1674 = vmatprep.subr.bf16.mxu0 0
      %1675 = vmatpush1.bf16.msra.mxu0 %v1537
      %1676 = vmatprep.subr.bf16.mxu0 0
      %1677 = vmatpush1.bf16.msra.mxu0 %v1538
      %1678 = vmatprep.subr.bf16.mxu0 0
      %1679 = vmatpush1.bf16.msra.mxu0 %v1539
      %1680 = vmatprep.subr.bf16.mxu0 0
      %1681 = vmatpush1.bf16.msra.mxu0 %v1540
      %1682 = vmatprep.subr.bf16.mxu0 0
      %1683 = vmatpush1.bf16.msra.mxu0 %v1541
      %1684 = vmatprep.subr.bf16.mxu0 0
      %1685 = vmatpush1.bf16.msra.mxu0 %v1542
      %1686 = vmatprep.subr.bf16.mxu0 0
      %1687 = vmatpush1.bf16.msra.mxu0 %v1543
      %1688 = vmatprep.mubr.bf16.mxu0 %v1130
      %1689 = vmatmul.mubr.bf16.gmra.mrb[0].mxu0 %v1129
      %v1690 = vpop.f32.mrb[0].mxu0
      %v1691 = vadd.f32 %v1270, %v1690
      %v1692 = vpop.f32.mrb[0].mxu0
      %v1693 = vpop.f32.mrb[0].mxu0
      %v1694 = vpop.f32.mrb[0].mxu0
      %1695 = vdwg.mxu0
      %1696 = vmatprep.subr.bf16.mxu0 0
      %1697 = vmatpush1.bf16.msra.mxu0 %v1544
      %1698 = vmatprep.subr.bf16.mxu0 0
      %1699 = vmatpush1.bf16.msra.mxu0 %v1545
      %1700 = vmatprep.subr.bf16.mxu0 0
      %1701 = vmatpush1.bf16.msra.mxu0 %v1546
      %1702 = vmatprep.subr.bf16.mxu0 0
      %1703 = vmatpush1.bf16.msra.mxu0 %v1547
      %1704 = vmatprep.subr.bf16.mxu0 0
      %1705 = vmatpush1.bf16.msra.mxu0 %v1548
      %1706 = vmatprep.subr.bf16.mxu0 0
      %1707 = vmatpush1.bf16.msra.mxu0 %v1549
      %1708 = vmatprep.subr.bf16.mxu0 0
      %1709 = vmatpush1.bf16.msra.mxu0 %v1550
      %1710 = vmatprep.subr.bf16.mxu0 0
      %1711 = vmatpush1.bf16.msra.mxu0 %v1551
      %1712 = vmatprep.subr.bf16.mxu0 0
      %1713 = vmatpush1.bf16.msra.mxu0 %v1552
      %1714 = vmatprep.subr.bf16.mxu0 0
      %1715 = vmatpush1.bf16.msra.mxu0 %v1553
      %1716 = vmatprep.subr.bf16.mxu0 0
      %1717 = vmatpush1.bf16.msra.mxu0 %v1554
      %1718 = vmatprep.subr.bf16.mxu0 0
      %1719 = vmatpush1.bf16.msra.mxu0 %v1555
      %1720 = vmatprep.subr.bf16.mxu0 0
      %1721 = vmatpush1.bf16.msra.mxu0 %v1556
      %1722 = vmatprep.subr.bf16.mxu0 0
      %1723 = vmatpush1.bf16.msra.mxu0 %v1557
      %1724 = vmatprep.subr.bf16.mxu0 0
      %1725 = vmatpush1.bf16.msra.mxu0 %v1558
      %1726 = vmatprep.subr.bf16.mxu0 0
      %1727 = vmatpush1.bf16.msra.mxu0 %v1559
      %1728 = vmatprep.mubr.bf16.mxu0 %v1132
      %1729 = vmatmul.mubr.bf16.gmra.mrb[0].mxu0 %v1131
      %v1730 = vpop.f32.mrb[0].mxu0
      %v1731 = vadd.f32 %v1691, %v1730
      %v1732 = vpop.f32.mrb[0].mxu0
      %v1733 = vpop.f32.mrb[0].mxu0
      %v1734 = vpop.f32.mrb[0].mxu0
      %1735 = vdwg.mxu0
      %1736 = vmatprep.subr.bf16.mxu0 0
      %1737 = vmatpush1.bf16.msra.mxu0 %v1560
      %1738 = vmatprep.subr.bf16.mxu0 0
      %1739 = vmatpush1.bf16.msra.mxu0 %v1561
      %1740 = vmatprep.subr.bf16.mxu0 0
      %1741 = vmatpush1.bf16.msra.mxu0 %v1562
      %1742 = vmatprep.subr.bf16.mxu0 0
      %1743 = vmatpush1.bf16.msra.mxu0 %v1563
      %1744 = vmatprep.subr.bf16.mxu0 0
      %1745 = vmatpush1.bf16.msra.mxu0 %v1564
      %1746 = vmatprep.subr.bf16.mxu0 0
      %1747 = vmatpush1.bf16.msra.mxu0 %v1565
      %1748 = vmatprep.subr.bf16.mxu0 0
      %1749 = vmatpush1.bf16.msra.mxu0 %v1566
      %1750 = vmatprep.subr.bf16.mxu0 0
      %1751 = vmatpush1.bf16.msra.mxu0 %v1567
      %1752 = vmatprep.subr.bf16.mxu0 0
      %1753 = vmatpush1.bf16.msra.mxu0 %v1568
      %1754 = vmatprep.subr.bf16.mxu0 0
      %1755 = vmatpush1.bf16.msra.mxu0 %v1569
      %1756 = vmatprep.subr.bf16.mxu0 0
      %1757 = vmatpush1.bf16.msra.mxu0 %v1570
      %1758 = vmatprep.subr.bf16.mxu0 0
      %1759 = vmatpush1.bf16.msra.mxu0 %v1571
      %1760 = vmatprep.subr.bf16.mxu0 0
      %1761 = vmatpush1.bf16.msra.mxu0 %v1572
      %1762 = vmatprep.subr.bf16.mxu0 0
      %1763 = vmatpush1.bf16.msra.mxu0 %v1573
      %1764 = vmatprep.subr.bf16.mxu0 0
      %1765 = vmatpush1.bf16.msra.mxu0 %v1574
      %1766 = vmatprep.subr.bf16.mxu0 0
      %1767 = vmatpush1.bf16.msra.mxu0 %v1575
      %1768 = vmatprep.mubr.bf16.mxu0 %v1134
      %1769 = vmatmul.mubr.bf16.gmra.mrb[0].mxu0 %v1133
      %v1770 = vpop.f32.mrb[0].mxu0
      %v1771 = vadd.f32 %v1731, %v1770
      %v1772 = vpop.f32.mrb[0].mxu0
      %v1773 = vpop.f32.mrb[0].mxu0
      %v1774 = vpop.f32.mrb[0].mxu0
      %1775 = vdwg.mxu0
      %1776 = vmatprep.subr.bf16.mxu0 0
      %1777 = vmatpush1.bf16.msra.mxu0 %v1576
      %1778 = vmatprep.subr.bf16.mxu0 0
      %1779 = vmatpush1.bf16.msra.mxu0 %v1577
      %1780 = vmatprep.subr.bf16.mxu0 0
      %1781 = vmatpush1.bf16.msra.mxu0 %v1578
      %1782 = vmatprep.subr.bf16.mxu0 0
      %1783 = vmatpush1.bf16.msra.mxu0 %v1579
      %1784 = vmatprep.subr.bf16.mxu0 0
      %1785 = vmatpush1.bf16.msra.mxu0 %v1580
      %1786 = vmatprep.subr.bf16.mxu0 0
      %1787 = vmatpush1.bf16.msra.mxu0 %v1581
      %1788 = vmatprep.subr.bf16.mxu0 0
      %1789 = vmatpush1.bf16.msra.mxu0 %v1582
      %1790 = vmatprep.subr.bf16.mxu0 0
      %1791 = vmatpush1.bf16.msra.mxu0 %v1583
      %1792 = vmatprep.subr.bf16.mxu0 0
      %1793 = vmatpush1.bf16.msra.mxu0 %v1584
      %1794 = vmatprep.subr.bf16.mxu0 0
      %1795 = vmatpush1.bf16.msra.mxu0 %v1585
      %1796 = vmatprep.subr.bf16.mxu0 0
      %1797 = vmatpush1.bf16.msra.mxu0 %v1586
      %1798 = vmatprep.subr.bf16.mxu0 0
      %1799 = vmatpush1.bf16.msra.mxu0 %v1587
      %1800 = vmatprep.subr.bf16.mxu0 0
      %1801 = vmatpush1.bf16.msra.mxu0 %v1588
      %1802 = vmatprep.subr.bf16.mxu0 0
      %1803 = vmatpush1.bf16.msra.mxu0 %v1589
      %1804 = vmatprep.subr.bf16.mxu0 0
      %1805 = vmatpush1.bf16.msra.mxu0 %v1590
      %1806 = vmatprep.subr.bf16.mxu0 0
      %1807 = vmatpush1.bf16.msra.mxu0 %v1591
      %1808 = vmatprep.mubr.bf16.mxu0 %v1136
      %1809 = vmatmul.mubr.bf16.gmra.mrb[0].mxu0 %v1135
      %v1810 = vpop.f32.mrb[0].mxu0
      %v1811 = vadd.f32 %v1771, %v1810
      %v1812 = vpop.f32.mrb[0].mxu0
      %v1813 = vpop.f32.mrb[0].mxu0
      %v1814 = vpop.f32.mrb[0].mxu0
      %1815 = vdwg.mxu0
      %vm1816 = vcmask 261120
      %1817 = vst.msk [vmem:[#allocation12] sm:$0xff] %vm1816, %v1811
    $region49: #{encoder_forward.9} parent=1 // pred_fallthru
      _
    // Predicated region
    $region50: #{encoder_forward.9} parent=1 // pred_check
      _
    $region51: #{encoder_forward.9} parent=1 // pred_check_branch
      %1819 = sbr.rel (0) target = $region53
    $region52: #{encoder_forward.9} parent=1 // pred_region
      %s1821 = ssub.s32 128, 128
      %1822 = vsyncadd [#allocation5], %s1821
      %s1824 = sshll.u32 [#allocation12], 4
      %s1825 = int_to_ptr.vmem [resolvable:$true] %s1824
      %1827 = dma.vmem_to_hbm [thread:$0]  %s1825, 128, %s5, [#allocation5]
    $region53: #{encoder_forward.9} parent=1 // pred_fallthru
      _
    // Predicated region
    $region54: #{encoder_forward.9} parent=1 // pred_check
      _
    $region55: #{encoder_forward.9} parent=1 // pred_check_branch
      %1829 = sbr.rel (0) target = $region57
    $region56: #{encoder_forward.9} parent=1 // pred_region
      %1830 = dma.done [#allocation5], 128
    $region57: #{encoder_forward.9} parent=1 // pred_fallthru
      _
    %1831 = vsyncpa [#allocation4], 1
    %1832 = vsyncpa [#allocation7], 1
    %1833 = vsyncpa [#allocation10], 1
    %1834 = vsyncpa [#allocation5], 1

</llo_original>
